<compile_context>
chip_gen: v5e
topology: v5e:2x2
jax: 0.10.0
libtpu: 0.0.40
codegen_flags: <defaults>
</compile_context>

<pallas_src>
import functools

import jax
import jax.numpy as jnp
from jax.experimental import pallas as pl
from jax.experimental.pallas import tpu as pltpu


# ------------------------------- fused kernel -------------------------------

def _fused_forward_kernel(bs, C, HW, x_ref, wb_ref, bb_ref, w1_ref, b1_ref,
                          g_ref, be_ref, w2_ref, b2_ref, o_ref):
    rows = 3 * bs
    x = x_ref[...]                                            # (3*bs, C*HW) bf16

    # ---- backbone stand-in: per-channel global-avg-pool + tiny projection --
    # Pool over the HW lanes of each channel (aligned 256-lane slices), then
    # apply the (C, FEAT) projection as C scaled vector adds (no MXU pass).
    wb = wb_ref[...].astype(jnp.float32)                      # (C, FEAT)
    inv_hw = jnp.float32(1.0 / HW)
    feat = bb_ref[...]                                        # (1, FEAT) f32
    for c in range(C):
        pooled = jnp.sum(x[:, c * HW:(c + 1) * HW].astype(jnp.float32),
                         axis=-1, keepdims=True) * inv_hw     # (rows, 1)
        feat = feat + pooled * wb[c:c + 1, :]                 # -> (rows, FEAT)

    # ---- head: fc1 -> LayerNorm(1024) -> ReLU -> fc2 -> ReLU ---------------
    h = jnp.dot(feat.astype(jnp.bfloat16), w1_ref[...],
                preferred_element_type=jnp.float32) + b1_ref[...]   # (rows, 1024)
    mu = jnp.mean(h, axis=-1, keepdims=True)
    d = h - mu
    var = jnp.mean(d * d, axis=-1, keepdims=True)
    h = d * jax.lax.rsqrt(var + 1e-5) * g_ref[...] + be_ref[...]    # LayerNorm
    h = jnp.maximum(h, 0.0)                                         # ReLU
    # TODO(synk): Dropout(0.5) / Dropout(0.3) are identity in eval mode.
    h2 = jnp.dot(h.astype(jnp.bfloat16), w2_ref[...],
                 preferred_element_type=jnp.float32) + b2_ref[...]  # (rows, 512)
    f = jnp.maximum(h2, 0.0)                                        # ReLU

    # ---- cosine similarity (dim=1, eps=1e-8) --------------------------------
    # Sections are sublane-aligned (bs = multiple of 16), so static row slices
    # are cheap. rsqrt of the clamped product == PyTorch's x.y/max(|x||y|,eps).
    fp = f[0:bs]                                              # pos features
    fn = f[bs:2 * bs]                                         # neg features
    fm = f[2 * bs:3 * bs]                                     # mix features
    dp = jnp.sum(fp * fm, axis=-1, keepdims=True)
    dn = jnp.sum(fn * fm, axis=-1, keepdims=True)
    nsq_p = jnp.sum(fp * fp, axis=-1, keepdims=True)
    nsq_n = jnp.sum(fn * fn, axis=-1, keepdims=True)
    nsq_m = jnp.sum(fm * fm, axis=-1, keepdims=True)
    cos_p = dp * jax.lax.rsqrt(jnp.maximum(nsq_p * nsq_m, 1e-16))   # (bs, 1)
    cos_n = dn * jax.lax.rsqrt(jnp.maximum(nsq_n * nsq_m, 1e-16))   # (bs, 1)

    o_ref[...] = jnp.broadcast_to(jnp.concatenate([cos_p, cos_n], axis=0),
                                  o_ref.shape)                # lane-dense store


# ------------------------------- host wrapper --------------------------------

def _full_spec(shape):
    ndim = len(shape)
    return pl.BlockSpec(shape, lambda: (0,) * ndim)


@jax.jit
def model_forward(pos_img, neg_img, mix_img, params):
    B, C, H, W = pos_img.shape
    HW = H * W
    chw = C * HW
    bs = ((B + 15) // 16) * 16       # per-section rows; bf16 (16,128) pack

    def section(img):                # one bf16 pad per section, one concat
        flat = img.reshape(B, chw).astype(jnp.bfloat16)
        return jnp.pad(flat, ((0, bs - B), (0, 0)))

    x = jnp.concatenate([section(pos_img), section(neg_img), section(mix_img)],
                        axis=0)      # (3*bs, CHW) bf16, layout [pos|neg|mix]

    out_lanes = 128                  # one full lane group for the scalar results
    kernel = functools.partial(_fused_forward_kernel, bs, C, HW)

    out = pl.pallas_call(
        kernel,
        out_shape=jax.ShapeDtypeStruct((2 * bs, out_lanes), jnp.float32),
        in_specs=[_full_spec((3 * bs, chw)),
                  _full_spec(params["wb"].shape), _full_spec(params["bb"].shape),
                  _full_spec(params["w1"].shape), _full_spec(params["b1"].shape),
                  _full_spec(params["gamma"].shape), _full_spec(params["beta"].shape),
                  _full_spec(params["w2"].shape), _full_spec(params["b2"].shape)],
        out_specs=_full_spec((2 * bs, out_lanes)),
        compiler_params=pltpu.CompilerParams(vmem_limit_bytes=32 * 1024 * 1024),
    )(x, params["wb"], params["bb"], params["w1"], params["b1"],
      params["gamma"], params["beta"], params["w2"], params["b2"])

    pos_diff = out[0:B, 0]           # cos(pos, mix)
    neg_diff = out[bs:bs + B, 0]     # cos(neg, mix)
    return pos_diff, neg_diff


# ---------------------------------- driver -----------------------------------

if __name__ == "__main__":
    key = jax.random.PRNGKey(0)
    B, C, H, W = 2, 3, 16, 16       # small image shapes
    FEAT = 1024                     # backbone feature dim, padded 1000 -> 1024
    D1, D2 = 1024, 512

    keys = jax.random.split(key, 7)
    pos_img = jax.random.normal(keys[0], (B, C, H, W), jnp.float32)
    neg_img = jax.random.normal(keys[1], (B, C, H, W), jnp.float32)
    mix_img = jax.random.normal(keys[2], (B, C, H, W), jnp.float32)

    params = {
        # Backbone stand-in: tiny per-channel projection applied after the
        # in-kernel global average pool.
        "wb": jax.random.normal(keys[3], (C, FEAT), jnp.float32) * 0.1,
        "bb": jax.random.normal(keys[4], (1, FEAT), jnp.float32) * 0.01,
        # fc1: 1024 -> 1024 (bf16 weights, f32 accumulation)
        "w1": (jax.random.normal(keys[5], (FEAT, D1), jnp.float32)
               * (1.0 / FEAT ** 0.5)).astype(jnp.bfloat16),
        "b1": jnp.zeros((1, D1), jnp.float32),
        # LayerNorm(1024)
        "gamma": jnp.ones((1, D1), jnp.float32),
        "beta": jnp.zeros((1, D1), jnp.float32),
        # fc2: 1024 -> 512
        "w2": (jax.random.normal(keys[6], (D1, D2), jnp.float32)
               * (1.0 / D1 ** 0.5)).astype(jnp.bfloat16),
        "b2": jnp.zeros((1, D2), jnp.float32),
    }

    pos_diff, neg_diff = model_forward(pos_img, neg_img, mix_img, params)
    jax.block_until_ready((pos_diff, neg_diff))
    assert pos_diff.shape == (B,) and neg_diff.shape == (B,)
    assert bool(jnp.all(jnp.isfinite(pos_diff)))
    assert bool(jnp.all(jnp.isfinite(neg_diff)))
    print("KERNEL_OK")
</pallas_src>

<mosaic_0001>
module attributes {stable_mosaic.version = 11 : i64} {
  func.func @_fused_forward_kernel(%arg0: memref<48x768xbf16, #tpu.memory_space<vmem>>, %arg1: memref<3x1024xf32, #tpu.memory_space<vmem>>, %arg2: memref<1x1024xf32, #tpu.memory_space<vmem>>, %arg3: memref<1024x1024xbf16, #tpu.memory_space<vmem>>, %arg4: memref<1x1024xf32, #tpu.memory_space<vmem>>, %arg5: memref<1x1024xf32, #tpu.memory_space<vmem>>, %arg6: memref<1x1024xf32, #tpu.memory_space<vmem>>, %arg7: memref<1024x512xbf16, #tpu.memory_space<vmem>>, %arg8: memref<1x512xf32, #tpu.memory_space<vmem>>, %arg9: memref<32x128xf32, #tpu.memory_space<vmem>>) attributes {dimension_semantics = [], scalar_prefetch = 0 : i64, scratch_operands = 0 : i64, tpu.core_type = #tpu.core_type<tc>} {
    %c0 = arith.constant 0 : index
    %c0_0 = arith.constant 0 : index
    %0 = vector.load %arg0[%c0, %c0_0] : memref<48x768xbf16, #tpu.memory_space<vmem>>, vector<48x768xbf16>
    %c0_1 = arith.constant 0 : index
    %c0_2 = arith.constant 0 : index
    %1 = vector.load %arg1[%c0_1, %c0_2] : memref<3x1024xf32, #tpu.memory_space<vmem>>, vector<3x1024xf32>
    %c0_3 = arith.constant 0 : index
    %c0_4 = arith.constant 0 : index
    %2 = vector.load %arg2[%c0_3, %c0_4] : memref<1x1024xf32, #tpu.memory_space<vmem>>, vector<1x1024xf32>
    %3 = vector.extract_strided_slice %0 {offsets = [0, 0], sizes = [48, 256], strides = [1, 1]} : vector<48x768xbf16> to vector<48x256xbf16>
    %4 = arith.extf %3 : vector<48x256xbf16> to vector<48x256xf32>
    %cst = arith.constant dense<0.000000e+00> : vector<48xf32>
    %5 = vector.multi_reduction <add>, %4, %cst [1] : vector<48x256xf32> to vector<48xf32>
    %6 = vector.shape_cast %5 : vector<48xf32> to vector<48x1xf32>
    %cst_5 = arith.constant 3.906250e-03 : f32
    %7 = vector.broadcast %cst_5 : f32 to vector<48x1xf32>
    %8 = arith.mulf %6, %7 : vector<48x1xf32>
    %9 = vector.extract_strided_slice %1 {offsets = [0, 0], sizes = [1, 1024], strides = [1, 1]} : vector<3x1024xf32> to vector<1x1024xf32>
    %10 = vector.broadcast %8 : vector<48x1xf32> to vector<48x1024xf32>
    %11 = vector.broadcast %9 : vector<1x1024xf32> to vector<48x1024xf32>
    %12 = arith.mulf %10, %11 : vector<48x1024xf32>
    %13 = vector.broadcast %2 : vector<1x1024xf32> to vector<48x1024xf32>
    %14 = arith.addf %13, %12 : vector<48x1024xf32>
    %15 = vector.extract_strided_slice %0 {offsets = [0, 256], sizes = [48, 256], strides = [1, 1]} : vector<48x768xbf16> to vector<48x256xbf16>
    %16 = arith.extf %15 : vector<48x256xbf16> to vector<48x256xf32>
    %cst_6 = arith.constant dense<0.000000e+00> : vector<48xf32>
    %17 = vector.multi_reduction <add>, %16, %cst_6 [1] : vector<48x256xf32> to vector<48xf32>
    %18 = vector.shape_cast %17 : vector<48xf32> to vector<48x1xf32>
    %cst_7 = arith.constant 3.906250e-03 : f32
    %19 = vector.broadcast %cst_7 : f32 to vector<48x1xf32>
    %20 = arith.mulf %18, %19 : vector<48x1xf32>
    %21 = vector.extract_strided_slice %1 {offsets = [1, 0], sizes = [1, 1024], strides = [1, 1]} : vector<3x1024xf32> to vector<1x1024xf32>
    %22 = vector.broadcast %20 : vector<48x1xf32> to vector<48x1024xf32>
    %23 = vector.broadcast %21 : vector<1x1024xf32> to vector<48x1024xf32>
    %24 = arith.mulf %22, %23 : vector<48x1024xf32>
    %25 = arith.addf %14, %24 : vector<48x1024xf32>
    %26 = vector.extract_strided_slice %0 {offsets = [0, 512], sizes = [48, 256], strides = [1, 1]} : vector<48x768xbf16> to vector<48x256xbf16>
    %27 = arith.extf %26 : vector<48x256xbf16> to vector<48x256xf32>
    %cst_8 = arith.constant dense<0.000000e+00> : vector<48xf32>
    %28 = vector.multi_reduction <add>, %27, %cst_8 [1] : vector<48x256xf32> to vector<48xf32>
    %29 = vector.shape_cast %28 : vector<48xf32> to vector<48x1xf32>
    %cst_9 = arith.constant 3.906250e-03 : f32
    %30 = vector.broadcast %cst_9 : f32 to vector<48x1xf32>
    %31 = arith.mulf %29, %30 : vector<48x1xf32>
    %32 = vector.extract_strided_slice %1 {offsets = [2, 0], sizes = [1, 1024], strides = [1, 1]} : vector<3x1024xf32> to vector<1x1024xf32>
    %33 = vector.broadcast %31 : vector<48x1xf32> to vector<48x1024xf32>
    %34 = vector.broadcast %32 : vector<1x1024xf32> to vector<48x1024xf32>
    %35 = arith.mulf %33, %34 : vector<48x1024xf32>
    %36 = arith.addf %25, %35 : vector<48x1024xf32>
    %37 = arith.truncf %36 : vector<48x1024xf32> to vector<48x1024xbf16>
    %c0_10 = arith.constant 0 : index
    %c0_11 = arith.constant 0 : index
    %38 = vector.load %arg3[%c0_10, %c0_11] : memref<1024x1024xbf16, #tpu.memory_space<vmem>>, vector<1024x1024xbf16>
    %cst_12 = arith.constant dense<0.000000e+00> : vector<48x1024xf32>
    %39 = tpu.matmul %37, %38, %cst_12 {dimension_numbers = #tpu.dot_dimension_numbers<[1], [0], [0], [1], [0, 0, 1, 1], [], []>} : vector<48x1024xbf16>, vector<1024x1024xbf16>, vector<48x1024xf32> -> vector<48x1024xf32>
    %c0_13 = arith.constant 0 : index
    %c0_14 = arith.constant 0 : index
    %40 = vector.load %arg4[%c0_13, %c0_14] : memref<1x1024xf32, #tpu.memory_space<vmem>>, vector<1x1024xf32>
    %41 = vector.broadcast %40 : vector<1x1024xf32> to vector<48x1024xf32>
    %42 = arith.addf %39, %41 : vector<48x1024xf32>
    %cst_15 = arith.constant dense<0.000000e+00> : vector<48xf32>
    %43 = vector.multi_reduction <add>, %42, %cst_15 [1] : vector<48x1024xf32> to vector<48xf32>
    %44 = vector.shape_cast %43 : vector<48xf32> to vector<48x1xf32>
    %cst_16 = arith.constant 1.024000e+03 : f32
    %45 = vector.broadcast %cst_16 : f32 to vector<48x1xf32>
    %46 = arith.divf %44, %45 : vector<48x1xf32>
    %47 = vector.broadcast %46 : vector<48x1xf32> to vector<48x1024xf32>
    %48 = arith.subf %42, %47 : vector<48x1024xf32>
    %49 = arith.mulf %48, %48 : vector<48x1024xf32>
    %cst_17 = arith.constant dense<0.000000e+00> : vector<48xf32>
    %50 = vector.multi_reduction <add>, %49, %cst_17 [1] : vector<48x1024xf32> to vector<48xf32>
    %51 = vector.shape_cast %50 : vector<48xf32> to vector<48x1xf32>
    %cst_18 = arith.constant 1.024000e+03 : f32
    %52 = vector.broadcast %cst_18 : f32 to vector<48x1xf32>
    %53 = arith.divf %51, %52 : vector<48x1xf32>
    %cst_19 = arith.constant 9.99999974E-6 : f32
    %54 = vector.broadcast %cst_19 : f32 to vector<48x1xf32>
    %55 = arith.addf %53, %54 : vector<48x1xf32>
    %56 = math.rsqrt %55 : vector<48x1xf32>
    %57 = vector.broadcast %56 : vector<48x1xf32> to vector<48x1024xf32>
    %58 = arith.mulf %48, %57 : vector<48x1024xf32>
    %c0_20 = arith.constant 0 : index
    %c0_21 = arith.constant 0 : index
    %59 = vector.load %arg5[%c0_20, %c0_21] : memref<1x1024xf32, #tpu.memory_space<vmem>>, vector<1x1024xf32>
    %60 = vector.broadcast %59 : vector<1x1024xf32> to vector<48x1024xf32>
    %61 = arith.mulf %58, %60 : vector<48x1024xf32>
    %c0_22 = arith.constant 0 : index
    %c0_23 = arith.constant 0 : index
    %62 = vector.load %arg6[%c0_22, %c0_23] : memref<1x1024xf32, #tpu.memory_space<vmem>>, vector<1x1024xf32>
    %63 = vector.broadcast %62 : vector<1x1024xf32> to vector<48x1024xf32>
    %64 = arith.addf %61, %63 : vector<48x1024xf32>
    %cst_24 = arith.constant 0.000000e+00 : f32
    %65 = vector.broadcast %cst_24 : f32 to vector<48x1024xf32>
    %66 = arith.maximumf %64, %65 : vector<48x1024xf32>
    %67 = arith.truncf %66 : vector<48x1024xf32> to vector<48x1024xbf16>
    %c0_25 = arith.constant 0 : index
    %c0_26 = arith.constant 0 : index
    %68 = vector.load %arg7[%c0_25, %c0_26] : memref<1024x512xbf16, #tpu.memory_space<vmem>>, vector<1024x512xbf16>
    %cst_27 = arith.constant dense<0.000000e+00> : vector<48x512xf32>
    %69 = tpu.matmul %67, %68, %cst_27 {dimension_numbers = #tpu.dot_dimension_numbers<[1], [0], [0], [1], [0, 0, 1, 1], [], []>} : vector<48x1024xbf16>, vector<1024x512xbf16>, vector<48x512xf32> -> vector<48x512xf32>
    %c0_28 = arith.constant 0 : index
    %c0_29 = arith.constant 0 : index
    %70 = vector.load %arg8[%c0_28, %c0_29] : memref<1x512xf32, #tpu.memory_space<vmem>>, vector<1x512xf32>
    %71 = vector.broadcast %70 : vector<1x512xf32> to vector<48x512xf32>
    %72 = arith.addf %69, %71 : vector<48x512xf32>
    %cst_30 = arith.constant 0.000000e+00 : f32
    %73 = vector.broadcast %cst_30 : f32 to vector<48x512xf32>
    %74 = arith.maximumf %72, %73 : vector<48x512xf32>
    %75 = vector.extract_strided_slice %74 {offsets = [0, 0], sizes = [16, 512], strides = [1, 1]} : vector<48x512xf32> to vector<16x512xf32>
    %76 = vector.extract_strided_slice %74 {offsets = [16, 0], sizes = [16, 512], strides = [1, 1]} : vector<48x512xf32> to vector<16x512xf32>
    %77 = vector.extract_strided_slice %74 {offsets = [32, 0], sizes = [16, 512], strides = [1, 1]} : vector<48x512xf32> to vector<16x512xf32>
    %78 = arith.mulf %75, %77 : vector<16x512xf32>
    %cst_31 = arith.constant dense<0.000000e+00> : vector<16xf32>
    %79 = vector.multi_reduction <add>, %78, %cst_31 [1] : vector<16x512xf32> to vector<16xf32>
    %80 = vector.shape_cast %79 : vector<16xf32> to vector<16x1xf32>
    %81 = arith.mulf %76, %77 : vector<16x512xf32>
    %cst_32 = arith.constant dense<0.000000e+00> : vector<16xf32>
    %82 = vector.multi_reduction <add>, %81, %cst_32 [1] : vector<16x512xf32> to vector<16xf32>
    %83 = vector.shape_cast %82 : vector<16xf32> to vector<16x1xf32>
    %84 = arith.mulf %75, %75 : vector<16x512xf32>
    %cst_33 = arith.constant dense<0.000000e+00> : vector<16xf32>
    %85 = vector.multi_reduction <add>, %84, %cst_33 [1] : vector<16x512xf32> to vector<16xf32>
    %86 = vector.shape_cast %85 : vector<16xf32> to vector<16x1xf32>
    %87 = arith.mulf %76, %76 : vector<16x512xf32>
    %cst_34 = arith.constant dense<0.000000e+00> : vector<16xf32>
    %88 = vector.multi_reduction <add>, %87, %cst_34 [1] : vector<16x512xf32> to vector<16xf32>
    %89 = vector.shape_cast %88 : vector<16xf32> to vector<16x1xf32>
    %90 = arith.mulf %77, %77 : vector<16x512xf32>
    %cst_35 = arith.constant dense<0.000000e+00> : vector<16xf32>
    %91 = vector.multi_reduction <add>, %90, %cst_35 [1] : vector<16x512xf32> to vector<16xf32>
    %92 = vector.shape_cast %91 : vector<16xf32> to vector<16x1xf32>
    %93 = arith.mulf %86, %92 : vector<16x1xf32>
    %cst_36 = arith.constant 1.000000e-16 : f32
    %94 = vector.broadcast %cst_36 : f32 to vector<16x1xf32>
    %95 = arith.maximumf %93, %94 : vector<16x1xf32>
    %96 = math.rsqrt %95 : vector<16x1xf32>
    %97 = arith.mulf %80, %96 : vector<16x1xf32>
    %98 = arith.mulf %89, %92 : vector<16x1xf32>
    %cst_37 = arith.constant 1.000000e-16 : f32
    %99 = vector.broadcast %cst_37 : f32 to vector<16x1xf32>
    %100 = arith.maximumf %98, %99 : vector<16x1xf32>
    %101 = math.rsqrt %100 : vector<16x1xf32>
    %102 = arith.mulf %83, %101 : vector<16x1xf32>
    %103 = tpu.concatenate %97, %102 in 0 : vector<16x1xf32>, vector<16x1xf32> -> vector<32x1xf32>
    %104 = vector.shape_cast %103 : vector<32x1xf32> to vector<32x1xf32>
    %105 = vector.broadcast %104 : vector<32x1xf32> to vector<32x128xf32>
    %c0_38 = arith.constant 0 : index
    %c0_39 = arith.constant 0 : index
    %106 = vector.load %arg9[%c0_38, %c0_39] : memref<32x128xf32, #tpu.memory_space<vmem>>, vector<32x128xf32>
    tpu.vector_store %arg9[%c0_38, %c0_39], %105 {strides = array<i32>} : memref<32x128xf32, #tpu.memory_space<vmem>>, vector<32x128xf32>,
    return
  }
}

</mosaic_0001>

<llo_original>
// kernel: model_forward.1
$region0: #{model_forward.1}
  #allocation0 [shape = 'u32[]', space=smem, size = 0x4, offset = 0x4, fixed_abs, tag = 'smem constant byte address 0x4 - core index']
  #allocation1 [shape = 'u32[72,128]{1,0:T(1,128)}', space=vmem, size = 0x9000, scoped, tag = 'internal scratch']
  %s0 = inlined_call_operand.vmem [shape: bf16[48,768], index: 0, kind: input, shape index: {}]
  %s1 = inlined_call_operand.hbm [shape: f32[3,1024], index: 1, kind: input, shape index: {}]
  %s2 = inlined_call_operand.hbm [shape: f32[1,1024], index: 2, kind: input, shape index: {}]
  %s3 = inlined_call_operand.hbm [shape: bf16[1024,1024], index: 3, kind: input, shape index: {}]
  %s4 = inlined_call_operand.hbm [shape: f32[1,1024], index: 4, kind: input, shape index: {}]
  %s5 = inlined_call_operand.hbm [shape: f32[1,1024], index: 5, kind: input, shape index: {}]
  %s6 = inlined_call_operand.hbm [shape: f32[1,1024], index: 6, kind: input, shape index: {}]
  %s7 = inlined_call_operand.hbm [shape: bf16[1024,512], index: 7, kind: input, shape index: {}]
  %s8 = inlined_call_operand.hbm [shape: f32[1,512], index: 8, kind: input, shape index: {}]
  %s9 = inlined_call_operand.vmem [shape: f32[32,128], index: 9, kind: output, shape index: {}]
  %s10 = sld [smem:[#allocation0]]
  $region78: #{model_forward.1} parent=0
    _
  %s12 = ssub.s32 1, %s10
  %s13 = scalar_select 0, %s12, %s10
  $region1: #{model_forward.1} parent=0
    #allocation2 [shape = 'u8[16384]{0}', space=vmem, size = 0x4000, scoped, tag = 'input window, operand 1, single buffered']
    #allocation3 [shape = 's32[1]{0}', space=sflag, size = 0x4, scoped, tag = 'scoped memory for model_forward.1']
    #allocation4 [shape = 'u8[4096]{0}', space=vmem, size = 0x1000, scoped, tag = 'input window, operand 2, single buffered']
    #allocation5 [shape = 's32[1]{0}', space=sflag, size = 0x4, scoped, tag = 'scoped memory for model_forward.1']
    #allocation6 [shape = 'u8[2097152]{0}', space=vmem, size = 0x200000, scoped, tag = 'input window, operand 3, single buffered']
    #allocation7 [shape = 'u8[4096]{0}', space=vmem, size = 0x1000, scoped, tag = 'input window, operand 4, single buffered']
    #allocation8 [shape = 's32[1]{0}', space=sflag, size = 0x4, scoped, tag = 'scoped memory for model_forward.1']
    #allocation9 [shape = 'u8[4096]{0}', space=vmem, size = 0x1000, scoped, tag = 'input window, operand 5, single buffered']
    #allocation10 [shape = 'u8[4096]{0}', space=vmem, size = 0x1000, scoped, tag = 'input window, operand 6, single buffered']
    #allocation11 [shape = 's32[1]{0}', space=sflag, size = 0x4, scoped, tag = 'scoped memory for model_forward.1']
    #allocation12 [shape = 'u8[1048576]{0}', space=vmem, size = 0x100000, scoped, tag = 'input window, operand 7, single buffered']
    #allocation13 [shape = 'u8[2048]{0}', space=vmem, size = 0x800, scoped, tag = 'input window, operand 8, single buffered']
    #allocation14 [shape = 's32[1]{0}', space=sflag, size = 0x4, scoped, tag = 'scoped memory for model_forward.1']
    %14 = vsyncpa [#allocation3], 0
    %15 = vsyncpa [#allocation5], 0
    %16 = vsyncpa [#allocation8], 0
    %17 = vsyncpa [#allocation11], 0
    %18 = vsyncpa [#allocation14], 0
    // Predicated region
    $region2: #{model_forward.1} parent=1 // pred_check
      _
    $region3: #{model_forward.1} parent=1 // pred_check_branch
      %20 = sbr.rel (0) target = $region5
    $region4: #{model_forward.1} parent=1 // pred_region
      _
    $region5: #{model_forward.1} parent=1 // pred_fallthru
      _
    // Predicated region
    $region6: #{model_forward.1} parent=1 // pred_check
      _
    $region7: #{model_forward.1} parent=1 // pred_check_branch
      %22 = sbr.rel (0) target = $region9
    $region8: #{model_forward.1} parent=1 // pred_region
      %24 = vsyncadd [#allocation3], 0
      %s26 = sshll.u32 %s1, 4
      %s27 = int_to_ptr.hbm [resolvable:$true] %s26
      %s28 = sshll.u32 [#allocation2], 4
      %s29 = int_to_ptr.vmem [resolvable:$true] %s28
      %31 = dma.hbm_to_vmem [thread:$0]  %s27, 512, %s29, [#allocation3]
    $region9: #{model_forward.1} parent=1 // pred_fallthru
      _
    // Predicated region
    $region10: #{model_forward.1} parent=1 // pred_check
      _
    $region11: #{model_forward.1} parent=1 // pred_check_branch
      %33 = sbr.rel (0) target = $region13
    $region12: #{model_forward.1} parent=1 // pred_region
      %35 = vsyncadd [#allocation5], 0
      %s37 = sshll.u32 %s2, 4
      %s38 = int_to_ptr.hbm [resolvable:$true] %s37
      %s39 = sshll.u32 [#allocation4], 4
      %s40 = int_to_ptr.vmem [resolvable:$true] %s39
      %42 = dma.hbm_to_vmem [thread:$0]  %s38, 128, %s40, [#allocation5]
    $region13: #{model_forward.1} parent=1 // pred_fallthru
      _
    // Predicated region
    $region14: #{model_forward.1} parent=1 // pred_check
      _
    $region15: #{model_forward.1} parent=1 // pred_check_branch
      %44 = sbr.rel (0) target = $region17
    $region16: #{model_forward.1} parent=1 // pred_region
      %46 = vsyncadd [#allocation5], 0
      %s47 = sshll.u32 %s3, 4
      %s48 = int_to_ptr.hbm [resolvable:$true] %s47
      %s49 = sshll.u32 [#allocation6], 4
      %s50 = int_to_ptr.vmem [resolvable:$true] %s49
      %55 = dma.hbm_to_vmem [thread:$0]  %s48, 65536, %s50, [#allocation5], 512, 512, 32
    $region17: #{model_forward.1} parent=1 // pred_fallthru
      _
    // Predicated region
    $region18: #{model_forward.1} parent=1 // pred_check
      _
    $region19: #{model_forward.1} parent=1 // pred_check_branch
      %57 = sbr.rel (0) target = $region21
    $region20: #{model_forward.1} parent=1 // pred_region
      %59 = vsyncadd [#allocation8], 0
      %s61 = sshll.u32 %s4, 4
      %s62 = int_to_ptr.hbm [resolvable:$true] %s61
      %s63 = sshll.u32 [#allocation7], 4
      %s64 = int_to_ptr.vmem [resolvable:$true] %s63
      %66 = dma.hbm_to_vmem [thread:$0]  %s62, 128, %s64, [#allocation8]
    $region21: #{model_forward.1} parent=1 // pred_fallthru
      _
    // Predicated region
    $region22: #{model_forward.1} parent=1 // pred_check
      _
    $region23: #{model_forward.1} parent=1 // pred_check_branch
      %68 = sbr.rel (0) target = $region25
    $region24: #{model_forward.1} parent=1 // pred_region
      %70 = vsyncadd [#allocation8], 0
      %s72 = sshll.u32 %s5, 4
      %s73 = int_to_ptr.hbm [resolvable:$true] %s72
      %s74 = sshll.u32 [#allocation9], 4
      %s75 = int_to_ptr.vmem [resolvable:$true] %s74
      %77 = dma.hbm_to_vmem [thread:$0]  %s73, 128, %s75, [#allocation8]
    $region25: #{model_forward.1} parent=1 // pred_fallthru
      _
    // Predicated region
    $region26: #{model_forward.1} parent=1 // pred_check
      _
    $region27: #{model_forward.1} parent=1 // pred_check_branch
      %79 = sbr.rel (0) target = $region29
    $region28: #{model_forward.1} parent=1 // pred_region
      %81 = vsyncadd [#allocation11], 0
      %s83 = sshll.u32 %s6, 4
      %s84 = int_to_ptr.hbm [resolvable:$true] %s83
      %s85 = sshll.u32 [#allocation10], 4
      %s86 = int_to_ptr.vmem [resolvable:$true] %s85
      %88 = dma.hbm_to_vmem [thread:$0]  %s84, 128, %s86, [#allocation11]
    $region29: #{model_forward.1} parent=1 // pred_fallthru
      _
    // Predicated region
    $region30: #{model_forward.1} parent=1 // pred_check
      _
    $region31: #{model_forward.1} parent=1 // pred_check_branch
      %90 = sbr.rel (0) target = $region33
    $region32: #{model_forward.1} parent=1 // pred_region
      %92 = vsyncadd [#allocation11], 0
      %s93 = sshll.u32 %s7, 4
      %s94 = int_to_ptr.hbm [resolvable:$true] %s93
      %s95 = sshll.u32 [#allocation12], 4
      %s96 = int_to_ptr.vmem [resolvable:$true] %s95
      %101 = dma.hbm_to_vmem [thread:$0]  %s94, 32768, %s96, [#allocation11], 256, 256, 16
    $region33: #{model_forward.1} parent=1 // pred_fallthru
      _
    // Predicated region
    $region34: #{model_forward.1} parent=1 // pred_check
      _
    $region35: #{model_forward.1} parent=1 // pred_check_branch
      %103 = sbr.rel (0) target = $region37
    $region36: #{model_forward.1} parent=1 // pred_region
      %105 = vsyncadd [#allocation14], 0
      %s107 = sshll.u32 %s8, 4
      %s108 = int_to_ptr.hbm [resolvable:$true] %s107
      %s109 = sshll.u32 [#allocation13], 4
      %s110 = int_to_ptr.vmem [resolvable:$true] %s109
      %112 = dma.hbm_to_vmem [thread:$0]  %s108, 64, %s110, [#allocation14]
    $region37: #{model_forward.1} parent=1 // pred_fallthru
      _
    // Predicated region
    $region38: #{model_forward.1} parent=1 // pred_check
      _
    $region39: #{model_forward.1} parent=1 // pred_check_branch
      %114 = sbr.rel (0) target = $region41
    $region40: #{model_forward.1} parent=1 // pred_region
      %116 = dma.done [#allocation3], 512
    $region41: #{model_forward.1} parent=1 // pred_fallthru
      _
    // Predicated region
    $region42: #{model_forward.1} parent=1 // pred_check
      _
    $region43: #{model_forward.1} parent=1 // pred_check_branch
      %118 = sbr.rel (0) target = $region45
    $region44: #{model_forward.1} parent=1 // pred_region
      %120 = dma.done [#allocation5], 128
    $region45: #{model_forward.1} parent=1 // pred_fallthru
      _
    // Predicated region
    $region46: #{model_forward.1} parent=1 // pred_check
      _
    $region47: #{model_forward.1} parent=1 // pred_check_branch
      %122 = sbr.rel (0) target = $region49
    $region48: #{model_forward.1} parent=1 // pred_region
      %124 = dma.done [#allocation5], 65536
    $region49: #{model_forward.1} parent=1 // pred_fallthru
      _
    // Predicated region
    $region50: #{model_forward.1} parent=1 // pred_check
      _
    $region51: #{model_forward.1} parent=1 // pred_check_branch
      %126 = sbr.rel (0) target = $region53
    $region52: #{model_forward.1} parent=1 // pred_region
      %128 = dma.done [#allocation8], 128
    $region53: #{model_forward.1} parent=1 // pred_fallthru
      _
    // Predicated region
    $region54: #{model_forward.1} parent=1 // pred_check
      _
    $region55: #{model_forward.1} parent=1 // pred_check_branch
      %130 = sbr.rel (0) target = $region57
    $region56: #{model_forward.1} parent=1 // pred_region
      %132 = dma.done [#allocation8], 128
    $region57: #{model_forward.1} parent=1 // pred_fallthru
      _
    // Predicated region
    $region58: #{model_forward.1} parent=1 // pred_check
      _
    $region59: #{model_forward.1} parent=1 // pred_check_branch
      %134 = sbr.rel (0) target = $region61
    $region60: #{model_forward.1} parent=1 // pred_region
      %136 = dma.done [#allocation11], 128
    $region61: #{model_forward.1} parent=1 // pred_fallthru
      _
    // Predicated region
    $region62: #{model_forward.1} parent=1 // pred_check
      _
    $region63: #{model_forward.1} parent=1 // pred_check_branch
      %138 = sbr.rel (0) target = $region65
    $region64: #{model_forward.1} parent=1 // pred_region
      %140 = dma.done [#allocation11], 32768
    $region65: #{model_forward.1} parent=1 // pred_fallthru
      _
    // Predicated region
    $region66: #{model_forward.1} parent=1 // pred_check
      _
    $region67: #{model_forward.1} parent=1 // pred_check_branch
      %142 = sbr.rel (0) target = $region69
    $region68: #{model_forward.1} parent=1 // pred_region
      %144 = dma.done [#allocation14], 64
    $region69: #{model_forward.1} parent=1 // pred_fallthru
      _
    %v145 = vld [vmem:[%s0] sm:$0xff]
    %v146 = vld [vmem:[%s0 + $0x8] sm:$0xff]
    %v147 = vld [vmem:[%s0 + $0x10] sm:$0xff]
    %v148 = vld [vmem:[%s0 + $0x18] sm:$0xff]
    %v149 = vld [vmem:[%s0 + $0x20] sm:$0xff]
    %v150 = vld [vmem:[%s0 + $0x28] sm:$0xff]
    %v151 = vld [vmem:[%s0 + $0x30] sm:$0xff]
    %v152 = vld [vmem:[%s0 + $0x38] sm:$0xff]
    %v153 = vld [vmem:[%s0 + $0x40] sm:$0xff]
    %v154 = vld [vmem:[%s0 + $0x48] sm:$0xff]
    %v155 = vld [vmem:[%s0 + $0x50] sm:$0xff]
    %v156 = vld [vmem:[%s0 + $0x58] sm:$0xff]
    %v157 = vld [vmem:[%s0 + $0x60] sm:$0xff]
    %v158 = vld [vmem:[%s0 + $0x68] sm:$0xff]
    %v159 = vld [vmem:[%s0 + $0x70] sm:$0xff]
    %v160 = vld [vmem:[%s0 + $0x78] sm:$0xff]
    %v161 = vld [vmem:[%s0 + $0x80] sm:$0xff]
    %v162 = vld [vmem:[%s0 + $0x88] sm:$0xff]
    %v163 = vld [vmem:[#allocation2] sm:$0x77]
    %v164 = vld [vmem:[#allocation2 + $0x8] sm:$0x77]
    %v165 = vld [vmem:[#allocation2 + $0x10] sm:$0x77]
    %v166 = vld [vmem:[#allocation2 + $0x18] sm:$0x77]
    %v167 = vld [vmem:[#allocation4] sm:$0xff]
    %v168 = vunpack.c.l.bf16 %v145
    %v169 = vunpack.c.h.bf16 %v145
    %v170 = vunpack.c.l.bf16 %v148
    %v171 = vunpack.c.h.bf16 %v148
    %v172 = vunpack.c.l.bf16 %v151
    %v173 = vunpack.c.h.bf16 %v151
    %v174 = vunpack.c.l.bf16 %v154
    %v175 = vunpack.c.h.bf16 %v154
    %v176 = vunpack.c.l.bf16 %v157
    %v177 = vunpack.c.h.bf16 %v157
    %v178 = vunpack.c.l.bf16 %v160
    %v179 = vunpack.c.h.bf16 %v160
    %v180 = vadd.f32 %v168, %v169
    %181 = vadd.xlane.f32.xlu0 %v180
    %v182 = vpop.xlane.xlu0 %181
    %v183 = vadd.f32 %v170, %v171
    %184 = vadd.xlane.f32.xlu0 %v183
    %v185 = vpop.xlane.xlu0 %184
    %v186 = vadd.f32 %v172, %v173
    %187 = vadd.xlane.f32.xlu0 %v186
    %v188 = vpop.xlane.xlu0 %187
    %v189 = vadd.f32 %v174, %v175
    %190 = vadd.xlane.f32.xlu0 %v189
    %v191 = vpop.xlane.xlu0 %190
    %v192 = vadd.f32 %v176, %v177
    %193 = vadd.xlane.f32.xlu0 %v192
    %v194 = vpop.xlane.xlu0 %193
    %v195 = vadd.f32 %v178, %v179
    %196 = vadd.xlane.f32.xlu0 %v195
    %v197 = vpop.xlane.xlu0 %196
    %v198 = vmul.f32 %v182, 0.00390625
    %v199 = vmul.f32 %v185, 0.00390625
    %v200 = vmul.f32 %v188, 0.00390625
    %v201 = vmul.f32 %v191, 0.00390625
    %v202 = vmul.f32 %v194, 0.00390625
    %v203 = vmul.f32 %v197, 0.00390625
    %v208 = vperm.slane %v163, 0
    %v209 = vperm.slane %v163, 4
    %v210 = vperm.slane %v164, 0
    %v211 = vperm.slane %v164, 4
    %v212 = vperm.slane %v165, 0
    %v213 = vperm.slane %v165, 4
    %v214 = vperm.slane %v166, 0
    %v215 = vperm.slane %v166, 4
    %v224 = vperm.slane %v208, 0
    %v225 = vperm.slane %v209, 0
    %v226 = vperm.slane %v210, 0
    %v227 = vperm.slane %v211, 0
    %v228 = vperm.slane %v212, 0
    %v229 = vperm.slane %v213, 0
    %v230 = vperm.slane %v214, 0
    %v231 = vperm.slane %v215, 0
    %v232 = vmul.f32 %v198, %v224
    %v233 = vmul.f32 %v198, %v225
    %v234 = vmul.f32 %v198, %v226
    %v235 = vmul.f32 %v198, %v227
    %v236 = vmul.f32 %v198, %v228
    %v237 = vmul.f32 %v198, %v229
    %v238 = vmul.f32 %v198, %v230
    %v239 = vmul.f32 %v198, %v231
    %v240 = vmul.f32 %v199, %v224
    %v241 = vmul.f32 %v199, %v225
    %v242 = vmul.f32 %v199, %v226
    %v243 = vmul.f32 %v199, %v227
    %v244 = vmul.f32 %v199, %v228
    %v245 = vmul.f32 %v199, %v229
    %v246 = vmul.f32 %v199, %v230
    %v247 = vmul.f32 %v199, %v231
    %v248 = vmul.f32 %v200, %v224
    %v249 = vmul.f32 %v200, %v225
    %v250 = vmul.f32 %v200, %v226
    %v251 = vmul.f32 %v200, %v227
    %v252 = vmul.f32 %v200, %v228
    %v253 = vmul.f32 %v200, %v229
    %v254 = vmul.f32 %v200, %v230
    %v255 = vmul.f32 %v200, %v231
    %v256 = vmul.f32 %v201, %v224
    %v257 = vmul.f32 %v201, %v225
    %v258 = vmul.f32 %v201, %v226
    %v259 = vmul.f32 %v201, %v227
    %v260 = vmul.f32 %v201, %v228
    %v261 = vmul.f32 %v201, %v229
    %v262 = vmul.f32 %v201, %v230
    %v263 = vmul.f32 %v201, %v231
    %v264 = vmul.f32 %v202, %v224
    %v265 = vmul.f32 %v202, %v225
    %v266 = vmul.f32 %v202, %v226
    %v267 = vmul.f32 %v202, %v227
    %v268 = vmul.f32 %v202, %v228
    %v269 = vmul.f32 %v202, %v229
    %v270 = vmul.f32 %v202, %v230
    %v271 = vmul.f32 %v202, %v231
    %v272 = vmul.f32 %v203, %v224
    %v273 = vmul.f32 %v203, %v225
    %v274 = vmul.f32 %v203, %v226
    %v275 = vmul.f32 %v203, %v227
    %v276 = vmul.f32 %v203, %v228
    %v277 = vmul.f32 %v203, %v229
    %v278 = vmul.f32 %v203, %v230
    %v279 = vmul.f32 %v203, %v231
    %v281 = vperm.slane %v167, 0
    %v282 = vperm.slane %v167, 1
    %v283 = vperm.slane %v167, 2
    %v284 = vperm.slane %v167, 3
    %v285 = vperm.slane %v167, 4
    %v286 = vperm.slane %v167, 5
    %v287 = vperm.slane %v167, 6
    %v288 = vperm.slane %v167, 7
    %v297 = vadd.f32 %v281, %v232
    %v298 = vadd.f32 %v282, %v233
    %v299 = vadd.f32 %v283, %v234
    %v300 = vadd.f32 %v284, %v235
    %v301 = vadd.f32 %v285, %v236
    %v302 = vadd.f32 %v286, %v237
    %v303 = vadd.f32 %v287, %v238
    %v304 = vadd.f32 %v288, %v239
    %v305 = vadd.f32 %v281, %v240
    %v306 = vadd.f32 %v282, %v241
    %v307 = vadd.f32 %v283, %v242
    %v308 = vadd.f32 %v284, %v243
    %v309 = vadd.f32 %v285, %v244
    %v310 = vadd.f32 %v286, %v245
    %v311 = vadd.f32 %v287, %v246
    %v312 = vadd.f32 %v288, %v247
    %v313 = vadd.f32 %v281, %v248
    %v314 = vadd.f32 %v282, %v249
    %v315 = vadd.f32 %v283, %v250
    %v316 = vadd.f32 %v284, %v251
    %v317 = vadd.f32 %v285, %v252
    %v318 = vadd.f32 %v286, %v253
    %v319 = vadd.f32 %v287, %v254
    %v320 = vadd.f32 %v288, %v255
    %v321 = vadd.f32 %v281, %v256
    %v322 = vadd.f32 %v282, %v257
    %v323 = vadd.f32 %v283, %v258
    %v324 = vadd.f32 %v284, %v259
    %v325 = vadd.f32 %v285, %v260
    %v326 = vadd.f32 %v286, %v261
    %v327 = vadd.f32 %v287, %v262
    %v328 = vadd.f32 %v288, %v263
    %v329 = vadd.f32 %v281, %v264
    %v330 = vadd.f32 %v282, %v265
    %v331 = vadd.f32 %v283, %v266
    %v332 = vadd.f32 %v284, %v267
    %v333 = vadd.f32 %v285, %v268
    %v334 = vadd.f32 %v286, %v269
    %v335 = vadd.f32 %v287, %v270
    %v336 = vadd.f32 %v288, %v271
    %v337 = vadd.f32 %v281, %v272
    %v338 = vadd.f32 %v282, %v273
    %v339 = vadd.f32 %v283, %v274
    %v340 = vadd.f32 %v284, %v275
    %v341 = vadd.f32 %v285, %v276
    %v342 = vadd.f32 %v286, %v277
    %v343 = vadd.f32 %v287, %v278
    %v344 = vadd.f32 %v288, %v279
    %v345 = vunpack.c.l.bf16 %v146
    %v346 = vunpack.c.h.bf16 %v146
    %v347 = vunpack.c.l.bf16 %v149
    %v348 = vunpack.c.h.bf16 %v149
    %v349 = vunpack.c.l.bf16 %v152
    %v350 = vunpack.c.h.bf16 %v152
    %v351 = vunpack.c.l.bf16 %v155
    %v352 = vunpack.c.h.bf16 %v155
    %v353 = vunpack.c.l.bf16 %v158
    %v354 = vunpack.c.h.bf16 %v158
    %v355 = vunpack.c.l.bf16 %v161
    %v356 = vunpack.c.h.bf16 %v161
    %v357 = vadd.f32 %v345, %v346
    %358 = vadd.xlane.f32.xlu0 %v357
    %v359 = vpop.xlane.xlu0 %358
    %v360 = vadd.f32 %v347, %v348
    %361 = vadd.xlane.f32.xlu0 %v360
    %v362 = vpop.xlane.xlu0 %361
    %v363 = vadd.f32 %v349, %v350
    %364 = vadd.xlane.f32.xlu0 %v363
    %v365 = vpop.xlane.xlu0 %364
    %v366 = vadd.f32 %v351, %v352
    %367 = vadd.xlane.f32.xlu0 %v366
    %v368 = vpop.xlane.xlu0 %367
    %v369 = vadd.f32 %v353, %v354
    %370 = vadd.xlane.f32.xlu0 %v369
    %v371 = vpop.xlane.xlu0 %370
    %v372 = vadd.f32 %v355, %v356
    %373 = vadd.xlane.f32.xlu0 %v372
    %v374 = vpop.xlane.xlu0 %373
    %v375 = vmul.f32 %v359, 0.00390625
    %v376 = vmul.f32 %v362, 0.00390625
    %v377 = vmul.f32 %v365, 0.00390625
    %v378 = vmul.f32 %v368, 0.00390625
    %v379 = vmul.f32 %v371, 0.00390625
    %v380 = vmul.f32 %v374, 0.00390625
    %v381 = vperm.slane %v163, 1
    %v382 = vperm.slane %v163, 5
    %v383 = vperm.slane %v164, 1
    %v384 = vperm.slane %v164, 5
    %v385 = vperm.slane %v165, 1
    %v386 = vperm.slane %v165, 5
    %v387 = vperm.slane %v166, 1
    %v388 = vperm.slane %v166, 5
    %v397 = vperm.slane %v381, 1
    %v398 = vperm.slane %v382, 1
    %v399 = vperm.slane %v383, 1
    %v400 = vperm.slane %v384, 1
    %v401 = vperm.slane %v385, 1
    %v402 = vperm.slane %v386, 1
    %v403 = vperm.slane %v387, 1
    %v404 = vperm.slane %v388, 1
    %v405 = vmul.f32 %v375, %v397
    %v406 = vmul.f32 %v375, %v398
    %v407 = vmul.f32 %v375, %v399
    %v408 = vmul.f32 %v375, %v400
    %v409 = vmul.f32 %v375, %v401
    %v410 = vmul.f32 %v375, %v402
    %v411 = vmul.f32 %v375, %v403
    %v412 = vmul.f32 %v375, %v404
    %v413 = vmul.f32 %v376, %v397
    %v414 = vmul.f32 %v376, %v398
    %v415 = vmul.f32 %v376, %v399
    %v416 = vmul.f32 %v376, %v400
    %v417 = vmul.f32 %v376, %v401
    %v418 = vmul.f32 %v376, %v402
    %v419 = vmul.f32 %v376, %v403
    %v420 = vmul.f32 %v376, %v404
    %v421 = vmul.f32 %v377, %v397
    %v422 = vmul.f32 %v377, %v398
    %v423 = vmul.f32 %v377, %v399
    %v424 = vmul.f32 %v377, %v400
    %v425 = vmul.f32 %v377, %v401
    %v426 = vmul.f32 %v377, %v402
    %v427 = vmul.f32 %v377, %v403
    %v428 = vmul.f32 %v377, %v404
    %v429 = vmul.f32 %v378, %v397
    %v430 = vmul.f32 %v378, %v398
    %v431 = vmul.f32 %v378, %v399
    %v432 = vmul.f32 %v378, %v400
    %v433 = vmul.f32 %v378, %v401
    %v434 = vmul.f32 %v378, %v402
    %v435 = vmul.f32 %v378, %v403
    %v436 = vmul.f32 %v378, %v404
    %v437 = vmul.f32 %v379, %v397
    %v438 = vmul.f32 %v379, %v398
    %v439 = vmul.f32 %v379, %v399
    %v440 = vmul.f32 %v379, %v400
    %v441 = vmul.f32 %v379, %v401
    %v442 = vmul.f32 %v379, %v402
    %v443 = vmul.f32 %v379, %v403
    %v444 = vmul.f32 %v379, %v404
    %v445 = vmul.f32 %v380, %v397
    %v446 = vmul.f32 %v380, %v398
    %v447 = vmul.f32 %v380, %v399
    %v448 = vmul.f32 %v380, %v400
    %v449 = vmul.f32 %v380, %v401
    %v450 = vmul.f32 %v380, %v402
    %v451 = vmul.f32 %v380, %v403
    %v452 = vmul.f32 %v380, %v404
    %v453 = vadd.f32 %v297, %v405
    %v454 = vadd.f32 %v298, %v406
    %v455 = vadd.f32 %v299, %v407
    %v456 = vadd.f32 %v300, %v408
    %v457 = vadd.f32 %v301, %v409
    %v458 = vadd.f32 %v302, %v410
    %v459 = vadd.f32 %v303, %v411
    %v460 = vadd.f32 %v304, %v412
    %v461 = vadd.f32 %v305, %v413
    %v462 = vadd.f32 %v306, %v414
    %v463 = vadd.f32 %v307, %v415
    %v464 = vadd.f32 %v308, %v416
    %v465 = vadd.f32 %v309, %v417
    %v466 = vadd.f32 %v310, %v418
    %v467 = vadd.f32 %v311, %v419
    %v468 = vadd.f32 %v312, %v420
    %v469 = vadd.f32 %v313, %v421
    %v470 = vadd.f32 %v314, %v422
    %v471 = vadd.f32 %v315, %v423
    %v472 = vadd.f32 %v316, %v424
    %v473 = vadd.f32 %v317, %v425
    %v474 = vadd.f32 %v318, %v426
    %v475 = vadd.f32 %v319, %v427
    %v476 = vadd.f32 %v320, %v428
    %v477 = vadd.f32 %v321, %v429
    %v478 = vadd.f32 %v322, %v430
    %v479 = vadd.f32 %v323, %v431
    %v480 = vadd.f32 %v324, %v432
    %v481 = vadd.f32 %v325, %v433
    %v482 = vadd.f32 %v326, %v434
    %v483 = vadd.f32 %v327, %v435
    %v484 = vadd.f32 %v328, %v436
    %v485 = vadd.f32 %v329, %v437
    %v486 = vadd.f32 %v330, %v438
    %v487 = vadd.f32 %v331, %v439
    %v488 = vadd.f32 %v332, %v440
    %v489 = vadd.f32 %v333, %v441
    %v490 = vadd.f32 %v334, %v442
    %v491 = vadd.f32 %v335, %v443
    %v492 = vadd.f32 %v336, %v444
    %v493 = vadd.f32 %v337, %v445
    %v494 = vadd.f32 %v338, %v446
    %v495 = vadd.f32 %v339, %v447
    %v496 = vadd.f32 %v340, %v448
    %v497 = vadd.f32 %v341, %v449
    %v498 = vadd.f32 %v342, %v450
    %v499 = vadd.f32 %v343, %v451
    %v500 = vadd.f32 %v344, %v452
    %v501 = vunpack.c.l.bf16 %v147
    %v502 = vunpack.c.h.bf16 %v147
    %v503 = vunpack.c.l.bf16 %v150
    %v504 = vunpack.c.h.bf16 %v150
    %v505 = vunpack.c.l.bf16 %v153
    %v506 = vunpack.c.h.bf16 %v153
    %v507 = vunpack.c.l.bf16 %v156
    %v508 = vunpack.c.h.bf16 %v156
    %v509 = vunpack.c.l.bf16 %v159
    %v510 = vunpack.c.h.bf16 %v159
    %v511 = vunpack.c.l.bf16 %v162
    %v512 = vunpack.c.h.bf16 %v162
    %v513 = vadd.f32 %v501, %v502
    %514 = vadd.xlane.f32.xlu0 %v513
    %v515 = vpop.xlane.xlu0 %514
    %v516 = vadd.f32 %v503, %v504
    %517 = vadd.xlane.f32.xlu0 %v516
    %v518 = vpop.xlane.xlu0 %517
    %v519 = vadd.f32 %v505, %v506
    %520 = vadd.xlane.f32.xlu0 %v519
    %v521 = vpop.xlane.xlu0 %520
    %v522 = vadd.f32 %v507, %v508
    %523 = vadd.xlane.f32.xlu0 %v522
    %v524 = vpop.xlane.xlu0 %523
    %v525 = vadd.f32 %v509, %v510
    %526 = vadd.xlane.f32.xlu0 %v525
    %v527 = vpop.xlane.xlu0 %526
    %v528 = vadd.f32 %v511, %v512
    %529 = vadd.xlane.f32.xlu0 %v528
    %v530 = vpop.xlane.xlu0 %529
    %v531 = vmul.f32 %v515, 0.00390625
    %v532 = vmul.f32 %v518, 0.00390625
    %v533 = vmul.f32 %v521, 0.00390625
    %v534 = vmul.f32 %v524, 0.00390625
    %v535 = vmul.f32 %v527, 0.00390625
    %v536 = vmul.f32 %v530, 0.00390625
    %v537 = vperm.slane %v163, 2
    %v538 = vperm.slane %v163, 6
    %v539 = vperm.slane %v164, 2
    %v540 = vperm.slane %v164, 6
    %v541 = vperm.slane %v165, 2
    %v542 = vperm.slane %v165, 6
    %v543 = vperm.slane %v166, 2
    %v544 = vperm.slane %v166, 6
    %v553 = vperm.slane %v537, 2
    %v554 = vperm.slane %v538, 2
    %v555 = vperm.slane %v539, 2
    %v556 = vperm.slane %v540, 2
    %v557 = vperm.slane %v541, 2
    %v558 = vperm.slane %v542, 2
    %v559 = vperm.slane %v543, 2
    %v560 = vperm.slane %v544, 2
    %v561 = vmul.f32 %v531, %v553
    %v562 = vmul.f32 %v531, %v554
    %v563 = vmul.f32 %v531, %v555
    %v564 = vmul.f32 %v531, %v556
    %v565 = vmul.f32 %v531, %v557
    %v566 = vmul.f32 %v531, %v558
    %v567 = vmul.f32 %v531, %v559
    %v568 = vmul.f32 %v531, %v560
    %v569 = vmul.f32 %v532, %v553
    %v570 = vmul.f32 %v532, %v554
    %v571 = vmul.f32 %v532, %v555
    %v572 = vmul.f32 %v532, %v556
    %v573 = vmul.f32 %v532, %v557
    %v574 = vmul.f32 %v532, %v558
    %v575 = vmul.f32 %v532, %v559
    %v576 = vmul.f32 %v532, %v560
    %v577 = vmul.f32 %v533, %v553
    %v578 = vmul.f32 %v533, %v554
    %v579 = vmul.f32 %v533, %v555
    %v580 = vmul.f32 %v533, %v556
    %v581 = vmul.f32 %v533, %v557
    %v582 = vmul.f32 %v533, %v558
    %v583 = vmul.f32 %v533, %v559
    %v584 = vmul.f32 %v533, %v560
    %v585 = vmul.f32 %v534, %v553
    %v586 = vmul.f32 %v534, %v554
    %v587 = vmul.f32 %v534, %v555
    %v588 = vmul.f32 %v534, %v556
    %v589 = vmul.f32 %v534, %v557
    %v590 = vmul.f32 %v534, %v558
    %v591 = vmul.f32 %v534, %v559
    %v592 = vmul.f32 %v534, %v560
    %v593 = vmul.f32 %v535, %v553
    %v594 = vmul.f32 %v535, %v554
    %v595 = vmul.f32 %v535, %v555
    %v596 = vmul.f32 %v535, %v556
    %v597 = vmul.f32 %v535, %v557
    %v598 = vmul.f32 %v535, %v558
    %v599 = vmul.f32 %v535, %v559
    %v600 = vmul.f32 %v535, %v560
    %v601 = vmul.f32 %v536, %v553
    %v602 = vmul.f32 %v536, %v554
    %v603 = vmul.f32 %v536, %v555
    %v604 = vmul.f32 %v536, %v556
    %v605 = vmul.f32 %v536, %v557
    %v606 = vmul.f32 %v536, %v558
    %v607 = vmul.f32 %v536, %v559
    %v608 = vmul.f32 %v536, %v560
    %v609 = vadd.f32 %v453, %v561
    %v610 = vadd.f32 %v454, %v562
    %v611 = vadd.f32 %v455, %v563
    %v612 = vadd.f32 %v456, %v564
    %v613 = vadd.f32 %v457, %v565
    %v614 = vadd.f32 %v458, %v566
    %v615 = vadd.f32 %v459, %v567
    %v616 = vadd.f32 %v460, %v568
    %v617 = vadd.f32 %v461, %v569
    %v618 = vadd.f32 %v462, %v570
    %v619 = vadd.f32 %v463, %v571
    %v620 = vadd.f32 %v464, %v572
    %v621 = vadd.f32 %v465, %v573
    %v622 = vadd.f32 %v466, %v574
    %v623 = vadd.f32 %v467, %v575
    %v624 = vadd.f32 %v468, %v576
    %v625 = vadd.f32 %v469, %v577
    %v626 = vadd.f32 %v470, %v578
    %v627 = vadd.f32 %v471, %v579
    %v628 = vadd.f32 %v472, %v580
    %v629 = vadd.f32 %v473, %v581
    %v630 = vadd.f32 %v474, %v582
    %v631 = vadd.f32 %v475, %v583
    %v632 = vadd.f32 %v476, %v584
    %v633 = vadd.f32 %v477, %v585
    %v634 = vadd.f32 %v478, %v586
    %v635 = vadd.f32 %v479, %v587
    %v636 = vadd.f32 %v480, %v588
    %v637 = vadd.f32 %v481, %v589
    %v638 = vadd.f32 %v482, %v590
    %v639 = vadd.f32 %v483, %v591
    %v640 = vadd.f32 %v484, %v592
    %v641 = vadd.f32 %v485, %v593
    %v642 = vadd.f32 %v486, %v594
    %v643 = vadd.f32 %v487, %v595
    %v644 = vadd.f32 %v488, %v596
    %v645 = vadd.f32 %v489, %v597
    %v646 = vadd.f32 %v490, %v598
    %v647 = vadd.f32 %v491, %v599
    %v648 = vadd.f32 %v492, %v600
    %v649 = vadd.f32 %v493, %v601
    %v650 = vadd.f32 %v494, %v602
    %v651 = vadd.f32 %v495, %v603
    %v652 = vadd.f32 %v496, %v604
    %v653 = vadd.f32 %v497, %v605
    %v654 = vadd.f32 %v498, %v606
    %v655 = vadd.f32 %v499, %v607
    %v656 = vadd.f32 %v500, %v608
    %v657 = vpack.c.bf16 %v617, %v609
    %v658 = vpack.c.bf16 %v618, %v610
    %v659 = vpack.c.bf16 %v619, %v611
    %v660 = vpack.c.bf16 %v620, %v612
    %v661 = vpack.c.bf16 %v621, %v613
    %v662 = vpack.c.bf16 %v622, %v614
    %v663 = vpack.c.bf16 %v623, %v615
    %v664 = vpack.c.bf16 %v624, %v616
    %v665 = vpack.c.bf16 %v633, %v625
    %v666 = vpack.c.bf16 %v634, %v626
    %v667 = vpack.c.bf16 %v635, %v627
    %v668 = vpack.c.bf16 %v636, %v628
    %v669 = vpack.c.bf16 %v637, %v629
    %v670 = vpack.c.bf16 %v638, %v630
    %v671 = vpack.c.bf16 %v639, %v631
    %v672 = vpack.c.bf16 %v640, %v632
    %v673 = vpack.c.bf16 %v649, %v641
    %v674 = vpack.c.bf16 %v650, %v642
    %v675 = vpack.c.bf16 %v651, %v643
    %v676 = vpack.c.bf16 %v652, %v644
    %v677 = vpack.c.bf16 %v653, %v645
    %v678 = vpack.c.bf16 %v654, %v646
    %v679 = vpack.c.bf16 %v655, %v647
    %v680 = vpack.c.bf16 %v656, %v648
    %v681 = vld [vmem:[#allocation6] sm:$0xff]
    %v682 = vld [vmem:[#allocation6 + $0x8] sm:$0xff]
    %v683 = vld [vmem:[#allocation6 + $0x10] sm:$0xff]
    %v684 = vld [vmem:[#allocation6 + $0x18] sm:$0xff]
    %v685 = vld [vmem:[#allocation6 + $0x20] sm:$0xff]
    %v686 = vld [vmem:[#allocation6 + $0x28] sm:$0xff]
    %v687 = vld [vmem:[#allocation6 + $0x30] sm:$0xff]
    %v688 = vld [vmem:[#allocation6 + $0x38] sm:$0xff]
    %v689 = vld [vmem:[#allocation6 + $0x40] sm:$0xff]
    %v690 = vld [vmem:[#allocation6 + $0x48] sm:$0xff]
    %v691 = vld [vmem:[#allocation6 + $0x50] sm:$0xff]
    %v692 = vld [vmem:[#allocation6 + $0x58] sm:$0xff]
    %v693 = vld [vmem:[#allocation6 + $0x60] sm:$0xff]
    %v694 = vld [vmem:[#allocation6 + $0x68] sm:$0xff]
    %v695 = vld [vmem:[#allocation6 + $0x70] sm:$0xff]
    %v696 = vld [vmem:[#allocation6 + $0x78] sm:$0xff]
    %v697 = vld [vmem:[#allocation6 + $0x80] sm:$0xff]
    %v698 = vld [vmem:[#allocation6 + $0x88] sm:$0xff]
    %v699 = vld [vmem:[#allocation6 + $0x90] sm:$0xff]
    %v700 = vld [vmem:[#allocation6 + $0x98] sm:$0xff]
    %v701 = vld [vmem:[#allocation6 + $0xa0] sm:$0xff]
    %v702 = vld [vmem:[#allocation6 + $0xa8] sm:$0xff]
    %v703 = vld [vmem:[#allocation6 + $0xb0] sm:$0xff]
    %v704 = vld [vmem:[#allocation6 + $0xb8] sm:$0xff]
    %v705 = vld [vmem:[#allocation6 + $0xc0] sm:$0xff]
    %v706 = vld [vmem:[#allocation6 + $0xc8] sm:$0xff]
    %v707 = vld [vmem:[#allocation6 + $0xd0] sm:$0xff]
    %v708 = vld [vmem:[#allocation6 + $0xd8] sm:$0xff]
    %v709 = vld [vmem:[#allocation6 + $0xe0] sm:$0xff]
    %v710 = vld [vmem:[#allocation6 + $0xe8] sm:$0xff]
    %v711 = vld [vmem:[#allocation6 + $0xf0] sm:$0xff]
    %v712 = vld [vmem:[#allocation6 + $0xf8] sm:$0xff]
    %v713 = vld [vmem:[#allocation6 + $0x100] sm:$0xff]
    %v714 = vld [vmem:[#allocation6 + $0x108] sm:$0xff]
    %v715 = vld [vmem:[#allocation6 + $0x110] sm:$0xff]
    %v716 = vld [vmem:[#allocation6 + $0x118] sm:$0xff]
    %v717 = vld [vmem:[#allocation6 + $0x120] sm:$0xff]
    %v718 = vld [vmem:[#allocation6 + $0x128] sm:$0xff]
    %v719 = vld [vmem:[#allocation6 + $0x130] sm:$0xff]
    %v720 = vld [vmem:[#allocation6 + $0x138] sm:$0xff]
    %v721 = vld [vmem:[#allocation6 + $0x140] sm:$0xff]
    %v722 = vld [vmem:[#allocation6 + $0x148] sm:$0xff]
    %v723 = vld [vmem:[#allocation6 + $0x150] sm:$0xff]
    %v724 = vld [vmem:[#allocation6 + $0x158] sm:$0xff]
    %v725 = vld [vmem:[#allocation6 + $0x160] sm:$0xff]
    %v726 = vld [vmem:[#allocation6 + $0x168] sm:$0xff]
    %v727 = vld [vmem:[#allocation6 + $0x170] sm:$0xff]
    %v728 = vld [vmem:[#allocation6 + $0x178] sm:$0xff]
    %v729 = vld [vmem:[#allocation6 + $0x180] sm:$0xff]
    %v730 = vld [vmem:[#allocation6 + $0x188] sm:$0xff]
    %v731 = vld [vmem:[#allocation6 + $0x190] sm:$0xff]
    %v732 = vld [vmem:[#allocation6 + $0x198] sm:$0xff]
    %v733 = vld [vmem:[#allocation6 + $0x1a0] sm:$0xff]
    %v734 = vld [vmem:[#allocation6 + $0x1a8] sm:$0xff]
    %v735 = vld [vmem:[#allocation6 + $0x1b0] sm:$0xff]
    %v736 = vld [vmem:[#allocation6 + $0x1b8] sm:$0xff]
    %v737 = vld [vmem:[#allocation6 + $0x1c0] sm:$0xff]
    %v738 = vld [vmem:[#allocation6 + $0x1c8] sm:$0xff]
    %v739 = vld [vmem:[#allocation6 + $0x1d0] sm:$0xff]
    %v740 = vld [vmem:[#allocation6 + $0x1d8] sm:$0xff]
    %v741 = vld [vmem:[#allocation6 + $0x1e0] sm:$0xff]
    %v742 = vld [vmem:[#allocation6 + $0x1e8] sm:$0xff]
    %v743 = vld [vmem:[#allocation6 + $0x1f0] sm:$0xff]
    %v744 = vld [vmem:[#allocation6 + $0x1f8] sm:$0xff]
    %v745 = vld [vmem:[#allocation6 + $0x200] sm:$0xff]
    %v746 = vld [vmem:[#allocation6 + $0x208] sm:$0xff]
    %v747 = vld [vmem:[#allocation6 + $0x210] sm:$0xff]
    %v748 = vld [vmem:[#allocation6 + $0x218] sm:$0xff]
    %v749 = vld [vmem:[#allocation6 + $0x220] sm:$0xff]
    %v750 = vld [vmem:[#allocation6 + $0x228] sm:$0xff]
    %v751 = vld [vmem:[#allocation6 + $0x230] sm:$0xff]
    %v752 = vld [vmem:[#allocation6 + $0x238] sm:$0xff]
    %v753 = vld [vmem:[#allocation6 + $0x240] sm:$0xff]
    %v754 = vld [vmem:[#allocation6 + $0x248] sm:$0xff]
    %v755 = vld [vmem:[#allocation6 + $0x250] sm:$0xff]
    %v756 = vld [vmem:[#allocation6 + $0x258] sm:$0xff]
    %v757 = vld [vmem:[#allocation6 + $0x260] sm:$0xff]
    %v758 = vld [vmem:[#allocation6 + $0x268] sm:$0xff]
    %v759 = vld [vmem:[#allocation6 + $0x270] sm:$0xff]
    %v760 = vld [vmem:[#allocation6 + $0x278] sm:$0xff]
    %v761 = vld [vmem:[#allocation6 + $0x280] sm:$0xff]
    %v762 = vld [vmem:[#allocation6 + $0x288] sm:$0xff]
    %v763 = vld [vmem:[#allocation6 + $0x290] sm:$0xff]
    %v764 = vld [vmem:[#allocation6 + $0x298] sm:$0xff]
    %v765 = vld [vmem:[#allocation6 + $0x2a0] sm:$0xff]
    %v766 = vld [vmem:[#allocation6 + $0x2a8] sm:$0xff]
    %v767 = vld [vmem:[#allocation6 + $0x2b0] sm:$0xff]
    %v768 = vld [vmem:[#allocation6 + $0x2b8] sm:$0xff]
    %v769 = vld [vmem:[#allocation6 + $0x2c0] sm:$0xff]
    %v770 = vld [vmem:[#allocation6 + $0x2c8] sm:$0xff]
    %v771 = vld [vmem:[#allocation6 + $0x2d0] sm:$0xff]
    %v772 = vld [vmem:[#allocation6 + $0x2d8] sm:$0xff]
    %v773 = vld [vmem:[#allocation6 + $0x2e0] sm:$0xff]
    %v774 = vld [vmem:[#allocation6 + $0x2e8] sm:$0xff]
    %v775 = vld [vmem:[#allocation6 + $0x2f0] sm:$0xff]
    %v776 = vld [vmem:[#allocation6 + $0x2f8] sm:$0xff]
    %v777 = vld [vmem:[#allocation6 + $0x300] sm:$0xff]
    %v778 = vld [vmem:[#allocation6 + $0x308] sm:$0xff]
    %v779 = vld [vmem:[#allocation6 + $0x310] sm:$0xff]
    %v780 = vld [vmem:[#allocation6 + $0x318] sm:$0xff]
    %v781 = vld [vmem:[#allocation6 + $0x320] sm:$0xff]
    %v782 = vld [vmem:[#allocation6 + $0x328] sm:$0xff]
    %v783 = vld [vmem:[#allocation6 + $0x330] sm:$0xff]
    %v784 = vld [vmem:[#allocation6 + $0x338] sm:$0xff]
    %v785 = vld [vmem:[#allocation6 + $0x340] sm:$0xff]
    %v786 = vld [vmem:[#allocation6 + $0x348] sm:$0xff]
    %v787 = vld [vmem:[#allocation6 + $0x350] sm:$0xff]
    %v788 = vld [vmem:[#allocation6 + $0x358] sm:$0xff]
    %v789 = vld [vmem:[#allocation6 + $0x360] sm:$0xff]
    %v790 = vld [vmem:[#allocation6 + $0x368] sm:$0xff]
    %v791 = vld [vmem:[#allocation6 + $0x370] sm:$0xff]
    %v792 = vld [vmem:[#allocation6 + $0x378] sm:$0xff]
    %v793 = vld [vmem:[#allocation6 + $0x380] sm:$0xff]
    %v794 = vld [vmem:[#allocation6 + $0x388] sm:$0xff]
    %v795 = vld [vmem:[#allocation6 + $0x390] sm:$0xff]
    %v796 = vld [vmem:[#allocation6 + $0x398] sm:$0xff]
    %v797 = vld [vmem:[#allocation6 + $0x3a0] sm:$0xff]
    %v798 = vld [vmem:[#allocation6 + $0x3a8] sm:$0xff]
    %v799 = vld [vmem:[#allocation6 + $0x3b0] sm:$0xff]
    %v800 = vld [vmem:[#allocation6 + $0x3b8] sm:$0xff]
    %v801 = vld [vmem:[#allocation6 + $0x3c0] sm:$0xff]
    %v802 = vld [vmem:[#allocation6 + $0x3c8] sm:$0xff]
    %v803 = vld [vmem:[#allocation6 + $0x3d0] sm:$0xff]
    %v804 = vld [vmem:[#allocation6 + $0x3d8] sm:$0xff]
    %v805 = vld [vmem:[#allocation6 + $0x3e0] sm:$0xff]
    %v806 = vld [vmem:[#allocation6 + $0x3e8] sm:$0xff]
    %v807 = vld [vmem:[#allocation6 + $0x3f0] sm:$0xff]
    %v808 = vld [vmem:[#allocation6 + $0x3f8] sm:$0xff]
    %v809 = vld [vmem:[#allocation6 + $0x400] sm:$0xff]
    %v810 = vld [vmem:[#allocation6 + $0x408] sm:$0xff]
    %v811 = vld [vmem:[#allocation6 + $0x410] sm:$0xff]
    %v812 = vld [vmem:[#allocation6 + $0x418] sm:$0xff]
    %v813 = vld [vmem:[#allocation6 + $0x420] sm:$0xff]
    %v814 = vld [vmem:[#allocation6 + $0x428] sm:$0xff]
    %v815 = vld [vmem:[#allocation6 + $0x430] sm:$0xff]
    %v816 = vld [vmem:[#allocation6 + $0x438] sm:$0xff]
    %v817 = vld [vmem:[#allocation6 + $0x440] sm:$0xff]
    %v818 = vld [vmem:[#allocation6 + $0x448] sm:$0xff]
    %v819 = vld [vmem:[#allocation6 + $0x450] sm:$0xff]
    %v820 = vld [vmem:[#allocation6 + $0x458] sm:$0xff]
    %v821 = vld [vmem:[#allocation6 + $0x460] sm:$0xff]
    %v822 = vld [vmem:[#allocation6 + $0x468] sm:$0xff]
    %v823 = vld [vmem:[#allocation6 + $0x470] sm:$0xff]
    %v824 = vld [vmem:[#allocation6 + $0x478] sm:$0xff]
    %v825 = vld [vmem:[#allocation6 + $0x480] sm:$0xff]
    %v826 = vld [vmem:[#allocation6 + $0x488] sm:$0xff]
    %v827 = vld [vmem:[#allocation6 + $0x490] sm:$0xff]
    %v828 = vld [vmem:[#allocation6 + $0x498] sm:$0xff]
    %v829 = vld [vmem:[#allocation6 + $0x4a0] sm:$0xff]
    %v830 = vld [vmem:[#allocation6 + $0x4a8] sm:$0xff]
    %v831 = vld [vmem:[#allocation6 + $0x4b0] sm:$0xff]
    %v832 = vld [vmem:[#allocation6 + $0x4b8] sm:$0xff]
    %v833 = vld [vmem:[#allocation6 + $0x4c0] sm:$0xff]
    %v834 = vld [vmem:[#allocation6 + $0x4c8] sm:$0xff]
    %v835 = vld [vmem:[#allocation6 + $0x4d0] sm:$0xff]
    %v836 = vld [vmem:[#allocation6 + $0x4d8] sm:$0xff]
    %v837 = vld [vmem:[#allocation6 + $0x4e0] sm:$0xff]
    %v838 = vld [vmem:[#allocation6 + $0x4e8] sm:$0xff]
    %v839 = vld [vmem:[#allocation6 + $0x4f0] sm:$0xff]
    %v840 = vld [vmem:[#allocation6 + $0x4f8] sm:$0xff]
    %v841 = vld [vmem:[#allocation6 + $0x500] sm:$0xff]
    %v842 = vld [vmem:[#allocation6 + $0x508] sm:$0xff]
    %v843 = vld [vmem:[#allocation6 + $0x510] sm:$0xff]
    %v844 = vld [vmem:[#allocation6 + $0x518] sm:$0xff]
    %v845 = vld [vmem:[#allocation6 + $0x520] sm:$0xff]
    %v846 = vld [vmem:[#allocation6 + $0x528] sm:$0xff]
    %v847 = vld [vmem:[#allocation6 + $0x530] sm:$0xff]
    %v848 = vld [vmem:[#allocation6 + $0x538] sm:$0xff]
    %v849 = vld [vmem:[#allocation6 + $0x540] sm:$0xff]
    %v850 = vld [vmem:[#allocation6 + $0x548] sm:$0xff]
    %v851 = vld [vmem:[#allocation6 + $0x550] sm:$0xff]
    %v852 = vld [vmem:[#allocation6 + $0x558] sm:$0xff]
    %v853 = vld [vmem:[#allocation6 + $0x560] sm:$0xff]
    %v854 = vld [vmem:[#allocation6 + $0x568] sm:$0xff]
    %v855 = vld [vmem:[#allocation6 + $0x570] sm:$0xff]
    %v856 = vld [vmem:[#allocation6 + $0x578] sm:$0xff]
    %v857 = vld [vmem:[#allocation6 + $0x580] sm:$0xff]
    %v858 = vld [vmem:[#allocation6 + $0x588] sm:$0xff]
    %v859 = vld [vmem:[#allocation6 + $0x590] sm:$0xff]
    %v860 = vld [vmem:[#allocation6 + $0x598] sm:$0xff]
    %v861 = vld [vmem:[#allocation6 + $0x5a0] sm:$0xff]
    %v862 = vld [vmem:[#allocation6 + $0x5a8] sm:$0xff]
    %v863 = vld [vmem:[#allocation6 + $0x5b0] sm:$0xff]
    %v864 = vld [vmem:[#allocation6 + $0x5b8] sm:$0xff]
    %v865 = vld [vmem:[#allocation6 + $0x5c0] sm:$0xff]
    %v866 = vld [vmem:[#allocation6 + $0x5c8] sm:$0xff]
    %v867 = vld [vmem:[#allocation6 + $0x5d0] sm:$0xff]
    %v868 = vld [vmem:[#allocation6 + $0x5d8] sm:$0xff]
    %v869 = vld [vmem:[#allocation6 + $0x5e0] sm:$0xff]
    %v870 = vld [vmem:[#allocation6 + $0x5e8] sm:$0xff]
    %v871 = vld [vmem:[#allocation6 + $0x5f0] sm:$0xff]
    %v872 = vld [vmem:[#allocation6 + $0x5f8] sm:$0xff]
    %v873 = vld [vmem:[#allocation6 + $0x600] sm:$0xff]
    %v874 = vld [vmem:[#allocation6 + $0x608] sm:$0xff]
    %v875 = vld [vmem:[#allocation6 + $0x610] sm:$0xff]
    %v876 = vld [vmem:[#allocation6 + $0x618] sm:$0xff]
    %v877 = vld [vmem:[#allocation6 + $0x620] sm:$0xff]
    %v878 = vld [vmem:[#allocation6 + $0x628] sm:$0xff]
    %v879 = vld [vmem:[#allocation6 + $0x630] sm:$0xff]
    %v880 = vld [vmem:[#allocation6 + $0x638] sm:$0xff]
    %v881 = vld [vmem:[#allocation6 + $0x640] sm:$0xff]
    %v882 = vld [vmem:[#allocation6 + $0x648] sm:$0xff]
    %v883 = vld [vmem:[#allocation6 + $0x650] sm:$0xff]
    %v884 = vld [vmem:[#allocation6 + $0x658] sm:$0xff]
    %v885 = vld [vmem:[#allocation6 + $0x660] sm:$0xff]
    %v886 = vld [vmem:[#allocation6 + $0x668] sm:$0xff]
    %v887 = vld [vmem:[#allocation6 + $0x670] sm:$0xff]
    %v888 = vld [vmem:[#allocation6 + $0x678] sm:$0xff]
    %v889 = vld [vmem:[#allocation6 + $0x680] sm:$0xff]
    %v890 = vld [vmem:[#allocation6 + $0x688] sm:$0xff]
    %v891 = vld [vmem:[#allocation6 + $0x690] sm:$0xff]
    %v892 = vld [vmem:[#allocation6 + $0x698] sm:$0xff]
    %v893 = vld [vmem:[#allocation6 + $0x6a0] sm:$0xff]
    %v894 = vld [vmem:[#allocation6 + $0x6a8] sm:$0xff]
    %v895 = vld [vmem:[#allocation6 + $0x6b0] sm:$0xff]
    %v896 = vld [vmem:[#allocation6 + $0x6b8] sm:$0xff]
    %v897 = vld [vmem:[#allocation6 + $0x6c0] sm:$0xff]
    %v898 = vld [vmem:[#allocation6 + $0x6c8] sm:$0xff]
    %v899 = vld [vmem:[#allocation6 + $0x6d0] sm:$0xff]
    %v900 = vld [vmem:[#allocation6 + $0x6d8] sm:$0xff]
    %v901 = vld [vmem:[#allocation6 + $0x6e0] sm:$0xff]
    %v902 = vld [vmem:[#allocation6 + $0x6e8] sm:$0xff]
    %v903 = vld [vmem:[#allocation6 + $0x6f0] sm:$0xff]
    %v904 = vld [vmem:[#allocation6 + $0x6f8] sm:$0xff]
    %v905 = vld [vmem:[#allocation6 + $0x700] sm:$0xff]
    %v906 = vld [vmem:[#allocation6 + $0x708] sm:$0xff]
    %v907 = vld [vmem:[#allocation6 + $0x710] sm:$0xff]
    %v908 = vld [vmem:[#allocation6 + $0x718] sm:$0xff]
    %v909 = vld [vmem:[#allocation6 + $0x720] sm:$0xff]
    %v910 = vld [vmem:[#allocation6 + $0x728] sm:$0xff]
    %v911 = vld [vmem:[#allocation6 + $0x730] sm:$0xff]
    %v912 = vld [vmem:[#allocation6 + $0x738] sm:$0xff]
    %v913 = vld [vmem:[#allocation6 + $0x740] sm:$0xff]
    %v914 = vld [vmem:[#allocation6 + $0x748] sm:$0xff]
    %v915 = vld [vmem:[#allocation6 + $0x750] sm:$0xff]
    %v916 = vld [vmem:[#allocation6 + $0x758] sm:$0xff]
    %v917 = vld [vmem:[#allocation6 + $0x760] sm:$0xff]
    %v918 = vld [vmem:[#allocation6 + $0x768] sm:$0xff]
    %v919 = vld [vmem:[#allocation6 + $0x770] sm:$0xff]
    %v920 = vld [vmem:[#allocation6 + $0x778] sm:$0xff]
    %v921 = vld [vmem:[#allocation6 + $0x780] sm:$0xff]
    %v922 = vld [vmem:[#allocation6 + $0x788] sm:$0xff]
    %v923 = vld [vmem:[#allocation6 + $0x790] sm:$0xff]
    %v924 = vld [vmem:[#allocation6 + $0x798] sm:$0xff]
    %v925 = vld [vmem:[#allocation6 + $0x7a0] sm:$0xff]
    %v926 = vld [vmem:[#allocation6 + $0x7a8] sm:$0xff]
    %v927 = vld [vmem:[#allocation6 + $0x7b0] sm:$0xff]
    %v928 = vld [vmem:[#allocation6 + $0x7b8] sm:$0xff]
    %v929 = vld [vmem:[#allocation6 + $0x7c0] sm:$0xff]
    %v930 = vld [vmem:[#allocation6 + $0x7c8] sm:$0xff]
    %v931 = vld [vmem:[#allocation6 + $0x7d0] sm:$0xff]
    %v932 = vld [vmem:[#allocation6 + $0x7d8] sm:$0xff]
    %v933 = vld [vmem:[#allocation6 + $0x7e0] sm:$0xff]
    %v934 = vld [vmem:[#allocation6 + $0x7e8] sm:$0xff]
    %v935 = vld [vmem:[#allocation6 + $0x7f0] sm:$0xff]
    %v936 = vld [vmem:[#allocation6 + $0x7f8] sm:$0xff]
    %v937 = vld [vmem:[#allocation6 + $0x800] sm:$0xff]
    %v938 = vld [vmem:[#allocation6 + $0x808] sm:$0xff]
    %v939 = vld [vmem:[#allocation6 + $0x810] sm:$0xff]
    %v940 = vld [vmem:[#allocation6 + $0x818] sm:$0xff]
    %v941 = vld [vmem:[#allocation6 + $0x820] sm:$0xff]
    %v942 = vld [vmem:[#allocation6 + $0x828] sm:$0xff]
    %v943 = vld [vmem:[#allocation6 + $0x830] sm:$0xff]
    %v944 = vld [vmem:[#allocation6 + $0x838] sm:$0xff]
    %v945 = vld [vmem:[#allocation6 + $0x840] sm:$0xff]
    %v946 = vld [vmem:[#allocation6 + $0x848] sm:$0xff]
    %v947 = vld [vmem:[#allocation6 + $0x850] sm:$0xff]
    %v948 = vld [vmem:[#allocation6 + $0x858] sm:$0xff]
    %v949 = vld [vmem:[#allocation6 + $0x860] sm:$0xff]
    %v950 = vld [vmem:[#allocation6 + $0x868] sm:$0xff]
    %v951 = vld [vmem:[#allocation6 + $0x870] sm:$0xff]
    %v952 = vld [vmem:[#allocation6 + $0x878] sm:$0xff]
    %v953 = vld [vmem:[#allocation6 + $0x880] sm:$0xff]
    %v954 = vld [vmem:[#allocation6 + $0x888] sm:$0xff]
    %v955 = vld [vmem:[#allocation6 + $0x890] sm:$0xff]
    %v956 = vld [vmem:[#allocation6 + $0x898] sm:$0xff]
    %v957 = vld [vmem:[#allocation6 + $0x8a0] sm:$0xff]
    %v958 = vld [vmem:[#allocation6 + $0x8a8] sm:$0xff]
    %v959 = vld [vmem:[#allocation6 + $0x8b0] sm:$0xff]
    %v960 = vld [vmem:[#allocation6 + $0x8b8] sm:$0xff]
    %v961 = vld [vmem:[#allocation6 + $0x8c0] sm:$0xff]
    %v962 = vld [vmem:[#allocation6 + $0x8c8] sm:$0xff]
    %v963 = vld [vmem:[#allocation6 + $0x8d0] sm:$0xff]
    %v964 = vld [vmem:[#allocation6 + $0x8d8] sm:$0xff]
    %v965 = vld [vmem:[#allocation6 + $0x8e0] sm:$0xff]
    %v966 = vld [vmem:[#allocation6 + $0x8e8] sm:$0xff]
    %v967 = vld [vmem:[#allocation6 + $0x8f0] sm:$0xff]
    %v968 = vld [vmem:[#allocation6 + $0x8f8] sm:$0xff]
    %v969 = vld [vmem:[#allocation6 + $0x900] sm:$0xff]
    %v970 = vld [vmem:[#allocation6 + $0x908] sm:$0xff]
    %v971 = vld [vmem:[#allocation6 + $0x910] sm:$0xff]
    %v972 = vld [vmem:[#allocation6 + $0x918] sm:$0xff]
    %v973 = vld [vmem:[#allocation6 + $0x920] sm:$0xff]
    %v974 = vld [vmem:[#allocation6 + $0x928] sm:$0xff]
    %v975 = vld [vmem:[#allocation6 + $0x930] sm:$0xff]
    %v976 = vld [vmem:[#allocation6 + $0x938] sm:$0xff]
    %v977 = vld [vmem:[#allocation6 + $0x940] sm:$0xff]
    %v978 = vld [vmem:[#allocation6 + $0x948] sm:$0xff]
    %v979 = vld [vmem:[#allocation6 + $0x950] sm:$0xff]
    %v980 = vld [vmem:[#allocation6 + $0x958] sm:$0xff]
    %v981 = vld [vmem:[#allocation6 + $0x960] sm:$0xff]
    %v982 = vld [vmem:[#allocation6 + $0x968] sm:$0xff]
    %v983 = vld [vmem:[#allocation6 + $0x970] sm:$0xff]
    %v984 = vld [vmem:[#allocation6 + $0x978] sm:$0xff]
    %v985 = vld [vmem:[#allocation6 + $0x980] sm:$0xff]
    %v986 = vld [vmem:[#allocation6 + $0x988] sm:$0xff]
    %v987 = vld [vmem:[#allocation6 + $0x990] sm:$0xff]
    %v988 = vld [vmem:[#allocation6 + $0x998] sm:$0xff]
    %v989 = vld [vmem:[#allocation6 + $0x9a0] sm:$0xff]
    %v990 = vld [vmem:[#allocation6 + $0x9a8] sm:$0xff]
    %v991 = vld [vmem:[#allocation6 + $0x9b0] sm:$0xff]
    %v992 = vld [vmem:[#allocation6 + $0x9b8] sm:$0xff]
    %v993 = vld [vmem:[#allocation6 + $0x9c0] sm:$0xff]
    %v994 = vld [vmem:[#allocation6 + $0x9c8] sm:$0xff]
    %v995 = vld [vmem:[#allocation6 + $0x9d0] sm:$0xff]
    %v996 = vld [vmem:[#allocation6 + $0x9d8] sm:$0xff]
    %v997 = vld [vmem:[#allocation6 + $0x9e0] sm:$0xff]
    %v998 = vld [vmem:[#allocation6 + $0x9e8] sm:$0xff]
    %v999 = vld [vmem:[#allocation6 + $0x9f0] sm:$0xff]
    %v1000 = vld [vmem:[#allocation6 + $0x9f8] sm:$0xff]
    %v1001 = vld [vmem:[#allocation6 + $0xa00] sm:$0xff]
    %v1002 = vld [vmem:[#allocation6 + $0xa08] sm:$0xff]
    %v1003 = vld [vmem:[#allocation6 + $0xa10] sm:$0xff]
    %v1004 = vld [vmem:[#allocation6 + $0xa18] sm:$0xff]
    %v1005 = vld [vmem:[#allocation6 + $0xa20] sm:$0xff]
    %v1006 = vld [vmem:[#allocation6 + $0xa28] sm:$0xff]
    %v1007 = vld [vmem:[#allocation6 + $0xa30] sm:$0xff]
    %v1008 = vld [vmem:[#allocation6 + $0xa38] sm:$0xff]
    %v1009 = vld [vmem:[#allocation6 + $0xa40] sm:$0xff]
    %v1010 = vld [vmem:[#allocation6 + $0xa48] sm:$0xff]
    %v1011 = vld [vmem:[#allocation6 + $0xa50] sm:$0xff]
    %v1012 = vld [vmem:[#allocation6 + $0xa58] sm:$0xff]
    %v1013 = vld [vmem:[#allocation6 + $0xa60] sm:$0xff]
    %v1014 = vld [vmem:[#allocation6 + $0xa68] sm:$0xff]
    %v1015 = vld [vmem:[#allocation6 + $0xa70] sm:$0xff]
    %v1016 = vld [vmem:[#allocation6 + $0xa78] sm:$0xff]
    %v1017 = vld [vmem:[#allocation6 + $0xa80] sm:$0xff]
    %v1018 = vld [vmem:[#allocation6 + $0xa88] sm:$0xff]
    %v1019 = vld [vmem:[#allocation6 + $0xa90] sm:$0xff]
    %v1020 = vld [vmem:[#allocation6 + $0xa98] sm:$0xff]
    %v1021 = vld [vmem:[#allocation6 + $0xaa0] sm:$0xff]
    %v1022 = vld [vmem:[#allocation6 + $0xaa8] sm:$0xff]
    %v1023 = vld [vmem:[#allocation6 + $0xab0] sm:$0xff]
    %v1024 = vld [vmem:[#allocation6 + $0xab8] sm:$0xff]
    %v1025 = vld [vmem:[#allocation6 + $0xac0] sm:$0xff]
    %v1026 = vld [vmem:[#allocation6 + $0xac8] sm:$0xff]
    %v1027 = vld [vmem:[#allocation6 + $0xad0] sm:$0xff]
    %v1028 = vld [vmem:[#allocation6 + $0xad8] sm:$0xff]
    %v1029 = vld [vmem:[#allocation6 + $0xae0] sm:$0xff]
    %v1030 = vld [vmem:[#allocation6 + $0xae8] sm:$0xff]
    %v1031 = vld [vmem:[#allocation6 + $0xaf0] sm:$0xff]
    %v1032 = vld [vmem:[#allocation6 + $0xaf8] sm:$0xff]
    %v1033 = vld [vmem:[#allocation6 + $0xb00] sm:$0xff]
    %v1034 = vld [vmem:[#allocation6 + $0xb08] sm:$0xff]
    %v1035 = vld [vmem:[#allocation6 + $0xb10] sm:$0xff]
    %v1036 = vld [vmem:[#allocation6 + $0xb18] sm:$0xff]
    %v1037 = vld [vmem:[#allocation6 + $0xb20] sm:$0xff]
    %v1038 = vld [vmem:[#allocation6 + $0xb28] sm:$0xff]
    %v1039 = vld [vmem:[#allocation6 + $0xb30] sm:$0xff]
    %v1040 = vld [vmem:[#allocation6 + $0xb38] sm:$0xff]
    %v1041 = vld [vmem:[#allocation6 + $0xb40] sm:$0xff]
    %v1042 = vld [vmem:[#allocation6 + $0xb48] sm:$0xff]
    %v1043 = vld [vmem:[#allocation6 + $0xb50] sm:$0xff]
    %v1044 = vld [vmem:[#allocation6 + $0xb58] sm:$0xff]
    %v1045 = vld [vmem:[#allocation6 + $0xb60] sm:$0xff]
    %v1046 = vld [vmem:[#allocation6 + $0xb68] sm:$0xff]
    %v1047 = vld [vmem:[#allocation6 + $0xb70] sm:$0xff]
    %v1048 = vld [vmem:[#allocation6 + $0xb78] sm:$0xff]
    %v1049 = vld [vmem:[#allocation6 + $0xb80] sm:$0xff]
    %v1050 = vld [vmem:[#allocation6 + $0xb88] sm:$0xff]
    %v1051 = vld [vmem:[#allocation6 + $0xb90] sm:$0xff]
    %v1052 = vld [vmem:[#allocation6 + $0xb98] sm:$0xff]
    %v1053 = vld [vmem:[#allocation6 + $0xba0] sm:$0xff]
    %v1054 = vld [vmem:[#allocation6 + $0xba8] sm:$0xff]
    %v1055 = vld [vmem:[#allocation6 + $0xbb0] sm:$0xff]
    %v1056 = vld [vmem:[#allocation6 + $0xbb8] sm:$0xff]
    %v1057 = vld [vmem:[#allocation6 + $0xbc0] sm:$0xff]
    %v1058 = vld [vmem:[#allocation6 + $0xbc8] sm:$0xff]
    %v1059 = vld [vmem:[#allocation6 + $0xbd0] sm:$0xff]
    %v1060 = vld [vmem:[#allocation6 + $0xbd8] sm:$0xff]
    %v1061 = vld [vmem:[#allocation6 + $0xbe0] sm:$0xff]
    %v1062 = vld [vmem:[#allocation6 + $0xbe8] sm:$0xff]
    %v1063 = vld [vmem:[#allocation6 + $0xbf0] sm:$0xff]
    %v1064 = vld [vmem:[#allocation6 + $0xbf8] sm:$0xff]
    %v1065 = vld [vmem:[#allocation6 + $0xc00] sm:$0xff]
    %v1066 = vld [vmem:[#allocation6 + $0xc08] sm:$0xff]
    %v1067 = vld [vmem:[#allocation6 + $0xc10] sm:$0xff]
    %v1068 = vld [vmem:[#allocation6 + $0xc18] sm:$0xff]
    %v1069 = vld [vmem:[#allocation6 + $0xc20] sm:$0xff]
    %v1070 = vld [vmem:[#allocation6 + $0xc28] sm:$0xff]
    %v1071 = vld [vmem:[#allocation6 + $0xc30] sm:$0xff]
    %v1072 = vld [vmem:[#allocation6 + $0xc38] sm:$0xff]
    %v1073 = vld [vmem:[#allocation6 + $0xc40] sm:$0xff]
    %v1074 = vld [vmem:[#allocation6 + $0xc48] sm:$0xff]
    %v1075 = vld [vmem:[#allocation6 + $0xc50] sm:$0xff]
    %v1076 = vld [vmem:[#allocation6 + $0xc58] sm:$0xff]
    %v1077 = vld [vmem:[#allocation6 + $0xc60] sm:$0xff]
    %v1078 = vld [vmem:[#allocation6 + $0xc68] sm:$0xff]
    %v1079 = vld [vmem:[#allocation6 + $0xc70] sm:$0xff]
    %v1080 = vld [vmem:[#allocation6 + $0xc78] sm:$0xff]
    %v1081 = vld [vmem:[#allocation6 + $0xc80] sm:$0xff]
    %v1082 = vld [vmem:[#allocation6 + $0xc88] sm:$0xff]
    %v1083 = vld [vmem:[#allocation6 + $0xc90] sm:$0xff]
    %v1084 = vld [vmem:[#allocation6 + $0xc98] sm:$0xff]
    %v1085 = vld [vmem:[#allocation6 + $0xca0] sm:$0xff]
    %v1086 = vld [vmem:[#allocation6 + $0xca8] sm:$0xff]
    %v1087 = vld [vmem:[#allocation6 + $0xcb0] sm:$0xff]
    %v1088 = vld [vmem:[#allocation6 + $0xcb8] sm:$0xff]
    %v1089 = vld [vmem:[#allocation6 + $0xcc0] sm:$0xff]
    %v1090 = vld [vmem:[#allocation6 + $0xcc8] sm:$0xff]
    %v1091 = vld [vmem:[#allocation6 + $0xcd0] sm:$0xff]
    %v1092 = vld [vmem:[#allocation6 + $0xcd8] sm:$0xff]
    %v1093 = vld [vmem:[#allocation6 + $0xce0] sm:$0xff]
    %v1094 = vld [vmem:[#allocation6 + $0xce8] sm:$0xff]
    %v1095 = vld [vmem:[#allocation6 + $0xcf0] sm:$0xff]
    %v1096 = vld [vmem:[#allocation6 + $0xcf8] sm:$0xff]
    %v1097 = vld [vmem:[#allocation6 + $0xd00] sm:$0xff]
    %v1098 = vld [vmem:[#allocation6 + $0xd08] sm:$0xff]
    %v1099 = vld [vmem:[#allocation6 + $0xd10] sm:$0xff]
    %v1100 = vld [vmem:[#allocation6 + $0xd18] sm:$0xff]
    %v1101 = vld [vmem:[#allocation6 + $0xd20] sm:$0xff]
    %v1102 = vld [vmem:[#allocation6 + $0xd28] sm:$0xff]
    %v1103 = vld [vmem:[#allocation6 + $0xd30] sm:$0xff]
    %v1104 = vld [vmem:[#allocation6 + $0xd38] sm:$0xff]
    %v1105 = vld [vmem:[#allocation6 + $0xd40] sm:$0xff]
    %v1106 = vld [vmem:[#allocation6 + $0xd48] sm:$0xff]
    %v1107 = vld [vmem:[#allocation6 + $0xd50] sm:$0xff]
    %v1108 = vld [vmem:[#allocation6 + $0xd58] sm:$0xff]
    %v1109 = vld [vmem:[#allocation6 + $0xd60] sm:$0xff]
    %v1110 = vld [vmem:[#allocation6 + $0xd68] sm:$0xff]
    %v1111 = vld [vmem:[#allocation6 + $0xd70] sm:$0xff]
    %v1112 = vld [vmem:[#allocation6 + $0xd78] sm:$0xff]
    %v1113 = vld [vmem:[#allocation6 + $0xd80] sm:$0xff]
    %v1114 = vld [vmem:[#allocation6 + $0xd88] sm:$0xff]
    %v1115 = vld [vmem:[#allocation6 + $0xd90] sm:$0xff]
    %v1116 = vld [vmem:[#allocation6 + $0xd98] sm:$0xff]
    %v1117 = vld [vmem:[#allocation6 + $0xda0] sm:$0xff]
    %v1118 = vld [vmem:[#allocation6 + $0xda8] sm:$0xff]
    %v1119 = vld [vmem:[#allocation6 + $0xdb0] sm:$0xff]
    %v1120 = vld [vmem:[#allocation6 + $0xdb8] sm:$0xff]
    %v1121 = vld [vmem:[#allocation6 + $0xdc0] sm:$0xff]
    %v1122 = vld [vmem:[#allocation6 + $0xdc8] sm:$0xff]
    %v1123 = vld [vmem:[#allocation6 + $0xdd0] sm:$0xff]
    %v1124 = vld [vmem:[#allocation6 + $0xdd8] sm:$0xff]
    %v1125 = vld [vmem:[#allocation6 + $0xde0] sm:$0xff]
    %v1126 = vld [vmem:[#allocation6 + $0xde8] sm:$0xff]
    %v1127 = vld [vmem:[#allocation6 + $0xdf0] sm:$0xff]
    %v1128 = vld [vmem:[#allocation6 + $0xdf8] sm:$0xff]
    %v1129 = vld [vmem:[#allocation6 + $0xe00] sm:$0xff]
    %v1130 = vld [vmem:[#allocation6 + $0xe08] sm:$0xff]
    %v1131 = vld [vmem:[#allocation6 + $0xe10] sm:$0xff]
    %v1132 = vld [vmem:[#allocation6 + $0xe18] sm:$0xff]
    %v1133 = vld [vmem:[#allocation6 + $0xe20] sm:$0xff]
    %v1134 = vld [vmem:[#allocation6 + $0xe28] sm:$0xff]
    %v1135 = vld [vmem:[#allocation6 + $0xe30] sm:$0xff]
    %v1136 = vld [vmem:[#allocation6 + $0xe38] sm:$0xff]
    %v1137 = vld [vmem:[#allocation6 + $0xe40] sm:$0xff]
    %v1138 = vld [vmem:[#allocation6 + $0xe48] sm:$0xff]
    %v1139 = vld [vmem:[#allocation6 + $0xe50] sm:$0xff]
    %v1140 = vld [vmem:[#allocation6 + $0xe58] sm:$0xff]
    %v1141 = vld [vmem:[#allocation6 + $0xe60] sm:$0xff]
    %v1142 = vld [vmem:[#allocation6 + $0xe68] sm:$0xff]
    %v1143 = vld [vmem:[#allocation6 + $0xe70] sm:$0xff]
    %v1144 = vld [vmem:[#allocation6 + $0xe78] sm:$0xff]
    %v1145 = vld [vmem:[#allocation6 + $0xe80] sm:$0xff]
    %v1146 = vld [vmem:[#allocation6 + $0xe88] sm:$0xff]
    %v1147 = vld [vmem:[#allocation6 + $0xe90] sm:$0xff]
    %v1148 = vld [vmem:[#allocation6 + $0xe98] sm:$0xff]
    %v1149 = vld [vmem:[#allocation6 + $0xea0] sm:$0xff]
    %v1150 = vld [vmem:[#allocation6 + $0xea8] sm:$0xff]
    %v1151 = vld [vmem:[#allocation6 + $0xeb0] sm:$0xff]
    %v1152 = vld [vmem:[#allocation6 + $0xeb8] sm:$0xff]
    %v1153 = vld [vmem:[#allocation6 + $0xec0] sm:$0xff]
    %v1154 = vld [vmem:[#allocation6 + $0xec8] sm:$0xff]
    %v1155 = vld [vmem:[#allocation6 + $0xed0] sm:$0xff]
    %v1156 = vld [vmem:[#allocation6 + $0xed8] sm:$0xff]
    %v1157 = vld [vmem:[#allocation6 + $0xee0] sm:$0xff]
    %v1158 = vld [vmem:[#allocation6 + $0xee8] sm:$0xff]
    %v1159 = vld [vmem:[#allocation6 + $0xef0] sm:$0xff]
    %v1160 = vld [vmem:[#allocation6 + $0xef8] sm:$0xff]
    %v1161 = vld [vmem:[#allocation6 + $0xf00] sm:$0xff]
    %v1162 = vld [vmem:[#allocation6 + $0xf08] sm:$0xff]
    %v1163 = vld [vmem:[#allocation6 + $0xf10] sm:$0xff]
    %v1164 = vld [vmem:[#allocation6 + $0xf18] sm:$0xff]
    %v1165 = vld [vmem:[#allocation6 + $0xf20] sm:$0xff]
    %v1166 = vld [vmem:[#allocation6 + $0xf28] sm:$0xff]
    %v1167 = vld [vmem:[#allocation6 + $0xf30] sm:$0xff]
    %v1168 = vld [vmem:[#allocation6 + $0xf38] sm:$0xff]
    %v1169 = vld [vmem:[#allocation6 + $0xf40] sm:$0xff]
    %v1170 = vld [vmem:[#allocation6 + $0xf48] sm:$0xff]
    %v1171 = vld [vmem:[#allocation6 + $0xf50] sm:$0xff]
    %v1172 = vld [vmem:[#allocation6 + $0xf58] sm:$0xff]
    %v1173 = vld [vmem:[#allocation6 + $0xf60] sm:$0xff]
    %v1174 = vld [vmem:[#allocation6 + $0xf68] sm:$0xff]
    %v1175 = vld [vmem:[#allocation6 + $0xf70] sm:$0xff]
    %v1176 = vld [vmem:[#allocation6 + $0xf78] sm:$0xff]
    %v1177 = vld [vmem:[#allocation6 + $0xf80] sm:$0xff]
    %v1178 = vld [vmem:[#allocation6 + $0xf88] sm:$0xff]
    %v1179 = vld [vmem:[#allocation6 + $0xf90] sm:$0xff]
    %v1180 = vld [vmem:[#allocation6 + $0xf98] sm:$0xff]
    %v1181 = vld [vmem:[#allocation6 + $0xfa0] sm:$0xff]
    %v1182 = vld [vmem:[#allocation6 + $0xfa8] sm:$0xff]
    %v1183 = vld [vmem:[#allocation6 + $0xfb0] sm:$0xff]
    %v1184 = vld [vmem:[#allocation6 + $0xfb8] sm:$0xff]
    %v1185 = vld [vmem:[#allocation6 + $0xfc0] sm:$0xff]
    %v1186 = vld [vmem:[#allocation6 + $0xfc8] sm:$0xff]
    %v1187 = vld [vmem:[#allocation6 + $0xfd0] sm:$0xff]
    %v1188 = vld [vmem:[#allocation6 + $0xfd8] sm:$0xff]
    %v1189 = vld [vmem:[#allocation6 + $0xfe0] sm:$0xff]
    %v1190 = vld [vmem:[#allocation6 + $0xfe8] sm:$0xff]
    %v1191 = vld [vmem:[#allocation6 + $0xff0] sm:$0xff]
    %v1192 = vld [vmem:[#allocation6 + $0xff8] sm:$0xff]
    %v1193 = vld [vmem:[#allocation7] sm:$0xff]
    %v1195 = vperm.slane %v1193, 0
    %v1196 = vperm.slane %v1193, 1
    %v1197 = vperm.slane %v1193, 2
    %v1198 = vperm.slane %v1193, 3
    %v1199 = vperm.slane %v1193, 4
    %v1200 = vperm.slane %v1193, 5
    %v1201 = vperm.slane %v1193, 6
    %v1202 = vperm.slane %v1193, 7
    %v1723 = vunpack.c.l.b16 %v681
    %v1724 = vunpack.c.h.b16 %v681
    %v1725 = vunpack.c.l.b16 %v682
    %v1726 = vunpack.c.h.b16 %v682
    %v1727 = vunpack.c.l.b16 %v683
    %v1728 = vunpack.c.h.b16 %v683
    %v1729 = vunpack.c.l.b16 %v684
    %v1730 = vunpack.c.h.b16 %v684
    %v1731 = vunpack.c.l.b16 %v685
    %v1732 = vunpack.c.h.b16 %v685
    %v1733 = vunpack.c.l.b16 %v686
    %v1734 = vunpack.c.h.b16 %v686
    %v1735 = vunpack.c.l.b16 %v687
    %v1736 = vunpack.c.h.b16 %v687
    %v1737 = vunpack.c.l.b16 %v688
    %v1738 = vunpack.c.h.b16 %v688
    %v1739 = vunpack.c.l.b16 %v689
    %v1740 = vunpack.c.h.b16 %v689
    %v1741 = vunpack.c.l.b16 %v690
    %v1742 = vunpack.c.h.b16 %v690
    %v1743 = vunpack.c.l.b16 %v691
    %v1744 = vunpack.c.h.b16 %v691
    %v1745 = vunpack.c.l.b16 %v692
    %v1746 = vunpack.c.h.b16 %v692
    %v1747 = vunpack.c.l.b16 %v693
    %v1748 = vunpack.c.h.b16 %v693
    %v1749 = vunpack.c.l.b16 %v694
    %v1750 = vunpack.c.h.b16 %v694
    %v1751 = vunpack.c.l.b16 %v695
    %v1752 = vunpack.c.h.b16 %v695
    %v1753 = vunpack.c.l.b16 %v696
    %v1754 = vunpack.c.h.b16 %v696
    %v1755 = vunpack.c.l.b16 %v697
    %v1756 = vunpack.c.h.b16 %v697
    %v1757 = vunpack.c.l.b16 %v698
    %v1758 = vunpack.c.h.b16 %v698
    %v1759 = vunpack.c.l.b16 %v699
    %v1760 = vunpack.c.h.b16 %v699
    %v1761 = vunpack.c.l.b16 %v700
    %v1762 = vunpack.c.h.b16 %v700
    %v1763 = vunpack.c.l.b16 %v701
    %v1764 = vunpack.c.h.b16 %v701
    %v1765 = vunpack.c.l.b16 %v702
    %v1766 = vunpack.c.h.b16 %v702
    %v1767 = vunpack.c.l.b16 %v703
    %v1768 = vunpack.c.h.b16 %v703
    %v1769 = vunpack.c.l.b16 %v704
    %v1770 = vunpack.c.h.b16 %v704
    %v1771 = vunpack.c.l.b16 %v705
    %v1772 = vunpack.c.h.b16 %v705
    %v1773 = vunpack.c.l.b16 %v706
    %v1774 = vunpack.c.h.b16 %v706
    %v1775 = vunpack.c.l.b16 %v707
    %v1776 = vunpack.c.h.b16 %v707
    %v1777 = vunpack.c.l.b16 %v708
    %v1778 = vunpack.c.h.b16 %v708
    %v1779 = vunpack.c.l.b16 %v709
    %v1780 = vunpack.c.h.b16 %v709
    %v1781 = vunpack.c.l.b16 %v710
    %v1782 = vunpack.c.h.b16 %v710
    %v1783 = vunpack.c.l.b16 %v711
    %v1784 = vunpack.c.h.b16 %v711
    %v1785 = vunpack.c.l.b16 %v712
    %v1786 = vunpack.c.h.b16 %v712
    %v1787 = vunpack.c.l.b16 %v713
    %v1788 = vunpack.c.h.b16 %v713
    %v1789 = vunpack.c.l.b16 %v714
    %v1790 = vunpack.c.h.b16 %v714
    %v1791 = vunpack.c.l.b16 %v715
    %v1792 = vunpack.c.h.b16 %v715
    %v1793 = vunpack.c.l.b16 %v716
    %v1794 = vunpack.c.h.b16 %v716
    %v1795 = vunpack.c.l.b16 %v717
    %v1796 = vunpack.c.h.b16 %v717
    %v1797 = vunpack.c.l.b16 %v718
    %v1798 = vunpack.c.h.b16 %v718
    %v1799 = vunpack.c.l.b16 %v719
    %v1800 = vunpack.c.h.b16 %v719
    %v1801 = vunpack.c.l.b16 %v720
    %v1802 = vunpack.c.h.b16 %v720
    %v1803 = vunpack.c.l.b16 %v721
    %v1804 = vunpack.c.h.b16 %v721
    %v1805 = vunpack.c.l.b16 %v722
    %v1806 = vunpack.c.h.b16 %v722
    %v1807 = vunpack.c.l.b16 %v723
    %v1808 = vunpack.c.h.b16 %v723
    %v1809 = vunpack.c.l.b16 %v724
    %v1810 = vunpack.c.h.b16 %v724
    %v1811 = vunpack.c.l.b16 %v725
    %v1812 = vunpack.c.h.b16 %v725
    %v1813 = vunpack.c.l.b16 %v726
    %v1814 = vunpack.c.h.b16 %v726
    %v1815 = vunpack.c.l.b16 %v727
    %v1816 = vunpack.c.h.b16 %v727
    %v1817 = vunpack.c.l.b16 %v728
    %v1818 = vunpack.c.h.b16 %v728
    %v1819 = vunpack.c.l.b16 %v729
    %v1820 = vunpack.c.h.b16 %v729
    %v1821 = vunpack.c.l.b16 %v730
    %v1822 = vunpack.c.h.b16 %v730
    %v1823 = vunpack.c.l.b16 %v731
    %v1824 = vunpack.c.h.b16 %v731
    %v1825 = vunpack.c.l.b16 %v732
    %v1826 = vunpack.c.h.b16 %v732
    %v1827 = vunpack.c.l.b16 %v733
    %v1828 = vunpack.c.h.b16 %v733
    %v1829 = vunpack.c.l.b16 %v734
    %v1830 = vunpack.c.h.b16 %v734
    %v1831 = vunpack.c.l.b16 %v735
    %v1832 = vunpack.c.h.b16 %v735
    %v1833 = vunpack.c.l.b16 %v736
    %v1834 = vunpack.c.h.b16 %v736
    %v1835 = vunpack.c.l.b16 %v737
    %v1836 = vunpack.c.h.b16 %v737
    %v1837 = vunpack.c.l.b16 %v738
    %v1838 = vunpack.c.h.b16 %v738
    %v1839 = vunpack.c.l.b16 %v739
    %v1840 = vunpack.c.h.b16 %v739
    %v1841 = vunpack.c.l.b16 %v740
    %v1842 = vunpack.c.h.b16 %v740
    %v1843 = vunpack.c.l.b16 %v741
    %v1844 = vunpack.c.h.b16 %v741
    %v1845 = vunpack.c.l.b16 %v742
    %v1846 = vunpack.c.h.b16 %v742
    %v1847 = vunpack.c.l.b16 %v743
    %v1848 = vunpack.c.h.b16 %v743
    %v1849 = vunpack.c.l.b16 %v744
    %v1850 = vunpack.c.h.b16 %v744
    %v1851 = vunpack.c.l.b16 %v745
    %v1852 = vunpack.c.h.b16 %v745
    %v1853 = vunpack.c.l.b16 %v746
    %v1854 = vunpack.c.h.b16 %v746
    %v1855 = vunpack.c.l.b16 %v747
    %v1856 = vunpack.c.h.b16 %v747
    %v1857 = vunpack.c.l.b16 %v748
    %v1858 = vunpack.c.h.b16 %v748
    %v1859 = vunpack.c.l.b16 %v749
    %v1860 = vunpack.c.h.b16 %v749
    %v1861 = vunpack.c.l.b16 %v750
    %v1862 = vunpack.c.h.b16 %v750
    %v1863 = vunpack.c.l.b16 %v751
    %v1864 = vunpack.c.h.b16 %v751
    %v1865 = vunpack.c.l.b16 %v752
    %v1866 = vunpack.c.h.b16 %v752
    %v1867 = vunpack.c.l.b16 %v753
    %v1868 = vunpack.c.h.b16 %v753
    %v1869 = vunpack.c.l.b16 %v754
    %v1870 = vunpack.c.h.b16 %v754
    %v1871 = vunpack.c.l.b16 %v755
    %v1872 = vunpack.c.h.b16 %v755
    %v1873 = vunpack.c.l.b16 %v756
    %v1874 = vunpack.c.h.b16 %v756
    %v1875 = vunpack.c.l.b16 %v757
    %v1876 = vunpack.c.h.b16 %v757
    %v1877 = vunpack.c.l.b16 %v758
    %v1878 = vunpack.c.h.b16 %v758
    %v1879 = vunpack.c.l.b16 %v759
    %v1880 = vunpack.c.h.b16 %v759
    %v1881 = vunpack.c.l.b16 %v760
    %v1882 = vunpack.c.h.b16 %v760
    %v1883 = vunpack.c.l.b16 %v761
    %v1884 = vunpack.c.h.b16 %v761
    %v1885 = vunpack.c.l.b16 %v762
    %v1886 = vunpack.c.h.b16 %v762
    %v1887 = vunpack.c.l.b16 %v763
    %v1888 = vunpack.c.h.b16 %v763
    %v1889 = vunpack.c.l.b16 %v764
    %v1890 = vunpack.c.h.b16 %v764
    %v1891 = vunpack.c.l.b16 %v765
    %v1892 = vunpack.c.h.b16 %v765
    %v1893 = vunpack.c.l.b16 %v766
    %v1894 = vunpack.c.h.b16 %v766
    %v1895 = vunpack.c.l.b16 %v767
    %v1896 = vunpack.c.h.b16 %v767
    %v1897 = vunpack.c.l.b16 %v768
    %v1898 = vunpack.c.h.b16 %v768
    %v1899 = vunpack.c.l.b16 %v769
    %v1900 = vunpack.c.h.b16 %v769
    %v1901 = vunpack.c.l.b16 %v770
    %v1902 = vunpack.c.h.b16 %v770
    %v1903 = vunpack.c.l.b16 %v771
    %v1904 = vunpack.c.h.b16 %v771
    %v1905 = vunpack.c.l.b16 %v772
    %v1906 = vunpack.c.h.b16 %v772
    %v1907 = vunpack.c.l.b16 %v773
    %v1908 = vunpack.c.h.b16 %v773
    %v1909 = vunpack.c.l.b16 %v774
    %v1910 = vunpack.c.h.b16 %v774
    %v1911 = vunpack.c.l.b16 %v775
    %v1912 = vunpack.c.h.b16 %v775
    %v1913 = vunpack.c.l.b16 %v776
    %v1914 = vunpack.c.h.b16 %v776
    %v1915 = vunpack.c.l.b16 %v777
    %v1916 = vunpack.c.h.b16 %v777
    %v1917 = vunpack.c.l.b16 %v778
    %v1918 = vunpack.c.h.b16 %v778
    %v1919 = vunpack.c.l.b16 %v779
    %v1920 = vunpack.c.h.b16 %v779
    %v1921 = vunpack.c.l.b16 %v780
    %v1922 = vunpack.c.h.b16 %v780
    %v1923 = vunpack.c.l.b16 %v781
    %v1924 = vunpack.c.h.b16 %v781
    %v1925 = vunpack.c.l.b16 %v782
    %v1926 = vunpack.c.h.b16 %v782
    %v1927 = vunpack.c.l.b16 %v783
    %v1928 = vunpack.c.h.b16 %v783
    %v1929 = vunpack.c.l.b16 %v784
    %v1930 = vunpack.c.h.b16 %v784
    %v1931 = vunpack.c.l.b16 %v785
    %v1932 = vunpack.c.h.b16 %v785
    %v1933 = vunpack.c.l.b16 %v786
    %v1934 = vunpack.c.h.b16 %v786
    %v1935 = vunpack.c.l.b16 %v787
    %v1936 = vunpack.c.h.b16 %v787
    %v1937 = vunpack.c.l.b16 %v788
    %v1938 = vunpack.c.h.b16 %v788
    %v1939 = vunpack.c.l.b16 %v789
    %v1940 = vunpack.c.h.b16 %v789
    %v1941 = vunpack.c.l.b16 %v790
    %v1942 = vunpack.c.h.b16 %v790
    %v1943 = vunpack.c.l.b16 %v791
    %v1944 = vunpack.c.h.b16 %v791
    %v1945 = vunpack.c.l.b16 %v792
    %v1946 = vunpack.c.h.b16 %v792
    %v1947 = vunpack.c.l.b16 %v793
    %v1948 = vunpack.c.h.b16 %v793
    %v1949 = vunpack.c.l.b16 %v794
    %v1950 = vunpack.c.h.b16 %v794
    %v1951 = vunpack.c.l.b16 %v795
    %v1952 = vunpack.c.h.b16 %v795
    %v1953 = vunpack.c.l.b16 %v796
    %v1954 = vunpack.c.h.b16 %v796
    %v1955 = vunpack.c.l.b16 %v797
    %v1956 = vunpack.c.h.b16 %v797
    %v1957 = vunpack.c.l.b16 %v798
    %v1958 = vunpack.c.h.b16 %v798
    %v1959 = vunpack.c.l.b16 %v799
    %v1960 = vunpack.c.h.b16 %v799
    %v1961 = vunpack.c.l.b16 %v800
    %v1962 = vunpack.c.h.b16 %v800
    %v1963 = vunpack.c.l.b16 %v801
    %v1964 = vunpack.c.h.b16 %v801
    %v1965 = vunpack.c.l.b16 %v802
    %v1966 = vunpack.c.h.b16 %v802
    %v1967 = vunpack.c.l.b16 %v803
    %v1968 = vunpack.c.h.b16 %v803
    %v1969 = vunpack.c.l.b16 %v804
    %v1970 = vunpack.c.h.b16 %v804
    %v1971 = vunpack.c.l.b16 %v805
    %v1972 = vunpack.c.h.b16 %v805
    %v1973 = vunpack.c.l.b16 %v806
    %v1974 = vunpack.c.h.b16 %v806
    %v1975 = vunpack.c.l.b16 %v807
    %v1976 = vunpack.c.h.b16 %v807
    %v1977 = vunpack.c.l.b16 %v808
    %v1978 = vunpack.c.h.b16 %v808
    %v1979 = vunpack.c.l.b16 %v809
    %v1980 = vunpack.c.h.b16 %v809
    %v1981 = vunpack.c.l.b16 %v810
    %v1982 = vunpack.c.h.b16 %v810
    %v1983 = vunpack.c.l.b16 %v811
    %v1984 = vunpack.c.h.b16 %v811
    %v1985 = vunpack.c.l.b16 %v812
    %v1986 = vunpack.c.h.b16 %v812
    %v1987 = vunpack.c.l.b16 %v813
    %v1988 = vunpack.c.h.b16 %v813
    %v1989 = vunpack.c.l.b16 %v814
    %v1990 = vunpack.c.h.b16 %v814
    %v1991 = vunpack.c.l.b16 %v815
    %v1992 = vunpack.c.h.b16 %v815
    %v1993 = vunpack.c.l.b16 %v816
    %v1994 = vunpack.c.h.b16 %v816
    %v1995 = vunpack.c.l.b16 %v817
    %v1996 = vunpack.c.h.b16 %v817
    %v1997 = vunpack.c.l.b16 %v818
    %v1998 = vunpack.c.h.b16 %v818
    %v1999 = vunpack.c.l.b16 %v819
    %v2000 = vunpack.c.h.b16 %v819
    %v2001 = vunpack.c.l.b16 %v820
    %v2002 = vunpack.c.h.b16 %v820
    %v2003 = vunpack.c.l.b16 %v821
    %v2004 = vunpack.c.h.b16 %v821
    %v2005 = vunpack.c.l.b16 %v822
    %v2006 = vunpack.c.h.b16 %v822
    %v2007 = vunpack.c.l.b16 %v823
    %v2008 = vunpack.c.h.b16 %v823
    %v2009 = vunpack.c.l.b16 %v824
    %v2010 = vunpack.c.h.b16 %v824
    %v2011 = vunpack.c.l.b16 %v825
    %v2012 = vunpack.c.h.b16 %v825
    %v2013 = vunpack.c.l.b16 %v826
    %v2014 = vunpack.c.h.b16 %v826
    %v2015 = vunpack.c.l.b16 %v827
    %v2016 = vunpack.c.h.b16 %v827
    %v2017 = vunpack.c.l.b16 %v828
    %v2018 = vunpack.c.h.b16 %v828
    %v2019 = vunpack.c.l.b16 %v829
    %v2020 = vunpack.c.h.b16 %v829
    %v2021 = vunpack.c.l.b16 %v830
    %v2022 = vunpack.c.h.b16 %v830
    %v2023 = vunpack.c.l.b16 %v831
    %v2024 = vunpack.c.h.b16 %v831
    %v2025 = vunpack.c.l.b16 %v832
    %v2026 = vunpack.c.h.b16 %v832
    %v2027 = vunpack.c.l.b16 %v833
    %v2028 = vunpack.c.h.b16 %v833
    %v2029 = vunpack.c.l.b16 %v834
    %v2030 = vunpack.c.h.b16 %v834
    %v2031 = vunpack.c.l.b16 %v835
    %v2032 = vunpack.c.h.b16 %v835
    %v2033 = vunpack.c.l.b16 %v836
    %v2034 = vunpack.c.h.b16 %v836
    %v2035 = vunpack.c.l.b16 %v837
    %v2036 = vunpack.c.h.b16 %v837
    %v2037 = vunpack.c.l.b16 %v838
    %v2038 = vunpack.c.h.b16 %v838
    %v2039 = vunpack.c.l.b16 %v839
    %v2040 = vunpack.c.h.b16 %v839
    %v2041 = vunpack.c.l.b16 %v840
    %v2042 = vunpack.c.h.b16 %v840
    %v2043 = vunpack.c.l.b16 %v841
    %v2044 = vunpack.c.h.b16 %v841
    %v2045 = vunpack.c.l.b16 %v842
    %v2046 = vunpack.c.h.b16 %v842
    %v2047 = vunpack.c.l.b16 %v843
    %v2048 = vunpack.c.h.b16 %v843
    %v2049 = vunpack.c.l.b16 %v844
    %v2050 = vunpack.c.h.b16 %v844
    %v2051 = vunpack.c.l.b16 %v845
    %v2052 = vunpack.c.h.b16 %v845
    %v2053 = vunpack.c.l.b16 %v846
    %v2054 = vunpack.c.h.b16 %v846
    %v2055 = vunpack.c.l.b16 %v847
    %v2056 = vunpack.c.h.b16 %v847
    %v2057 = vunpack.c.l.b16 %v848
    %v2058 = vunpack.c.h.b16 %v848
    %v2059 = vunpack.c.l.b16 %v849
    %v2060 = vunpack.c.h.b16 %v849
    %v2061 = vunpack.c.l.b16 %v850
    %v2062 = vunpack.c.h.b16 %v850
    %v2063 = vunpack.c.l.b16 %v851
    %v2064 = vunpack.c.h.b16 %v851
    %v2065 = vunpack.c.l.b16 %v852
    %v2066 = vunpack.c.h.b16 %v852
    %v2067 = vunpack.c.l.b16 %v853
    %v2068 = vunpack.c.h.b16 %v853
    %v2069 = vunpack.c.l.b16 %v854
    %v2070 = vunpack.c.h.b16 %v854
    %v2071 = vunpack.c.l.b16 %v855
    %v2072 = vunpack.c.h.b16 %v855
    %v2073 = vunpack.c.l.b16 %v856
    %v2074 = vunpack.c.h.b16 %v856
    %v2075 = vunpack.c.l.b16 %v857
    %v2076 = vunpack.c.h.b16 %v857
    %v2077 = vunpack.c.l.b16 %v858
    %v2078 = vunpack.c.h.b16 %v858
    %v2079 = vunpack.c.l.b16 %v859
    %v2080 = vunpack.c.h.b16 %v859
    %v2081 = vunpack.c.l.b16 %v860
    %v2082 = vunpack.c.h.b16 %v860
    %v2083 = vunpack.c.l.b16 %v861
    %v2084 = vunpack.c.h.b16 %v861
    %v2085 = vunpack.c.l.b16 %v862
    %v2086 = vunpack.c.h.b16 %v862
    %v2087 = vunpack.c.l.b16 %v863
    %v2088 = vunpack.c.h.b16 %v863
    %v2089 = vunpack.c.l.b16 %v864
    %v2090 = vunpack.c.h.b16 %v864
    %v2091 = vunpack.c.l.b16 %v865
    %v2092 = vunpack.c.h.b16 %v865
    %v2093 = vunpack.c.l.b16 %v866
    %v2094 = vunpack.c.h.b16 %v866
    %v2095 = vunpack.c.l.b16 %v867
    %v2096 = vunpack.c.h.b16 %v867
    %v2097 = vunpack.c.l.b16 %v868
    %v2098 = vunpack.c.h.b16 %v868
    %v2099 = vunpack.c.l.b16 %v869
    %v2100 = vunpack.c.h.b16 %v869
    %v2101 = vunpack.c.l.b16 %v870
    %v2102 = vunpack.c.h.b16 %v870
    %v2103 = vunpack.c.l.b16 %v871
    %v2104 = vunpack.c.h.b16 %v871
    %v2105 = vunpack.c.l.b16 %v872
    %v2106 = vunpack.c.h.b16 %v872
    %v2107 = vunpack.c.l.b16 %v873
    %v2108 = vunpack.c.h.b16 %v873
    %v2109 = vunpack.c.l.b16 %v874
    %v2110 = vunpack.c.h.b16 %v874
    %v2111 = vunpack.c.l.b16 %v875
    %v2112 = vunpack.c.h.b16 %v875
    %v2113 = vunpack.c.l.b16 %v876
    %v2114 = vunpack.c.h.b16 %v876
    %v2115 = vunpack.c.l.b16 %v877
    %v2116 = vunpack.c.h.b16 %v877
    %v2117 = vunpack.c.l.b16 %v878
    %v2118 = vunpack.c.h.b16 %v878
    %v2119 = vunpack.c.l.b16 %v879
    %v2120 = vunpack.c.h.b16 %v879
    %v2121 = vunpack.c.l.b16 %v880
    %v2122 = vunpack.c.h.b16 %v880
    %v2123 = vunpack.c.l.b16 %v881
    %v2124 = vunpack.c.h.b16 %v881
    %v2125 = vunpack.c.l.b16 %v882
    %v2126 = vunpack.c.h.b16 %v882
    %v2127 = vunpack.c.l.b16 %v883
    %v2128 = vunpack.c.h.b16 %v883
    %v2129 = vunpack.c.l.b16 %v884
    %v2130 = vunpack.c.h.b16 %v884
    %v2131 = vunpack.c.l.b16 %v885
    %v2132 = vunpack.c.h.b16 %v885
    %v2133 = vunpack.c.l.b16 %v886
    %v2134 = vunpack.c.h.b16 %v886
    %v2135 = vunpack.c.l.b16 %v887
    %v2136 = vunpack.c.h.b16 %v887
    %v2137 = vunpack.c.l.b16 %v888
    %v2138 = vunpack.c.h.b16 %v888
    %v2139 = vunpack.c.l.b16 %v889
    %v2140 = vunpack.c.h.b16 %v889
    %v2141 = vunpack.c.l.b16 %v890
    %v2142 = vunpack.c.h.b16 %v890
    %v2143 = vunpack.c.l.b16 %v891
    %v2144 = vunpack.c.h.b16 %v891
    %v2145 = vunpack.c.l.b16 %v892
    %v2146 = vunpack.c.h.b16 %v892
    %v2147 = vunpack.c.l.b16 %v893
    %v2148 = vunpack.c.h.b16 %v893
    %v2149 = vunpack.c.l.b16 %v894
    %v2150 = vunpack.c.h.b16 %v894
    %v2151 = vunpack.c.l.b16 %v895
    %v2152 = vunpack.c.h.b16 %v895
    %v2153 = vunpack.c.l.b16 %v896
    %v2154 = vunpack.c.h.b16 %v896
    %v2155 = vunpack.c.l.b16 %v897
    %v2156 = vunpack.c.h.b16 %v897
    %v2157 = vunpack.c.l.b16 %v898
    %v2158 = vunpack.c.h.b16 %v898
    %v2159 = vunpack.c.l.b16 %v899
    %v2160 = vunpack.c.h.b16 %v899
    %v2161 = vunpack.c.l.b16 %v900
    %v2162 = vunpack.c.h.b16 %v900
    %v2163 = vunpack.c.l.b16 %v901
    %v2164 = vunpack.c.h.b16 %v901
    %v2165 = vunpack.c.l.b16 %v902
    %v2166 = vunpack.c.h.b16 %v902
    %v2167 = vunpack.c.l.b16 %v903
    %v2168 = vunpack.c.h.b16 %v903
    %v2169 = vunpack.c.l.b16 %v904
    %v2170 = vunpack.c.h.b16 %v904
    %v2171 = vunpack.c.l.b16 %v905
    %v2172 = vunpack.c.h.b16 %v905
    %v2173 = vunpack.c.l.b16 %v906
    %v2174 = vunpack.c.h.b16 %v906
    %v2175 = vunpack.c.l.b16 %v907
    %v2176 = vunpack.c.h.b16 %v907
    %v2177 = vunpack.c.l.b16 %v908
    %v2178 = vunpack.c.h.b16 %v908
    %v2179 = vunpack.c.l.b16 %v909
    %v2180 = vunpack.c.h.b16 %v909
    %v2181 = vunpack.c.l.b16 %v910
    %v2182 = vunpack.c.h.b16 %v910
    %v2183 = vunpack.c.l.b16 %v911
    %v2184 = vunpack.c.h.b16 %v911
    %v2185 = vunpack.c.l.b16 %v912
    %v2186 = vunpack.c.h.b16 %v912
    %v2187 = vunpack.c.l.b16 %v913
    %v2188 = vunpack.c.h.b16 %v913
    %v2189 = vunpack.c.l.b16 %v914
    %v2190 = vunpack.c.h.b16 %v914
    %v2191 = vunpack.c.l.b16 %v915
    %v2192 = vunpack.c.h.b16 %v915
    %v2193 = vunpack.c.l.b16 %v916
    %v2194 = vunpack.c.h.b16 %v916
    %v2195 = vunpack.c.l.b16 %v917
    %v2196 = vunpack.c.h.b16 %v917
    %v2197 = vunpack.c.l.b16 %v918
    %v2198 = vunpack.c.h.b16 %v918
    %v2199 = vunpack.c.l.b16 %v919
    %v2200 = vunpack.c.h.b16 %v919
    %v2201 = vunpack.c.l.b16 %v920
    %v2202 = vunpack.c.h.b16 %v920
    %v2203 = vunpack.c.l.b16 %v921
    %v2204 = vunpack.c.h.b16 %v921
    %v2205 = vunpack.c.l.b16 %v922
    %v2206 = vunpack.c.h.b16 %v922
    %v2207 = vunpack.c.l.b16 %v923
    %v2208 = vunpack.c.h.b16 %v923
    %v2209 = vunpack.c.l.b16 %v924
    %v2210 = vunpack.c.h.b16 %v924
    %v2211 = vunpack.c.l.b16 %v925
    %v2212 = vunpack.c.h.b16 %v925
    %v2213 = vunpack.c.l.b16 %v926
    %v2214 = vunpack.c.h.b16 %v926
    %v2215 = vunpack.c.l.b16 %v927
    %v2216 = vunpack.c.h.b16 %v927
    %v2217 = vunpack.c.l.b16 %v928
    %v2218 = vunpack.c.h.b16 %v928
    %v2219 = vunpack.c.l.b16 %v929
    %v2220 = vunpack.c.h.b16 %v929
    %v2221 = vunpack.c.l.b16 %v930
    %v2222 = vunpack.c.h.b16 %v930
    %v2223 = vunpack.c.l.b16 %v931
    %v2224 = vunpack.c.h.b16 %v931
    %v2225 = vunpack.c.l.b16 %v932
    %v2226 = vunpack.c.h.b16 %v932
    %v2227 = vunpack.c.l.b16 %v933
    %v2228 = vunpack.c.h.b16 %v933
    %v2229 = vunpack.c.l.b16 %v934
    %v2230 = vunpack.c.h.b16 %v934
    %v2231 = vunpack.c.l.b16 %v935
    %v2232 = vunpack.c.h.b16 %v935
    %v2233 = vunpack.c.l.b16 %v936
    %v2234 = vunpack.c.h.b16 %v936
    %v2235 = vunpack.c.l.b16 %v937
    %v2236 = vunpack.c.h.b16 %v937
    %v2237 = vunpack.c.l.b16 %v938
    %v2238 = vunpack.c.h.b16 %v938
    %v2239 = vunpack.c.l.b16 %v939
    %v2240 = vunpack.c.h.b16 %v939
    %v2241 = vunpack.c.l.b16 %v940
    %v2242 = vunpack.c.h.b16 %v940
    %v2243 = vunpack.c.l.b16 %v941
    %v2244 = vunpack.c.h.b16 %v941
    %v2245 = vunpack.c.l.b16 %v942
    %v2246 = vunpack.c.h.b16 %v942
    %v2247 = vunpack.c.l.b16 %v943
    %v2248 = vunpack.c.h.b16 %v943
    %v2249 = vunpack.c.l.b16 %v944
    %v2250 = vunpack.c.h.b16 %v944
    %v2251 = vunpack.c.l.b16 %v945
    %v2252 = vunpack.c.h.b16 %v945
    %v2253 = vunpack.c.l.b16 %v946
    %v2254 = vunpack.c.h.b16 %v946
    %v2255 = vunpack.c.l.b16 %v947
    %v2256 = vunpack.c.h.b16 %v947
    %v2257 = vunpack.c.l.b16 %v948
    %v2258 = vunpack.c.h.b16 %v948
    %v2259 = vunpack.c.l.b16 %v949
    %v2260 = vunpack.c.h.b16 %v949
    %v2261 = vunpack.c.l.b16 %v950
    %v2262 = vunpack.c.h.b16 %v950
    %v2263 = vunpack.c.l.b16 %v951
    %v2264 = vunpack.c.h.b16 %v951
    %v2265 = vunpack.c.l.b16 %v952
    %v2266 = vunpack.c.h.b16 %v952
    %v2267 = vunpack.c.l.b16 %v953
    %v2268 = vunpack.c.h.b16 %v953
    %v2269 = vunpack.c.l.b16 %v954
    %v2270 = vunpack.c.h.b16 %v954
    %v2271 = vunpack.c.l.b16 %v955
    %v2272 = vunpack.c.h.b16 %v955
    %v2273 = vunpack.c.l.b16 %v956
    %v2274 = vunpack.c.h.b16 %v956
    %v2275 = vunpack.c.l.b16 %v957
    %v2276 = vunpack.c.h.b16 %v957
    %v2277 = vunpack.c.l.b16 %v958
    %v2278 = vunpack.c.h.b16 %v958
    %v2279 = vunpack.c.l.b16 %v959
    %v2280 = vunpack.c.h.b16 %v959
    %v2281 = vunpack.c.l.b16 %v960
    %v2282 = vunpack.c.h.b16 %v960
    %v2283 = vunpack.c.l.b16 %v961
    %v2284 = vunpack.c.h.b16 %v961
    %v2285 = vunpack.c.l.b16 %v962
    %v2286 = vunpack.c.h.b16 %v962
    %v2287 = vunpack.c.l.b16 %v963
    %v2288 = vunpack.c.h.b16 %v963
    %v2289 = vunpack.c.l.b16 %v964
    %v2290 = vunpack.c.h.b16 %v964
    %v2291 = vunpack.c.l.b16 %v965
    %v2292 = vunpack.c.h.b16 %v965
    %v2293 = vunpack.c.l.b16 %v966
    %v2294 = vunpack.c.h.b16 %v966
    %v2295 = vunpack.c.l.b16 %v967
    %v2296 = vunpack.c.h.b16 %v967
    %v2297 = vunpack.c.l.b16 %v968
    %v2298 = vunpack.c.h.b16 %v968
    %v2299 = vunpack.c.l.b16 %v969
    %v2300 = vunpack.c.h.b16 %v969
    %v2301 = vunpack.c.l.b16 %v970
    %v2302 = vunpack.c.h.b16 %v970
    %v2303 = vunpack.c.l.b16 %v971
    %v2304 = vunpack.c.h.b16 %v971
    %v2305 = vunpack.c.l.b16 %v972
    %v2306 = vunpack.c.h.b16 %v972
    %v2307 = vunpack.c.l.b16 %v973
    %v2308 = vunpack.c.h.b16 %v973
    %v2309 = vunpack.c.l.b16 %v974
    %v2310 = vunpack.c.h.b16 %v974
    %v2311 = vunpack.c.l.b16 %v975
    %v2312 = vunpack.c.h.b16 %v975
    %v2313 = vunpack.c.l.b16 %v976
    %v2314 = vunpack.c.h.b16 %v976
    %v2315 = vunpack.c.l.b16 %v977
    %v2316 = vunpack.c.h.b16 %v977
    %v2317 = vunpack.c.l.b16 %v978
    %v2318 = vunpack.c.h.b16 %v978
    %v2319 = vunpack.c.l.b16 %v979
    %v2320 = vunpack.c.h.b16 %v979
    %v2321 = vunpack.c.l.b16 %v980
    %v2322 = vunpack.c.h.b16 %v980
    %v2323 = vunpack.c.l.b16 %v981
    %v2324 = vunpack.c.h.b16 %v981
    %v2325 = vunpack.c.l.b16 %v982
    %v2326 = vunpack.c.h.b16 %v982
    %v2327 = vunpack.c.l.b16 %v983
    %v2328 = vunpack.c.h.b16 %v983
    %v2329 = vunpack.c.l.b16 %v984
    %v2330 = vunpack.c.h.b16 %v984
    %v2331 = vunpack.c.l.b16 %v985
    %v2332 = vunpack.c.h.b16 %v985
    %v2333 = vunpack.c.l.b16 %v986
    %v2334 = vunpack.c.h.b16 %v986
    %v2335 = vunpack.c.l.b16 %v987
    %v2336 = vunpack.c.h.b16 %v987
    %v2337 = vunpack.c.l.b16 %v988
    %v2338 = vunpack.c.h.b16 %v988
    %v2339 = vunpack.c.l.b16 %v989
    %v2340 = vunpack.c.h.b16 %v989
    %v2341 = vunpack.c.l.b16 %v990
    %v2342 = vunpack.c.h.b16 %v990
    %v2343 = vunpack.c.l.b16 %v991
    %v2344 = vunpack.c.h.b16 %v991
    %v2345 = vunpack.c.l.b16 %v992
    %v2346 = vunpack.c.h.b16 %v992
    %v2347 = vunpack.c.l.b16 %v993
    %v2348 = vunpack.c.h.b16 %v993
    %v2349 = vunpack.c.l.b16 %v994
    %v2350 = vunpack.c.h.b16 %v994
    %v2351 = vunpack.c.l.b16 %v995
    %v2352 = vunpack.c.h.b16 %v995
    %v2353 = vunpack.c.l.b16 %v996
    %v2354 = vunpack.c.h.b16 %v996
    %v2355 = vunpack.c.l.b16 %v997
    %v2356 = vunpack.c.h.b16 %v997
    %v2357 = vunpack.c.l.b16 %v998
    %v2358 = vunpack.c.h.b16 %v998
    %v2359 = vunpack.c.l.b16 %v999
    %v2360 = vunpack.c.h.b16 %v999
    %v2361 = vunpack.c.l.b16 %v1000
    %v2362 = vunpack.c.h.b16 %v1000
    %v2363 = vunpack.c.l.b16 %v1001
    %v2364 = vunpack.c.h.b16 %v1001
    %v2365 = vunpack.c.l.b16 %v1002
    %v2366 = vunpack.c.h.b16 %v1002
    %v2367 = vunpack.c.l.b16 %v1003
    %v2368 = vunpack.c.h.b16 %v1003
    %v2369 = vunpack.c.l.b16 %v1004
    %v2370 = vunpack.c.h.b16 %v1004
    %v2371 = vunpack.c.l.b16 %v1005
    %v2372 = vunpack.c.h.b16 %v1005
    %v2373 = vunpack.c.l.b16 %v1006
    %v2374 = vunpack.c.h.b16 %v1006
    %v2375 = vunpack.c.l.b16 %v1007
    %v2376 = vunpack.c.h.b16 %v1007
    %v2377 = vunpack.c.l.b16 %v1008
    %v2378 = vunpack.c.h.b16 %v1008
    %v2379 = vunpack.c.l.b16 %v1009
    %v2380 = vunpack.c.h.b16 %v1009
    %v2381 = vunpack.c.l.b16 %v1010
    %v2382 = vunpack.c.h.b16 %v1010
    %v2383 = vunpack.c.l.b16 %v1011
    %v2384 = vunpack.c.h.b16 %v1011
    %v2385 = vunpack.c.l.b16 %v1012
    %v2386 = vunpack.c.h.b16 %v1012
    %v2387 = vunpack.c.l.b16 %v1013
    %v2388 = vunpack.c.h.b16 %v1013
    %v2389 = vunpack.c.l.b16 %v1014
    %v2390 = vunpack.c.h.b16 %v1014
    %v2391 = vunpack.c.l.b16 %v1015
    %v2392 = vunpack.c.h.b16 %v1015
    %v2393 = vunpack.c.l.b16 %v1016
    %v2394 = vunpack.c.h.b16 %v1016
    %v2395 = vunpack.c.l.b16 %v1017
    %v2396 = vunpack.c.h.b16 %v1017
    %v2397 = vunpack.c.l.b16 %v1018
    %v2398 = vunpack.c.h.b16 %v1018
    %v2399 = vunpack.c.l.b16 %v1019
    %v2400 = vunpack.c.h.b16 %v1019
    %v2401 = vunpack.c.l.b16 %v1020
    %v2402 = vunpack.c.h.b16 %v1020
    %v2403 = vunpack.c.l.b16 %v1021
    %v2404 = vunpack.c.h.b16 %v1021
    %v2405 = vunpack.c.l.b16 %v1022
    %v2406 = vunpack.c.h.b16 %v1022
    %v2407 = vunpack.c.l.b16 %v1023
    %v2408 = vunpack.c.h.b16 %v1023
    %v2409 = vunpack.c.l.b16 %v1024
    %v2410 = vunpack.c.h.b16 %v1024
    %v2411 = vunpack.c.l.b16 %v1025
    %v2412 = vunpack.c.h.b16 %v1025
    %v2413 = vunpack.c.l.b16 %v1026
    %v2414 = vunpack.c.h.b16 %v1026
    %v2415 = vunpack.c.l.b16 %v1027
    %v2416 = vunpack.c.h.b16 %v1027
    %v2417 = vunpack.c.l.b16 %v1028
    %v2418 = vunpack.c.h.b16 %v1028
    %v2419 = vunpack.c.l.b16 %v1029
    %v2420 = vunpack.c.h.b16 %v1029
    %v2421 = vunpack.c.l.b16 %v1030
    %v2422 = vunpack.c.h.b16 %v1030
    %v2423 = vunpack.c.l.b16 %v1031
    %v2424 = vunpack.c.h.b16 %v1031
    %v2425 = vunpack.c.l.b16 %v1032
    %v2426 = vunpack.c.h.b16 %v1032
    %v2427 = vunpack.c.l.b16 %v1033
    %v2428 = vunpack.c.h.b16 %v1033
    %v2429 = vunpack.c.l.b16 %v1034
    %v2430 = vunpack.c.h.b16 %v1034
    %v2431 = vunpack.c.l.b16 %v1035
    %v2432 = vunpack.c.h.b16 %v1035
    %v2433 = vunpack.c.l.b16 %v1036
    %v2434 = vunpack.c.h.b16 %v1036
    %v2435 = vunpack.c.l.b16 %v1037
    %v2436 = vunpack.c.h.b16 %v1037
    %v2437 = vunpack.c.l.b16 %v1038
    %v2438 = vunpack.c.h.b16 %v1038
    %v2439 = vunpack.c.l.b16 %v1039
    %v2440 = vunpack.c.h.b16 %v1039
    %v2441 = vunpack.c.l.b16 %v1040
    %v2442 = vunpack.c.h.b16 %v1040
    %v2443 = vunpack.c.l.b16 %v1041
    %v2444 = vunpack.c.h.b16 %v1041
    %v2445 = vunpack.c.l.b16 %v1042
    %v2446 = vunpack.c.h.b16 %v1042
    %v2447 = vunpack.c.l.b16 %v1043
    %v2448 = vunpack.c.h.b16 %v1043
    %v2449 = vunpack.c.l.b16 %v1044
    %v2450 = vunpack.c.h.b16 %v1044
    %v2451 = vunpack.c.l.b16 %v1045
    %v2452 = vunpack.c.h.b16 %v1045
    %v2453 = vunpack.c.l.b16 %v1046
    %v2454 = vunpack.c.h.b16 %v1046
    %v2455 = vunpack.c.l.b16 %v1047
    %v2456 = vunpack.c.h.b16 %v1047
    %v2457 = vunpack.c.l.b16 %v1048
    %v2458 = vunpack.c.h.b16 %v1048
    %v2459 = vunpack.c.l.b16 %v1049
    %v2460 = vunpack.c.h.b16 %v1049
    %v2461 = vunpack.c.l.b16 %v1050
    %v2462 = vunpack.c.h.b16 %v1050
    %v2463 = vunpack.c.l.b16 %v1051
    %v2464 = vunpack.c.h.b16 %v1051
    %v2465 = vunpack.c.l.b16 %v1052
    %v2466 = vunpack.c.h.b16 %v1052
    %v2467 = vunpack.c.l.b16 %v1053
    %v2468 = vunpack.c.h.b16 %v1053
    %v2469 = vunpack.c.l.b16 %v1054
    %v2470 = vunpack.c.h.b16 %v1054
    %v2471 = vunpack.c.l.b16 %v1055
    %v2472 = vunpack.c.h.b16 %v1055
    %v2473 = vunpack.c.l.b16 %v1056
    %v2474 = vunpack.c.h.b16 %v1056
    %v2475 = vunpack.c.l.b16 %v1057
    %v2476 = vunpack.c.h.b16 %v1057
    %v2477 = vunpack.c.l.b16 %v1058
    %v2478 = vunpack.c.h.b16 %v1058
    %v2479 = vunpack.c.l.b16 %v1059
    %v2480 = vunpack.c.h.b16 %v1059
    %v2481 = vunpack.c.l.b16 %v1060
    %v2482 = vunpack.c.h.b16 %v1060
    %v2483 = vunpack.c.l.b16 %v1061
    %v2484 = vunpack.c.h.b16 %v1061
    %v2485 = vunpack.c.l.b16 %v1062
    %v2486 = vunpack.c.h.b16 %v1062
    %v2487 = vunpack.c.l.b16 %v1063
    %v2488 = vunpack.c.h.b16 %v1063
    %v2489 = vunpack.c.l.b16 %v1064
    %v2490 = vunpack.c.h.b16 %v1064
    %v2491 = vunpack.c.l.b16 %v1065
    %v2492 = vunpack.c.h.b16 %v1065
    %v2493 = vunpack.c.l.b16 %v1066
    %v2494 = vunpack.c.h.b16 %v1066
    %v2495 = vunpack.c.l.b16 %v1067
    %v2496 = vunpack.c.h.b16 %v1067
    %v2497 = vunpack.c.l.b16 %v1068
    %v2498 = vunpack.c.h.b16 %v1068
    %v2499 = vunpack.c.l.b16 %v1069
    %v2500 = vunpack.c.h.b16 %v1069
    %v2501 = vunpack.c.l.b16 %v1070
    %v2502 = vunpack.c.h.b16 %v1070
    %v2503 = vunpack.c.l.b16 %v1071
    %v2504 = vunpack.c.h.b16 %v1071
    %v2505 = vunpack.c.l.b16 %v1072
    %v2506 = vunpack.c.h.b16 %v1072
    %v2507 = vunpack.c.l.b16 %v1073
    %v2508 = vunpack.c.h.b16 %v1073
    %v2509 = vunpack.c.l.b16 %v1074
    %v2510 = vunpack.c.h.b16 %v1074
    %v2511 = vunpack.c.l.b16 %v1075
    %v2512 = vunpack.c.h.b16 %v1075
    %v2513 = vunpack.c.l.b16 %v1076
    %v2514 = vunpack.c.h.b16 %v1076
    %v2515 = vunpack.c.l.b16 %v1077
    %v2516 = vunpack.c.h.b16 %v1077
    %v2517 = vunpack.c.l.b16 %v1078
    %v2518 = vunpack.c.h.b16 %v1078
    %v2519 = vunpack.c.l.b16 %v1079
    %v2520 = vunpack.c.h.b16 %v1079
    %v2521 = vunpack.c.l.b16 %v1080
    %v2522 = vunpack.c.h.b16 %v1080
    %v2523 = vunpack.c.l.b16 %v1081
    %v2524 = vunpack.c.h.b16 %v1081
    %v2525 = vunpack.c.l.b16 %v1082
    %v2526 = vunpack.c.h.b16 %v1082
    %v2527 = vunpack.c.l.b16 %v1083
    %v2528 = vunpack.c.h.b16 %v1083
    %v2529 = vunpack.c.l.b16 %v1084
    %v2530 = vunpack.c.h.b16 %v1084
    %v2531 = vunpack.c.l.b16 %v1085
    %v2532 = vunpack.c.h.b16 %v1085
    %v2533 = vunpack.c.l.b16 %v1086
    %v2534 = vunpack.c.h.b16 %v1086
    %v2535 = vunpack.c.l.b16 %v1087
    %v2536 = vunpack.c.h.b16 %v1087
    %v2537 = vunpack.c.l.b16 %v1088
    %v2538 = vunpack.c.h.b16 %v1088
    %v2539 = vunpack.c.l.b16 %v1089
    %v2540 = vunpack.c.h.b16 %v1089
    %v2541 = vunpack.c.l.b16 %v1090
    %v2542 = vunpack.c.h.b16 %v1090
    %v2543 = vunpack.c.l.b16 %v1091
    %v2544 = vunpack.c.h.b16 %v1091
    %v2545 = vunpack.c.l.b16 %v1092
    %v2546 = vunpack.c.h.b16 %v1092
    %v2547 = vunpack.c.l.b16 %v1093
    %v2548 = vunpack.c.h.b16 %v1093
    %v2549 = vunpack.c.l.b16 %v1094
    %v2550 = vunpack.c.h.b16 %v1094
    %v2551 = vunpack.c.l.b16 %v1095
    %v2552 = vunpack.c.h.b16 %v1095
    %v2553 = vunpack.c.l.b16 %v1096
    %v2554 = vunpack.c.h.b16 %v1096
    %v2555 = vunpack.c.l.b16 %v1097
    %v2556 = vunpack.c.h.b16 %v1097
    %v2557 = vunpack.c.l.b16 %v1098
    %v2558 = vunpack.c.h.b16 %v1098
    %v2559 = vunpack.c.l.b16 %v1099
    %v2560 = vunpack.c.h.b16 %v1099
    %v2561 = vunpack.c.l.b16 %v1100
    %v2562 = vunpack.c.h.b16 %v1100
    %v2563 = vunpack.c.l.b16 %v1101
    %v2564 = vunpack.c.h.b16 %v1101
    %v2565 = vunpack.c.l.b16 %v1102
    %v2566 = vunpack.c.h.b16 %v1102
    %v2567 = vunpack.c.l.b16 %v1103
    %v2568 = vunpack.c.h.b16 %v1103
    %v2569 = vunpack.c.l.b16 %v1104
    %v2570 = vunpack.c.h.b16 %v1104
    %v2571 = vunpack.c.l.b16 %v1105
    %v2572 = vunpack.c.h.b16 %v1105
    %v2573 = vunpack.c.l.b16 %v1106
    %v2574 = vunpack.c.h.b16 %v1106
    %v2575 = vunpack.c.l.b16 %v1107
    %v2576 = vunpack.c.h.b16 %v1107
    %v2577 = vunpack.c.l.b16 %v1108
    %v2578 = vunpack.c.h.b16 %v1108
    %v2579 = vunpack.c.l.b16 %v1109
    %v2580 = vunpack.c.h.b16 %v1109
    %v2581 = vunpack.c.l.b16 %v1110
    %v2582 = vunpack.c.h.b16 %v1110
    %v2583 = vunpack.c.l.b16 %v1111
    %v2584 = vunpack.c.h.b16 %v1111
    %v2585 = vunpack.c.l.b16 %v1112
    %v2586 = vunpack.c.h.b16 %v1112
    %v2587 = vunpack.c.l.b16 %v1113
    %v2588 = vunpack.c.h.b16 %v1113
    %v2589 = vunpack.c.l.b16 %v1114
    %v2590 = vunpack.c.h.b16 %v1114
    %v2591 = vunpack.c.l.b16 %v1115
    %v2592 = vunpack.c.h.b16 %v1115
    %v2593 = vunpack.c.l.b16 %v1116
    %v2594 = vunpack.c.h.b16 %v1116
    %v2595 = vunpack.c.l.b16 %v1117
    %v2596 = vunpack.c.h.b16 %v1117
    %v2597 = vunpack.c.l.b16 %v1118
    %v2598 = vunpack.c.h.b16 %v1118
    %v2599 = vunpack.c.l.b16 %v1119
    %v2600 = vunpack.c.h.b16 %v1119
    %v2601 = vunpack.c.l.b16 %v1120
    %v2602 = vunpack.c.h.b16 %v1120
    %v2603 = vunpack.c.l.b16 %v1121
    %v2604 = vunpack.c.h.b16 %v1121
    %v2605 = vunpack.c.l.b16 %v1122
    %v2606 = vunpack.c.h.b16 %v1122
    %v2607 = vunpack.c.l.b16 %v1123
    %v2608 = vunpack.c.h.b16 %v1123
    %v2609 = vunpack.c.l.b16 %v1124
    %v2610 = vunpack.c.h.b16 %v1124
    %v2611 = vunpack.c.l.b16 %v1125
    %v2612 = vunpack.c.h.b16 %v1125
    %v2613 = vunpack.c.l.b16 %v1126
    %v2614 = vunpack.c.h.b16 %v1126
    %v2615 = vunpack.c.l.b16 %v1127
    %v2616 = vunpack.c.h.b16 %v1127
    %v2617 = vunpack.c.l.b16 %v1128
    %v2618 = vunpack.c.h.b16 %v1128
    %v2619 = vunpack.c.l.b16 %v1129
    %v2620 = vunpack.c.h.b16 %v1129
    %v2621 = vunpack.c.l.b16 %v1130
    %v2622 = vunpack.c.h.b16 %v1130
    %v2623 = vunpack.c.l.b16 %v1131
    %v2624 = vunpack.c.h.b16 %v1131
    %v2625 = vunpack.c.l.b16 %v1132
    %v2626 = vunpack.c.h.b16 %v1132
    %v2627 = vunpack.c.l.b16 %v1133
    %v2628 = vunpack.c.h.b16 %v1133
    %v2629 = vunpack.c.l.b16 %v1134
    %v2630 = vunpack.c.h.b16 %v1134
    %v2631 = vunpack.c.l.b16 %v1135
    %v2632 = vunpack.c.h.b16 %v1135
    %v2633 = vunpack.c.l.b16 %v1136
    %v2634 = vunpack.c.h.b16 %v1136
    %v2635 = vunpack.c.l.b16 %v1137
    %v2636 = vunpack.c.h.b16 %v1137
    %v2637 = vunpack.c.l.b16 %v1138
    %v2638 = vunpack.c.h.b16 %v1138
    %v2639 = vunpack.c.l.b16 %v1139
    %v2640 = vunpack.c.h.b16 %v1139
    %v2641 = vunpack.c.l.b16 %v1140
    %v2642 = vunpack.c.h.b16 %v1140
    %v2643 = vunpack.c.l.b16 %v1141
    %v2644 = vunpack.c.h.b16 %v1141
    %v2645 = vunpack.c.l.b16 %v1142
    %v2646 = vunpack.c.h.b16 %v1142
    %v2647 = vunpack.c.l.b16 %v1143
    %v2648 = vunpack.c.h.b16 %v1143
    %v2649 = vunpack.c.l.b16 %v1144
    %v2650 = vunpack.c.h.b16 %v1144
    %v2651 = vunpack.c.l.b16 %v1145
    %v2652 = vunpack.c.h.b16 %v1145
    %v2653 = vunpack.c.l.b16 %v1146
    %v2654 = vunpack.c.h.b16 %v1146
    %v2655 = vunpack.c.l.b16 %v1147
    %v2656 = vunpack.c.h.b16 %v1147
    %v2657 = vunpack.c.l.b16 %v1148
    %v2658 = vunpack.c.h.b16 %v1148
    %v2659 = vunpack.c.l.b16 %v1149
    %v2660 = vunpack.c.h.b16 %v1149
    %v2661 = vunpack.c.l.b16 %v1150
    %v2662 = vunpack.c.h.b16 %v1150
    %v2663 = vunpack.c.l.b16 %v1151
    %v2664 = vunpack.c.h.b16 %v1151
    %v2665 = vunpack.c.l.b16 %v1152
    %v2666 = vunpack.c.h.b16 %v1152
    %v2667 = vunpack.c.l.b16 %v1153
    %v2668 = vunpack.c.h.b16 %v1153
    %v2669 = vunpack.c.l.b16 %v1154
    %v2670 = vunpack.c.h.b16 %v1154
    %v2671 = vunpack.c.l.b16 %v1155
    %v2672 = vunpack.c.h.b16 %v1155
    %v2673 = vunpack.c.l.b16 %v1156
    %v2674 = vunpack.c.h.b16 %v1156
    %v2675 = vunpack.c.l.b16 %v1157
    %v2676 = vunpack.c.h.b16 %v1157
    %v2677 = vunpack.c.l.b16 %v1158
    %v2678 = vunpack.c.h.b16 %v1158
    %v2679 = vunpack.c.l.b16 %v1159
    %v2680 = vunpack.c.h.b16 %v1159
    %v2681 = vunpack.c.l.b16 %v1160
    %v2682 = vunpack.c.h.b16 %v1160
    %v2683 = vunpack.c.l.b16 %v1161
    %v2684 = vunpack.c.h.b16 %v1161
    %v2685 = vunpack.c.l.b16 %v1162
    %v2686 = vunpack.c.h.b16 %v1162
    %v2687 = vunpack.c.l.b16 %v1163
    %v2688 = vunpack.c.h.b16 %v1163
    %v2689 = vunpack.c.l.b16 %v1164
    %v2690 = vunpack.c.h.b16 %v1164
    %v2691 = vunpack.c.l.b16 %v1165
    %v2692 = vunpack.c.h.b16 %v1165
    %v2693 = vunpack.c.l.b16 %v1166
    %v2694 = vunpack.c.h.b16 %v1166
    %v2695 = vunpack.c.l.b16 %v1167
    %v2696 = vunpack.c.h.b16 %v1167
    %v2697 = vunpack.c.l.b16 %v1168
    %v2698 = vunpack.c.h.b16 %v1168
    %v2699 = vunpack.c.l.b16 %v1169
    %v2700 = vunpack.c.h.b16 %v1169
    %v2701 = vunpack.c.l.b16 %v1170
    %v2702 = vunpack.c.h.b16 %v1170
    %v2703 = vunpack.c.l.b16 %v1171
    %v2704 = vunpack.c.h.b16 %v1171
    %v2705 = vunpack.c.l.b16 %v1172
    %v2706 = vunpack.c.h.b16 %v1172
    %v2707 = vunpack.c.l.b16 %v1173
    %v2708 = vunpack.c.h.b16 %v1173
    %v2709 = vunpack.c.l.b16 %v1174
    %v2710 = vunpack.c.h.b16 %v1174
    %v2711 = vunpack.c.l.b16 %v1175
    %v2712 = vunpack.c.h.b16 %v1175
    %v2713 = vunpack.c.l.b16 %v1176
    %v2714 = vunpack.c.h.b16 %v1176
    %v2715 = vunpack.c.l.b16 %v1177
    %v2716 = vunpack.c.h.b16 %v1177
    %v2717 = vunpack.c.l.b16 %v1178
    %v2718 = vunpack.c.h.b16 %v1178
    %v2719 = vunpack.c.l.b16 %v1179
    %v2720 = vunpack.c.h.b16 %v1179
    %v2721 = vunpack.c.l.b16 %v1180
    %v2722 = vunpack.c.h.b16 %v1180
    %v2723 = vunpack.c.l.b16 %v1181
    %v2724 = vunpack.c.h.b16 %v1181
    %v2725 = vunpack.c.l.b16 %v1182
    %v2726 = vunpack.c.h.b16 %v1182
    %v2727 = vunpack.c.l.b16 %v1183
    %v2728 = vunpack.c.h.b16 %v1183
    %v2729 = vunpack.c.l.b16 %v1184
    %v2730 = vunpack.c.h.b16 %v1184
    %v2731 = vunpack.c.l.b16 %v1185
    %v2732 = vunpack.c.h.b16 %v1185
    %v2733 = vunpack.c.l.b16 %v1186
    %v2734 = vunpack.c.h.b16 %v1186
    %v2735 = vunpack.c.l.b16 %v1187
    %v2736 = vunpack.c.h.b16 %v1187
    %v2737 = vunpack.c.l.b16 %v1188
    %v2738 = vunpack.c.h.b16 %v1188
    %v2739 = vunpack.c.l.b16 %v1189
    %v2740 = vunpack.c.h.b16 %v1189
    %v2741 = vunpack.c.l.b16 %v1190
    %v2742 = vunpack.c.h.b16 %v1190
    %v2743 = vunpack.c.l.b16 %v1191
    %v2744 = vunpack.c.h.b16 %v1191
    %v2745 = vunpack.c.l.b16 %v1192
    %v2746 = vunpack.c.h.b16 %v1192
    %v2747 = vpack.c.b16 %v1731, %v1723
    %v2748 = vpack.c.b16 %v1732, %v1724
    %v2749 = vpack.c.b16 %v1733, %v1725
    %v2750 = vpack.c.b16 %v1734, %v1726
    %v2751 = vpack.c.b16 %v1735, %v1727
    %v2752 = vpack.c.b16 %v1736, %v1728
    %v2753 = vpack.c.b16 %v1737, %v1729
    %v2754 = vpack.c.b16 %v1738, %v1730
    %v2755 = vpack.c.b16 %v1747, %v1739
    %v2756 = vpack.c.b16 %v1748, %v1740
    %v2757 = vpack.c.b16 %v1749, %v1741
    %v2758 = vpack.c.b16 %v1750, %v1742
    %v2759 = vpack.c.b16 %v1751, %v1743
    %v2760 = vpack.c.b16 %v1752, %v1744
    %v2761 = vpack.c.b16 %v1753, %v1745
    %v2762 = vpack.c.b16 %v1754, %v1746
    %v2763 = vpack.c.b16 %v1763, %v1755
    %v2764 = vpack.c.b16 %v1764, %v1756
    %v2765 = vpack.c.b16 %v1765, %v1757
    %v2766 = vpack.c.b16 %v1766, %v1758
    %v2767 = vpack.c.b16 %v1767, %v1759
    %v2768 = vpack.c.b16 %v1768, %v1760
    %v2769 = vpack.c.b16 %v1769, %v1761
    %v2770 = vpack.c.b16 %v1770, %v1762
    %v2771 = vpack.c.b16 %v1779, %v1771
    %v2772 = vpack.c.b16 %v1780, %v1772
    %v2773 = vpack.c.b16 %v1781, %v1773
    %v2774 = vpack.c.b16 %v1782, %v1774
    %v2775 = vpack.c.b16 %v1783, %v1775
    %v2776 = vpack.c.b16 %v1784, %v1776
    %v2777 = vpack.c.b16 %v1785, %v1777
    %v2778 = vpack.c.b16 %v1786, %v1778
    %v2779 = vpack.c.b16 %v1795, %v1787
    %v2780 = vpack.c.b16 %v1796, %v1788
    %v2781 = vpack.c.b16 %v1797, %v1789
    %v2782 = vpack.c.b16 %v1798, %v1790
    %v2783 = vpack.c.b16 %v1799, %v1791
    %v2784 = vpack.c.b16 %v1800, %v1792
    %v2785 = vpack.c.b16 %v1801, %v1793
    %v2786 = vpack.c.b16 %v1802, %v1794
    %v2787 = vpack.c.b16 %v1811, %v1803
    %v2788 = vpack.c.b16 %v1812, %v1804
    %v2789 = vpack.c.b16 %v1813, %v1805
    %v2790 = vpack.c.b16 %v1814, %v1806
    %v2791 = vpack.c.b16 %v1815, %v1807
    %v2792 = vpack.c.b16 %v1816, %v1808
    %v2793 = vpack.c.b16 %v1817, %v1809
    %v2794 = vpack.c.b16 %v1818, %v1810
    %v2795 = vpack.c.b16 %v1827, %v1819
    %v2796 = vpack.c.b16 %v1828, %v1820
    %v2797 = vpack.c.b16 %v1829, %v1821
    %v2798 = vpack.c.b16 %v1830, %v1822
    %v2799 = vpack.c.b16 %v1831, %v1823
    %v2800 = vpack.c.b16 %v1832, %v1824
    %v2801 = vpack.c.b16 %v1833, %v1825
    %v2802 = vpack.c.b16 %v1834, %v1826
    %v2803 = vpack.c.b16 %v1843, %v1835
    %v2804 = vpack.c.b16 %v1844, %v1836
    %v2805 = vpack.c.b16 %v1845, %v1837
    %v2806 = vpack.c.b16 %v1846, %v1838
    %v2807 = vpack.c.b16 %v1847, %v1839
    %v2808 = vpack.c.b16 %v1848, %v1840
    %v2809 = vpack.c.b16 %v1849, %v1841
    %v2810 = vpack.c.b16 %v1850, %v1842
    %v2811 = vpack.c.b16 %v1859, %v1851
    %v2812 = vpack.c.b16 %v1860, %v1852
    %v2813 = vpack.c.b16 %v1861, %v1853
    %v2814 = vpack.c.b16 %v1862, %v1854
    %v2815 = vpack.c.b16 %v1863, %v1855
    %v2816 = vpack.c.b16 %v1864, %v1856
    %v2817 = vpack.c.b16 %v1865, %v1857
    %v2818 = vpack.c.b16 %v1866, %v1858
    %v2819 = vpack.c.b16 %v1875, %v1867
    %v2820 = vpack.c.b16 %v1876, %v1868
    %v2821 = vpack.c.b16 %v1877, %v1869
    %v2822 = vpack.c.b16 %v1878, %v1870
    %v2823 = vpack.c.b16 %v1879, %v1871
    %v2824 = vpack.c.b16 %v1880, %v1872
    %v2825 = vpack.c.b16 %v1881, %v1873
    %v2826 = vpack.c.b16 %v1882, %v1874
    %v2827 = vpack.c.b16 %v1891, %v1883
    %v2828 = vpack.c.b16 %v1892, %v1884
    %v2829 = vpack.c.b16 %v1893, %v1885
    %v2830 = vpack.c.b16 %v1894, %v1886
    %v2831 = vpack.c.b16 %v1895, %v1887
    %v2832 = vpack.c.b16 %v1896, %v1888
    %v2833 = vpack.c.b16 %v1897, %v1889
    %v2834 = vpack.c.b16 %v1898, %v1890
    %v2835 = vpack.c.b16 %v1907, %v1899
    %v2836 = vpack.c.b16 %v1908, %v1900
    %v2837 = vpack.c.b16 %v1909, %v1901
    %v2838 = vpack.c.b16 %v1910, %v1902
    %v2839 = vpack.c.b16 %v1911, %v1903
    %v2840 = vpack.c.b16 %v1912, %v1904
    %v2841 = vpack.c.b16 %v1913, %v1905
    %v2842 = vpack.c.b16 %v1914, %v1906
    %v2843 = vpack.c.b16 %v1923, %v1915
    %v2844 = vpack.c.b16 %v1924, %v1916
    %v2845 = vpack.c.b16 %v1925, %v1917
    %v2846 = vpack.c.b16 %v1926, %v1918
    %v2847 = vpack.c.b16 %v1927, %v1919
    %v2848 = vpack.c.b16 %v1928, %v1920
    %v2849 = vpack.c.b16 %v1929, %v1921
    %v2850 = vpack.c.b16 %v1930, %v1922
    %v2851 = vpack.c.b16 %v1939, %v1931
    %v2852 = vpack.c.b16 %v1940, %v1932
    %v2853 = vpack.c.b16 %v1941, %v1933
    %v2854 = vpack.c.b16 %v1942, %v1934
    %v2855 = vpack.c.b16 %v1943, %v1935
    %v2856 = vpack.c.b16 %v1944, %v1936
    %v2857 = vpack.c.b16 %v1945, %v1937
    %v2858 = vpack.c.b16 %v1946, %v1938
    %v2859 = vpack.c.b16 %v1955, %v1947
    %v2860 = vpack.c.b16 %v1956, %v1948
    %v2861 = vpack.c.b16 %v1957, %v1949
    %v2862 = vpack.c.b16 %v1958, %v1950
    %v2863 = vpack.c.b16 %v1959, %v1951
    %v2864 = vpack.c.b16 %v1960, %v1952
    %v2865 = vpack.c.b16 %v1961, %v1953
    %v2866 = vpack.c.b16 %v1962, %v1954
    %v2867 = vpack.c.b16 %v1971, %v1963
    %v2868 = vpack.c.b16 %v1972, %v1964
    %v2869 = vpack.c.b16 %v1973, %v1965
    %v2870 = vpack.c.b16 %v1974, %v1966
    %v2871 = vpack.c.b16 %v1975, %v1967
    %v2872 = vpack.c.b16 %v1976, %v1968
    %v2873 = vpack.c.b16 %v1977, %v1969
    %v2874 = vpack.c.b16 %v1978, %v1970
    %v2875 = vpack.c.b16 %v1987, %v1979
    %v2876 = vpack.c.b16 %v1988, %v1980
    %v2877 = vpack.c.b16 %v1989, %v1981
    %v2878 = vpack.c.b16 %v1990, %v1982
    %v2879 = vpack.c.b16 %v1991, %v1983
    %v2880 = vpack.c.b16 %v1992, %v1984
    %v2881 = vpack.c.b16 %v1993, %v1985
    %v2882 = vpack.c.b16 %v1994, %v1986
    %v2883 = vpack.c.b16 %v2003, %v1995
    %v2884 = vpack.c.b16 %v2004, %v1996
    %v2885 = vpack.c.b16 %v2005, %v1997
    %v2886 = vpack.c.b16 %v2006, %v1998
    %v2887 = vpack.c.b16 %v2007, %v1999
    %v2888 = vpack.c.b16 %v2008, %v2000
    %v2889 = vpack.c.b16 %v2009, %v2001
    %v2890 = vpack.c.b16 %v2010, %v2002
    %v2891 = vpack.c.b16 %v2019, %v2011
    %v2892 = vpack.c.b16 %v2020, %v2012
    %v2893 = vpack.c.b16 %v2021, %v2013
    %v2894 = vpack.c.b16 %v2022, %v2014
    %v2895 = vpack.c.b16 %v2023, %v2015
    %v2896 = vpack.c.b16 %v2024, %v2016
    %v2897 = vpack.c.b16 %v2025, %v2017
    %v2898 = vpack.c.b16 %v2026, %v2018
    %v2899 = vpack.c.b16 %v2035, %v2027
    %v2900 = vpack.c.b16 %v2036, %v2028
    %v2901 = vpack.c.b16 %v2037, %v2029
    %v2902 = vpack.c.b16 %v2038, %v2030
    %v2903 = vpack.c.b16 %v2039, %v2031
    %v2904 = vpack.c.b16 %v2040, %v2032
    %v2905 = vpack.c.b16 %v2041, %v2033
    %v2906 = vpack.c.b16 %v2042, %v2034
    %v2907 = vpack.c.b16 %v2051, %v2043
    %v2908 = vpack.c.b16 %v2052, %v2044
    %v2909 = vpack.c.b16 %v2053, %v2045
    %v2910 = vpack.c.b16 %v2054, %v2046
    %v2911 = vpack.c.b16 %v2055, %v2047
    %v2912 = vpack.c.b16 %v2056, %v2048
    %v2913 = vpack.c.b16 %v2057, %v2049
    %v2914 = vpack.c.b16 %v2058, %v2050
    %v2915 = vpack.c.b16 %v2067, %v2059
    %v2916 = vpack.c.b16 %v2068, %v2060
    %v2917 = vpack.c.b16 %v2069, %v2061
    %v2918 = vpack.c.b16 %v2070, %v2062
    %v2919 = vpack.c.b16 %v2071, %v2063
    %v2920 = vpack.c.b16 %v2072, %v2064
    %v2921 = vpack.c.b16 %v2073, %v2065
    %v2922 = vpack.c.b16 %v2074, %v2066
    %v2923 = vpack.c.b16 %v2083, %v2075
    %v2924 = vpack.c.b16 %v2084, %v2076
    %v2925 = vpack.c.b16 %v2085, %v2077
    %v2926 = vpack.c.b16 %v2086, %v2078
    %v2927 = vpack.c.b16 %v2087, %v2079
    %v2928 = vpack.c.b16 %v2088, %v2080
    %v2929 = vpack.c.b16 %v2089, %v2081
    %v2930 = vpack.c.b16 %v2090, %v2082
    %v2931 = vpack.c.b16 %v2099, %v2091
    %v2932 = vpack.c.b16 %v2100, %v2092
    %v2933 = vpack.c.b16 %v2101, %v2093
    %v2934 = vpack.c.b16 %v2102, %v2094
    %v2935 = vpack.c.b16 %v2103, %v2095
    %v2936 = vpack.c.b16 %v2104, %v2096
    %v2937 = vpack.c.b16 %v2105, %v2097
    %v2938 = vpack.c.b16 %v2106, %v2098
    %v2939 = vpack.c.b16 %v2115, %v2107
    %v2940 = vpack.c.b16 %v2116, %v2108
    %v2941 = vpack.c.b16 %v2117, %v2109
    %v2942 = vpack.c.b16 %v2118, %v2110
    %v2943 = vpack.c.b16 %v2119, %v2111
    %v2944 = vpack.c.b16 %v2120, %v2112
    %v2945 = vpack.c.b16 %v2121, %v2113
    %v2946 = vpack.c.b16 %v2122, %v2114
    %v2947 = vpack.c.b16 %v2131, %v2123
    %v2948 = vpack.c.b16 %v2132, %v2124
    %v2949 = vpack.c.b16 %v2133, %v2125
    %v2950 = vpack.c.b16 %v2134, %v2126
    %v2951 = vpack.c.b16 %v2135, %v2127
    %v2952 = vpack.c.b16 %v2136, %v2128
    %v2953 = vpack.c.b16 %v2137, %v2129
    %v2954 = vpack.c.b16 %v2138, %v2130
    %v2955 = vpack.c.b16 %v2147, %v2139
    %v2956 = vpack.c.b16 %v2148, %v2140
    %v2957 = vpack.c.b16 %v2149, %v2141
    %v2958 = vpack.c.b16 %v2150, %v2142
    %v2959 = vpack.c.b16 %v2151, %v2143
    %v2960 = vpack.c.b16 %v2152, %v2144
    %v2961 = vpack.c.b16 %v2153, %v2145
    %v2962 = vpack.c.b16 %v2154, %v2146
    %v2963 = vpack.c.b16 %v2163, %v2155
    %v2964 = vpack.c.b16 %v2164, %v2156
    %v2965 = vpack.c.b16 %v2165, %v2157
    %v2966 = vpack.c.b16 %v2166, %v2158
    %v2967 = vpack.c.b16 %v2167, %v2159
    %v2968 = vpack.c.b16 %v2168, %v2160
    %v2969 = vpack.c.b16 %v2169, %v2161
    %v2970 = vpack.c.b16 %v2170, %v2162
    %v2971 = vpack.c.b16 %v2179, %v2171
    %v2972 = vpack.c.b16 %v2180, %v2172
    %v2973 = vpack.c.b16 %v2181, %v2173
    %v2974 = vpack.c.b16 %v2182, %v2174
    %v2975 = vpack.c.b16 %v2183, %v2175
    %v2976 = vpack.c.b16 %v2184, %v2176
    %v2977 = vpack.c.b16 %v2185, %v2177
    %v2978 = vpack.c.b16 %v2186, %v2178
    %v2979 = vpack.c.b16 %v2195, %v2187
    %v2980 = vpack.c.b16 %v2196, %v2188
    %v2981 = vpack.c.b16 %v2197, %v2189
    %v2982 = vpack.c.b16 %v2198, %v2190
    %v2983 = vpack.c.b16 %v2199, %v2191
    %v2984 = vpack.c.b16 %v2200, %v2192
    %v2985 = vpack.c.b16 %v2201, %v2193
    %v2986 = vpack.c.b16 %v2202, %v2194
    %v2987 = vpack.c.b16 %v2211, %v2203
    %v2988 = vpack.c.b16 %v2212, %v2204
    %v2989 = vpack.c.b16 %v2213, %v2205
    %v2990 = vpack.c.b16 %v2214, %v2206
    %v2991 = vpack.c.b16 %v2215, %v2207
    %v2992 = vpack.c.b16 %v2216, %v2208
    %v2993 = vpack.c.b16 %v2217, %v2209
    %v2994 = vpack.c.b16 %v2218, %v2210
    %v2995 = vpack.c.b16 %v2227, %v2219
    %v2996 = vpack.c.b16 %v2228, %v2220
    %v2997 = vpack.c.b16 %v2229, %v2221
    %v2998 = vpack.c.b16 %v2230, %v2222
    %v2999 = vpack.c.b16 %v2231, %v2223
    %v3000 = vpack.c.b16 %v2232, %v2224
    %v3001 = vpack.c.b16 %v2233, %v2225
    %v3002 = vpack.c.b16 %v2234, %v2226
    %v3003 = vpack.c.b16 %v2243, %v2235
    %v3004 = vpack.c.b16 %v2244, %v2236
    %v3005 = vpack.c.b16 %v2245, %v2237
    %v3006 = vpack.c.b16 %v2246, %v2238
    %v3007 = vpack.c.b16 %v2247, %v2239
    %v3008 = vpack.c.b16 %v2248, %v2240
    %v3009 = vpack.c.b16 %v2249, %v2241
    %v3010 = vpack.c.b16 %v2250, %v2242
    %v3011 = vpack.c.b16 %v2259, %v2251
    %v3012 = vpack.c.b16 %v2260, %v2252
    %v3013 = vpack.c.b16 %v2261, %v2253
    %v3014 = vpack.c.b16 %v2262, %v2254
    %v3015 = vpack.c.b16 %v2263, %v2255
    %v3016 = vpack.c.b16 %v2264, %v2256
    %v3017 = vpack.c.b16 %v2265, %v2257
    %v3018 = vpack.c.b16 %v2266, %v2258
    %v3019 = vpack.c.b16 %v2275, %v2267
    %v3020 = vpack.c.b16 %v2276, %v2268
    %v3021 = vpack.c.b16 %v2277, %v2269
    %v3022 = vpack.c.b16 %v2278, %v2270
    %v3023 = vpack.c.b16 %v2279, %v2271
    %v3024 = vpack.c.b16 %v2280, %v2272
    %v3025 = vpack.c.b16 %v2281, %v2273
    %v3026 = vpack.c.b16 %v2282, %v2274
    %v3027 = vpack.c.b16 %v2291, %v2283
    %v3028 = vpack.c.b16 %v2292, %v2284
    %v3029 = vpack.c.b16 %v2293, %v2285
    %v3030 = vpack.c.b16 %v2294, %v2286
    %v3031 = vpack.c.b16 %v2295, %v2287
    %v3032 = vpack.c.b16 %v2296, %v2288
    %v3033 = vpack.c.b16 %v2297, %v2289
    %v3034 = vpack.c.b16 %v2298, %v2290
    %v3035 = vpack.c.b16 %v2307, %v2299
    %v3036 = vpack.c.b16 %v2308, %v2300
    %v3037 = vpack.c.b16 %v2309, %v2301
    %v3038 = vpack.c.b16 %v2310, %v2302
    %v3039 = vpack.c.b16 %v2311, %v2303
    %v3040 = vpack.c.b16 %v2312, %v2304
    %v3041 = vpack.c.b16 %v2313, %v2305
    %v3042 = vpack.c.b16 %v2314, %v2306
    %v3043 = vpack.c.b16 %v2323, %v2315
    %v3044 = vpack.c.b16 %v2324, %v2316
    %v3045 = vpack.c.b16 %v2325, %v2317
    %v3046 = vpack.c.b16 %v2326, %v2318
    %v3047 = vpack.c.b16 %v2327, %v2319
    %v3048 = vpack.c.b16 %v2328, %v2320
    %v3049 = vpack.c.b16 %v2329, %v2321
    %v3050 = vpack.c.b16 %v2330, %v2322
    %v3051 = vpack.c.b16 %v2339, %v2331
    %v3052 = vpack.c.b16 %v2340, %v2332
    %v3053 = vpack.c.b16 %v2341, %v2333
    %v3054 = vpack.c.b16 %v2342, %v2334
    %v3055 = vpack.c.b16 %v2343, %v2335
    %v3056 = vpack.c.b16 %v2344, %v2336
    %v3057 = vpack.c.b16 %v2345, %v2337
    %v3058 = vpack.c.b16 %v2346, %v2338
    %v3059 = vpack.c.b16 %v2355, %v2347
    %v3060 = vpack.c.b16 %v2356, %v2348
    %v3061 = vpack.c.b16 %v2357, %v2349
    %v3062 = vpack.c.b16 %v2358, %v2350
    %v3063 = vpack.c.b16 %v2359, %v2351
    %v3064 = vpack.c.b16 %v2360, %v2352
    %v3065 = vpack.c.b16 %v2361, %v2353
    %v3066 = vpack.c.b16 %v2362, %v2354
    %v3067 = vpack.c.b16 %v2371, %v2363
    %v3068 = vpack.c.b16 %v2372, %v2364
    %v3069 = vpack.c.b16 %v2373, %v2365
    %v3070 = vpack.c.b16 %v2374, %v2366
    %v3071 = vpack.c.b16 %v2375, %v2367
    %v3072 = vpack.c.b16 %v2376, %v2368
    %v3073 = vpack.c.b16 %v2377, %v2369
    %v3074 = vpack.c.b16 %v2378, %v2370
    %v3075 = vpack.c.b16 %v2387, %v2379
    %v3076 = vpack.c.b16 %v2388, %v2380
    %v3077 = vpack.c.b16 %v2389, %v2381
    %v3078 = vpack.c.b16 %v2390, %v2382
    %v3079 = vpack.c.b16 %v2391, %v2383
    %v3080 = vpack.c.b16 %v2392, %v2384
    %v3081 = vpack.c.b16 %v2393, %v2385
    %v3082 = vpack.c.b16 %v2394, %v2386
    %v3083 = vpack.c.b16 %v2403, %v2395
    %v3084 = vpack.c.b16 %v2404, %v2396
    %v3085 = vpack.c.b16 %v2405, %v2397
    %v3086 = vpack.c.b16 %v2406, %v2398
    %v3087 = vpack.c.b16 %v2407, %v2399
    %v3088 = vpack.c.b16 %v2408, %v2400
    %v3089 = vpack.c.b16 %v2409, %v2401
    %v3090 = vpack.c.b16 %v2410, %v2402
    %v3091 = vpack.c.b16 %v2419, %v2411
    %v3092 = vpack.c.b16 %v2420, %v2412
    %v3093 = vpack.c.b16 %v2421, %v2413
    %v3094 = vpack.c.b16 %v2422, %v2414
    %v3095 = vpack.c.b16 %v2423, %v2415
    %v3096 = vpack.c.b16 %v2424, %v2416
    %v3097 = vpack.c.b16 %v2425, %v2417
    %v3098 = vpack.c.b16 %v2426, %v2418
    %v3099 = vpack.c.b16 %v2435, %v2427
    %v3100 = vpack.c.b16 %v2436, %v2428
    %v3101 = vpack.c.b16 %v2437, %v2429
    %v3102 = vpack.c.b16 %v2438, %v2430
    %v3103 = vpack.c.b16 %v2439, %v2431
    %v3104 = vpack.c.b16 %v2440, %v2432
    %v3105 = vpack.c.b16 %v2441, %v2433
    %v3106 = vpack.c.b16 %v2442, %v2434
    %v3107 = vpack.c.b16 %v2451, %v2443
    %v3108 = vpack.c.b16 %v2452, %v2444
    %v3109 = vpack.c.b16 %v2453, %v2445
    %v3110 = vpack.c.b16 %v2454, %v2446
    %v3111 = vpack.c.b16 %v2455, %v2447
    %v3112 = vpack.c.b16 %v2456, %v2448
    %v3113 = vpack.c.b16 %v2457, %v2449
    %v3114 = vpack.c.b16 %v2458, %v2450
    %v3115 = vpack.c.b16 %v2467, %v2459
    %v3116 = vpack.c.b16 %v2468, %v2460
    %v3117 = vpack.c.b16 %v2469, %v2461
    %v3118 = vpack.c.b16 %v2470, %v2462
    %v3119 = vpack.c.b16 %v2471, %v2463
    %v3120 = vpack.c.b16 %v2472, %v2464
    %v3121 = vpack.c.b16 %v2473, %v2465
    %v3122 = vpack.c.b16 %v2474, %v2466
    %v3123 = vpack.c.b16 %v2483, %v2475
    %v3124 = vpack.c.b16 %v2484, %v2476
    %v3125 = vpack.c.b16 %v2485, %v2477
    %v3126 = vpack.c.b16 %v2486, %v2478
    %v3127 = vpack.c.b16 %v2487, %v2479
    %v3128 = vpack.c.b16 %v2488, %v2480
    %v3129 = vpack.c.b16 %v2489, %v2481
    %v3130 = vpack.c.b16 %v2490, %v2482
    %v3131 = vpack.c.b16 %v2499, %v2491
    %v3132 = vpack.c.b16 %v2500, %v2492
    %v3133 = vpack.c.b16 %v2501, %v2493
    %v3134 = vpack.c.b16 %v2502, %v2494
    %v3135 = vpack.c.b16 %v2503, %v2495
    %v3136 = vpack.c.b16 %v2504, %v2496
    %v3137 = vpack.c.b16 %v2505, %v2497
    %v3138 = vpack.c.b16 %v2506, %v2498
    %v3139 = vpack.c.b16 %v2515, %v2507
    %v3140 = vpack.c.b16 %v2516, %v2508
    %v3141 = vpack.c.b16 %v2517, %v2509
    %v3142 = vpack.c.b16 %v2518, %v2510
    %v3143 = vpack.c.b16 %v2519, %v2511
    %v3144 = vpack.c.b16 %v2520, %v2512
    %v3145 = vpack.c.b16 %v2521, %v2513
    %v3146 = vpack.c.b16 %v2522, %v2514
    %v3147 = vpack.c.b16 %v2531, %v2523
    %v3148 = vpack.c.b16 %v2532, %v2524
    %v3149 = vpack.c.b16 %v2533, %v2525
    %v3150 = vpack.c.b16 %v2534, %v2526
    %v3151 = vpack.c.b16 %v2535, %v2527
    %v3152 = vpack.c.b16 %v2536, %v2528
    %v3153 = vpack.c.b16 %v2537, %v2529
    %v3154 = vpack.c.b16 %v2538, %v2530
    %v3155 = vpack.c.b16 %v2547, %v2539
    %v3156 = vpack.c.b16 %v2548, %v2540
    %v3157 = vpack.c.b16 %v2549, %v2541
    %v3158 = vpack.c.b16 %v2550, %v2542
    %v3159 = vpack.c.b16 %v2551, %v2543
    %v3160 = vpack.c.b16 %v2552, %v2544
    %v3161 = vpack.c.b16 %v2553, %v2545
    %v3162 = vpack.c.b16 %v2554, %v2546
    %v3163 = vpack.c.b16 %v2563, %v2555
    %v3164 = vpack.c.b16 %v2564, %v2556
    %v3165 = vpack.c.b16 %v2565, %v2557
    %v3166 = vpack.c.b16 %v2566, %v2558
    %v3167 = vpack.c.b16 %v2567, %v2559
    %v3168 = vpack.c.b16 %v2568, %v2560
    %v3169 = vpack.c.b16 %v2569, %v2561
    %v3170 = vpack.c.b16 %v2570, %v2562
    %v3171 = vpack.c.b16 %v2579, %v2571
    %v3172 = vpack.c.b16 %v2580, %v2572
    %v3173 = vpack.c.b16 %v2581, %v2573
    %v3174 = vpack.c.b16 %v2582, %v2574
    %v3175 = vpack.c.b16 %v2583, %v2575
    %v3176 = vpack.c.b16 %v2584, %v2576
    %v3177 = vpack.c.b16 %v2585, %v2577
    %v3178 = vpack.c.b16 %v2586, %v2578
    %v3179 = vpack.c.b16 %v2595, %v2587
    %v3180 = vpack.c.b16 %v2596, %v2588
    %v3181 = vpack.c.b16 %v2597, %v2589
    %v3182 = vpack.c.b16 %v2598, %v2590
    %v3183 = vpack.c.b16 %v2599, %v2591
    %v3184 = vpack.c.b16 %v2600, %v2592
    %v3185 = vpack.c.b16 %v2601, %v2593
    %v3186 = vpack.c.b16 %v2602, %v2594
    %v3187 = vpack.c.b16 %v2611, %v2603
    %v3188 = vpack.c.b16 %v2612, %v2604
    %v3189 = vpack.c.b16 %v2613, %v2605
    %v3190 = vpack.c.b16 %v2614, %v2606
    %v3191 = vpack.c.b16 %v2615, %v2607
    %v3192 = vpack.c.b16 %v2616, %v2608
    %v3193 = vpack.c.b16 %v2617, %v2609
    %v3194 = vpack.c.b16 %v2618, %v2610
    %v3195 = vpack.c.b16 %v2627, %v2619
    %v3196 = vpack.c.b16 %v2628, %v2620
    %v3197 = vpack.c.b16 %v2629, %v2621
    %v3198 = vpack.c.b16 %v2630, %v2622
    %v3199 = vpack.c.b16 %v2631, %v2623
    %v3200 = vpack.c.b16 %v2632, %v2624
    %v3201 = vpack.c.b16 %v2633, %v2625
    %v3202 = vpack.c.b16 %v2634, %v2626
    %v3203 = vpack.c.b16 %v2643, %v2635
    %v3204 = vpack.c.b16 %v2644, %v2636
    %v3205 = vpack.c.b16 %v2645, %v2637
    %v3206 = vpack.c.b16 %v2646, %v2638
    %v3207 = vpack.c.b16 %v2647, %v2639
    %v3208 = vpack.c.b16 %v2648, %v2640
    %v3209 = vpack.c.b16 %v2649, %v2641
    %v3210 = vpack.c.b16 %v2650, %v2642
    %v3211 = vpack.c.b16 %v2659, %v2651
    %v3212 = vpack.c.b16 %v2660, %v2652
    %v3213 = vpack.c.b16 %v2661, %v2653
    %v3214 = vpack.c.b16 %v2662, %v2654
    %v3215 = vpack.c.b16 %v2663, %v2655
    %v3216 = vpack.c.b16 %v2664, %v2656
    %v3217 = vpack.c.b16 %v2665, %v2657
    %v3218 = vpack.c.b16 %v2666, %v2658
    %v3219 = vpack.c.b16 %v2675, %v2667
    %v3220 = vpack.c.b16 %v2676, %v2668
    %v3221 = vpack.c.b16 %v2677, %v2669
    %v3222 = vpack.c.b16 %v2678, %v2670
    %v3223 = vpack.c.b16 %v2679, %v2671
    %v3224 = vpack.c.b16 %v2680, %v2672
    %v3225 = vpack.c.b16 %v2681, %v2673
    %v3226 = vpack.c.b16 %v2682, %v2674
    %v3227 = vpack.c.b16 %v2691, %v2683
    %v3228 = vpack.c.b16 %v2692, %v2684
    %v3229 = vpack.c.b16 %v2693, %v2685
    %v3230 = vpack.c.b16 %v2694, %v2686
    %v3231 = vpack.c.b16 %v2695, %v2687
    %v3232 = vpack.c.b16 %v2696, %v2688
    %v3233 = vpack.c.b16 %v2697, %v2689
    %v3234 = vpack.c.b16 %v2698, %v2690
    %v3235 = vpack.c.b16 %v2707, %v2699
    %v3236 = vpack.c.b16 %v2708, %v2700
    %v3237 = vpack.c.b16 %v2709, %v2701
    %v3238 = vpack.c.b16 %v2710, %v2702
    %v3239 = vpack.c.b16 %v2711, %v2703
    %v3240 = vpack.c.b16 %v2712, %v2704
    %v3241 = vpack.c.b16 %v2713, %v2705
    %v3242 = vpack.c.b16 %v2714, %v2706
    %v3243 = vpack.c.b16 %v2723, %v2715
    %v3244 = vpack.c.b16 %v2724, %v2716
    %v3245 = vpack.c.b16 %v2725, %v2717
    %v3246 = vpack.c.b16 %v2726, %v2718
    %v3247 = vpack.c.b16 %v2727, %v2719
    %v3248 = vpack.c.b16 %v2728, %v2720
    %v3249 = vpack.c.b16 %v2729, %v2721
    %v3250 = vpack.c.b16 %v2730, %v2722
    %v3251 = vpack.c.b16 %v2739, %v2731
    %v3252 = vpack.c.b16 %v2740, %v2732
    %v3253 = vpack.c.b16 %v2741, %v2733
    %v3254 = vpack.c.b16 %v2742, %v2734
    %v3255 = vpack.c.b16 %v2743, %v2735
    %v3256 = vpack.c.b16 %v2744, %v2736
    %v3257 = vpack.c.b16 %v2745, %v2737
    %v3258 = vpack.c.b16 %v2746, %v2738
    %3771 = vmatpush.bf16.msra.mxu0 %v2803
    %3772 = vmatpush.bf16.msra.mxu0 %v2795
    %3773 = vmatpush.bf16.msra.mxu0 %v2787
    %3774 = vmatpush.bf16.msra.mxu0 %v2779
    %3775 = vmatpush.bf16.msra.mxu0 %v2771
    %3776 = vmatpush.bf16.msra.mxu0 %v2763
    %3777 = vmatpush.bf16.msra.mxu0 %v2755
    %3778 = vmatpush.bf16.msra.mxu0 %v2747
    %3779 = vmatmul.bf16.gmra.mxu0 %v657
    %v3780 = vpop.f32.mrf.mxu0
    %v3781 = vadd.f32 %v1195, %v3780
    %v3782 = vpop.f32.mrf.mxu0
    %v3783 = vadd.f32 %v1195, %v3782
    %3784 = vmatmul.bf16.gmra.mxu0 %v665
    %v3785 = vpop.f32.mrf.mxu0
    %v3786 = vadd.f32 %v1195, %v3785
    %v3787 = vpop.f32.mrf.mxu0
    %v3788 = vadd.f32 %v1195, %v3787
    %3789 = vmatmul.bf16.gmra.mxu0 %v673
    %v3790 = vpop.f32.mrf.mxu0
    %v3791 = vadd.f32 %v1195, %v3790
    %v3792 = vpop.f32.mrf.mxu0
    %v3793 = vadd.f32 %v1195, %v3792
    %3794 = vdwg.mxu0
    %3795 = vmatpush.bf16.msra.mxu0 %v2867
    %3796 = vmatpush.bf16.msra.mxu0 %v2859
    %3797 = vmatpush.bf16.msra.mxu0 %v2851
    %3798 = vmatpush.bf16.msra.mxu0 %v2843
    %3799 = vmatpush.bf16.msra.mxu0 %v2835
    %3800 = vmatpush.bf16.msra.mxu0 %v2827
    %3801 = vmatpush.bf16.msra.mxu0 %v2819
    %3802 = vmatpush.bf16.msra.mxu0 %v2811
    %3803 = vmatmul.bf16.gmra.mxu0 %v658
    %v3804 = vpop.f32.mrf.mxu0
    %v3805 = vadd.f32 %v3781, %v3804
    %v3806 = vpop.f32.mrf.mxu0
    %v3807 = vadd.f32 %v3783, %v3806
    %3808 = vmatmul.bf16.gmra.mxu0 %v666
    %v3809 = vpop.f32.mrf.mxu0
    %v3810 = vadd.f32 %v3786, %v3809
    %v3811 = vpop.f32.mrf.mxu0
    %v3812 = vadd.f32 %v3788, %v3811
    %3813 = vmatmul.bf16.gmra.mxu0 %v674
    %v3814 = vpop.f32.mrf.mxu0
    %v3815 = vadd.f32 %v3791, %v3814
    %v3816 = vpop.f32.mrf.mxu0
    %v3817 = vadd.f32 %v3793, %v3816
    %3818 = vdwg.mxu0
    %3819 = vmatpush.bf16.msra.mxu0 %v2931
    %3820 = vmatpush.bf16.msra.mxu0 %v2923
    %3821 = vmatpush.bf16.msra.mxu0 %v2915
    %3822 = vmatpush.bf16.msra.mxu0 %v2907
    %3823 = vmatpush.bf16.msra.mxu0 %v2899
    %3824 = vmatpush.bf16.msra.mxu0 %v2891
    %3825 = vmatpush.bf16.msra.mxu0 %v2883
    %3826 = vmatpush.bf16.msra.mxu0 %v2875
    %3827 = vmatmul.bf16.gmra.mxu0 %v659
    %v3828 = vpop.f32.mrf.mxu0
    %v3829 = vadd.f32 %v3805, %v3828
    %v3830 = vpop.f32.mrf.mxu0
    %v3831 = vadd.f32 %v3807, %v3830
    %3832 = vmatmul.bf16.gmra.mxu0 %v667
    %v3833 = vpop.f32.mrf.mxu0
    %v3834 = vadd.f32 %v3810, %v3833
    %v3835 = vpop.f32.mrf.mxu0
    %v3836 = vadd.f32 %v3812, %v3835
    %3837 = vmatmul.bf16.gmra.mxu0 %v675
    %v3838 = vpop.f32.mrf.mxu0
    %v3839 = vadd.f32 %v3815, %v3838
    %v3840 = vpop.f32.mrf.mxu0
    %v3841 = vadd.f32 %v3817, %v3840
    %3842 = vdwg.mxu0
    %3843 = vmatpush.bf16.msra.mxu0 %v2995
    %3844 = vmatpush.bf16.msra.mxu0 %v2987
    %3845 = vmatpush.bf16.msra.mxu0 %v2979
    %3846 = vmatpush.bf16.msra.mxu0 %v2971
    %3847 = vmatpush.bf16.msra.mxu0 %v2963
    %3848 = vmatpush.bf16.msra.mxu0 %v2955
    %3849 = vmatpush.bf16.msra.mxu0 %v2947
    %3850 = vmatpush.bf16.msra.mxu0 %v2939
    %3851 = vmatmul.bf16.gmra.mxu0 %v660
    %v3852 = vpop.f32.mrf.mxu0
    %v3853 = vadd.f32 %v3829, %v3852
    %v3854 = vpop.f32.mrf.mxu0
    %v3855 = vadd.f32 %v3831, %v3854
    %3856 = vmatmul.bf16.gmra.mxu0 %v668
    %v3857 = vpop.f32.mrf.mxu0
    %v3858 = vadd.f32 %v3834, %v3857
    %v3859 = vpop.f32.mrf.mxu0
    %v3860 = vadd.f32 %v3836, %v3859
    %3861 = vmatmul.bf16.gmra.mxu0 %v676
    %v3862 = vpop.f32.mrf.mxu0
    %v3863 = vadd.f32 %v3839, %v3862
    %v3864 = vpop.f32.mrf.mxu0
    %v3865 = vadd.f32 %v3841, %v3864
    %3866 = vdwg.mxu0
    %3867 = vmatpush.bf16.msra.mxu0 %v3059
    %3868 = vmatpush.bf16.msra.mxu0 %v3051
    %3869 = vmatpush.bf16.msra.mxu0 %v3043
    %3870 = vmatpush.bf16.msra.mxu0 %v3035
    %3871 = vmatpush.bf16.msra.mxu0 %v3027
    %3872 = vmatpush.bf16.msra.mxu0 %v3019
    %3873 = vmatpush.bf16.msra.mxu0 %v3011
    %3874 = vmatpush.bf16.msra.mxu0 %v3003
    %3875 = vmatmul.bf16.gmra.mxu0 %v661
    %v3876 = vpop.f32.mrf.mxu0
    %v3877 = vadd.f32 %v3853, %v3876
    %v3878 = vpop.f32.mrf.mxu0
    %v3879 = vadd.f32 %v3855, %v3878
    %3880 = vmatmul.bf16.gmra.mxu0 %v669
    %v3881 = vpop.f32.mrf.mxu0
    %v3882 = vadd.f32 %v3858, %v3881
    %v3883 = vpop.f32.mrf.mxu0
    %v3884 = vadd.f32 %v3860, %v3883
    %3885 = vmatmul.bf16.gmra.mxu0 %v677
    %v3886 = vpop.f32.mrf.mxu0
    %v3887 = vadd.f32 %v3863, %v3886
    %v3888 = vpop.f32.mrf.mxu0
    %v3889 = vadd.f32 %v3865, %v3888
    %3890 = vdwg.mxu0
    %3891 = vmatpush.bf16.msra.mxu0 %v3123
    %3892 = vmatpush.bf16.msra.mxu0 %v3115
    %3893 = vmatpush.bf16.msra.mxu0 %v3107
    %3894 = vmatpush.bf16.msra.mxu0 %v3099
    %3895 = vmatpush.bf16.msra.mxu0 %v3091
    %3896 = vmatpush.bf16.msra.mxu0 %v3083
    %3897 = vmatpush.bf16.msra.mxu0 %v3075
    %3898 = vmatpush.bf16.msra.mxu0 %v3067
    %3899 = vmatmul.bf16.gmra.mxu0 %v662
    %v3900 = vpop.f32.mrf.mxu0
    %v3901 = vadd.f32 %v3877, %v3900
    %v3902 = vpop.f32.mrf.mxu0
    %v3903 = vadd.f32 %v3879, %v3902
    %3904 = vmatmul.bf16.gmra.mxu0 %v670
    %v3905 = vpop.f32.mrf.mxu0
    %v3906 = vadd.f32 %v3882, %v3905
    %v3907 = vpop.f32.mrf.mxu0
    %v3908 = vadd.f32 %v3884, %v3907
    %3909 = vmatmul.bf16.gmra.mxu0 %v678
    %v3910 = vpop.f32.mrf.mxu0
    %v3911 = vadd.f32 %v3887, %v3910
    %v3912 = vpop.f32.mrf.mxu0
    %v3913 = vadd.f32 %v3889, %v3912
    %3914 = vdwg.mxu0
    %3915 = vmatpush.bf16.msra.mxu0 %v3187
    %3916 = vmatpush.bf16.msra.mxu0 %v3179
    %3917 = vmatpush.bf16.msra.mxu0 %v3171
    %3918 = vmatpush.bf16.msra.mxu0 %v3163
    %3919 = vmatpush.bf16.msra.mxu0 %v3155
    %3920 = vmatpush.bf16.msra.mxu0 %v3147
    %3921 = vmatpush.bf16.msra.mxu0 %v3139
    %3922 = vmatpush.bf16.msra.mxu0 %v3131
    %3923 = vmatmul.bf16.gmra.mxu0 %v663
    %v3924 = vpop.f32.mrf.mxu0
    %v3925 = vadd.f32 %v3901, %v3924
    %v3926 = vpop.f32.mrf.mxu0
    %v3927 = vadd.f32 %v3903, %v3926
    %3928 = vmatmul.bf16.gmra.mxu0 %v671
    %v3929 = vpop.f32.mrf.mxu0
    %v3930 = vadd.f32 %v3906, %v3929
    %v3931 = vpop.f32.mrf.mxu0
    %v3932 = vadd.f32 %v3908, %v3931
    %3933 = vmatmul.bf16.gmra.mxu0 %v679
    %v3934 = vpop.f32.mrf.mxu0
    %v3935 = vadd.f32 %v3911, %v3934
    %v3936 = vpop.f32.mrf.mxu0
    %v3937 = vadd.f32 %v3913, %v3936
    %3938 = vdwg.mxu0
    %3939 = vmatpush.bf16.msra.mxu0 %v3251
    %3940 = vmatpush.bf16.msra.mxu0 %v3243
    %3941 = vmatpush.bf16.msra.mxu0 %v3235
    %3942 = vmatpush.bf16.msra.mxu0 %v3227
    %3943 = vmatpush.bf16.msra.mxu0 %v3219
    %3944 = vmatpush.bf16.msra.mxu0 %v3211
    %3945 = vmatpush.bf16.msra.mxu0 %v3203
    %3946 = vmatpush.bf16.msra.mxu0 %v3195
    %3947 = vmatmul.bf16.gmra.mxu0 %v664
    %v3948 = vpop.f32.mrf.mxu0
    %v3949 = vadd.f32 %v3925, %v3948
    %v3950 = vpop.f32.mrf.mxu0
    %v3951 = vadd.f32 %v3927, %v3950
    %3952 = vmatmul.bf16.gmra.mxu0 %v672
    %v3953 = vpop.f32.mrf.mxu0
    %v3954 = vadd.f32 %v3930, %v3953
    %v3955 = vpop.f32.mrf.mxu0
    %v3956 = vadd.f32 %v3932, %v3955
    %3957 = vmatmul.bf16.gmra.mxu0 %v680
    %v3958 = vpop.f32.mrf.mxu0
    %v3959 = vadd.f32 %v3935, %v3958
    %v3960 = vpop.f32.mrf.mxu0
    %v3961 = vadd.f32 %v3937, %v3960
    %3962 = vdwg.mxu0
    %3963 = vmatpush.bf16.msra.mxu0 %v2804
    %3964 = vmatpush.bf16.msra.mxu0 %v2796
    %3965 = vmatpush.bf16.msra.mxu0 %v2788
    %3966 = vmatpush.bf16.msra.mxu0 %v2780
    %3967 = vmatpush.bf16.msra.mxu0 %v2772
    %3968 = vmatpush.bf16.msra.mxu0 %v2764
    %3969 = vmatpush.bf16.msra.mxu0 %v2756
    %3970 = vmatpush.bf16.msra.mxu0 %v2748
    %3971 = vmatmul.bf16.gmra.mxu0 %v657
    %v3972 = vpop.f32.mrf.mxu0
    %v3973 = vadd.f32 %v1196, %v3972
    %v3974 = vpop.f32.mrf.mxu0
    %v3975 = vadd.f32 %v1196, %v3974
    %3976 = vmatmul.bf16.gmra.mxu0 %v665
    %v3977 = vpop.f32.mrf.mxu0
    %v3978 = vadd.f32 %v1196, %v3977
    %v3979 = vpop.f32.mrf.mxu0
    %v3980 = vadd.f32 %v1196, %v3979
    %3981 = vmatmul.bf16.gmra.mxu0 %v673
    %v3982 = vpop.f32.mrf.mxu0
    %v3983 = vadd.f32 %v1196, %v3982
    %v3984 = vpop.f32.mrf.mxu0
    %v3985 = vadd.f32 %v1196, %v3984
    %3986 = vdwg.mxu0
    %3987 = vmatpush.bf16.msra.mxu0 %v2868
    %3988 = vmatpush.bf16.msra.mxu0 %v2860
    %3989 = vmatpush.bf16.msra.mxu0 %v2852
    %3990 = vmatpush.bf16.msra.mxu0 %v2844
    %3991 = vmatpush.bf16.msra.mxu0 %v2836
    %3992 = vmatpush.bf16.msra.mxu0 %v2828
    %3993 = vmatpush.bf16.msra.mxu0 %v2820
    %3994 = vmatpush.bf16.msra.mxu0 %v2812
    %3995 = vmatmul.bf16.gmra.mxu0 %v658
    %v3996 = vpop.f32.mrf.mxu0
    %v3997 = vadd.f32 %v3973, %v3996
    %v3998 = vpop.f32.mrf.mxu0
    %v3999 = vadd.f32 %v3975, %v3998
    %4000 = vmatmul.bf16.gmra.mxu0 %v666
    %v4001 = vpop.f32.mrf.mxu0
    %v4002 = vadd.f32 %v3978, %v4001
    %v4003 = vpop.f32.mrf.mxu0
    %v4004 = vadd.f32 %v3980, %v4003
    %4005 = vmatmul.bf16.gmra.mxu0 %v674
    %v4006 = vpop.f32.mrf.mxu0
    %v4007 = vadd.f32 %v3983, %v4006
    %v4008 = vpop.f32.mrf.mxu0
    %v4009 = vadd.f32 %v3985, %v4008
    %4010 = vdwg.mxu0
    %4011 = vmatpush.bf16.msra.mxu0 %v2932
    %4012 = vmatpush.bf16.msra.mxu0 %v2924
    %4013 = vmatpush.bf16.msra.mxu0 %v2916
    %4014 = vmatpush.bf16.msra.mxu0 %v2908
    %4015 = vmatpush.bf16.msra.mxu0 %v2900
    %4016 = vmatpush.bf16.msra.mxu0 %v2892
    %4017 = vmatpush.bf16.msra.mxu0 %v2884
    %4018 = vmatpush.bf16.msra.mxu0 %v2876
    %4019 = vmatmul.bf16.gmra.mxu0 %v659
    %v4020 = vpop.f32.mrf.mxu0
    %v4021 = vadd.f32 %v3997, %v4020
    %v4022 = vpop.f32.mrf.mxu0
    %v4023 = vadd.f32 %v3999, %v4022
    %4024 = vmatmul.bf16.gmra.mxu0 %v667
    %v4025 = vpop.f32.mrf.mxu0
    %v4026 = vadd.f32 %v4002, %v4025
    %v4027 = vpop.f32.mrf.mxu0
    %v4028 = vadd.f32 %v4004, %v4027
    %4029 = vmatmul.bf16.gmra.mxu0 %v675
    %v4030 = vpop.f32.mrf.mxu0
    %v4031 = vadd.f32 %v4007, %v4030
    %v4032 = vpop.f32.mrf.mxu0
    %v4033 = vadd.f32 %v4009, %v4032
    %4034 = vdwg.mxu0
    %4035 = vmatpush.bf16.msra.mxu0 %v2996
    %4036 = vmatpush.bf16.msra.mxu0 %v2988
    %4037 = vmatpush.bf16.msra.mxu0 %v2980
    %4038 = vmatpush.bf16.msra.mxu0 %v2972
    %4039 = vmatpush.bf16.msra.mxu0 %v2964
    %4040 = vmatpush.bf16.msra.mxu0 %v2956
    %4041 = vmatpush.bf16.msra.mxu0 %v2948
    %4042 = vmatpush.bf16.msra.mxu0 %v2940
    %4043 = vmatmul.bf16.gmra.mxu0 %v660
    %v4044 = vpop.f32.mrf.mxu0
    %v4045 = vadd.f32 %v4021, %v4044
    %v4046 = vpop.f32.mrf.mxu0
    %v4047 = vadd.f32 %v4023, %v4046
    %4048 = vmatmul.bf16.gmra.mxu0 %v668
    %v4049 = vpop.f32.mrf.mxu0
    %v4050 = vadd.f32 %v4026, %v4049
    %v4051 = vpop.f32.mrf.mxu0
    %v4052 = vadd.f32 %v4028, %v4051
    %4053 = vmatmul.bf16.gmra.mxu0 %v676
    %v4054 = vpop.f32.mrf.mxu0
    %v4055 = vadd.f32 %v4031, %v4054
    %v4056 = vpop.f32.mrf.mxu0
    %v4057 = vadd.f32 %v4033, %v4056
    %4058 = vdwg.mxu0
    %4059 = vmatpush.bf16.msra.mxu0 %v3060
    %4060 = vmatpush.bf16.msra.mxu0 %v3052
    %4061 = vmatpush.bf16.msra.mxu0 %v3044
    %4062 = vmatpush.bf16.msra.mxu0 %v3036
    %4063 = vmatpush.bf16.msra.mxu0 %v3028
    %4064 = vmatpush.bf16.msra.mxu0 %v3020
    %4065 = vmatpush.bf16.msra.mxu0 %v3012
    %4066 = vmatpush.bf16.msra.mxu0 %v3004
    %4067 = vmatmul.bf16.gmra.mxu0 %v661
    %v4068 = vpop.f32.mrf.mxu0
    %v4069 = vadd.f32 %v4045, %v4068
    %v4070 = vpop.f32.mrf.mxu0
    %v4071 = vadd.f32 %v4047, %v4070
    %4072 = vmatmul.bf16.gmra.mxu0 %v669
    %v4073 = vpop.f32.mrf.mxu0
    %v4074 = vadd.f32 %v4050, %v4073
    %v4075 = vpop.f32.mrf.mxu0
    %v4076 = vadd.f32 %v4052, %v4075
    %4077 = vmatmul.bf16.gmra.mxu0 %v677
    %v4078 = vpop.f32.mrf.mxu0
    %v4079 = vadd.f32 %v4055, %v4078
    %v4080 = vpop.f32.mrf.mxu0
    %v4081 = vadd.f32 %v4057, %v4080
    %4082 = vdwg.mxu0
    %4083 = vmatpush.bf16.msra.mxu0 %v3124
    %4084 = vmatpush.bf16.msra.mxu0 %v3116
    %4085 = vmatpush.bf16.msra.mxu0 %v3108
    %4086 = vmatpush.bf16.msra.mxu0 %v3100
    %4087 = vmatpush.bf16.msra.mxu0 %v3092
    %4088 = vmatpush.bf16.msra.mxu0 %v3084
    %4089 = vmatpush.bf16.msra.mxu0 %v3076
    %4090 = vmatpush.bf16.msra.mxu0 %v3068
    %4091 = vmatmul.bf16.gmra.mxu0 %v662
    %v4092 = vpop.f32.mrf.mxu0
    %v4093 = vadd.f32 %v4069, %v4092
    %v4094 = vpop.f32.mrf.mxu0
    %v4095 = vadd.f32 %v4071, %v4094
    %4096 = vmatmul.bf16.gmra.mxu0 %v670
    %v4097 = vpop.f32.mrf.mxu0
    %v4098 = vadd.f32 %v4074, %v4097
    %v4099 = vpop.f32.mrf.mxu0
    %v4100 = vadd.f32 %v4076, %v4099
    %4101 = vmatmul.bf16.gmra.mxu0 %v678
    %v4102 = vpop.f32.mrf.mxu0
    %v4103 = vadd.f32 %v4079, %v4102
    %v4104 = vpop.f32.mrf.mxu0
    %v4105 = vadd.f32 %v4081, %v4104
    %4106 = vdwg.mxu0
    %4107 = vmatpush.bf16.msra.mxu0 %v3188
    %4108 = vmatpush.bf16.msra.mxu0 %v3180
    %4109 = vmatpush.bf16.msra.mxu0 %v3172
    %4110 = vmatpush.bf16.msra.mxu0 %v3164
    %4111 = vmatpush.bf16.msra.mxu0 %v3156
    %4112 = vmatpush.bf16.msra.mxu0 %v3148
    %4113 = vmatpush.bf16.msra.mxu0 %v3140
    %4114 = vmatpush.bf16.msra.mxu0 %v3132
    %4115 = vmatmul.bf16.gmra.mxu0 %v663
    %v4116 = vpop.f32.mrf.mxu0
    %v4117 = vadd.f32 %v4093, %v4116
    %v4118 = vpop.f32.mrf.mxu0
    %v4119 = vadd.f32 %v4095, %v4118
    %4120 = vmatmul.bf16.gmra.mxu0 %v671
    %v4121 = vpop.f32.mrf.mxu0
    %v4122 = vadd.f32 %v4098, %v4121
    %v4123 = vpop.f32.mrf.mxu0
    %v4124 = vadd.f32 %v4100, %v4123
    %4125 = vmatmul.bf16.gmra.mxu0 %v679
    %v4126 = vpop.f32.mrf.mxu0
    %v4127 = vadd.f32 %v4103, %v4126
    %v4128 = vpop.f32.mrf.mxu0
    %v4129 = vadd.f32 %v4105, %v4128
    %4130 = vdwg.mxu0
    %4131 = vmatpush.bf16.msra.mxu0 %v3252
    %4132 = vmatpush.bf16.msra.mxu0 %v3244
    %4133 = vmatpush.bf16.msra.mxu0 %v3236
    %4134 = vmatpush.bf16.msra.mxu0 %v3228
    %4135 = vmatpush.bf16.msra.mxu0 %v3220
    %4136 = vmatpush.bf16.msra.mxu0 %v3212
    %4137 = vmatpush.bf16.msra.mxu0 %v3204
    %4138 = vmatpush.bf16.msra.mxu0 %v3196
    %4139 = vmatmul.bf16.gmra.mxu0 %v664
    %v4140 = vpop.f32.mrf.mxu0
    %v4141 = vadd.f32 %v4117, %v4140
    %v4142 = vpop.f32.mrf.mxu0
    %v4143 = vadd.f32 %v4119, %v4142
    %4144 = vmatmul.bf16.gmra.mxu0 %v672
    %v4145 = vpop.f32.mrf.mxu0
    %v4146 = vadd.f32 %v4122, %v4145
    %v4147 = vpop.f32.mrf.mxu0
    %v4148 = vadd.f32 %v4124, %v4147
    %4149 = vmatmul.bf16.gmra.mxu0 %v680
    %v4150 = vpop.f32.mrf.mxu0
    %v4151 = vadd.f32 %v4127, %v4150
    %v4152 = vpop.f32.mrf.mxu0
    %v4153 = vadd.f32 %v4129, %v4152
    %4154 = vdwg.mxu0
    %4155 = vmatpush.bf16.msra.mxu0 %v2805
    %4156 = vmatpush.bf16.msra.mxu0 %v2797
    %4157 = vmatpush.bf16.msra.mxu0 %v2789
    %4158 = vmatpush.bf16.msra.mxu0 %v2781
    %4159 = vmatpush.bf16.msra.mxu0 %v2773
    %4160 = vmatpush.bf16.msra.mxu0 %v2765
    %4161 = vmatpush.bf16.msra.mxu0 %v2757
    %4162 = vmatpush.bf16.msra.mxu0 %v2749
    %4163 = vmatmul.bf16.gmra.mxu0 %v657
    %v4164 = vpop.f32.mrf.mxu0
    %v4165 = vadd.f32 %v1197, %v4164
    %v4166 = vpop.f32.mrf.mxu0
    %v4167 = vadd.f32 %v1197, %v4166
    %4168 = vmatmul.bf16.gmra.mxu0 %v665
    %v4169 = vpop.f32.mrf.mxu0
    %v4170 = vadd.f32 %v1197, %v4169
    %v4171 = vpop.f32.mrf.mxu0
    %v4172 = vadd.f32 %v1197, %v4171
    %4173 = vmatmul.bf16.gmra.mxu0 %v673
    %v4174 = vpop.f32.mrf.mxu0
    %v4175 = vadd.f32 %v1197, %v4174
    %v4176 = vpop.f32.mrf.mxu0
    %v4177 = vadd.f32 %v1197, %v4176
    %4178 = vdwg.mxu0
    %4179 = vmatpush.bf16.msra.mxu0 %v2869
    %4180 = vmatpush.bf16.msra.mxu0 %v2861
    %4181 = vmatpush.bf16.msra.mxu0 %v2853
    %4182 = vmatpush.bf16.msra.mxu0 %v2845
    %4183 = vmatpush.bf16.msra.mxu0 %v2837
    %4184 = vmatpush.bf16.msra.mxu0 %v2829
    %4185 = vmatpush.bf16.msra.mxu0 %v2821
    %4186 = vmatpush.bf16.msra.mxu0 %v2813
    %4187 = vmatmul.bf16.gmra.mxu0 %v658
    %v4188 = vpop.f32.mrf.mxu0
    %v4189 = vadd.f32 %v4165, %v4188
    %v4190 = vpop.f32.mrf.mxu0
    %v4191 = vadd.f32 %v4167, %v4190
    %4192 = vmatmul.bf16.gmra.mxu0 %v666
    %v4193 = vpop.f32.mrf.mxu0
    %v4194 = vadd.f32 %v4170, %v4193
    %v4195 = vpop.f32.mrf.mxu0
    %v4196 = vadd.f32 %v4172, %v4195
    %4197 = vmatmul.bf16.gmra.mxu0 %v674
    %v4198 = vpop.f32.mrf.mxu0
    %v4199 = vadd.f32 %v4175, %v4198
    %v4200 = vpop.f32.mrf.mxu0
    %v4201 = vadd.f32 %v4177, %v4200
    %4202 = vdwg.mxu0
    %4203 = vmatpush.bf16.msra.mxu0 %v2933
    %4204 = vmatpush.bf16.msra.mxu0 %v2925
    %4205 = vmatpush.bf16.msra.mxu0 %v2917
    %4206 = vmatpush.bf16.msra.mxu0 %v2909
    %4207 = vmatpush.bf16.msra.mxu0 %v2901
    %4208 = vmatpush.bf16.msra.mxu0 %v2893
    %4209 = vmatpush.bf16.msra.mxu0 %v2885
    %4210 = vmatpush.bf16.msra.mxu0 %v2877
    %4211 = vmatmul.bf16.gmra.mxu0 %v659
    %v4212 = vpop.f32.mrf.mxu0
    %v4213 = vadd.f32 %v4189, %v4212
    %v4214 = vpop.f32.mrf.mxu0
    %v4215 = vadd.f32 %v4191, %v4214
    %4216 = vmatmul.bf16.gmra.mxu0 %v667
    %v4217 = vpop.f32.mrf.mxu0
    %v4218 = vadd.f32 %v4194, %v4217
    %v4219 = vpop.f32.mrf.mxu0
    %v4220 = vadd.f32 %v4196, %v4219
    %4221 = vmatmul.bf16.gmra.mxu0 %v675
    %v4222 = vpop.f32.mrf.mxu0
    %v4223 = vadd.f32 %v4199, %v4222
    %v4224 = vpop.f32.mrf.mxu0
    %v4225 = vadd.f32 %v4201, %v4224
    %4226 = vdwg.mxu0
    %4227 = vmatpush.bf16.msra.mxu0 %v2997
    %4228 = vmatpush.bf16.msra.mxu0 %v2989
    %4229 = vmatpush.bf16.msra.mxu0 %v2981
    %4230 = vmatpush.bf16.msra.mxu0 %v2973
    %4231 = vmatpush.bf16.msra.mxu0 %v2965
    %4232 = vmatpush.bf16.msra.mxu0 %v2957
    %4233 = vmatpush.bf16.msra.mxu0 %v2949
    %4234 = vmatpush.bf16.msra.mxu0 %v2941
    %4235 = vmatmul.bf16.gmra.mxu0 %v660
    %v4236 = vpop.f32.mrf.mxu0
    %v4237 = vadd.f32 %v4213, %v4236
    %v4238 = vpop.f32.mrf.mxu0
    %v4239 = vadd.f32 %v4215, %v4238
    %4240 = vmatmul.bf16.gmra.mxu0 %v668
    %v4241 = vpop.f32.mrf.mxu0
    %v4242 = vadd.f32 %v4218, %v4241
    %v4243 = vpop.f32.mrf.mxu0
    %v4244 = vadd.f32 %v4220, %v4243
    %4245 = vmatmul.bf16.gmra.mxu0 %v676
    %v4246 = vpop.f32.mrf.mxu0
    %v4247 = vadd.f32 %v4223, %v4246
    %v4248 = vpop.f32.mrf.mxu0
    %v4249 = vadd.f32 %v4225, %v4248
    %4250 = vdwg.mxu0
    %4251 = vmatpush.bf16.msra.mxu0 %v3061
    %4252 = vmatpush.bf16.msra.mxu0 %v3053
    %4253 = vmatpush.bf16.msra.mxu0 %v3045
    %4254 = vmatpush.bf16.msra.mxu0 %v3037
    %4255 = vmatpush.bf16.msra.mxu0 %v3029
    %4256 = vmatpush.bf16.msra.mxu0 %v3021
    %4257 = vmatpush.bf16.msra.mxu0 %v3013
    %4258 = vmatpush.bf16.msra.mxu0 %v3005
    %4259 = vmatmul.bf16.gmra.mxu0 %v661
    %v4260 = vpop.f32.mrf.mxu0
    %v4261 = vadd.f32 %v4237, %v4260
    %v4262 = vpop.f32.mrf.mxu0
    %v4263 = vadd.f32 %v4239, %v4262
    %4264 = vmatmul.bf16.gmra.mxu0 %v669
    %v4265 = vpop.f32.mrf.mxu0
    %v4266 = vadd.f32 %v4242, %v4265
    %v4267 = vpop.f32.mrf.mxu0
    %v4268 = vadd.f32 %v4244, %v4267
    %4269 = vmatmul.bf16.gmra.mxu0 %v677
    %v4270 = vpop.f32.mrf.mxu0
    %v4271 = vadd.f32 %v4247, %v4270
    %v4272 = vpop.f32.mrf.mxu0
    %v4273 = vadd.f32 %v4249, %v4272
    %4274 = vdwg.mxu0
    %4275 = vmatpush.bf16.msra.mxu0 %v3125
    %4276 = vmatpush.bf16.msra.mxu0 %v3117
    %4277 = vmatpush.bf16.msra.mxu0 %v3109
    %4278 = vmatpush.bf16.msra.mxu0 %v3101
    %4279 = vmatpush.bf16.msra.mxu0 %v3093
    %4280 = vmatpush.bf16.msra.mxu0 %v3085
    %4281 = vmatpush.bf16.msra.mxu0 %v3077
    %4282 = vmatpush.bf16.msra.mxu0 %v3069
    %4283 = vmatmul.bf16.gmra.mxu0 %v662
    %v4284 = vpop.f32.mrf.mxu0
    %v4285 = vadd.f32 %v4261, %v4284
    %v4286 = vpop.f32.mrf.mxu0
    %v4287 = vadd.f32 %v4263, %v4286
    %4288 = vmatmul.bf16.gmra.mxu0 %v670
    %v4289 = vpop.f32.mrf.mxu0
    %v4290 = vadd.f32 %v4266, %v4289
    %v4291 = vpop.f32.mrf.mxu0
    %v4292 = vadd.f32 %v4268, %v4291
    %4293 = vmatmul.bf16.gmra.mxu0 %v678
    %v4294 = vpop.f32.mrf.mxu0
    %v4295 = vadd.f32 %v4271, %v4294
    %v4296 = vpop.f32.mrf.mxu0
    %v4297 = vadd.f32 %v4273, %v4296
    %4298 = vdwg.mxu0
    %4299 = vmatpush.bf16.msra.mxu0 %v3189
    %4300 = vmatpush.bf16.msra.mxu0 %v3181
    %4301 = vmatpush.bf16.msra.mxu0 %v3173
    %4302 = vmatpush.bf16.msra.mxu0 %v3165
    %4303 = vmatpush.bf16.msra.mxu0 %v3157
    %4304 = vmatpush.bf16.msra.mxu0 %v3149
    %4305 = vmatpush.bf16.msra.mxu0 %v3141
    %4306 = vmatpush.bf16.msra.mxu0 %v3133
    %4307 = vmatmul.bf16.gmra.mxu0 %v663
    %v4308 = vpop.f32.mrf.mxu0
    %v4309 = vadd.f32 %v4285, %v4308
    %v4310 = vpop.f32.mrf.mxu0
    %v4311 = vadd.f32 %v4287, %v4310
    %4312 = vmatmul.bf16.gmra.mxu0 %v671
    %v4313 = vpop.f32.mrf.mxu0
    %v4314 = vadd.f32 %v4290, %v4313
    %v4315 = vpop.f32.mrf.mxu0
    %v4316 = vadd.f32 %v4292, %v4315
    %4317 = vmatmul.bf16.gmra.mxu0 %v679
    %v4318 = vpop.f32.mrf.mxu0
    %v4319 = vadd.f32 %v4295, %v4318
    %v4320 = vpop.f32.mrf.mxu0
    %v4321 = vadd.f32 %v4297, %v4320
    %4322 = vdwg.mxu0
    %4323 = vmatpush.bf16.msra.mxu0 %v3253
    %4324 = vmatpush.bf16.msra.mxu0 %v3245
    %4325 = vmatpush.bf16.msra.mxu0 %v3237
    %4326 = vmatpush.bf16.msra.mxu0 %v3229
    %4327 = vmatpush.bf16.msra.mxu0 %v3221
    %4328 = vmatpush.bf16.msra.mxu0 %v3213
    %4329 = vmatpush.bf16.msra.mxu0 %v3205
    %4330 = vmatpush.bf16.msra.mxu0 %v3197
    %4331 = vmatmul.bf16.gmra.mxu0 %v664
    %v4332 = vpop.f32.mrf.mxu0
    %v4333 = vadd.f32 %v4309, %v4332
    %v4334 = vpop.f32.mrf.mxu0
    %v4335 = vadd.f32 %v4311, %v4334
    %4336 = vmatmul.bf16.gmra.mxu0 %v672
    %v4337 = vpop.f32.mrf.mxu0
    %v4338 = vadd.f32 %v4314, %v4337
    %v4339 = vpop.f32.mrf.mxu0
    %v4340 = vadd.f32 %v4316, %v4339
    %4341 = vmatmul.bf16.gmra.mxu0 %v680
    %v4342 = vpop.f32.mrf.mxu0
    %v4343 = vadd.f32 %v4319, %v4342
    %v4344 = vpop.f32.mrf.mxu0
    %v4345 = vadd.f32 %v4321, %v4344
    %4346 = vdwg.mxu0
    %4347 = vmatpush.bf16.msra.mxu0 %v2806
    %4348 = vmatpush.bf16.msra.mxu0 %v2798
    %4349 = vmatpush.bf16.msra.mxu0 %v2790
    %4350 = vmatpush.bf16.msra.mxu0 %v2782
    %4351 = vmatpush.bf16.msra.mxu0 %v2774
    %4352 = vmatpush.bf16.msra.mxu0 %v2766
    %4353 = vmatpush.bf16.msra.mxu0 %v2758
    %4354 = vmatpush.bf16.msra.mxu0 %v2750
    %4355 = vmatmul.bf16.gmra.mxu0 %v657
    %v4356 = vpop.f32.mrf.mxu0
    %v4357 = vadd.f32 %v1198, %v4356
    %v4358 = vpop.f32.mrf.mxu0
    %v4359 = vadd.f32 %v1198, %v4358
    %4360 = vmatmul.bf16.gmra.mxu0 %v665
    %v4361 = vpop.f32.mrf.mxu0
    %v4362 = vadd.f32 %v1198, %v4361
    %v4363 = vpop.f32.mrf.mxu0
    %v4364 = vadd.f32 %v1198, %v4363
    %4365 = vmatmul.bf16.gmra.mxu0 %v673
    %v4366 = vpop.f32.mrf.mxu0
    %v4367 = vadd.f32 %v1198, %v4366
    %v4368 = vpop.f32.mrf.mxu0
    %v4369 = vadd.f32 %v1198, %v4368
    %4370 = vdwg.mxu0
    %4371 = vmatpush.bf16.msra.mxu0 %v2870
    %4372 = vmatpush.bf16.msra.mxu0 %v2862
    %4373 = vmatpush.bf16.msra.mxu0 %v2854
    %4374 = vmatpush.bf16.msra.mxu0 %v2846
    %4375 = vmatpush.bf16.msra.mxu0 %v2838
    %4376 = vmatpush.bf16.msra.mxu0 %v2830
    %4377 = vmatpush.bf16.msra.mxu0 %v2822
    %4378 = vmatpush.bf16.msra.mxu0 %v2814
    %4379 = vmatmul.bf16.gmra.mxu0 %v658
    %v4380 = vpop.f32.mrf.mxu0
    %v4381 = vadd.f32 %v4357, %v4380
    %v4382 = vpop.f32.mrf.mxu0
    %v4383 = vadd.f32 %v4359, %v4382
    %4384 = vmatmul.bf16.gmra.mxu0 %v666
    %v4385 = vpop.f32.mrf.mxu0
    %v4386 = vadd.f32 %v4362, %v4385
    %v4387 = vpop.f32.mrf.mxu0
    %v4388 = vadd.f32 %v4364, %v4387
    %4389 = vmatmul.bf16.gmra.mxu0 %v674
    %v4390 = vpop.f32.mrf.mxu0
    %v4391 = vadd.f32 %v4367, %v4390
    %v4392 = vpop.f32.mrf.mxu0
    %v4393 = vadd.f32 %v4369, %v4392
    %4394 = vdwg.mxu0
    %4395 = vmatpush.bf16.msra.mxu0 %v2934
    %4396 = vmatpush.bf16.msra.mxu0 %v2926
    %4397 = vmatpush.bf16.msra.mxu0 %v2918
    %4398 = vmatpush.bf16.msra.mxu0 %v2910
    %4399 = vmatpush.bf16.msra.mxu0 %v2902
    %4400 = vmatpush.bf16.msra.mxu0 %v2894
    %4401 = vmatpush.bf16.msra.mxu0 %v2886
    %4402 = vmatpush.bf16.msra.mxu0 %v2878
    %4403 = vmatmul.bf16.gmra.mxu0 %v659
    %v4404 = vpop.f32.mrf.mxu0
    %v4405 = vadd.f32 %v4381, %v4404
    %v4406 = vpop.f32.mrf.mxu0
    %v4407 = vadd.f32 %v4383, %v4406
    %4408 = vmatmul.bf16.gmra.mxu0 %v667
    %v4409 = vpop.f32.mrf.mxu0
    %v4410 = vadd.f32 %v4386, %v4409
    %v4411 = vpop.f32.mrf.mxu0
    %v4412 = vadd.f32 %v4388, %v4411
    %4413 = vmatmul.bf16.gmra.mxu0 %v675
    %v4414 = vpop.f32.mrf.mxu0
    %v4415 = vadd.f32 %v4391, %v4414
    %v4416 = vpop.f32.mrf.mxu0
    %v4417 = vadd.f32 %v4393, %v4416
    %4418 = vdwg.mxu0
    %4419 = vmatpush.bf16.msra.mxu0 %v2998
    %4420 = vmatpush.bf16.msra.mxu0 %v2990
    %4421 = vmatpush.bf16.msra.mxu0 %v2982
    %4422 = vmatpush.bf16.msra.mxu0 %v2974
    %4423 = vmatpush.bf16.msra.mxu0 %v2966
    %4424 = vmatpush.bf16.msra.mxu0 %v2958
    %4425 = vmatpush.bf16.msra.mxu0 %v2950
    %4426 = vmatpush.bf16.msra.mxu0 %v2942
    %4427 = vmatmul.bf16.gmra.mxu0 %v660
    %v4428 = vpop.f32.mrf.mxu0
    %v4429 = vadd.f32 %v4405, %v4428
    %v4430 = vpop.f32.mrf.mxu0
    %v4431 = vadd.f32 %v4407, %v4430
    %4432 = vmatmul.bf16.gmra.mxu0 %v668
    %v4433 = vpop.f32.mrf.mxu0
    %v4434 = vadd.f32 %v4410, %v4433
    %v4435 = vpop.f32.mrf.mxu0
    %v4436 = vadd.f32 %v4412, %v4435
    %4437 = vmatmul.bf16.gmra.mxu0 %v676
    %v4438 = vpop.f32.mrf.mxu0
    %v4439 = vadd.f32 %v4415, %v4438
    %v4440 = vpop.f32.mrf.mxu0
    %v4441 = vadd.f32 %v4417, %v4440
    %4442 = vdwg.mxu0
    %4443 = vmatpush.bf16.msra.mxu0 %v3062
    %4444 = vmatpush.bf16.msra.mxu0 %v3054
    %4445 = vmatpush.bf16.msra.mxu0 %v3046
    %4446 = vmatpush.bf16.msra.mxu0 %v3038
    %4447 = vmatpush.bf16.msra.mxu0 %v3030
    %4448 = vmatpush.bf16.msra.mxu0 %v3022
    %4449 = vmatpush.bf16.msra.mxu0 %v3014
    %4450 = vmatpush.bf16.msra.mxu0 %v3006
    %4451 = vmatmul.bf16.gmra.mxu0 %v661
    %v4452 = vpop.f32.mrf.mxu0
    %v4453 = vadd.f32 %v4429, %v4452
    %v4454 = vpop.f32.mrf.mxu0
    %v4455 = vadd.f32 %v4431, %v4454
    %4456 = vmatmul.bf16.gmra.mxu0 %v669
    %v4457 = vpop.f32.mrf.mxu0
    %v4458 = vadd.f32 %v4434, %v4457
    %v4459 = vpop.f32.mrf.mxu0
    %v4460 = vadd.f32 %v4436, %v4459
    %4461 = vmatmul.bf16.gmra.mxu0 %v677
    %v4462 = vpop.f32.mrf.mxu0
    %v4463 = vadd.f32 %v4439, %v4462
    %v4464 = vpop.f32.mrf.mxu0
    %v4465 = vadd.f32 %v4441, %v4464
    %4466 = vdwg.mxu0
    %4467 = vmatpush.bf16.msra.mxu0 %v3126
    %4468 = vmatpush.bf16.msra.mxu0 %v3118
    %4469 = vmatpush.bf16.msra.mxu0 %v3110
    %4470 = vmatpush.bf16.msra.mxu0 %v3102
    %4471 = vmatpush.bf16.msra.mxu0 %v3094
    %4472 = vmatpush.bf16.msra.mxu0 %v3086
    %4473 = vmatpush.bf16.msra.mxu0 %v3078
    %4474 = vmatpush.bf16.msra.mxu0 %v3070
    %4475 = vmatmul.bf16.gmra.mxu0 %v662
    %v4476 = vpop.f32.mrf.mxu0
    %v4477 = vadd.f32 %v4453, %v4476
    %v4478 = vpop.f32.mrf.mxu0
    %v4479 = vadd.f32 %v4455, %v4478
    %4480 = vmatmul.bf16.gmra.mxu0 %v670
    %v4481 = vpop.f32.mrf.mxu0
    %v4482 = vadd.f32 %v4458, %v4481
    %v4483 = vpop.f32.mrf.mxu0
    %v4484 = vadd.f32 %v4460, %v4483
    %4485 = vmatmul.bf16.gmra.mxu0 %v678
    %v4486 = vpop.f32.mrf.mxu0
    %v4487 = vadd.f32 %v4463, %v4486
    %v4488 = vpop.f32.mrf.mxu0
    %v4489 = vadd.f32 %v4465, %v4488
    %4490 = vdwg.mxu0
    %4491 = vmatpush.bf16.msra.mxu0 %v3190
    %4492 = vmatpush.bf16.msra.mxu0 %v3182
    %4493 = vmatpush.bf16.msra.mxu0 %v3174
    %4494 = vmatpush.bf16.msra.mxu0 %v3166
    %4495 = vmatpush.bf16.msra.mxu0 %v3158
    %4496 = vmatpush.bf16.msra.mxu0 %v3150
    %4497 = vmatpush.bf16.msra.mxu0 %v3142
    %4498 = vmatpush.bf16.msra.mxu0 %v3134
    %4499 = vmatmul.bf16.gmra.mxu0 %v663
    %v4500 = vpop.f32.mrf.mxu0
    %v4501 = vadd.f32 %v4477, %v4500
    %v4502 = vpop.f32.mrf.mxu0
    %v4503 = vadd.f32 %v4479, %v4502
    %4504 = vmatmul.bf16.gmra.mxu0 %v671
    %v4505 = vpop.f32.mrf.mxu0
    %v4506 = vadd.f32 %v4482, %v4505
    %v4507 = vpop.f32.mrf.mxu0
    %v4508 = vadd.f32 %v4484, %v4507
    %4509 = vmatmul.bf16.gmra.mxu0 %v679
    %v4510 = vpop.f32.mrf.mxu0
    %v4511 = vadd.f32 %v4487, %v4510
    %v4512 = vpop.f32.mrf.mxu0
    %v4513 = vadd.f32 %v4489, %v4512
    %4514 = vdwg.mxu0
    %4515 = vmatpush.bf16.msra.mxu0 %v3254
    %4516 = vmatpush.bf16.msra.mxu0 %v3246
    %4517 = vmatpush.bf16.msra.mxu0 %v3238
    %4518 = vmatpush.bf16.msra.mxu0 %v3230
    %4519 = vmatpush.bf16.msra.mxu0 %v3222
    %4520 = vmatpush.bf16.msra.mxu0 %v3214
    %4521 = vmatpush.bf16.msra.mxu0 %v3206
    %4522 = vmatpush.bf16.msra.mxu0 %v3198
    %4523 = vmatmul.bf16.gmra.mxu0 %v664
    %v4524 = vpop.f32.mrf.mxu0
    %v4525 = vadd.f32 %v4501, %v4524
    %v4526 = vpop.f32.mrf.mxu0
    %v4527 = vadd.f32 %v4503, %v4526
    %4528 = vmatmul.bf16.gmra.mxu0 %v672
    %v4529 = vpop.f32.mrf.mxu0
    %v4530 = vadd.f32 %v4506, %v4529
    %v4531 = vpop.f32.mrf.mxu0
    %v4532 = vadd.f32 %v4508, %v4531
    %4533 = vmatmul.bf16.gmra.mxu0 %v680
    %v4534 = vpop.f32.mrf.mxu0
    %v4535 = vadd.f32 %v4511, %v4534
    %v4536 = vpop.f32.mrf.mxu0
    %v4537 = vadd.f32 %v4513, %v4536
    %4538 = vdwg.mxu0
    %4539 = vmatpush.bf16.msra.mxu0 %v2807
    %4540 = vmatpush.bf16.msra.mxu0 %v2799
    %4541 = vmatpush.bf16.msra.mxu0 %v2791
    %4542 = vmatpush.bf16.msra.mxu0 %v2783
    %4543 = vmatpush.bf16.msra.mxu0 %v2775
    %4544 = vmatpush.bf16.msra.mxu0 %v2767
    %4545 = vmatpush.bf16.msra.mxu0 %v2759
    %4546 = vmatpush.bf16.msra.mxu0 %v2751
    %4547 = vmatmul.bf16.gmra.mxu0 %v657
    %v4548 = vpop.f32.mrf.mxu0
    %v4549 = vadd.f32 %v1199, %v4548
    %v4550 = vpop.f32.mrf.mxu0
    %v4551 = vadd.f32 %v1199, %v4550
    %4552 = vmatmul.bf16.gmra.mxu0 %v665
    %v4553 = vpop.f32.mrf.mxu0
    %v4554 = vadd.f32 %v1199, %v4553
    %v4555 = vpop.f32.mrf.mxu0
    %v4556 = vadd.f32 %v1199, %v4555
    %4557 = vmatmul.bf16.gmra.mxu0 %v673
    %v4558 = vpop.f32.mrf.mxu0
    %v4559 = vadd.f32 %v1199, %v4558
    %v4560 = vpop.f32.mrf.mxu0
    %v4561 = vadd.f32 %v1199, %v4560
    %4562 = vdwg.mxu0
    %4563 = vmatpush.bf16.msra.mxu0 %v2871
    %4564 = vmatpush.bf16.msra.mxu0 %v2863
    %4565 = vmatpush.bf16.msra.mxu0 %v2855
    %4566 = vmatpush.bf16.msra.mxu0 %v2847
    %4567 = vmatpush.bf16.msra.mxu0 %v2839
    %4568 = vmatpush.bf16.msra.mxu0 %v2831
    %4569 = vmatpush.bf16.msra.mxu0 %v2823
    %4570 = vmatpush.bf16.msra.mxu0 %v2815
    %4571 = vmatmul.bf16.gmra.mxu0 %v658
    %v4572 = vpop.f32.mrf.mxu0
    %v4573 = vadd.f32 %v4549, %v4572
    %v4574 = vpop.f32.mrf.mxu0
    %v4575 = vadd.f32 %v4551, %v4574
    %4576 = vmatmul.bf16.gmra.mxu0 %v666
    %v4577 = vpop.f32.mrf.mxu0
    %v4578 = vadd.f32 %v4554, %v4577
    %v4579 = vpop.f32.mrf.mxu0
    %v4580 = vadd.f32 %v4556, %v4579
    %4581 = vmatmul.bf16.gmra.mxu0 %v674
    %v4582 = vpop.f32.mrf.mxu0
    %v4583 = vadd.f32 %v4559, %v4582
    %v4584 = vpop.f32.mrf.mxu0
    %v4585 = vadd.f32 %v4561, %v4584
    %4586 = vdwg.mxu0
    %4587 = vmatpush.bf16.msra.mxu0 %v2935
    %4588 = vmatpush.bf16.msra.mxu0 %v2927
    %4589 = vmatpush.bf16.msra.mxu0 %v2919
    %4590 = vmatpush.bf16.msra.mxu0 %v2911
    %4591 = vmatpush.bf16.msra.mxu0 %v2903
    %4592 = vmatpush.bf16.msra.mxu0 %v2895
    %4593 = vmatpush.bf16.msra.mxu0 %v2887
    %4594 = vmatpush.bf16.msra.mxu0 %v2879
    %4595 = vmatmul.bf16.gmra.mxu0 %v659
    %v4596 = vpop.f32.mrf.mxu0
    %v4597 = vadd.f32 %v4573, %v4596
    %v4598 = vpop.f32.mrf.mxu0
    %v4599 = vadd.f32 %v4575, %v4598
    %4600 = vmatmul.bf16.gmra.mxu0 %v667
    %v4601 = vpop.f32.mrf.mxu0
    %v4602 = vadd.f32 %v4578, %v4601
    %v4603 = vpop.f32.mrf.mxu0
    %v4604 = vadd.f32 %v4580, %v4603
    %4605 = vmatmul.bf16.gmra.mxu0 %v675
    %v4606 = vpop.f32.mrf.mxu0
    %v4607 = vadd.f32 %v4583, %v4606
    %v4608 = vpop.f32.mrf.mxu0
    %v4609 = vadd.f32 %v4585, %v4608
    %4610 = vdwg.mxu0
    %4611 = vmatpush.bf16.msra.mxu0 %v2999
    %4612 = vmatpush.bf16.msra.mxu0 %v2991
    %4613 = vmatpush.bf16.msra.mxu0 %v2983
    %4614 = vmatpush.bf16.msra.mxu0 %v2975
    %4615 = vmatpush.bf16.msra.mxu0 %v2967
    %4616 = vmatpush.bf16.msra.mxu0 %v2959
    %4617 = vmatpush.bf16.msra.mxu0 %v2951
    %4618 = vmatpush.bf16.msra.mxu0 %v2943
    %4619 = vmatmul.bf16.gmra.mxu0 %v660
    %v4620 = vpop.f32.mrf.mxu0
    %v4621 = vadd.f32 %v4597, %v4620
    %v4622 = vpop.f32.mrf.mxu0
    %v4623 = vadd.f32 %v4599, %v4622
    %4624 = vmatmul.bf16.gmra.mxu0 %v668
    %v4625 = vpop.f32.mrf.mxu0
    %v4626 = vadd.f32 %v4602, %v4625
    %v4627 = vpop.f32.mrf.mxu0
    %v4628 = vadd.f32 %v4604, %v4627
    %4629 = vmatmul.bf16.gmra.mxu0 %v676
    %v4630 = vpop.f32.mrf.mxu0
    %v4631 = vadd.f32 %v4607, %v4630
    %v4632 = vpop.f32.mrf.mxu0
    %v4633 = vadd.f32 %v4609, %v4632
    %4634 = vdwg.mxu0
    %4635 = vmatpush.bf16.msra.mxu0 %v3063
    %4636 = vmatpush.bf16.msra.mxu0 %v3055
    %4637 = vmatpush.bf16.msra.mxu0 %v3047
    %4638 = vmatpush.bf16.msra.mxu0 %v3039
    %4639 = vmatpush.bf16.msra.mxu0 %v3031
    %4640 = vmatpush.bf16.msra.mxu0 %v3023
    %4641 = vmatpush.bf16.msra.mxu0 %v3015
    %4642 = vmatpush.bf16.msra.mxu0 %v3007
    %4643 = vmatmul.bf16.gmra.mxu0 %v661
    %v4644 = vpop.f32.mrf.mxu0
    %v4645 = vadd.f32 %v4621, %v4644
    %v4646 = vpop.f32.mrf.mxu0
    %v4647 = vadd.f32 %v4623, %v4646
    %4648 = vmatmul.bf16.gmra.mxu0 %v669
    %v4649 = vpop.f32.mrf.mxu0
    %v4650 = vadd.f32 %v4626, %v4649
    %v4651 = vpop.f32.mrf.mxu0
    %v4652 = vadd.f32 %v4628, %v4651
    %4653 = vmatmul.bf16.gmra.mxu0 %v677
    %v4654 = vpop.f32.mrf.mxu0
    %v4655 = vadd.f32 %v4631, %v4654
    %v4656 = vpop.f32.mrf.mxu0
    %v4657 = vadd.f32 %v4633, %v4656
    %4658 = vdwg.mxu0
    %4659 = vmatpush.bf16.msra.mxu0 %v3127
    %4660 = vmatpush.bf16.msra.mxu0 %v3119
    %4661 = vmatpush.bf16.msra.mxu0 %v3111
    %4662 = vmatpush.bf16.msra.mxu0 %v3103
    %4663 = vmatpush.bf16.msra.mxu0 %v3095
    %4664 = vmatpush.bf16.msra.mxu0 %v3087
    %4665 = vmatpush.bf16.msra.mxu0 %v3079
    %4666 = vmatpush.bf16.msra.mxu0 %v3071
    %4667 = vmatmul.bf16.gmra.mxu0 %v662
    %v4668 = vpop.f32.mrf.mxu0
    %v4669 = vadd.f32 %v4645, %v4668
    %v4670 = vpop.f32.mrf.mxu0
    %v4671 = vadd.f32 %v4647, %v4670
    %4672 = vmatmul.bf16.gmra.mxu0 %v670
    %v4673 = vpop.f32.mrf.mxu0
    %v4674 = vadd.f32 %v4650, %v4673
    %v4675 = vpop.f32.mrf.mxu0
    %v4676 = vadd.f32 %v4652, %v4675
    %4677 = vmatmul.bf16.gmra.mxu0 %v678
    %v4678 = vpop.f32.mrf.mxu0
    %v4679 = vadd.f32 %v4655, %v4678
    %v4680 = vpop.f32.mrf.mxu0
    %v4681 = vadd.f32 %v4657, %v4680
    %4682 = vdwg.mxu0
    %4683 = vmatpush.bf16.msra.mxu0 %v3191
    %4684 = vmatpush.bf16.msra.mxu0 %v3183
    %4685 = vmatpush.bf16.msra.mxu0 %v3175
    %4686 = vmatpush.bf16.msra.mxu0 %v3167
    %4687 = vmatpush.bf16.msra.mxu0 %v3159
    %4688 = vmatpush.bf16.msra.mxu0 %v3151
    %4689 = vmatpush.bf16.msra.mxu0 %v3143
    %4690 = vmatpush.bf16.msra.mxu0 %v3135
    %4691 = vmatmul.bf16.gmra.mxu0 %v663
    %v4692 = vpop.f32.mrf.mxu0
    %v4693 = vadd.f32 %v4669, %v4692
    %v4694 = vpop.f32.mrf.mxu0
    %v4695 = vadd.f32 %v4671, %v4694
    %4696 = vmatmul.bf16.gmra.mxu0 %v671
    %v4697 = vpop.f32.mrf.mxu0
    %v4698 = vadd.f32 %v4674, %v4697
    %v4699 = vpop.f32.mrf.mxu0
    %v4700 = vadd.f32 %v4676, %v4699
    %4701 = vmatmul.bf16.gmra.mxu0 %v679
    %v4702 = vpop.f32.mrf.mxu0
    %v4703 = vadd.f32 %v4679, %v4702
    %v4704 = vpop.f32.mrf.mxu0
    %v4705 = vadd.f32 %v4681, %v4704
    %4706 = vdwg.mxu0
    %4707 = vmatpush.bf16.msra.mxu0 %v3255
    %4708 = vmatpush.bf16.msra.mxu0 %v3247
    %4709 = vmatpush.bf16.msra.mxu0 %v3239
    %4710 = vmatpush.bf16.msra.mxu0 %v3231
    %4711 = vmatpush.bf16.msra.mxu0 %v3223
    %4712 = vmatpush.bf16.msra.mxu0 %v3215
    %4713 = vmatpush.bf16.msra.mxu0 %v3207
    %4714 = vmatpush.bf16.msra.mxu0 %v3199
    %4715 = vmatmul.bf16.gmra.mxu0 %v664
    %v4716 = vpop.f32.mrf.mxu0
    %v4717 = vadd.f32 %v4693, %v4716
    %v4718 = vpop.f32.mrf.mxu0
    %v4719 = vadd.f32 %v4695, %v4718
    %4720 = vmatmul.bf16.gmra.mxu0 %v672
    %v4721 = vpop.f32.mrf.mxu0
    %v4722 = vadd.f32 %v4698, %v4721
    %v4723 = vpop.f32.mrf.mxu0
    %v4724 = vadd.f32 %v4700, %v4723
    %4725 = vmatmul.bf16.gmra.mxu0 %v680
    %v4726 = vpop.f32.mrf.mxu0
    %v4727 = vadd.f32 %v4703, %v4726
    %v4728 = vpop.f32.mrf.mxu0
    %v4729 = vadd.f32 %v4705, %v4728
    %4730 = vdwg.mxu0
    %4731 = vmatpush.bf16.msra.mxu0 %v2808
    %4732 = vmatpush.bf16.msra.mxu0 %v2800
    %4733 = vmatpush.bf16.msra.mxu0 %v2792
    %4734 = vmatpush.bf16.msra.mxu0 %v2784
    %4735 = vmatpush.bf16.msra.mxu0 %v2776
    %4736 = vmatpush.bf16.msra.mxu0 %v2768
    %4737 = vmatpush.bf16.msra.mxu0 %v2760
    %4738 = vmatpush.bf16.msra.mxu0 %v2752
    %4739 = vmatmul.bf16.gmra.mxu0 %v657
    %v4740 = vpop.f32.mrf.mxu0
    %v4741 = vadd.f32 %v1200, %v4740
    %v4742 = vpop.f32.mrf.mxu0
    %v4743 = vadd.f32 %v1200, %v4742
    %4744 = vmatmul.bf16.gmra.mxu0 %v665
    %v4745 = vpop.f32.mrf.mxu0
    %v4746 = vadd.f32 %v1200, %v4745
    %v4747 = vpop.f32.mrf.mxu0
    %v4748 = vadd.f32 %v1200, %v4747
    %4749 = vmatmul.bf16.gmra.mxu0 %v673
    %v4750 = vpop.f32.mrf.mxu0
    %v4751 = vadd.f32 %v1200, %v4750
    %v4752 = vpop.f32.mrf.mxu0
    %v4753 = vadd.f32 %v1200, %v4752
    %4754 = vdwg.mxu0
    %4755 = vmatpush.bf16.msra.mxu0 %v2872
    %4756 = vmatpush.bf16.msra.mxu0 %v2864
    %4757 = vmatpush.bf16.msra.mxu0 %v2856
    %4758 = vmatpush.bf16.msra.mxu0 %v2848
    %4759 = vmatpush.bf16.msra.mxu0 %v2840
    %4760 = vmatpush.bf16.msra.mxu0 %v2832
    %4761 = vmatpush.bf16.msra.mxu0 %v2824
    %4762 = vmatpush.bf16.msra.mxu0 %v2816
    %4763 = vmatmul.bf16.gmra.mxu0 %v658
    %v4764 = vpop.f32.mrf.mxu0
    %v4765 = vadd.f32 %v4741, %v4764
    %v4766 = vpop.f32.mrf.mxu0
    %v4767 = vadd.f32 %v4743, %v4766
    %4768 = vmatmul.bf16.gmra.mxu0 %v666
    %v4769 = vpop.f32.mrf.mxu0
    %v4770 = vadd.f32 %v4746, %v4769
    %v4771 = vpop.f32.mrf.mxu0
    %v4772 = vadd.f32 %v4748, %v4771
    %4773 = vmatmul.bf16.gmra.mxu0 %v674
    %v4774 = vpop.f32.mrf.mxu0
    %v4775 = vadd.f32 %v4751, %v4774
    %v4776 = vpop.f32.mrf.mxu0
    %v4777 = vadd.f32 %v4753, %v4776
    %4778 = vdwg.mxu0
    %4779 = vmatpush.bf16.msra.mxu0 %v2936
    %4780 = vmatpush.bf16.msra.mxu0 %v2928
    %4781 = vmatpush.bf16.msra.mxu0 %v2920
    %4782 = vmatpush.bf16.msra.mxu0 %v2912
    %4783 = vmatpush.bf16.msra.mxu0 %v2904
    %4784 = vmatpush.bf16.msra.mxu0 %v2896
    %4785 = vmatpush.bf16.msra.mxu0 %v2888
    %4786 = vmatpush.bf16.msra.mxu0 %v2880
    %4787 = vmatmul.bf16.gmra.mxu0 %v659
    %v4788 = vpop.f32.mrf.mxu0
    %v4789 = vadd.f32 %v4765, %v4788
    %v4790 = vpop.f32.mrf.mxu0
    %v4791 = vadd.f32 %v4767, %v4790
    %4792 = vmatmul.bf16.gmra.mxu0 %v667
    %v4793 = vpop.f32.mrf.mxu0
    %v4794 = vadd.f32 %v4770, %v4793
    %v4795 = vpop.f32.mrf.mxu0
    %v4796 = vadd.f32 %v4772, %v4795
    %4797 = vmatmul.bf16.gmra.mxu0 %v675
    %v4798 = vpop.f32.mrf.mxu0
    %v4799 = vadd.f32 %v4775, %v4798
    %v4800 = vpop.f32.mrf.mxu0
    %v4801 = vadd.f32 %v4777, %v4800
    %4802 = vdwg.mxu0
    %4803 = vmatpush.bf16.msra.mxu0 %v3000
    %4804 = vmatpush.bf16.msra.mxu0 %v2992
    %4805 = vmatpush.bf16.msra.mxu0 %v2984
    %4806 = vmatpush.bf16.msra.mxu0 %v2976
    %4807 = vmatpush.bf16.msra.mxu0 %v2968
    %4808 = vmatpush.bf16.msra.mxu0 %v2960
    %4809 = vmatpush.bf16.msra.mxu0 %v2952
    %4810 = vmatpush.bf16.msra.mxu0 %v2944
    %4811 = vmatmul.bf16.gmra.mxu0 %v660
    %v4812 = vpop.f32.mrf.mxu0
    %v4813 = vadd.f32 %v4789, %v4812
    %v4814 = vpop.f32.mrf.mxu0
    %v4815 = vadd.f32 %v4791, %v4814
    %4816 = vmatmul.bf16.gmra.mxu0 %v668
    %v4817 = vpop.f32.mrf.mxu0
    %v4818 = vadd.f32 %v4794, %v4817
    %v4819 = vpop.f32.mrf.mxu0
    %v4820 = vadd.f32 %v4796, %v4819
    %4821 = vmatmul.bf16.gmra.mxu0 %v676
    %v4822 = vpop.f32.mrf.mxu0
    %v4823 = vadd.f32 %v4799, %v4822
    %v4824 = vpop.f32.mrf.mxu0
    %v4825 = vadd.f32 %v4801, %v4824
    %4826 = vdwg.mxu0
    %4827 = vmatpush.bf16.msra.mxu0 %v3064
    %4828 = vmatpush.bf16.msra.mxu0 %v3056
    %4829 = vmatpush.bf16.msra.mxu0 %v3048
    %4830 = vmatpush.bf16.msra.mxu0 %v3040
    %4831 = vmatpush.bf16.msra.mxu0 %v3032
    %4832 = vmatpush.bf16.msra.mxu0 %v3024
    %4833 = vmatpush.bf16.msra.mxu0 %v3016
    %4834 = vmatpush.bf16.msra.mxu0 %v3008
    %4835 = vmatmul.bf16.gmra.mxu0 %v661
    %v4836 = vpop.f32.mrf.mxu0
    %v4837 = vadd.f32 %v4813, %v4836
    %v4838 = vpop.f32.mrf.mxu0
    %v4839 = vadd.f32 %v4815, %v4838
    %4840 = vmatmul.bf16.gmra.mxu0 %v669
    %v4841 = vpop.f32.mrf.mxu0
    %v4842 = vadd.f32 %v4818, %v4841
    %v4843 = vpop.f32.mrf.mxu0
    %v4844 = vadd.f32 %v4820, %v4843
    %4845 = vmatmul.bf16.gmra.mxu0 %v677
    %v4846 = vpop.f32.mrf.mxu0
    %v4847 = vadd.f32 %v4823, %v4846
    %v4848 = vpop.f32.mrf.mxu0
    %v4849 = vadd.f32 %v4825, %v4848
    %4850 = vdwg.mxu0
    %4851 = vmatpush.bf16.msra.mxu0 %v3128
    %4852 = vmatpush.bf16.msra.mxu0 %v3120
    %4853 = vmatpush.bf16.msra.mxu0 %v3112
    %4854 = vmatpush.bf16.msra.mxu0 %v3104
    %4855 = vmatpush.bf16.msra.mxu0 %v3096
    %4856 = vmatpush.bf16.msra.mxu0 %v3088
    %4857 = vmatpush.bf16.msra.mxu0 %v3080
    %4858 = vmatpush.bf16.msra.mxu0 %v3072
    %4859 = vmatmul.bf16.gmra.mxu0 %v662
    %v4860 = vpop.f32.mrf.mxu0
    %v4861 = vadd.f32 %v4837, %v4860
    %v4862 = vpop.f32.mrf.mxu0
    %v4863 = vadd.f32 %v4839, %v4862
    %4864 = vmatmul.bf16.gmra.mxu0 %v670
    %v4865 = vpop.f32.mrf.mxu0
    %v4866 = vadd.f32 %v4842, %v4865
    %v4867 = vpop.f32.mrf.mxu0
    %v4868 = vadd.f32 %v4844, %v4867
    %4869 = vmatmul.bf16.gmra.mxu0 %v678
    %v4870 = vpop.f32.mrf.mxu0
    %v4871 = vadd.f32 %v4847, %v4870
    %v4872 = vpop.f32.mrf.mxu0
    %v4873 = vadd.f32 %v4849, %v4872
    %4874 = vdwg.mxu0
    %4875 = vmatpush.bf16.msra.mxu0 %v3192
    %4876 = vmatpush.bf16.msra.mxu0 %v3184
    %4877 = vmatpush.bf16.msra.mxu0 %v3176
    %4878 = vmatpush.bf16.msra.mxu0 %v3168
    %4879 = vmatpush.bf16.msra.mxu0 %v3160
    %4880 = vmatpush.bf16.msra.mxu0 %v3152
    %4881 = vmatpush.bf16.msra.mxu0 %v3144
    %4882 = vmatpush.bf16.msra.mxu0 %v3136
    %4883 = vmatmul.bf16.gmra.mxu0 %v663
    %v4884 = vpop.f32.mrf.mxu0
    %v4885 = vadd.f32 %v4861, %v4884
    %v4886 = vpop.f32.mrf.mxu0
    %v4887 = vadd.f32 %v4863, %v4886
    %4888 = vmatmul.bf16.gmra.mxu0 %v671
    %v4889 = vpop.f32.mrf.mxu0
    %v4890 = vadd.f32 %v4866, %v4889
    %v4891 = vpop.f32.mrf.mxu0
    %v4892 = vadd.f32 %v4868, %v4891
    %4893 = vmatmul.bf16.gmra.mxu0 %v679
    %v4894 = vpop.f32.mrf.mxu0
    %v4895 = vadd.f32 %v4871, %v4894
    %v4896 = vpop.f32.mrf.mxu0
    %v4897 = vadd.f32 %v4873, %v4896
    %4898 = vdwg.mxu0
    %4899 = vmatpush.bf16.msra.mxu0 %v3256
    %4900 = vmatpush.bf16.msra.mxu0 %v3248
    %4901 = vmatpush.bf16.msra.mxu0 %v3240
    %4902 = vmatpush.bf16.msra.mxu0 %v3232
    %4903 = vmatpush.bf16.msra.mxu0 %v3224
    %4904 = vmatpush.bf16.msra.mxu0 %v3216
    %4905 = vmatpush.bf16.msra.mxu0 %v3208
    %4906 = vmatpush.bf16.msra.mxu0 %v3200
    %4907 = vmatmul.bf16.gmra.mxu0 %v664
    %v4908 = vpop.f32.mrf.mxu0
    %v4909 = vadd.f32 %v4885, %v4908
    %v4910 = vpop.f32.mrf.mxu0
    %v4911 = vadd.f32 %v4887, %v4910
    %4912 = vmatmul.bf16.gmra.mxu0 %v672
    %v4913 = vpop.f32.mrf.mxu0
    %v4914 = vadd.f32 %v4890, %v4913
    %v4915 = vpop.f32.mrf.mxu0
    %v4916 = vadd.f32 %v4892, %v4915
    %4917 = vmatmul.bf16.gmra.mxu0 %v680
    %v4918 = vpop.f32.mrf.mxu0
    %v4919 = vadd.f32 %v4895, %v4918
    %v4920 = vpop.f32.mrf.mxu0
    %v4921 = vadd.f32 %v4897, %v4920
    %4922 = vdwg.mxu0
    %4923 = vmatpush.bf16.msra.mxu0 %v2809
    %4924 = vmatpush.bf16.msra.mxu0 %v2801
    %4925 = vmatpush.bf16.msra.mxu0 %v2793
    %4926 = vmatpush.bf16.msra.mxu0 %v2785
    %4927 = vmatpush.bf16.msra.mxu0 %v2777
    %4928 = vmatpush.bf16.msra.mxu0 %v2769
    %4929 = vmatpush.bf16.msra.mxu0 %v2761
    %4930 = vmatpush.bf16.msra.mxu0 %v2753
    %4931 = vmatmul.bf16.gmra.mxu0 %v657
    %v4932 = vpop.f32.mrf.mxu0
    %v4933 = vadd.f32 %v1201, %v4932
    %v4934 = vpop.f32.mrf.mxu0
    %v4935 = vadd.f32 %v1201, %v4934
    %4936 = vmatmul.bf16.gmra.mxu0 %v665
    %v4937 = vpop.f32.mrf.mxu0
    %v4938 = vadd.f32 %v1201, %v4937
    %v4939 = vpop.f32.mrf.mxu0
    %v4940 = vadd.f32 %v1201, %v4939
    %4941 = vmatmul.bf16.gmra.mxu0 %v673
    %v4942 = vpop.f32.mrf.mxu0
    %v4943 = vadd.f32 %v1201, %v4942
    %v4944 = vpop.f32.mrf.mxu0
    %v4945 = vadd.f32 %v1201, %v4944
    %4946 = vdwg.mxu0
    %4947 = vmatpush.bf16.msra.mxu0 %v2873
    %4948 = vmatpush.bf16.msra.mxu0 %v2865
    %4949 = vmatpush.bf16.msra.mxu0 %v2857
    %4950 = vmatpush.bf16.msra.mxu0 %v2849
    %4951 = vmatpush.bf16.msra.mxu0 %v2841
    %4952 = vmatpush.bf16.msra.mxu0 %v2833
    %4953 = vmatpush.bf16.msra.mxu0 %v2825
    %4954 = vmatpush.bf16.msra.mxu0 %v2817
    %4955 = vmatmul.bf16.gmra.mxu0 %v658
    %v4956 = vpop.f32.mrf.mxu0
    %v4957 = vadd.f32 %v4933, %v4956
    %v4958 = vpop.f32.mrf.mxu0
    %v4959 = vadd.f32 %v4935, %v4958
    %4960 = vmatmul.bf16.gmra.mxu0 %v666
    %v4961 = vpop.f32.mrf.mxu0
    %v4962 = vadd.f32 %v4938, %v4961
    %v4963 = vpop.f32.mrf.mxu0
    %v4964 = vadd.f32 %v4940, %v4963
    %4965 = vmatmul.bf16.gmra.mxu0 %v674
    %v4966 = vpop.f32.mrf.mxu0
    %v4967 = vadd.f32 %v4943, %v4966
    %v4968 = vpop.f32.mrf.mxu0
    %v4969 = vadd.f32 %v4945, %v4968
    %4970 = vdwg.mxu0
    %4971 = vmatpush.bf16.msra.mxu0 %v2937
    %4972 = vmatpush.bf16.msra.mxu0 %v2929
    %4973 = vmatpush.bf16.msra.mxu0 %v2921
    %4974 = vmatpush.bf16.msra.mxu0 %v2913
    %4975 = vmatpush.bf16.msra.mxu0 %v2905
    %4976 = vmatpush.bf16.msra.mxu0 %v2897
    %4977 = vmatpush.bf16.msra.mxu0 %v2889
    %4978 = vmatpush.bf16.msra.mxu0 %v2881
    %4979 = vmatmul.bf16.gmra.mxu0 %v659
    %v4980 = vpop.f32.mrf.mxu0
    %v4981 = vadd.f32 %v4957, %v4980
    %v4982 = vpop.f32.mrf.mxu0
    %v4983 = vadd.f32 %v4959, %v4982
    %4984 = vmatmul.bf16.gmra.mxu0 %v667
    %v4985 = vpop.f32.mrf.mxu0
    %v4986 = vadd.f32 %v4962, %v4985
    %v4987 = vpop.f32.mrf.mxu0
    %v4988 = vadd.f32 %v4964, %v4987
    %4989 = vmatmul.bf16.gmra.mxu0 %v675
    %v4990 = vpop.f32.mrf.mxu0
    %v4991 = vadd.f32 %v4967, %v4990
    %v4992 = vpop.f32.mrf.mxu0
    %v4993 = vadd.f32 %v4969, %v4992
    %4994 = vdwg.mxu0
    %4995 = vmatpush.bf16.msra.mxu0 %v3001
    %4996 = vmatpush.bf16.msra.mxu0 %v2993
    %4997 = vmatpush.bf16.msra.mxu0 %v2985
    %4998 = vmatpush.bf16.msra.mxu0 %v2977
    %4999 = vmatpush.bf16.msra.mxu0 %v2969
    %5000 = vmatpush.bf16.msra.mxu0 %v2961
    %5001 = vmatpush.bf16.msra.mxu0 %v2953
    %5002 = vmatpush.bf16.msra.mxu0 %v2945
    %5003 = vmatmul.bf16.gmra.mxu0 %v660
    %v5004 = vpop.f32.mrf.mxu0
    %v5005 = vadd.f32 %v4981, %v5004
    %v5006 = vpop.f32.mrf.mxu0
    %v5007 = vadd.f32 %v4983, %v5006
    %5008 = vmatmul.bf16.gmra.mxu0 %v668
    %v5009 = vpop.f32.mrf.mxu0
    %v5010 = vadd.f32 %v4986, %v5009
    %v5011 = vpop.f32.mrf.mxu0
    %v5012 = vadd.f32 %v4988, %v5011
    %5013 = vmatmul.bf16.gmra.mxu0 %v676
    %v5014 = vpop.f32.mrf.mxu0
    %v5015 = vadd.f32 %v4991, %v5014
    %v5016 = vpop.f32.mrf.mxu0
    %v5017 = vadd.f32 %v4993, %v5016
    %5018 = vdwg.mxu0
    %5019 = vmatpush.bf16.msra.mxu0 %v3065
    %5020 = vmatpush.bf16.msra.mxu0 %v3057
    %5021 = vmatpush.bf16.msra.mxu0 %v3049
    %5022 = vmatpush.bf16.msra.mxu0 %v3041
    %5023 = vmatpush.bf16.msra.mxu0 %v3033
    %5024 = vmatpush.bf16.msra.mxu0 %v3025
    %5025 = vmatpush.bf16.msra.mxu0 %v3017
    %5026 = vmatpush.bf16.msra.mxu0 %v3009
    %5027 = vmatmul.bf16.gmra.mxu0 %v661
    %v5028 = vpop.f32.mrf.mxu0
    %v5029 = vadd.f32 %v5005, %v5028
    %v5030 = vpop.f32.mrf.mxu0
    %v5031 = vadd.f32 %v5007, %v5030
    %5032 = vmatmul.bf16.gmra.mxu0 %v669
    %v5033 = vpop.f32.mrf.mxu0
    %v5034 = vadd.f32 %v5010, %v5033
    %v5035 = vpop.f32.mrf.mxu0
    %v5036 = vadd.f32 %v5012, %v5035
    %5037 = vmatmul.bf16.gmra.mxu0 %v677
    %v5038 = vpop.f32.mrf.mxu0
    %v5039 = vadd.f32 %v5015, %v5038
    %v5040 = vpop.f32.mrf.mxu0
    %v5041 = vadd.f32 %v5017, %v5040
    %5042 = vdwg.mxu0
    %5043 = vmatpush.bf16.msra.mxu0 %v3129
    %5044 = vmatpush.bf16.msra.mxu0 %v3121
    %5045 = vmatpush.bf16.msra.mxu0 %v3113
    %5046 = vmatpush.bf16.msra.mxu0 %v3105
    %5047 = vmatpush.bf16.msra.mxu0 %v3097
    %5048 = vmatpush.bf16.msra.mxu0 %v3089
    %5049 = vmatpush.bf16.msra.mxu0 %v3081
    %5050 = vmatpush.bf16.msra.mxu0 %v3073
    %5051 = vmatmul.bf16.gmra.mxu0 %v662
    %v5052 = vpop.f32.mrf.mxu0
    %v5053 = vadd.f32 %v5029, %v5052
    %v5054 = vpop.f32.mrf.mxu0
    %v5055 = vadd.f32 %v5031, %v5054
    %5056 = vmatmul.bf16.gmra.mxu0 %v670
    %v5057 = vpop.f32.mrf.mxu0
    %v5058 = vadd.f32 %v5034, %v5057
    %v5059 = vpop.f32.mrf.mxu0
    %v5060 = vadd.f32 %v5036, %v5059
    %5061 = vmatmul.bf16.gmra.mxu0 %v678
    %v5062 = vpop.f32.mrf.mxu0
    %v5063 = vadd.f32 %v5039, %v5062
    %v5064 = vpop.f32.mrf.mxu0
    %v5065 = vadd.f32 %v5041, %v5064
    %5066 = vdwg.mxu0
    %5067 = vmatpush.bf16.msra.mxu0 %v3193
    %5068 = vmatpush.bf16.msra.mxu0 %v3185
    %5069 = vmatpush.bf16.msra.mxu0 %v3177
    %5070 = vmatpush.bf16.msra.mxu0 %v3169
    %5071 = vmatpush.bf16.msra.mxu0 %v3161
    %5072 = vmatpush.bf16.msra.mxu0 %v3153
    %5073 = vmatpush.bf16.msra.mxu0 %v3145
    %5074 = vmatpush.bf16.msra.mxu0 %v3137
    %5075 = vmatmul.bf16.gmra.mxu0 %v663
    %v5076 = vpop.f32.mrf.mxu0
    %v5077 = vadd.f32 %v5053, %v5076
    %v5078 = vpop.f32.mrf.mxu0
    %v5079 = vadd.f32 %v5055, %v5078
    %5080 = vmatmul.bf16.gmra.mxu0 %v671
    %v5081 = vpop.f32.mrf.mxu0
    %v5082 = vadd.f32 %v5058, %v5081
    %v5083 = vpop.f32.mrf.mxu0
    %v5084 = vadd.f32 %v5060, %v5083
    %5085 = vmatmul.bf16.gmra.mxu0 %v679
    %v5086 = vpop.f32.mrf.mxu0
    %v5087 = vadd.f32 %v5063, %v5086
    %v5088 = vpop.f32.mrf.mxu0
    %v5089 = vadd.f32 %v5065, %v5088
    %5090 = vdwg.mxu0
    %5091 = vmatpush.bf16.msra.mxu0 %v3257
    %5092 = vmatpush.bf16.msra.mxu0 %v3249
    %5093 = vmatpush.bf16.msra.mxu0 %v3241
    %5094 = vmatpush.bf16.msra.mxu0 %v3233
    %5095 = vmatpush.bf16.msra.mxu0 %v3225
    %5096 = vmatpush.bf16.msra.mxu0 %v3217
    %5097 = vmatpush.bf16.msra.mxu0 %v3209
    %5098 = vmatpush.bf16.msra.mxu0 %v3201
    %5099 = vmatmul.bf16.gmra.mxu0 %v664
    %v5100 = vpop.f32.mrf.mxu0
    %v5101 = vadd.f32 %v5077, %v5100
    %v5102 = vpop.f32.mrf.mxu0
    %v5103 = vadd.f32 %v5079, %v5102
    %5104 = vmatmul.bf16.gmra.mxu0 %v672
    %v5105 = vpop.f32.mrf.mxu0
    %v5106 = vadd.f32 %v5082, %v5105
    %v5107 = vpop.f32.mrf.mxu0
    %v5108 = vadd.f32 %v5084, %v5107
    %5109 = vmatmul.bf16.gmra.mxu0 %v680
    %v5110 = vpop.f32.mrf.mxu0
    %v5111 = vadd.f32 %v5087, %v5110
    %v5112 = vpop.f32.mrf.mxu0
    %v5113 = vadd.f32 %v5089, %v5112
    %5114 = vdwg.mxu0
    %5115 = vmatpush.bf16.msra.mxu0 %v2810
    %5116 = vmatpush.bf16.msra.mxu0 %v2802
    %5117 = vmatpush.bf16.msra.mxu0 %v2794
    %5118 = vmatpush.bf16.msra.mxu0 %v2786
    %5119 = vmatpush.bf16.msra.mxu0 %v2778
    %5120 = vmatpush.bf16.msra.mxu0 %v2770
    %5121 = vmatpush.bf16.msra.mxu0 %v2762
    %5122 = vmatpush.bf16.msra.mxu0 %v2754
    %5123 = vmatmul.bf16.gmra.mxu0 %v657
    %v5124 = vpop.f32.mrf.mxu0
    %v5125 = vadd.f32 %v1202, %v5124
    %v5126 = vpop.f32.mrf.mxu0
    %v5127 = vadd.f32 %v1202, %v5126
    %5128 = vmatmul.bf16.gmra.mxu0 %v665
    %v5129 = vpop.f32.mrf.mxu0
    %v5130 = vadd.f32 %v1202, %v5129
    %v5131 = vpop.f32.mrf.mxu0
    %v5132 = vadd.f32 %v1202, %v5131
    %5133 = vmatmul.bf16.gmra.mxu0 %v673
    %v5134 = vpop.f32.mrf.mxu0
    %v5135 = vadd.f32 %v1202, %v5134
    %v5136 = vpop.f32.mrf.mxu0
    %v5137 = vadd.f32 %v1202, %v5136
    %5138 = vdwg.mxu0
    %5139 = vmatpush.bf16.msra.mxu0 %v2874
    %5140 = vmatpush.bf16.msra.mxu0 %v2866
    %5141 = vmatpush.bf16.msra.mxu0 %v2858
    %5142 = vmatpush.bf16.msra.mxu0 %v2850
    %5143 = vmatpush.bf16.msra.mxu0 %v2842
    %5144 = vmatpush.bf16.msra.mxu0 %v2834
    %5145 = vmatpush.bf16.msra.mxu0 %v2826
    %5146 = vmatpush.bf16.msra.mxu0 %v2818
    %5147 = vmatmul.bf16.gmra.mxu0 %v658
    %v5148 = vpop.f32.mrf.mxu0
    %v5149 = vadd.f32 %v5125, %v5148
    %v5150 = vpop.f32.mrf.mxu0
    %v5151 = vadd.f32 %v5127, %v5150
    %5152 = vmatmul.bf16.gmra.mxu0 %v666
    %v5153 = vpop.f32.mrf.mxu0
    %v5154 = vadd.f32 %v5130, %v5153
    %v5155 = vpop.f32.mrf.mxu0
    %v5156 = vadd.f32 %v5132, %v5155
    %5157 = vmatmul.bf16.gmra.mxu0 %v674
    %v5158 = vpop.f32.mrf.mxu0
    %v5159 = vadd.f32 %v5135, %v5158
    %v5160 = vpop.f32.mrf.mxu0
    %v5161 = vadd.f32 %v5137, %v5160
    %5162 = vdwg.mxu0
    %5163 = vmatpush.bf16.msra.mxu0 %v2938
    %5164 = vmatpush.bf16.msra.mxu0 %v2930
    %5165 = vmatpush.bf16.msra.mxu0 %v2922
    %5166 = vmatpush.bf16.msra.mxu0 %v2914
    %5167 = vmatpush.bf16.msra.mxu0 %v2906
    %5168 = vmatpush.bf16.msra.mxu0 %v2898
    %5169 = vmatpush.bf16.msra.mxu0 %v2890
    %5170 = vmatpush.bf16.msra.mxu0 %v2882
    %5171 = vmatmul.bf16.gmra.mxu0 %v659
    %v5172 = vpop.f32.mrf.mxu0
    %v5173 = vadd.f32 %v5149, %v5172
    %v5174 = vpop.f32.mrf.mxu0
    %v5175 = vadd.f32 %v5151, %v5174
    %5176 = vmatmul.bf16.gmra.mxu0 %v667
    %v5177 = vpop.f32.mrf.mxu0
    %v5178 = vadd.f32 %v5154, %v5177
    %v5179 = vpop.f32.mrf.mxu0
    %v5180 = vadd.f32 %v5156, %v5179
    %5181 = vmatmul.bf16.gmra.mxu0 %v675
    %v5182 = vpop.f32.mrf.mxu0
    %v5183 = vadd.f32 %v5159, %v5182
    %v5184 = vpop.f32.mrf.mxu0
    %v5185 = vadd.f32 %v5161, %v5184
    %5186 = vdwg.mxu0
    %5187 = vmatpush.bf16.msra.mxu0 %v3002
    %5188 = vmatpush.bf16.msra.mxu0 %v2994
    %5189 = vmatpush.bf16.msra.mxu0 %v2986
    %5190 = vmatpush.bf16.msra.mxu0 %v2978
    %5191 = vmatpush.bf16.msra.mxu0 %v2970
    %5192 = vmatpush.bf16.msra.mxu0 %v2962
    %5193 = vmatpush.bf16.msra.mxu0 %v2954
    %5194 = vmatpush.bf16.msra.mxu0 %v2946
    %5195 = vmatmul.bf16.gmra.mxu0 %v660
    %v5196 = vpop.f32.mrf.mxu0
    %v5197 = vadd.f32 %v5173, %v5196
    %v5198 = vpop.f32.mrf.mxu0
    %v5199 = vadd.f32 %v5175, %v5198
    %5200 = vmatmul.bf16.gmra.mxu0 %v668
    %v5201 = vpop.f32.mrf.mxu0
    %v5202 = vadd.f32 %v5178, %v5201
    %v5203 = vpop.f32.mrf.mxu0
    %v5204 = vadd.f32 %v5180, %v5203
    %5205 = vmatmul.bf16.gmra.mxu0 %v676
    %v5206 = vpop.f32.mrf.mxu0
    %v5207 = vadd.f32 %v5183, %v5206
    %v5208 = vpop.f32.mrf.mxu0
    %v5209 = vadd.f32 %v5185, %v5208
    %5210 = vdwg.mxu0
    %5211 = vmatpush.bf16.msra.mxu0 %v3066
    %5212 = vmatpush.bf16.msra.mxu0 %v3058
    %5213 = vmatpush.bf16.msra.mxu0 %v3050
    %5214 = vmatpush.bf16.msra.mxu0 %v3042
    %5215 = vmatpush.bf16.msra.mxu0 %v3034
    %5216 = vmatpush.bf16.msra.mxu0 %v3026
    %5217 = vmatpush.bf16.msra.mxu0 %v3018
    %5218 = vmatpush.bf16.msra.mxu0 %v3010
    %5219 = vmatmul.bf16.gmra.mxu0 %v661
    %v5220 = vpop.f32.mrf.mxu0
    %v5221 = vadd.f32 %v5197, %v5220
    %v5222 = vpop.f32.mrf.mxu0
    %v5223 = vadd.f32 %v5199, %v5222
    %5224 = vmatmul.bf16.gmra.mxu0 %v669
    %v5225 = vpop.f32.mrf.mxu0
    %v5226 = vadd.f32 %v5202, %v5225
    %v5227 = vpop.f32.mrf.mxu0
    %v5228 = vadd.f32 %v5204, %v5227
    %5229 = vmatmul.bf16.gmra.mxu0 %v677
    %v5230 = vpop.f32.mrf.mxu0
    %v5231 = vadd.f32 %v5207, %v5230
    %v5232 = vpop.f32.mrf.mxu0
    %v5233 = vadd.f32 %v5209, %v5232
    %5234 = vdwg.mxu0
    %5235 = vmatpush.bf16.msra.mxu0 %v3130
    %5236 = vmatpush.bf16.msra.mxu0 %v3122
    %5237 = vmatpush.bf16.msra.mxu0 %v3114
    %5238 = vmatpush.bf16.msra.mxu0 %v3106
    %5239 = vmatpush.bf16.msra.mxu0 %v3098
    %5240 = vmatpush.bf16.msra.mxu0 %v3090
    %5241 = vmatpush.bf16.msra.mxu0 %v3082
    %5242 = vmatpush.bf16.msra.mxu0 %v3074
    %5243 = vmatmul.bf16.gmra.mxu0 %v662
    %v5244 = vpop.f32.mrf.mxu0
    %v5245 = vadd.f32 %v5221, %v5244
    %v5246 = vpop.f32.mrf.mxu0
    %v5247 = vadd.f32 %v5223, %v5246
    %5248 = vmatmul.bf16.gmra.mxu0 %v670
    %v5249 = vpop.f32.mrf.mxu0
    %v5250 = vadd.f32 %v5226, %v5249
    %v5251 = vpop.f32.mrf.mxu0
    %v5252 = vadd.f32 %v5228, %v5251
    %5253 = vmatmul.bf16.gmra.mxu0 %v678
    %v5254 = vpop.f32.mrf.mxu0
    %v5255 = vadd.f32 %v5231, %v5254
    %v5256 = vpop.f32.mrf.mxu0
    %v5257 = vadd.f32 %v5233, %v5256
    %5258 = vdwg.mxu0
    %5259 = vmatpush.bf16.msra.mxu0 %v3194
    %5260 = vmatpush.bf16.msra.mxu0 %v3186
    %5261 = vmatpush.bf16.msra.mxu0 %v3178
    %5262 = vmatpush.bf16.msra.mxu0 %v3170
    %5263 = vmatpush.bf16.msra.mxu0 %v3162
    %5264 = vmatpush.bf16.msra.mxu0 %v3154
    %5265 = vmatpush.bf16.msra.mxu0 %v3146
    %5266 = vmatpush.bf16.msra.mxu0 %v3138
    %5267 = vmatmul.bf16.gmra.mxu0 %v663
    %v5268 = vpop.f32.mrf.mxu0
    %v5269 = vadd.f32 %v5245, %v5268
    %v5270 = vpop.f32.mrf.mxu0
    %v5271 = vadd.f32 %v5247, %v5270
    %5272 = vmatmul.bf16.gmra.mxu0 %v671
    %v5273 = vpop.f32.mrf.mxu0
    %v5274 = vadd.f32 %v5250, %v5273
    %v5275 = vpop.f32.mrf.mxu0
    %v5276 = vadd.f32 %v5252, %v5275
    %5277 = vmatmul.bf16.gmra.mxu0 %v679
    %v5278 = vpop.f32.mrf.mxu0
    %v5279 = vadd.f32 %v5255, %v5278
    %v5280 = vpop.f32.mrf.mxu0
    %v5281 = vadd.f32 %v5257, %v5280
    %5282 = vdwg.mxu0
    %5283 = vmatpush.bf16.msra.mxu0 %v3258
    %5284 = vmatpush.bf16.msra.mxu0 %v3250
    %5285 = vmatpush.bf16.msra.mxu0 %v3242
    %5286 = vmatpush.bf16.msra.mxu0 %v3234
    %5287 = vmatpush.bf16.msra.mxu0 %v3226
    %5288 = vmatpush.bf16.msra.mxu0 %v3218
    %5289 = vmatpush.bf16.msra.mxu0 %v3210
    %5290 = vmatpush.bf16.msra.mxu0 %v3202
    %5291 = vmatmul.bf16.gmra.mxu0 %v664
    %v5292 = vpop.f32.mrf.mxu0
    %v5293 = vadd.f32 %v5269, %v5292
    %v5294 = vpop.f32.mrf.mxu0
    %v5295 = vadd.f32 %v5271, %v5294
    %5296 = vmatmul.bf16.gmra.mxu0 %v672
    %v5297 = vpop.f32.mrf.mxu0
    %v5298 = vadd.f32 %v5274, %v5297
    %v5299 = vpop.f32.mrf.mxu0
    %v5300 = vadd.f32 %v5276, %v5299
    %5301 = vmatmul.bf16.gmra.mxu0 %v680
    %v5302 = vpop.f32.mrf.mxu0
    %v5303 = vadd.f32 %v5279, %v5302
    %v5304 = vpop.f32.mrf.mxu0
    %v5305 = vadd.f32 %v5281, %v5304
    %5306 = vdwg.mxu0
    %v5307 = vadd.f32 %v3949, %v4141
    %v5308 = vadd.f32 %v5307, %v4333
    %v5309 = vadd.f32 %v5308, %v4525
    %v5310 = vadd.f32 %v5309, %v4717
    %v5311 = vadd.f32 %v5310, %v4909
    %v5312 = vadd.f32 %v5311, %v5101
    %v5313 = vadd.f32 %v5312, %v5293
    %5314 = vadd.xlane.f32.xlu0 %v5313
    %v5315 = vpop.xlane.xlu0 %5314
    %v5316 = vadd.f32 %v3951, %v4143
    %v5317 = vadd.f32 %v5316, %v4335
    %v5318 = vadd.f32 %v5317, %v4527
    %v5319 = vadd.f32 %v5318, %v4719
    %v5320 = vadd.f32 %v5319, %v4911
    %v5321 = vadd.f32 %v5320, %v5103
    %v5322 = vadd.f32 %v5321, %v5295
    %5323 = vadd.xlane.f32.xlu0 %v5322
    %v5324 = vpop.xlane.xlu0 %5323
    %v5325 = vadd.f32 %v3954, %v4146
    %v5326 = vadd.f32 %v5325, %v4338
    %v5327 = vadd.f32 %v5326, %v4530
    %v5328 = vadd.f32 %v5327, %v4722
    %v5329 = vadd.f32 %v5328, %v4914
    %v5330 = vadd.f32 %v5329, %v5106
    %v5331 = vadd.f32 %v5330, %v5298
    %5332 = vadd.xlane.f32.xlu0 %v5331
    %v5333 = vpop.xlane.xlu0 %5332
    %v5334 = vadd.f32 %v3956, %v4148
    %v5335 = vadd.f32 %v5334, %v4340
    %v5336 = vadd.f32 %v5335, %v4532
    %v5337 = vadd.f32 %v5336, %v4724
    %v5338 = vadd.f32 %v5337, %v4916
    %v5339 = vadd.f32 %v5338, %v5108
    %v5340 = vadd.f32 %v5339, %v5300
    %5341 = vadd.xlane.f32.xlu0 %v5340
    %v5342 = vpop.xlane.xlu0 %5341
    %v5343 = vadd.f32 %v3959, %v4151
    %v5344 = vadd.f32 %v5343, %v4343
    %v5345 = vadd.f32 %v5344, %v4535
    %v5346 = vadd.f32 %v5345, %v4727
    %v5347 = vadd.f32 %v5346, %v4919
    %v5348 = vadd.f32 %v5347, %v5111
    %v5349 = vadd.f32 %v5348, %v5303
    %5350 = vadd.xlane.f32.xlu0 %v5349
    %v5351 = vpop.xlane.xlu0 %5350
    %v5352 = vadd.f32 %v3961, %v4153
    %v5353 = vadd.f32 %v5352, %v4345
    %v5354 = vadd.f32 %v5353, %v4537
    %v5355 = vadd.f32 %v5354, %v4729
    %v5356 = vadd.f32 %v5355, %v4921
    %v5357 = vadd.f32 %v5356, %v5113
    %v5358 = vadd.f32 %v5357, %v5305
    %5359 = vadd.xlane.f32.xlu0 %v5358
    %v5360 = vpop.xlane.xlu0 %5359
    %v5361 = vrcp.pop 1024.0
    %v5362 = vmul.f32 1024.0, %v5361
    %v5363 = vsub.f32 1.0, %v5362
    %v5364 = vmul.f32 %v5361, %v5363
    %v5365 = vadd.f32 %v5361, %v5364
    %vm5366 = vweird.f32 %v5361
    %v5367 = vsel %vm5366, %v5361, %v5365
    %v5368 = vmul.f32 %v5315, %v5367
    %v5369 = vmul.f32 %v5324, %v5367
    %v5370 = vmul.f32 %v5333, %v5367
    %v5371 = vmul.f32 %v5342, %v5367
    %v5372 = vmul.f32 %v5351, %v5367
    %v5373 = vmul.f32 %v5360, %v5367
    %v5374 = vsub.f32 %v3949, %v5368
    %v5375 = vsub.f32 %v4141, %v5368
    %v5376 = vsub.f32 %v4333, %v5368
    %v5377 = vsub.f32 %v4525, %v5368
    %v5378 = vsub.f32 %v4717, %v5368
    %v5379 = vsub.f32 %v4909, %v5368
    %v5380 = vsub.f32 %v5101, %v5368
    %v5381 = vsub.f32 %v5293, %v5368
    %v5382 = vsub.f32 %v3951, %v5369
    %v5383 = vsub.f32 %v4143, %v5369
    %v5384 = vsub.f32 %v4335, %v5369
    %v5385 = vsub.f32 %v4527, %v5369
    %v5386 = vsub.f32 %v4719, %v5369
    %v5387 = vsub.f32 %v4911, %v5369
    %v5388 = vsub.f32 %v5103, %v5369
    %v5389 = vsub.f32 %v5295, %v5369
    %v5390 = vsub.f32 %v3954, %v5370
    %v5391 = vsub.f32 %v4146, %v5370
    %v5392 = vsub.f32 %v4338, %v5370
    %v5393 = vsub.f32 %v4530, %v5370
    %v5394 = vsub.f32 %v4722, %v5370
    %v5395 = vsub.f32 %v4914, %v5370
    %v5396 = vsub.f32 %v5106, %v5370
    %v5397 = vsub.f32 %v5298, %v5370
    %v5398 = vsub.f32 %v3956, %v5371
    %v5399 = vsub.f32 %v4148, %v5371
    %v5400 = vsub.f32 %v4340, %v5371
    %v5401 = vsub.f32 %v4532, %v5371
    %v5402 = vsub.f32 %v4724, %v5371
    %v5403 = vsub.f32 %v4916, %v5371
    %v5404 = vsub.f32 %v5108, %v5371
    %v5405 = vsub.f32 %v5300, %v5371
    %v5406 = vsub.f32 %v3959, %v5372
    %v5407 = vsub.f32 %v4151, %v5372
    %v5408 = vsub.f32 %v4343, %v5372
    %v5409 = vsub.f32 %v4535, %v5372
    %v5410 = vsub.f32 %v4727, %v5372
    %v5411 = vsub.f32 %v4919, %v5372
    %v5412 = vsub.f32 %v5111, %v5372
    %v5413 = vsub.f32 %v5303, %v5372
    %v5414 = vsub.f32 %v3961, %v5373
    %v5415 = vsub.f32 %v4153, %v5373
    %v5416 = vsub.f32 %v4345, %v5373
    %v5417 = vsub.f32 %v4537, %v5373
    %v5418 = vsub.f32 %v4729, %v5373
    %v5419 = vsub.f32 %v4921, %v5373
    %v5420 = vsub.f32 %v5113, %v5373
    %v5421 = vsub.f32 %v5305, %v5373
    %v5422 = vmul.f32 %v5374, %v5374
    %v5423 = vmul.f32 %v5375, %v5375
    %v5424 = vmul.f32 %v5376, %v5376
    %v5425 = vmul.f32 %v5377, %v5377
    %v5426 = vmul.f32 %v5378, %v5378
    %v5427 = vmul.f32 %v5379, %v5379
    %v5428 = vmul.f32 %v5380, %v5380
    %v5429 = vmul.f32 %v5381, %v5381
    %v5430 = vmul.f32 %v5382, %v5382
    %v5431 = vmul.f32 %v5383, %v5383
    %v5432 = vmul.f32 %v5384, %v5384
    %v5433 = vmul.f32 %v5385, %v5385
    %v5434 = vmul.f32 %v5386, %v5386
    %v5435 = vmul.f32 %v5387, %v5387
    %v5436 = vmul.f32 %v5388, %v5388
    %v5437 = vmul.f32 %v5389, %v5389
    %v5438 = vmul.f32 %v5390, %v5390
    %v5439 = vmul.f32 %v5391, %v5391
    %v5440 = vmul.f32 %v5392, %v5392
    %v5441 = vmul.f32 %v5393, %v5393
    %v5442 = vmul.f32 %v5394, %v5394
    %v5443 = vmul.f32 %v5395, %v5395
    %v5444 = vmul.f32 %v5396, %v5396
    %v5445 = vmul.f32 %v5397, %v5397
    %v5446 = vmul.f32 %v5398, %v5398
    %v5447 = vmul.f32 %v5399, %v5399
    %v5448 = vmul.f32 %v5400, %v5400
    %v5449 = vmul.f32 %v5401, %v5401
    %v5450 = vmul.f32 %v5402, %v5402
    %v5451 = vmul.f32 %v5403, %v5403
    %v5452 = vmul.f32 %v5404, %v5404
    %v5453 = vmul.f32 %v5405, %v5405
    %v5454 = vmul.f32 %v5406, %v5406
    %v5455 = vmul.f32 %v5407, %v5407
    %v5456 = vmul.f32 %v5408, %v5408
    %v5457 = vmul.f32 %v5409, %v5409
    %v5458 = vmul.f32 %v5410, %v5410
    %v5459 = vmul.f32 %v5411, %v5411
    %v5460 = vmul.f32 %v5412, %v5412
    %v5461 = vmul.f32 %v5413, %v5413
    %v5462 = vmul.f32 %v5414, %v5414
    %v5463 = vmul.f32 %v5415, %v5415
    %v5464 = vmul.f32 %v5416, %v5416
    %v5465 = vmul.f32 %v5417, %v5417
    %v5466 = vmul.f32 %v5418, %v5418
    %v5467 = vmul.f32 %v5419, %v5419
    %v5468 = vmul.f32 %v5420, %v5420
    %v5469 = vmul.f32 %v5421, %v5421
    %v5470 = vadd.f32 %v5422, %v5423
    %v5471 = vadd.f32 %v5470, %v5424
    %v5472 = vadd.f32 %v5471, %v5425
    %v5473 = vadd.f32 %v5472, %v5426
    %v5474 = vadd.f32 %v5473, %v5427
    %v5475 = vadd.f32 %v5474, %v5428
    %v5476 = vadd.f32 %v5475, %v5429
    %5477 = vadd.xlane.f32.xlu0 %v5476
    %v5478 = vpop.xlane.xlu0 %5477
    %v5479 = vadd.f32 %v5430, %v5431
    %v5480 = vadd.f32 %v5479, %v5432
    %v5481 = vadd.f32 %v5480, %v5433
    %v5482 = vadd.f32 %v5481, %v5434
    %v5483 = vadd.f32 %v5482, %v5435
    %v5484 = vadd.f32 %v5483, %v5436
    %v5485 = vadd.f32 %v5484, %v5437
    %5486 = vadd.xlane.f32.xlu0 %v5485
    %v5487 = vpop.xlane.xlu0 %5486
    %v5488 = vadd.f32 %v5438, %v5439
    %v5489 = vadd.f32 %v5488, %v5440
    %v5490 = vadd.f32 %v5489, %v5441
    %v5491 = vadd.f32 %v5490, %v5442
    %v5492 = vadd.f32 %v5491, %v5443
    %v5493 = vadd.f32 %v5492, %v5444
    %v5494 = vadd.f32 %v5493, %v5445
    %5495 = vadd.xlane.f32.xlu0 %v5494
    %v5496 = vpop.xlane.xlu0 %5495
    %v5497 = vadd.f32 %v5446, %v5447
    %v5498 = vadd.f32 %v5497, %v5448
    %v5499 = vadd.f32 %v5498, %v5449
    %v5500 = vadd.f32 %v5499, %v5450
    %v5501 = vadd.f32 %v5500, %v5451
    %v5502 = vadd.f32 %v5501, %v5452
    %v5503 = vadd.f32 %v5502, %v5453
    %5504 = vadd.xlane.f32.xlu0 %v5503
    %v5505 = vpop.xlane.xlu0 %5504
    %v5506 = vadd.f32 %v5454, %v5455
    %v5507 = vadd.f32 %v5506, %v5456
    %v5508 = vadd.f32 %v5507, %v5457
    %v5509 = vadd.f32 %v5508, %v5458
    %v5510 = vadd.f32 %v5509, %v5459
    %v5511 = vadd.f32 %v5510, %v5460
    %v5512 = vadd.f32 %v5511, %v5461
    %5513 = vadd.xlane.f32.xlu0 %v5512
    %v5514 = vpop.xlane.xlu0 %5513
    %v5515 = vadd.f32 %v5462, %v5463
    %v5516 = vadd.f32 %v5515, %v5464
    %v5517 = vadd.f32 %v5516, %v5465
    %v5518 = vadd.f32 %v5517, %v5466
    %v5519 = vadd.f32 %v5518, %v5467
    %v5520 = vadd.f32 %v5519, %v5468
    %v5521 = vadd.f32 %v5520, %v5469
    %5522 = vadd.xlane.f32.xlu0 %v5521
    %v5523 = vpop.xlane.xlu0 %5522
    %v5524 = vmul.f32 %v5478, %v5367
    %v5525 = vmul.f32 %v5487, %v5367
    %v5526 = vmul.f32 %v5496, %v5367
    %v5527 = vmul.f32 %v5505, %v5367
    %v5528 = vmul.f32 %v5514, %v5367
    %v5529 = vmul.f32 %v5523, %v5367
    %v5530 = vadd.f32 %v5524, 1e-05
    %v5531 = vadd.f32 %v5525, 1e-05
    %v5532 = vadd.f32 %v5526, 1e-05
    %v5533 = vadd.f32 %v5527, 1e-05
    %v5534 = vadd.f32 %v5528, 1e-05
    %v5535 = vadd.f32 %v5529, 1e-05
    %v5536 = vrsqrt.pop %v5530
    %v5537 = vmul.f32 %v5536, %v5530
    %v5538 = vmul.f32 %v5537, %v5536
    %v5539 = vmul.f32 0.5, %v5538
    %v5540 = vsub.f32 1.5, %v5539
    %v5541 = vmul.f32 %v5536, %v5540
    %vm5542 = vweird.f32 %v5530
    %vm5543 = vweird.f32 %v5536
    %vm5544 = vmor %vm5542, %vm5543
    %v5545 = vsel %vm5544, %v5536, %v5541
    %v5546 = vrsqrt.pop %v5531
    %v5547 = vmul.f32 %v5546, %v5531
    %v5548 = vmul.f32 %v5547, %v5546
    %v5549 = vmul.f32 0.5, %v5548
    %v5550 = vsub.f32 1.5, %v5549
    %v5551 = vmul.f32 %v5546, %v5550
    %vm5552 = vweird.f32 %v5531
    %vm5553 = vweird.f32 %v5546
    %vm5554 = vmor %vm5552, %vm5553
    %v5555 = vsel %vm5554, %v5546, %v5551
    %v5556 = vrsqrt.pop %v5532
    %v5557 = vmul.f32 %v5556, %v5532
    %v5558 = vmul.f32 %v5557, %v5556
    %v5559 = vmul.f32 0.5, %v5558
    %v5560 = vsub.f32 1.5, %v5559
    %v5561 = vmul.f32 %v5556, %v5560
    %vm5562 = vweird.f32 %v5532
    %vm5563 = vweird.f32 %v5556
    %vm5564 = vmor %vm5562, %vm5563
    %v5565 = vsel %vm5564, %v5556, %v5561
    %v5566 = vrsqrt.pop %v5533
    %v5567 = vmul.f32 %v5566, %v5533
    %v5568 = vmul.f32 %v5567, %v5566
    %v5569 = vmul.f32 0.5, %v5568
    %v5570 = vsub.f32 1.5, %v5569
    %v5571 = vmul.f32 %v5566, %v5570
    %vm5572 = vweird.f32 %v5533
    %vm5573 = vweird.f32 %v5566
    %vm5574 = vmor %vm5572, %vm5573
    %v5575 = vsel %vm5574, %v5566, %v5571
    %v5576 = vrsqrt.pop %v5534
    %v5577 = vmul.f32 %v5576, %v5534
    %v5578 = vmul.f32 %v5577, %v5576
    %v5579 = vmul.f32 0.5, %v5578
    %v5580 = vsub.f32 1.5, %v5579
    %v5581 = vmul.f32 %v5576, %v5580
    %vm5582 = vweird.f32 %v5534
    %vm5583 = vweird.f32 %v5576
    %vm5584 = vmor %vm5582, %vm5583
    %v5585 = vsel %vm5584, %v5576, %v5581
    %v5586 = vrsqrt.pop %v5535
    %v5587 = vmul.f32 %v5586, %v5535
    %v5588 = vmul.f32 %v5587, %v5586
    %v5589 = vmul.f32 0.5, %v5588
    %v5590 = vsub.f32 1.5, %v5589
    %v5591 = vmul.f32 %v5586, %v5590
    %vm5592 = vweird.f32 %v5535
    %vm5593 = vweird.f32 %v5586
    %vm5594 = vmor %vm5592, %vm5593
    %v5595 = vsel %vm5594, %v5586, %v5591
    %v5596 = vmul.f32 %v5374, %v5545
    %v5597 = vmul.f32 %v5375, %v5545
    %v5598 = vmul.f32 %v5376, %v5545
    %v5599 = vmul.f32 %v5377, %v5545
    %v5600 = vmul.f32 %v5378, %v5545
    %v5601 = vmul.f32 %v5379, %v5545
    %v5602 = vmul.f32 %v5380, %v5545
    %v5603 = vmul.f32 %v5381, %v5545
    %v5604 = vmul.f32 %v5382, %v5555
    %v5605 = vmul.f32 %v5383, %v5555
    %v5606 = vmul.f32 %v5384, %v5555
    %v5607 = vmul.f32 %v5385, %v5555
    %v5608 = vmul.f32 %v5386, %v5555
    %v5609 = vmul.f32 %v5387, %v5555
    %v5610 = vmul.f32 %v5388, %v5555
    %v5611 = vmul.f32 %v5389, %v5555
    %v5612 = vmul.f32 %v5390, %v5565
    %v5613 = vmul.f32 %v5391, %v5565
    %v5614 = vmul.f32 %v5392, %v5565
    %v5615 = vmul.f32 %v5393, %v5565
    %v5616 = vmul.f32 %v5394, %v5565
    %v5617 = vmul.f32 %v5395, %v5565
    %v5618 = vmul.f32 %v5396, %v5565
    %v5619 = vmul.f32 %v5397, %v5565
    %v5620 = vmul.f32 %v5398, %v5575
    %v5621 = vmul.f32 %v5399, %v5575
    %v5622 = vmul.f32 %v5400, %v5575
    %v5623 = vmul.f32 %v5401, %v5575
    %v5624 = vmul.f32 %v5402, %v5575
    %v5625 = vmul.f32 %v5403, %v5575
    %v5626 = vmul.f32 %v5404, %v5575
    %v5627 = vmul.f32 %v5405, %v5575
    %v5628 = vmul.f32 %v5406, %v5585
    %v5629 = vmul.f32 %v5407, %v5585
    %v5630 = vmul.f32 %v5408, %v5585
    %v5631 = vmul.f32 %v5409, %v5585
    %v5632 = vmul.f32 %v5410, %v5585
    %v5633 = vmul.f32 %v5411, %v5585
    %v5634 = vmul.f32 %v5412, %v5585
    %v5635 = vmul.f32 %v5413, %v5585
    %v5636 = vmul.f32 %v5414, %v5595
    %v5637 = vmul.f32 %v5415, %v5595
    %v5638 = vmul.f32 %v5416, %v5595
    %v5639 = vmul.f32 %v5417, %v5595
    %v5640 = vmul.f32 %v5418, %v5595
    %v5641 = vmul.f32 %v5419, %v5595
    %v5642 = vmul.f32 %v5420, %v5595
    %v5643 = vmul.f32 %v5421, %v5595
    %v5644 = vld [vmem:[#allocation9] sm:$0xff]
    %v5646 = vperm.slane %v5644, 0
    %v5647 = vperm.slane %v5644, 1
    %v5648 = vperm.slane %v5644, 2
    %v5649 = vperm.slane %v5644, 3
    %v5650 = vperm.slane %v5644, 4
    %v5651 = vperm.slane %v5644, 5
    %v5652 = vperm.slane %v5644, 6
    %v5653 = vperm.slane %v5644, 7
    %v5662 = vmul.f32 %v5596, %v5646
    %v5663 = vmul.f32 %v5597, %v5647
    %v5664 = vmul.f32 %v5598, %v5648
    %v5665 = vmul.f32 %v5599, %v5649
    %v5666 = vmul.f32 %v5600, %v5650
    %v5667 = vmul.f32 %v5601, %v5651
    %v5668 = vmul.f32 %v5602, %v5652
    %v5669 = vmul.f32 %v5603, %v5653
    %v5670 = vmul.f32 %v5604, %v5646
    %v5671 = vmul.f32 %v5605, %v5647
    %v5672 = vmul.f32 %v5606, %v5648
    %v5673 = vmul.f32 %v5607, %v5649
    %v5674 = vmul.f32 %v5608, %v5650
    %v5675 = vmul.f32 %v5609, %v5651
    %v5676 = vmul.f32 %v5610, %v5652
    %v5677 = vmul.f32 %v5611, %v5653
    %v5678 = vmul.f32 %v5612, %v5646
    %v5679 = vmul.f32 %v5613, %v5647
    %v5680 = vmul.f32 %v5614, %v5648
    %v5681 = vmul.f32 %v5615, %v5649
    %v5682 = vmul.f32 %v5616, %v5650
    %v5683 = vmul.f32 %v5617, %v5651
    %v5684 = vmul.f32 %v5618, %v5652
    %v5685 = vmul.f32 %v5619, %v5653
    %v5686 = vmul.f32 %v5620, %v5646
    %v5687 = vmul.f32 %v5621, %v5647
    %v5688 = vmul.f32 %v5622, %v5648
    %v5689 = vmul.f32 %v5623, %v5649
    %v5690 = vmul.f32 %v5624, %v5650
    %v5691 = vmul.f32 %v5625, %v5651
    %v5692 = vmul.f32 %v5626, %v5652
    %v5693 = vmul.f32 %v5627, %v5653
    %v5694 = vmul.f32 %v5628, %v5646
    %v5695 = vmul.f32 %v5629, %v5647
    %v5696 = vmul.f32 %v5630, %v5648
    %v5697 = vmul.f32 %v5631, %v5649
    %v5698 = vmul.f32 %v5632, %v5650
    %v5699 = vmul.f32 %v5633, %v5651
    %v5700 = vmul.f32 %v5634, %v5652
    %v5701 = vmul.f32 %v5635, %v5653
    %v5702 = vmul.f32 %v5636, %v5646
    %v5703 = vmul.f32 %v5637, %v5647
    %v5704 = vmul.f32 %v5638, %v5648
    %v5705 = vmul.f32 %v5639, %v5649
    %v5706 = vmul.f32 %v5640, %v5650
    %v5707 = vmul.f32 %v5641, %v5651
    %v5708 = vmul.f32 %v5642, %v5652
    %v5709 = vmul.f32 %v5643, %v5653
    %v5710 = vld [vmem:[#allocation10] sm:$0xff]
    %v5712 = vperm.slane %v5710, 0
    %v5713 = vperm.slane %v5710, 1
    %v5714 = vperm.slane %v5710, 2
    %v5715 = vperm.slane %v5710, 3
    %v5716 = vperm.slane %v5710, 4
    %v5717 = vperm.slane %v5710, 5
    %v5718 = vperm.slane %v5710, 6
    %v5719 = vperm.slane %v5710, 7
    %v5728 = vadd.f32 %v5662, %v5712
    %v5729 = vadd.f32 %v5663, %v5713
    %v5730 = vadd.f32 %v5664, %v5714
    %v5731 = vadd.f32 %v5665, %v5715
    %v5732 = vadd.f32 %v5666, %v5716
    %v5733 = vadd.f32 %v5667, %v5717
    %v5734 = vadd.f32 %v5668, %v5718
    %v5735 = vadd.f32 %v5669, %v5719
    %v5736 = vadd.f32 %v5670, %v5712
    %v5737 = vadd.f32 %v5671, %v5713
    %v5738 = vadd.f32 %v5672, %v5714
    %v5739 = vadd.f32 %v5673, %v5715
    %v5740 = vadd.f32 %v5674, %v5716
    %v5741 = vadd.f32 %v5675, %v5717
    %v5742 = vadd.f32 %v5676, %v5718
    %v5743 = vadd.f32 %v5677, %v5719
    %v5744 = vadd.f32 %v5678, %v5712
    %v5745 = vadd.f32 %v5679, %v5713
    %v5746 = vadd.f32 %v5680, %v5714
    %v5747 = vadd.f32 %v5681, %v5715
    %v5748 = vadd.f32 %v5682, %v5716
    %v5749 = vadd.f32 %v5683, %v5717
    %v5750 = vadd.f32 %v5684, %v5718
    %v5751 = vadd.f32 %v5685, %v5719
    %v5752 = vadd.f32 %v5686, %v5712
    %v5753 = vadd.f32 %v5687, %v5713
    %v5754 = vadd.f32 %v5688, %v5714
    %v5755 = vadd.f32 %v5689, %v5715
    %v5756 = vadd.f32 %v5690, %v5716
    %v5757 = vadd.f32 %v5691, %v5717
    %v5758 = vadd.f32 %v5692, %v5718
    %v5759 = vadd.f32 %v5693, %v5719
    %v5760 = vadd.f32 %v5694, %v5712
    %v5761 = vadd.f32 %v5695, %v5713
    %v5762 = vadd.f32 %v5696, %v5714
    %v5763 = vadd.f32 %v5697, %v5715
    %v5764 = vadd.f32 %v5698, %v5716
    %v5765 = vadd.f32 %v5699, %v5717
    %v5766 = vadd.f32 %v5700, %v5718
    %v5767 = vadd.f32 %v5701, %v5719
    %v5768 = vadd.f32 %v5702, %v5712
    %v5769 = vadd.f32 %v5703, %v5713
    %v5770 = vadd.f32 %v5704, %v5714
    %v5771 = vadd.f32 %v5705, %v5715
    %v5772 = vadd.f32 %v5706, %v5716
    %v5773 = vadd.f32 %v5707, %v5717
    %v5774 = vadd.f32 %v5708, %v5718
    %v5775 = vadd.f32 %v5709, %v5719
    %v5776 = vmax.f32 %v5728, 0.0
    %v5777 = vmax.f32 %v5729, 0.0
    %v5778 = vmax.f32 %v5730, 0.0
    %v5779 = vmax.f32 %v5731, 0.0
    %v5780 = vmax.f32 %v5732, 0.0
    %v5781 = vmax.f32 %v5733, 0.0
    %v5782 = vmax.f32 %v5734, 0.0
    %v5783 = vmax.f32 %v5735, 0.0
    %v5784 = vmax.f32 %v5736, 0.0
    %v5785 = vmax.f32 %v5737, 0.0
    %v5786 = vmax.f32 %v5738, 0.0
    %v5787 = vmax.f32 %v5739, 0.0
    %v5788 = vmax.f32 %v5740, 0.0
    %v5789 = vmax.f32 %v5741, 0.0
    %v5790 = vmax.f32 %v5742, 0.0
    %v5791 = vmax.f32 %v5743, 0.0
    %v5792 = vmax.f32 %v5744, 0.0
    %v5793 = vmax.f32 %v5745, 0.0
    %v5794 = vmax.f32 %v5746, 0.0
    %v5795 = vmax.f32 %v5747, 0.0
    %v5796 = vmax.f32 %v5748, 0.0
    %v5797 = vmax.f32 %v5749, 0.0
    %v5798 = vmax.f32 %v5750, 0.0
    %v5799 = vmax.f32 %v5751, 0.0
    %v5800 = vmax.f32 %v5752, 0.0
    %v5801 = vmax.f32 %v5753, 0.0
    %v5802 = vmax.f32 %v5754, 0.0
    %v5803 = vmax.f32 %v5755, 0.0
    %v5804 = vmax.f32 %v5756, 0.0
    %v5805 = vmax.f32 %v5757, 0.0
    %v5806 = vmax.f32 %v5758, 0.0
    %v5807 = vmax.f32 %v5759, 0.0
    %v5808 = vmax.f32 %v5760, 0.0
    %v5809 = vmax.f32 %v5761, 0.0
    %v5810 = vmax.f32 %v5762, 0.0
    %v5811 = vmax.f32 %v5763, 0.0
    %v5812 = vmax.f32 %v5764, 0.0
    %v5813 = vmax.f32 %v5765, 0.0
    %v5814 = vmax.f32 %v5766, 0.0
    %v5815 = vmax.f32 %v5767, 0.0
    %v5816 = vmax.f32 %v5768, 0.0
    %v5817 = vmax.f32 %v5769, 0.0
    %v5818 = vmax.f32 %v5770, 0.0
    %v5819 = vmax.f32 %v5771, 0.0
    %v5820 = vmax.f32 %v5772, 0.0
    %v5821 = vmax.f32 %v5773, 0.0
    %v5822 = vmax.f32 %v5774, 0.0
    %v5823 = vmax.f32 %v5775, 0.0
    %v5824 = vpack.c.bf16 %v5784, %v5776
    %v5825 = vpack.c.bf16 %v5785, %v5777
    %v5826 = vpack.c.bf16 %v5786, %v5778
    %v5827 = vpack.c.bf16 %v5787, %v5779
    %v5828 = vpack.c.bf16 %v5788, %v5780
    %v5829 = vpack.c.bf16 %v5789, %v5781
    %v5830 = vpack.c.bf16 %v5790, %v5782
    %v5831 = vpack.c.bf16 %v5791, %v5783
    %v5832 = vpack.c.bf16 %v5800, %v5792
    %v5833 = vpack.c.bf16 %v5801, %v5793
    %v5834 = vpack.c.bf16 %v5802, %v5794
    %v5835 = vpack.c.bf16 %v5803, %v5795
    %v5836 = vpack.c.bf16 %v5804, %v5796
    %v5837 = vpack.c.bf16 %v5805, %v5797
    %v5838 = vpack.c.bf16 %v5806, %v5798
    %v5839 = vpack.c.bf16 %v5807, %v5799
    %v5840 = vpack.c.bf16 %v5816, %v5808
    %v5841 = vpack.c.bf16 %v5817, %v5809
    %v5842 = vpack.c.bf16 %v5818, %v5810
    %v5843 = vpack.c.bf16 %v5819, %v5811
    %v5844 = vpack.c.bf16 %v5820, %v5812
    %v5845 = vpack.c.bf16 %v5821, %v5813
    %v5846 = vpack.c.bf16 %v5822, %v5814
    %v5847 = vpack.c.bf16 %v5823, %v5815
    %v5848 = vld [vmem:[#allocation12] sm:$0xff]
    %v5849 = vld [vmem:[#allocation12 + $0x8] sm:$0xff]
    %v5850 = vld [vmem:[#allocation12 + $0x10] sm:$0xff]
    %v5851 = vld [vmem:[#allocation12 + $0x18] sm:$0xff]
    %v5852 = vld [vmem:[#allocation12 + $0x20] sm:$0xff]
    %v5853 = vld [vmem:[#allocation12 + $0x28] sm:$0xff]
    %v5854 = vld [vmem:[#allocation12 + $0x30] sm:$0xff]
    %v5855 = vld [vmem:[#allocation12 + $0x38] sm:$0xff]
    %v5856 = vld [vmem:[#allocation12 + $0x40] sm:$0xff]
    %v5857 = vld [vmem:[#allocation12 + $0x48] sm:$0xff]
    %v5858 = vld [vmem:[#allocation12 + $0x50] sm:$0xff]
    %v5859 = vld [vmem:[#allocation12 + $0x58] sm:$0xff]
    %v5860 = vld [vmem:[#allocation12 + $0x60] sm:$0xff]
    %v5861 = vld [vmem:[#allocation12 + $0x68] sm:$0xff]
    %v5862 = vld [vmem:[#allocation12 + $0x70] sm:$0xff]
    %v5863 = vld [vmem:[#allocation12 + $0x78] sm:$0xff]
    %v5864 = vld [vmem:[#allocation12 + $0x80] sm:$0xff]
    %v5865 = vld [vmem:[#allocation12 + $0x88] sm:$0xff]
    %v5866 = vld [vmem:[#allocation12 + $0x90] sm:$0xff]
    %v5867 = vld [vmem:[#allocation12 + $0x98] sm:$0xff]
    %v5868 = vld [vmem:[#allocation12 + $0xa0] sm:$0xff]
    %v5869 = vld [vmem:[#allocation12 + $0xa8] sm:$0xff]
    %v5870 = vld [vmem:[#allocation12 + $0xb0] sm:$0xff]
    %v5871 = vld [vmem:[#allocation12 + $0xb8] sm:$0xff]
    %v5872 = vld [vmem:[#allocation12 + $0xc0] sm:$0xff]
    %v5873 = vld [vmem:[#allocation12 + $0xc8] sm:$0xff]
    %v5874 = vld [vmem:[#allocation12 + $0xd0] sm:$0xff]
    %v5875 = vld [vmem:[#allocation12 + $0xd8] sm:$0xff]
    %v5876 = vld [vmem:[#allocation12 + $0xe0] sm:$0xff]
    %v5877 = vld [vmem:[#allocation12 + $0xe8] sm:$0xff]
    %v5878 = vld [vmem:[#allocation12 + $0xf0] sm:$0xff]
    %v5879 = vld [vmem:[#allocation12 + $0xf8] sm:$0xff]
    %v5880 = vld [vmem:[#allocation12 + $0x100] sm:$0xff]
    %v5881 = vld [vmem:[#allocation12 + $0x108] sm:$0xff]
    %v5882 = vld [vmem:[#allocation12 + $0x110] sm:$0xff]
    %v5883 = vld [vmem:[#allocation12 + $0x118] sm:$0xff]
    %v5884 = vld [vmem:[#allocation12 + $0x120] sm:$0xff]
    %v5885 = vld [vmem:[#allocation12 + $0x128] sm:$0xff]
    %v5886 = vld [vmem:[#allocation12 + $0x130] sm:$0xff]
    %v5887 = vld [vmem:[#allocation12 + $0x138] sm:$0xff]
    %v5888 = vld [vmem:[#allocation12 + $0x140] sm:$0xff]
    %v5889 = vld [vmem:[#allocation12 + $0x148] sm:$0xff]
    %v5890 = vld [vmem:[#allocation12 + $0x150] sm:$0xff]
    %v5891 = vld [vmem:[#allocation12 + $0x158] sm:$0xff]
    %v5892 = vld [vmem:[#allocation12 + $0x160] sm:$0xff]
    %v5893 = vld [vmem:[#allocation12 + $0x168] sm:$0xff]
    %v5894 = vld [vmem:[#allocation12 + $0x170] sm:$0xff]
    %v5895 = vld [vmem:[#allocation12 + $0x178] sm:$0xff]
    %v5896 = vld [vmem:[#allocation12 + $0x180] sm:$0xff]
    %v5897 = vld [vmem:[#allocation12 + $0x188] sm:$0xff]
    %v5898 = vld [vmem:[#allocation12 + $0x190] sm:$0xff]
    %v5899 = vld [vmem:[#allocation12 + $0x198] sm:$0xff]
    %v5900 = vld [vmem:[#allocation12 + $0x1a0] sm:$0xff]
    %v5901 = vld [vmem:[#allocation12 + $0x1a8] sm:$0xff]
    %v5902 = vld [vmem:[#allocation12 + $0x1b0] sm:$0xff]
    %v5903 = vld [vmem:[#allocation12 + $0x1b8] sm:$0xff]
    %v5904 = vld [vmem:[#allocation12 + $0x1c0] sm:$0xff]
    %v5905 = vld [vmem:[#allocation12 + $0x1c8] sm:$0xff]
    %v5906 = vld [vmem:[#allocation12 + $0x1d0] sm:$0xff]
    %v5907 = vld [vmem:[#allocation12 + $0x1d8] sm:$0xff]
    %v5908 = vld [vmem:[#allocation12 + $0x1e0] sm:$0xff]
    %v5909 = vld [vmem:[#allocation12 + $0x1e8] sm:$0xff]
    %v5910 = vld [vmem:[#allocation12 + $0x1f0] sm:$0xff]
    %v5911 = vld [vmem:[#allocation12 + $0x1f8] sm:$0xff]
    %v5912 = vld [vmem:[#allocation12 + $0x200] sm:$0xff]
    %v5913 = vld [vmem:[#allocation12 + $0x208] sm:$0xff]
    %v5914 = vld [vmem:[#allocation12 + $0x210] sm:$0xff]
    %v5915 = vld [vmem:[#allocation12 + $0x218] sm:$0xff]
    %v5916 = vld [vmem:[#allocation12 + $0x220] sm:$0xff]
    %v5917 = vld [vmem:[#allocation12 + $0x228] sm:$0xff]
    %v5918 = vld [vmem:[#allocation12 + $0x230] sm:$0xff]
    %v5919 = vld [vmem:[#allocation12 + $0x238] sm:$0xff]
    %v5920 = vld [vmem:[#allocation12 + $0x240] sm:$0xff]
    %v5921 = vld [vmem:[#allocation12 + $0x248] sm:$0xff]
    %v5922 = vld [vmem:[#allocation12 + $0x250] sm:$0xff]
    %v5923 = vld [vmem:[#allocation12 + $0x258] sm:$0xff]
    %v5924 = vld [vmem:[#allocation12 + $0x260] sm:$0xff]
    %v5925 = vld [vmem:[#allocation12 + $0x268] sm:$0xff]
    %v5926 = vld [vmem:[#allocation12 + $0x270] sm:$0xff]
    %v5927 = vld [vmem:[#allocation12 + $0x278] sm:$0xff]
    %v5928 = vld [vmem:[#allocation12 + $0x280] sm:$0xff]
    %v5929 = vld [vmem:[#allocation12 + $0x288] sm:$0xff]
    %v5930 = vld [vmem:[#allocation12 + $0x290] sm:$0xff]
    %v5931 = vld [vmem:[#allocation12 + $0x298] sm:$0xff]
    %v5932 = vld [vmem:[#allocation12 + $0x2a0] sm:$0xff]
    %v5933 = vld [vmem:[#allocation12 + $0x2a8] sm:$0xff]
    %v5934 = vld [vmem:[#allocation12 + $0x2b0] sm:$0xff]
    %v5935 = vld [vmem:[#allocation12 + $0x2b8] sm:$0xff]
    %v5936 = vld [vmem:[#allocation12 + $0x2c0] sm:$0xff]
    %v5937 = vld [vmem:[#allocation12 + $0x2c8] sm:$0xff]
    %v5938 = vld [vmem:[#allocation12 + $0x2d0] sm:$0xff]
    %v5939 = vld [vmem:[#allocation12 + $0x2d8] sm:$0xff]
    %v5940 = vld [vmem:[#allocation12 + $0x2e0] sm:$0xff]
    %v5941 = vld [vmem:[#allocation12 + $0x2e8] sm:$0xff]
    %v5942 = vld [vmem:[#allocation12 + $0x2f0] sm:$0xff]
    %v5943 = vld [vmem:[#allocation12 + $0x2f8] sm:$0xff]
    %v5944 = vld [vmem:[#allocation12 + $0x300] sm:$0xff]
    %v5945 = vld [vmem:[#allocation12 + $0x308] sm:$0xff]
    %v5946 = vld [vmem:[#allocation12 + $0x310] sm:$0xff]
    %v5947 = vld [vmem:[#allocation12 + $0x318] sm:$0xff]
    %v5948 = vld [vmem:[#allocation12 + $0x320] sm:$0xff]
    %v5949 = vld [vmem:[#allocation12 + $0x328] sm:$0xff]
    %v5950 = vld [vmem:[#allocation12 + $0x330] sm:$0xff]
    %v5951 = vld [vmem:[#allocation12 + $0x338] sm:$0xff]
    %v5952 = vld [vmem:[#allocation12 + $0x340] sm:$0xff]
    %v5953 = vld [vmem:[#allocation12 + $0x348] sm:$0xff]
    %v5954 = vld [vmem:[#allocation12 + $0x350] sm:$0xff]
    %v5955 = vld [vmem:[#allocation12 + $0x358] sm:$0xff]
    %v5956 = vld [vmem:[#allocation12 + $0x360] sm:$0xff]
    %v5957 = vld [vmem:[#allocation12 + $0x368] sm:$0xff]
    %v5958 = vld [vmem:[#allocation12 + $0x370] sm:$0xff]
    %v5959 = vld [vmem:[#allocation12 + $0x378] sm:$0xff]
    %v5960 = vld [vmem:[#allocation12 + $0x380] sm:$0xff]
    %v5961 = vld [vmem:[#allocation12 + $0x388] sm:$0xff]
    %v5962 = vld [vmem:[#allocation12 + $0x390] sm:$0xff]
    %v5963 = vld [vmem:[#allocation12 + $0x398] sm:$0xff]
    %v5964 = vld [vmem:[#allocation12 + $0x3a0] sm:$0xff]
    %v5965 = vld [vmem:[#allocation12 + $0x3a8] sm:$0xff]
    %v5966 = vld [vmem:[#allocation12 + $0x3b0] sm:$0xff]
    %v5967 = vld [vmem:[#allocation12 + $0x3b8] sm:$0xff]
    %v5968 = vld [vmem:[#allocation12 + $0x3c0] sm:$0xff]
    %v5969 = vld [vmem:[#allocation12 + $0x3c8] sm:$0xff]
    %v5970 = vld [vmem:[#allocation12 + $0x3d0] sm:$0xff]
    %v5971 = vld [vmem:[#allocation12 + $0x3d8] sm:$0xff]
    %v5972 = vld [vmem:[#allocation12 + $0x3e0] sm:$0xff]
    %v5973 = vld [vmem:[#allocation12 + $0x3e8] sm:$0xff]
    %v5974 = vld [vmem:[#allocation12 + $0x3f0] sm:$0xff]
    %v5975 = vld [vmem:[#allocation12 + $0x3f8] sm:$0xff]
    %v5976 = vld [vmem:[#allocation12 + $0x400] sm:$0xff]
    %v5977 = vld [vmem:[#allocation12 + $0x408] sm:$0xff]
    %v5978 = vld [vmem:[#allocation12 + $0x410] sm:$0xff]
    %v5979 = vld [vmem:[#allocation12 + $0x418] sm:$0xff]
    %v5980 = vld [vmem:[#allocation12 + $0x420] sm:$0xff]
    %v5981 = vld [vmem:[#allocation12 + $0x428] sm:$0xff]
    %v5982 = vld [vmem:[#allocation12 + $0x430] sm:$0xff]
    %v5983 = vld [vmem:[#allocation12 + $0x438] sm:$0xff]
    %v5984 = vld [vmem:[#allocation12 + $0x440] sm:$0xff]
    %v5985 = vld [vmem:[#allocation12 + $0x448] sm:$0xff]
    %v5986 = vld [vmem:[#allocation12 + $0x450] sm:$0xff]
    %v5987 = vld [vmem:[#allocation12 + $0x458] sm:$0xff]
    %v5988 = vld [vmem:[#allocation12 + $0x460] sm:$0xff]
    %v5989 = vld [vmem:[#allocation12 + $0x468] sm:$0xff]
    %v5990 = vld [vmem:[#allocation12 + $0x470] sm:$0xff]
    %v5991 = vld [vmem:[#allocation12 + $0x478] sm:$0xff]
    %v5992 = vld [vmem:[#allocation12 + $0x480] sm:$0xff]
    %v5993 = vld [vmem:[#allocation12 + $0x488] sm:$0xff]
    %v5994 = vld [vmem:[#allocation12 + $0x490] sm:$0xff]
    %v5995 = vld [vmem:[#allocation12 + $0x498] sm:$0xff]
    %v5996 = vld [vmem:[#allocation12 + $0x4a0] sm:$0xff]
    %v5997 = vld [vmem:[#allocation12 + $0x4a8] sm:$0xff]
    %v5998 = vld [vmem:[#allocation12 + $0x4b0] sm:$0xff]
    %v5999 = vld [vmem:[#allocation12 + $0x4b8] sm:$0xff]
    %v6000 = vld [vmem:[#allocation12 + $0x4c0] sm:$0xff]
    %v6001 = vld [vmem:[#allocation12 + $0x4c8] sm:$0xff]
    %v6002 = vld [vmem:[#allocation12 + $0x4d0] sm:$0xff]
    %v6003 = vld [vmem:[#allocation12 + $0x4d8] sm:$0xff]
    %v6004 = vld [vmem:[#allocation12 + $0x4e0] sm:$0xff]
    %v6005 = vld [vmem:[#allocation12 + $0x4e8] sm:$0xff]
    %v6006 = vld [vmem:[#allocation12 + $0x4f0] sm:$0xff]
    %v6007 = vld [vmem:[#allocation12 + $0x4f8] sm:$0xff]
    %v6008 = vld [vmem:[#allocation12 + $0x500] sm:$0xff]
    %v6009 = vld [vmem:[#allocation12 + $0x508] sm:$0xff]
    %v6010 = vld [vmem:[#allocation12 + $0x510] sm:$0xff]
    %v6011 = vld [vmem:[#allocation12 + $0x518] sm:$0xff]
    %v6012 = vld [vmem:[#allocation12 + $0x520] sm:$0xff]
    %v6013 = vld [vmem:[#allocation12 + $0x528] sm:$0xff]
    %v6014 = vld [vmem:[#allocation12 + $0x530] sm:$0xff]
    %v6015 = vld [vmem:[#allocation12 + $0x538] sm:$0xff]
    %v6016 = vld [vmem:[#allocation12 + $0x540] sm:$0xff]
    %v6017 = vld [vmem:[#allocation12 + $0x548] sm:$0xff]
    %v6018 = vld [vmem:[#allocation12 + $0x550] sm:$0xff]
    %v6019 = vld [vmem:[#allocation12 + $0x558] sm:$0xff]
    %v6020 = vld [vmem:[#allocation12 + $0x560] sm:$0xff]
    %v6021 = vld [vmem:[#allocation12 + $0x568] sm:$0xff]
    %v6022 = vld [vmem:[#allocation12 + $0x570] sm:$0xff]
    %v6023 = vld [vmem:[#allocation12 + $0x578] sm:$0xff]
    %v6024 = vld [vmem:[#allocation12 + $0x580] sm:$0xff]
    %v6025 = vld [vmem:[#allocation12 + $0x588] sm:$0xff]
    %v6026 = vld [vmem:[#allocation12 + $0x590] sm:$0xff]
    %v6027 = vld [vmem:[#allocation12 + $0x598] sm:$0xff]
    %v6028 = vld [vmem:[#allocation12 + $0x5a0] sm:$0xff]
    %v6029 = vld [vmem:[#allocation12 + $0x5a8] sm:$0xff]
    %v6030 = vld [vmem:[#allocation12 + $0x5b0] sm:$0xff]
    %v6031 = vld [vmem:[#allocation12 + $0x5b8] sm:$0xff]
    %v6032 = vld [vmem:[#allocation12 + $0x5c0] sm:$0xff]
    %v6033 = vld [vmem:[#allocation12 + $0x5c8] sm:$0xff]
    %v6034 = vld [vmem:[#allocation12 + $0x5d0] sm:$0xff]
    %v6035 = vld [vmem:[#allocation12 + $0x5d8] sm:$0xff]
    %v6036 = vld [vmem:[#allocation12 + $0x5e0] sm:$0xff]
    %v6037 = vld [vmem:[#allocation12 + $0x5e8] sm:$0xff]
    %v6038 = vld [vmem:[#allocation12 + $0x5f0] sm:$0xff]
    %v6039 = vld [vmem:[#allocation12 + $0x5f8] sm:$0xff]
    %v6040 = vld [vmem:[#allocation12 + $0x600] sm:$0xff]
    %v6041 = vld [vmem:[#allocation12 + $0x608] sm:$0xff]
    %v6042 = vld [vmem:[#allocation12 + $0x610] sm:$0xff]
    %v6043 = vld [vmem:[#allocation12 + $0x618] sm:$0xff]
    %v6044 = vld [vmem:[#allocation12 + $0x620] sm:$0xff]
    %v6045 = vld [vmem:[#allocation12 + $0x628] sm:$0xff]
    %v6046 = vld [vmem:[#allocation12 + $0x630] sm:$0xff]
    %v6047 = vld [vmem:[#allocation12 + $0x638] sm:$0xff]
    %v6048 = vld [vmem:[#allocation12 + $0x640] sm:$0xff]
    %v6049 = vld [vmem:[#allocation12 + $0x648] sm:$0xff]
    %v6050 = vld [vmem:[#allocation12 + $0x650] sm:$0xff]
    %v6051 = vld [vmem:[#allocation12 + $0x658] sm:$0xff]
    %v6052 = vld [vmem:[#allocation12 + $0x660] sm:$0xff]
    %v6053 = vld [vmem:[#allocation12 + $0x668] sm:$0xff]
    %v6054 = vld [vmem:[#allocation12 + $0x670] sm:$0xff]
    %v6055 = vld [vmem:[#allocation12 + $0x678] sm:$0xff]
    %v6056 = vld [vmem:[#allocation12 + $0x680] sm:$0xff]
    %v6057 = vld [vmem:[#allocation12 + $0x688] sm:$0xff]
    %v6058 = vld [vmem:[#allocation12 + $0x690] sm:$0xff]
    %v6059 = vld [vmem:[#allocation12 + $0x698] sm:$0xff]
    %v6060 = vld [vmem:[#allocation12 + $0x6a0] sm:$0xff]
    %v6061 = vld [vmem:[#allocation12 + $0x6a8] sm:$0xff]
    %v6062 = vld [vmem:[#allocation12 + $0x6b0] sm:$0xff]
    %v6063 = vld [vmem:[#allocation12 + $0x6b8] sm:$0xff]
    %v6064 = vld [vmem:[#allocation12 + $0x6c0] sm:$0xff]
    %v6065 = vld [vmem:[#allocation12 + $0x6c8] sm:$0xff]
    %v6066 = vld [vmem:[#allocation12 + $0x6d0] sm:$0xff]
    %v6067 = vld [vmem:[#allocation12 + $0x6d8] sm:$0xff]
    %v6068 = vld [vmem:[#allocation12 + $0x6e0] sm:$0xff]
    %v6069 = vld [vmem:[#allocation12 + $0x6e8] sm:$0xff]
    %v6070 = vld [vmem:[#allocation12 + $0x6f0] sm:$0xff]
    %v6071 = vld [vmem:[#allocation12 + $0x6f8] sm:$0xff]
    %v6072 = vld [vmem:[#allocation12 + $0x700] sm:$0xff]
    %v6073 = vld [vmem:[#allocation12 + $0x708] sm:$0xff]
    %v6074 = vld [vmem:[#allocation12 + $0x710] sm:$0xff]
    %v6075 = vld [vmem:[#allocation12 + $0x718] sm:$0xff]
    %v6076 = vld [vmem:[#allocation12 + $0x720] sm:$0xff]
    %v6077 = vld [vmem:[#allocation12 + $0x728] sm:$0xff]
    %v6078 = vld [vmem:[#allocation12 + $0x730] sm:$0xff]
    %v6079 = vld [vmem:[#allocation12 + $0x738] sm:$0xff]
    %v6080 = vld [vmem:[#allocation12 + $0x740] sm:$0xff]
    %v6081 = vld [vmem:[#allocation12 + $0x748] sm:$0xff]
    %v6082 = vld [vmem:[#allocation12 + $0x750] sm:$0xff]
    %v6083 = vld [vmem:[#allocation12 + $0x758] sm:$0xff]
    %v6084 = vld [vmem:[#allocation12 + $0x760] sm:$0xff]
    %v6085 = vld [vmem:[#allocation12 + $0x768] sm:$0xff]
    %v6086 = vld [vmem:[#allocation12 + $0x770] sm:$0xff]
    %v6087 = vld [vmem:[#allocation12 + $0x778] sm:$0xff]
    %v6088 = vld [vmem:[#allocation12 + $0x780] sm:$0xff]
    %v6089 = vld [vmem:[#allocation12 + $0x788] sm:$0xff]
    %v6090 = vld [vmem:[#allocation12 + $0x790] sm:$0xff]
    %v6091 = vld [vmem:[#allocation12 + $0x798] sm:$0xff]
    %v6092 = vld [vmem:[#allocation12 + $0x7a0] sm:$0xff]
    %v6093 = vld [vmem:[#allocation12 + $0x7a8] sm:$0xff]
    %v6094 = vld [vmem:[#allocation12 + $0x7b0] sm:$0xff]
    %v6095 = vld [vmem:[#allocation12 + $0x7b8] sm:$0xff]
    %v6096 = vld [vmem:[#allocation12 + $0x7c0] sm:$0xff]
    %v6097 = vld [vmem:[#allocation12 + $0x7c8] sm:$0xff]
    %v6098 = vld [vmem:[#allocation12 + $0x7d0] sm:$0xff]
    %v6099 = vld [vmem:[#allocation12 + $0x7d8] sm:$0xff]
    %v6100 = vld [vmem:[#allocation12 + $0x7e0] sm:$0xff]
    %v6101 = vld [vmem:[#allocation12 + $0x7e8] sm:$0xff]
    %v6102 = vld [vmem:[#allocation12 + $0x7f0] sm:$0xff]
    %v6103 = vld [vmem:[#allocation12 + $0x7f8] sm:$0xff]
    %v6104 = vld [vmem:[#allocation13] sm:$0xf]
    %v6106 = vperm.slane %v6104, 0
    %v6107 = vperm.slane %v6104, 1
    %v6108 = vperm.slane %v6104, 2
    %v6109 = vperm.slane %v6104, 3
    %v6370 = vunpack.c.l.b16 %v5848
    %v6371 = vunpack.c.h.b16 %v5848
    %v6372 = vunpack.c.l.b16 %v5849
    %v6373 = vunpack.c.h.b16 %v5849
    %v6374 = vunpack.c.l.b16 %v5850
    %v6375 = vunpack.c.h.b16 %v5850
    %v6376 = vunpack.c.l.b16 %v5851
    %v6377 = vunpack.c.h.b16 %v5851
    %v6378 = vunpack.c.l.b16 %v5852
    %v6379 = vunpack.c.h.b16 %v5852
    %v6380 = vunpack.c.l.b16 %v5853
    %v6381 = vunpack.c.h.b16 %v5853
    %v6382 = vunpack.c.l.b16 %v5854
    %v6383 = vunpack.c.h.b16 %v5854
    %v6384 = vunpack.c.l.b16 %v5855
    %v6385 = vunpack.c.h.b16 %v5855
    %v6386 = vunpack.c.l.b16 %v5856
    %v6387 = vunpack.c.h.b16 %v5856
    %v6388 = vunpack.c.l.b16 %v5857
    %v6389 = vunpack.c.h.b16 %v5857
    %v6390 = vunpack.c.l.b16 %v5858
    %v6391 = vunpack.c.h.b16 %v5858
    %v6392 = vunpack.c.l.b16 %v5859
    %v6393 = vunpack.c.h.b16 %v5859
    %v6394 = vunpack.c.l.b16 %v5860
    %v6395 = vunpack.c.h.b16 %v5860
    %v6396 = vunpack.c.l.b16 %v5861
    %v6397 = vunpack.c.h.b16 %v5861
    %v6398 = vunpack.c.l.b16 %v5862
    %v6399 = vunpack.c.h.b16 %v5862
    %v6400 = vunpack.c.l.b16 %v5863
    %v6401 = vunpack.c.h.b16 %v5863
    %v6402 = vunpack.c.l.b16 %v5864
    %v6403 = vunpack.c.h.b16 %v5864
    %v6404 = vunpack.c.l.b16 %v5865
    %v6405 = vunpack.c.h.b16 %v5865
    %v6406 = vunpack.c.l.b16 %v5866
    %v6407 = vunpack.c.h.b16 %v5866
    %v6408 = vunpack.c.l.b16 %v5867
    %v6409 = vunpack.c.h.b16 %v5867
    %v6410 = vunpack.c.l.b16 %v5868
    %v6411 = vunpack.c.h.b16 %v5868
    %v6412 = vunpack.c.l.b16 %v5869
    %v6413 = vunpack.c.h.b16 %v5869
    %v6414 = vunpack.c.l.b16 %v5870
    %v6415 = vunpack.c.h.b16 %v5870
    %v6416 = vunpack.c.l.b16 %v5871
    %v6417 = vunpack.c.h.b16 %v5871
    %v6418 = vunpack.c.l.b16 %v5872
    %v6419 = vunpack.c.h.b16 %v5872
    %v6420 = vunpack.c.l.b16 %v5873
    %v6421 = vunpack.c.h.b16 %v5873
    %v6422 = vunpack.c.l.b16 %v5874
    %v6423 = vunpack.c.h.b16 %v5874
    %v6424 = vunpack.c.l.b16 %v5875
    %v6425 = vunpack.c.h.b16 %v5875
    %v6426 = vunpack.c.l.b16 %v5876
    %v6427 = vunpack.c.h.b16 %v5876
    %v6428 = vunpack.c.l.b16 %v5877
    %v6429 = vunpack.c.h.b16 %v5877
    %v6430 = vunpack.c.l.b16 %v5878
    %v6431 = vunpack.c.h.b16 %v5878
    %v6432 = vunpack.c.l.b16 %v5879
    %v6433 = vunpack.c.h.b16 %v5879
    %v6434 = vunpack.c.l.b16 %v5880
    %v6435 = vunpack.c.h.b16 %v5880
    %v6436 = vunpack.c.l.b16 %v5881
    %v6437 = vunpack.c.h.b16 %v5881
    %v6438 = vunpack.c.l.b16 %v5882
    %v6439 = vunpack.c.h.b16 %v5882
    %v6440 = vunpack.c.l.b16 %v5883
    %v6441 = vunpack.c.h.b16 %v5883
    %v6442 = vunpack.c.l.b16 %v5884
    %v6443 = vunpack.c.h.b16 %v5884
    %v6444 = vunpack.c.l.b16 %v5885
    %v6445 = vunpack.c.h.b16 %v5885
    %v6446 = vunpack.c.l.b16 %v5886
    %v6447 = vunpack.c.h.b16 %v5886
    %v6448 = vunpack.c.l.b16 %v5887
    %v6449 = vunpack.c.h.b16 %v5887
    %v6450 = vunpack.c.l.b16 %v5888
    %v6451 = vunpack.c.h.b16 %v5888
    %v6452 = vunpack.c.l.b16 %v5889
    %v6453 = vunpack.c.h.b16 %v5889
    %v6454 = vunpack.c.l.b16 %v5890
    %v6455 = vunpack.c.h.b16 %v5890
    %v6456 = vunpack.c.l.b16 %v5891
    %v6457 = vunpack.c.h.b16 %v5891
    %v6458 = vunpack.c.l.b16 %v5892
    %v6459 = vunpack.c.h.b16 %v5892
    %v6460 = vunpack.c.l.b16 %v5893
    %v6461 = vunpack.c.h.b16 %v5893
    %v6462 = vunpack.c.l.b16 %v5894
    %v6463 = vunpack.c.h.b16 %v5894
    %v6464 = vunpack.c.l.b16 %v5895
    %v6465 = vunpack.c.h.b16 %v5895
    %v6466 = vunpack.c.l.b16 %v5896
    %v6467 = vunpack.c.h.b16 %v5896
    %v6468 = vunpack.c.l.b16 %v5897
    %v6469 = vunpack.c.h.b16 %v5897
    %v6470 = vunpack.c.l.b16 %v5898
    %v6471 = vunpack.c.h.b16 %v5898
    %v6472 = vunpack.c.l.b16 %v5899
    %v6473 = vunpack.c.h.b16 %v5899
    %v6474 = vunpack.c.l.b16 %v5900
    %v6475 = vunpack.c.h.b16 %v5900
    %v6476 = vunpack.c.l.b16 %v5901
    %v6477 = vunpack.c.h.b16 %v5901
    %v6478 = vunpack.c.l.b16 %v5902
    %v6479 = vunpack.c.h.b16 %v5902
    %v6480 = vunpack.c.l.b16 %v5903
    %v6481 = vunpack.c.h.b16 %v5903
    %v6482 = vunpack.c.l.b16 %v5904
    %v6483 = vunpack.c.h.b16 %v5904
    %v6484 = vunpack.c.l.b16 %v5905
    %v6485 = vunpack.c.h.b16 %v5905
    %v6486 = vunpack.c.l.b16 %v5906
    %v6487 = vunpack.c.h.b16 %v5906
    %v6488 = vunpack.c.l.b16 %v5907
    %v6489 = vunpack.c.h.b16 %v5907
    %v6490 = vunpack.c.l.b16 %v5908
    %v6491 = vunpack.c.h.b16 %v5908
    %v6492 = vunpack.c.l.b16 %v5909
    %v6493 = vunpack.c.h.b16 %v5909
    %v6494 = vunpack.c.l.b16 %v5910
    %v6495 = vunpack.c.h.b16 %v5910
    %v6496 = vunpack.c.l.b16 %v5911
    %v6497 = vunpack.c.h.b16 %v5911
    %v6498 = vunpack.c.l.b16 %v5912
    %v6499 = vunpack.c.h.b16 %v5912
    %v6500 = vunpack.c.l.b16 %v5913
    %v6501 = vunpack.c.h.b16 %v5913
    %v6502 = vunpack.c.l.b16 %v5914
    %v6503 = vunpack.c.h.b16 %v5914
    %v6504 = vunpack.c.l.b16 %v5915
    %v6505 = vunpack.c.h.b16 %v5915
    %v6506 = vunpack.c.l.b16 %v5916
    %v6507 = vunpack.c.h.b16 %v5916
    %v6508 = vunpack.c.l.b16 %v5917
    %v6509 = vunpack.c.h.b16 %v5917
    %v6510 = vunpack.c.l.b16 %v5918
    %v6511 = vunpack.c.h.b16 %v5918
    %v6512 = vunpack.c.l.b16 %v5919
    %v6513 = vunpack.c.h.b16 %v5919
    %v6514 = vunpack.c.l.b16 %v5920
    %v6515 = vunpack.c.h.b16 %v5920
    %v6516 = vunpack.c.l.b16 %v5921
    %v6517 = vunpack.c.h.b16 %v5921
    %v6518 = vunpack.c.l.b16 %v5922
    %v6519 = vunpack.c.h.b16 %v5922
    %v6520 = vunpack.c.l.b16 %v5923
    %v6521 = vunpack.c.h.b16 %v5923
    %v6522 = vunpack.c.l.b16 %v5924
    %v6523 = vunpack.c.h.b16 %v5924
    %v6524 = vunpack.c.l.b16 %v5925
    %v6525 = vunpack.c.h.b16 %v5925
    %v6526 = vunpack.c.l.b16 %v5926
    %v6527 = vunpack.c.h.b16 %v5926
    %v6528 = vunpack.c.l.b16 %v5927
    %v6529 = vunpack.c.h.b16 %v5927
    %v6530 = vunpack.c.l.b16 %v5928
    %v6531 = vunpack.c.h.b16 %v5928
    %v6532 = vunpack.c.l.b16 %v5929
    %v6533 = vunpack.c.h.b16 %v5929
    %v6534 = vunpack.c.l.b16 %v5930
    %v6535 = vunpack.c.h.b16 %v5930
    %v6536 = vunpack.c.l.b16 %v5931
    %v6537 = vunpack.c.h.b16 %v5931
    %v6538 = vunpack.c.l.b16 %v5932
    %v6539 = vunpack.c.h.b16 %v5932
    %v6540 = vunpack.c.l.b16 %v5933
    %v6541 = vunpack.c.h.b16 %v5933
    %v6542 = vunpack.c.l.b16 %v5934
    %v6543 = vunpack.c.h.b16 %v5934
    %v6544 = vunpack.c.l.b16 %v5935
    %v6545 = vunpack.c.h.b16 %v5935
    %v6546 = vunpack.c.l.b16 %v5936
    %v6547 = vunpack.c.h.b16 %v5936
    %v6548 = vunpack.c.l.b16 %v5937
    %v6549 = vunpack.c.h.b16 %v5937
    %v6550 = vunpack.c.l.b16 %v5938
    %v6551 = vunpack.c.h.b16 %v5938
    %v6552 = vunpack.c.l.b16 %v5939
    %v6553 = vunpack.c.h.b16 %v5939
    %v6554 = vunpack.c.l.b16 %v5940
    %v6555 = vunpack.c.h.b16 %v5940
    %v6556 = vunpack.c.l.b16 %v5941
    %v6557 = vunpack.c.h.b16 %v5941
    %v6558 = vunpack.c.l.b16 %v5942
    %v6559 = vunpack.c.h.b16 %v5942
    %v6560 = vunpack.c.l.b16 %v5943
    %v6561 = vunpack.c.h.b16 %v5943
    %v6562 = vunpack.c.l.b16 %v5944
    %v6563 = vunpack.c.h.b16 %v5944
    %v6564 = vunpack.c.l.b16 %v5945
    %v6565 = vunpack.c.h.b16 %v5945
    %v6566 = vunpack.c.l.b16 %v5946
    %v6567 = vunpack.c.h.b16 %v5946
    %v6568 = vunpack.c.l.b16 %v5947
    %v6569 = vunpack.c.h.b16 %v5947
    %v6570 = vunpack.c.l.b16 %v5948
    %v6571 = vunpack.c.h.b16 %v5948
    %v6572 = vunpack.c.l.b16 %v5949
    %v6573 = vunpack.c.h.b16 %v5949
    %v6574 = vunpack.c.l.b16 %v5950
    %v6575 = vunpack.c.h.b16 %v5950
    %v6576 = vunpack.c.l.b16 %v5951
    %v6577 = vunpack.c.h.b16 %v5951
    %v6578 = vunpack.c.l.b16 %v5952
    %v6579 = vunpack.c.h.b16 %v5952
    %v6580 = vunpack.c.l.b16 %v5953
    %v6581 = vunpack.c.h.b16 %v5953
    %v6582 = vunpack.c.l.b16 %v5954
    %v6583 = vunpack.c.h.b16 %v5954
    %v6584 = vunpack.c.l.b16 %v5955
    %v6585 = vunpack.c.h.b16 %v5955
    %v6586 = vunpack.c.l.b16 %v5956
    %v6587 = vunpack.c.h.b16 %v5956
    %v6588 = vunpack.c.l.b16 %v5957
    %v6589 = vunpack.c.h.b16 %v5957
    %v6590 = vunpack.c.l.b16 %v5958
    %v6591 = vunpack.c.h.b16 %v5958
    %v6592 = vunpack.c.l.b16 %v5959
    %v6593 = vunpack.c.h.b16 %v5959
    %v6594 = vunpack.c.l.b16 %v5960
    %v6595 = vunpack.c.h.b16 %v5960
    %v6596 = vunpack.c.l.b16 %v5961
    %v6597 = vunpack.c.h.b16 %v5961
    %v6598 = vunpack.c.l.b16 %v5962
    %v6599 = vunpack.c.h.b16 %v5962
    %v6600 = vunpack.c.l.b16 %v5963
    %v6601 = vunpack.c.h.b16 %v5963
    %v6602 = vunpack.c.l.b16 %v5964
    %v6603 = vunpack.c.h.b16 %v5964
    %v6604 = vunpack.c.l.b16 %v5965
    %v6605 = vunpack.c.h.b16 %v5965
    %v6606 = vunpack.c.l.b16 %v5966
    %v6607 = vunpack.c.h.b16 %v5966
    %v6608 = vunpack.c.l.b16 %v5967
    %v6609 = vunpack.c.h.b16 %v5967
    %v6610 = vunpack.c.l.b16 %v5968
    %v6611 = vunpack.c.h.b16 %v5968
    %v6612 = vunpack.c.l.b16 %v5969
    %v6613 = vunpack.c.h.b16 %v5969
    %v6614 = vunpack.c.l.b16 %v5970
    %v6615 = vunpack.c.h.b16 %v5970
    %v6616 = vunpack.c.l.b16 %v5971
    %v6617 = vunpack.c.h.b16 %v5971
    %v6618 = vunpack.c.l.b16 %v5972
    %v6619 = vunpack.c.h.b16 %v5972
    %v6620 = vunpack.c.l.b16 %v5973
    %v6621 = vunpack.c.h.b16 %v5973
    %v6622 = vunpack.c.l.b16 %v5974
    %v6623 = vunpack.c.h.b16 %v5974
    %v6624 = vunpack.c.l.b16 %v5975
    %v6625 = vunpack.c.h.b16 %v5975
    %v6626 = vunpack.c.l.b16 %v5976
    %v6627 = vunpack.c.h.b16 %v5976
    %v6628 = vunpack.c.l.b16 %v5977
    %v6629 = vunpack.c.h.b16 %v5977
    %v6630 = vunpack.c.l.b16 %v5978
    %v6631 = vunpack.c.h.b16 %v5978
    %v6632 = vunpack.c.l.b16 %v5979
    %v6633 = vunpack.c.h.b16 %v5979
    %v6634 = vunpack.c.l.b16 %v5980
    %v6635 = vunpack.c.h.b16 %v5980
    %v6636 = vunpack.c.l.b16 %v5981
    %v6637 = vunpack.c.h.b16 %v5981
    %v6638 = vunpack.c.l.b16 %v5982
    %v6639 = vunpack.c.h.b16 %v5982
    %v6640 = vunpack.c.l.b16 %v5983
    %v6641 = vunpack.c.h.b16 %v5983
    %v6642 = vunpack.c.l.b16 %v5984
    %v6643 = vunpack.c.h.b16 %v5984
    %v6644 = vunpack.c.l.b16 %v5985
    %v6645 = vunpack.c.h.b16 %v5985
    %v6646 = vunpack.c.l.b16 %v5986
    %v6647 = vunpack.c.h.b16 %v5986
    %v6648 = vunpack.c.l.b16 %v5987
    %v6649 = vunpack.c.h.b16 %v5987
    %v6650 = vunpack.c.l.b16 %v5988
    %v6651 = vunpack.c.h.b16 %v5988
    %v6652 = vunpack.c.l.b16 %v5989
    %v6653 = vunpack.c.h.b16 %v5989
    %v6654 = vunpack.c.l.b16 %v5990
    %v6655 = vunpack.c.h.b16 %v5990
    %v6656 = vunpack.c.l.b16 %v5991
    %v6657 = vunpack.c.h.b16 %v5991
    %v6658 = vunpack.c.l.b16 %v5992
    %v6659 = vunpack.c.h.b16 %v5992
    %v6660 = vunpack.c.l.b16 %v5993
    %v6661 = vunpack.c.h.b16 %v5993
    %v6662 = vunpack.c.l.b16 %v5994
    %v6663 = vunpack.c.h.b16 %v5994
    %v6664 = vunpack.c.l.b16 %v5995
    %v6665 = vunpack.c.h.b16 %v5995
    %v6666 = vunpack.c.l.b16 %v5996
    %v6667 = vunpack.c.h.b16 %v5996
    %v6668 = vunpack.c.l.b16 %v5997
    %v6669 = vunpack.c.h.b16 %v5997
    %v6670 = vunpack.c.l.b16 %v5998
    %v6671 = vunpack.c.h.b16 %v5998
    %v6672 = vunpack.c.l.b16 %v5999
    %v6673 = vunpack.c.h.b16 %v5999
    %v6674 = vunpack.c.l.b16 %v6000
    %v6675 = vunpack.c.h.b16 %v6000
    %v6676 = vunpack.c.l.b16 %v6001
    %v6677 = vunpack.c.h.b16 %v6001
    %v6678 = vunpack.c.l.b16 %v6002
    %v6679 = vunpack.c.h.b16 %v6002
    %v6680 = vunpack.c.l.b16 %v6003
    %v6681 = vunpack.c.h.b16 %v6003
    %v6682 = vunpack.c.l.b16 %v6004
    %v6683 = vunpack.c.h.b16 %v6004
    %v6684 = vunpack.c.l.b16 %v6005
    %v6685 = vunpack.c.h.b16 %v6005
    %v6686 = vunpack.c.l.b16 %v6006
    %v6687 = vunpack.c.h.b16 %v6006
    %v6688 = vunpack.c.l.b16 %v6007
    %v6689 = vunpack.c.h.b16 %v6007
    %v6690 = vunpack.c.l.b16 %v6008
    %v6691 = vunpack.c.h.b16 %v6008
    %v6692 = vunpack.c.l.b16 %v6009
    %v6693 = vunpack.c.h.b16 %v6009
    %v6694 = vunpack.c.l.b16 %v6010
    %v6695 = vunpack.c.h.b16 %v6010
    %v6696 = vunpack.c.l.b16 %v6011
    %v6697 = vunpack.c.h.b16 %v6011
    %v6698 = vunpack.c.l.b16 %v6012
    %v6699 = vunpack.c.h.b16 %v6012
    %v6700 = vunpack.c.l.b16 %v6013
    %v6701 = vunpack.c.h.b16 %v6013
    %v6702 = vunpack.c.l.b16 %v6014
    %v6703 = vunpack.c.h.b16 %v6014
    %v6704 = vunpack.c.l.b16 %v6015
    %v6705 = vunpack.c.h.b16 %v6015
    %v6706 = vunpack.c.l.b16 %v6016
    %v6707 = vunpack.c.h.b16 %v6016
    %v6708 = vunpack.c.l.b16 %v6017
    %v6709 = vunpack.c.h.b16 %v6017
    %v6710 = vunpack.c.l.b16 %v6018
    %v6711 = vunpack.c.h.b16 %v6018
    %v6712 = vunpack.c.l.b16 %v6019
    %v6713 = vunpack.c.h.b16 %v6019
    %v6714 = vunpack.c.l.b16 %v6020
    %v6715 = vunpack.c.h.b16 %v6020
    %v6716 = vunpack.c.l.b16 %v6021
    %v6717 = vunpack.c.h.b16 %v6021
    %v6718 = vunpack.c.l.b16 %v6022
    %v6719 = vunpack.c.h.b16 %v6022
    %v6720 = vunpack.c.l.b16 %v6023
    %v6721 = vunpack.c.h.b16 %v6023
    %v6722 = vunpack.c.l.b16 %v6024
    %v6723 = vunpack.c.h.b16 %v6024
    %v6724 = vunpack.c.l.b16 %v6025
    %v6725 = vunpack.c.h.b16 %v6025
    %v6726 = vunpack.c.l.b16 %v6026
    %v6727 = vunpack.c.h.b16 %v6026
    %v6728 = vunpack.c.l.b16 %v6027
    %v6729 = vunpack.c.h.b16 %v6027
    %v6730 = vunpack.c.l.b16 %v6028
    %v6731 = vunpack.c.h.b16 %v6028
    %v6732 = vunpack.c.l.b16 %v6029
    %v6733 = vunpack.c.h.b16 %v6029
    %v6734 = vunpack.c.l.b16 %v6030
    %v6735 = vunpack.c.h.b16 %v6030
    %v6736 = vunpack.c.l.b16 %v6031
    %v6737 = vunpack.c.h.b16 %v6031
    %v6738 = vunpack.c.l.b16 %v6032
    %v6739 = vunpack.c.h.b16 %v6032
    %v6740 = vunpack.c.l.b16 %v6033
    %v6741 = vunpack.c.h.b16 %v6033
    %v6742 = vunpack.c.l.b16 %v6034
    %v6743 = vunpack.c.h.b16 %v6034
    %v6744 = vunpack.c.l.b16 %v6035
    %v6745 = vunpack.c.h.b16 %v6035
    %v6746 = vunpack.c.l.b16 %v6036
    %v6747 = vunpack.c.h.b16 %v6036
    %v6748 = vunpack.c.l.b16 %v6037
    %v6749 = vunpack.c.h.b16 %v6037
    %v6750 = vunpack.c.l.b16 %v6038
    %v6751 = vunpack.c.h.b16 %v6038
    %v6752 = vunpack.c.l.b16 %v6039
    %v6753 = vunpack.c.h.b16 %v6039
    %v6754 = vunpack.c.l.b16 %v6040
    %v6755 = vunpack.c.h.b16 %v6040
    %v6756 = vunpack.c.l.b16 %v6041
    %v6757 = vunpack.c.h.b16 %v6041
    %v6758 = vunpack.c.l.b16 %v6042
    %v6759 = vunpack.c.h.b16 %v6042
    %v6760 = vunpack.c.l.b16 %v6043
    %v6761 = vunpack.c.h.b16 %v6043
    %v6762 = vunpack.c.l.b16 %v6044
    %v6763 = vunpack.c.h.b16 %v6044
    %v6764 = vunpack.c.l.b16 %v6045
    %v6765 = vunpack.c.h.b16 %v6045
    %v6766 = vunpack.c.l.b16 %v6046
    %v6767 = vunpack.c.h.b16 %v6046
    %v6768 = vunpack.c.l.b16 %v6047
    %v6769 = vunpack.c.h.b16 %v6047
    %v6770 = vunpack.c.l.b16 %v6048
    %v6771 = vunpack.c.h.b16 %v6048
    %v6772 = vunpack.c.l.b16 %v6049
    %v6773 = vunpack.c.h.b16 %v6049
    %v6774 = vunpack.c.l.b16 %v6050
    %v6775 = vunpack.c.h.b16 %v6050
    %v6776 = vunpack.c.l.b16 %v6051
    %v6777 = vunpack.c.h.b16 %v6051
    %v6778 = vunpack.c.l.b16 %v6052
    %v6779 = vunpack.c.h.b16 %v6052
    %v6780 = vunpack.c.l.b16 %v6053
    %v6781 = vunpack.c.h.b16 %v6053
    %v6782 = vunpack.c.l.b16 %v6054
    %v6783 = vunpack.c.h.b16 %v6054
    %v6784 = vunpack.c.l.b16 %v6055
    %v6785 = vunpack.c.h.b16 %v6055
    %v6786 = vunpack.c.l.b16 %v6056
    %v6787 = vunpack.c.h.b16 %v6056
    %v6788 = vunpack.c.l.b16 %v6057
    %v6789 = vunpack.c.h.b16 %v6057
    %v6790 = vunpack.c.l.b16 %v6058
    %v6791 = vunpack.c.h.b16 %v6058
    %v6792 = vunpack.c.l.b16 %v6059
    %v6793 = vunpack.c.h.b16 %v6059
    %v6794 = vunpack.c.l.b16 %v6060
    %v6795 = vunpack.c.h.b16 %v6060
    %v6796 = vunpack.c.l.b16 %v6061
    %v6797 = vunpack.c.h.b16 %v6061
    %v6798 = vunpack.c.l.b16 %v6062
    %v6799 = vunpack.c.h.b16 %v6062
    %v6800 = vunpack.c.l.b16 %v6063
    %v6801 = vunpack.c.h.b16 %v6063
    %v6802 = vunpack.c.l.b16 %v6064
    %v6803 = vunpack.c.h.b16 %v6064
    %v6804 = vunpack.c.l.b16 %v6065
    %v6805 = vunpack.c.h.b16 %v6065
    %v6806 = vunpack.c.l.b16 %v6066
    %v6807 = vunpack.c.h.b16 %v6066
    %v6808 = vunpack.c.l.b16 %v6067
    %v6809 = vunpack.c.h.b16 %v6067
    %v6810 = vunpack.c.l.b16 %v6068
    %v6811 = vunpack.c.h.b16 %v6068
    %v6812 = vunpack.c.l.b16 %v6069
    %v6813 = vunpack.c.h.b16 %v6069
    %v6814 = vunpack.c.l.b16 %v6070
    %v6815 = vunpack.c.h.b16 %v6070
    %v6816 = vunpack.c.l.b16 %v6071
    %v6817 = vunpack.c.h.b16 %v6071
    %v6818 = vunpack.c.l.b16 %v6072
    %v6819 = vunpack.c.h.b16 %v6072
    %v6820 = vunpack.c.l.b16 %v6073
    %v6821 = vunpack.c.h.b16 %v6073
    %v6822 = vunpack.c.l.b16 %v6074
    %v6823 = vunpack.c.h.b16 %v6074
    %v6824 = vunpack.c.l.b16 %v6075
    %v6825 = vunpack.c.h.b16 %v6075
    %v6826 = vunpack.c.l.b16 %v6076
    %v6827 = vunpack.c.h.b16 %v6076
    %v6828 = vunpack.c.l.b16 %v6077
    %v6829 = vunpack.c.h.b16 %v6077
    %v6830 = vunpack.c.l.b16 %v6078
    %v6831 = vunpack.c.h.b16 %v6078
    %v6832 = vunpack.c.l.b16 %v6079
    %v6833 = vunpack.c.h.b16 %v6079
    %v6834 = vunpack.c.l.b16 %v6080
    %v6835 = vunpack.c.h.b16 %v6080
    %v6836 = vunpack.c.l.b16 %v6081
    %v6837 = vunpack.c.h.b16 %v6081
    %v6838 = vunpack.c.l.b16 %v6082
    %v6839 = vunpack.c.h.b16 %v6082
    %v6840 = vunpack.c.l.b16 %v6083
    %v6841 = vunpack.c.h.b16 %v6083
    %v6842 = vunpack.c.l.b16 %v6084
    %v6843 = vunpack.c.h.b16 %v6084
    %v6844 = vunpack.c.l.b16 %v6085
    %v6845 = vunpack.c.h.b16 %v6085
    %v6846 = vunpack.c.l.b16 %v6086
    %v6847 = vunpack.c.h.b16 %v6086
    %v6848 = vunpack.c.l.b16 %v6087
    %v6849 = vunpack.c.h.b16 %v6087
    %v6850 = vunpack.c.l.b16 %v6088
    %v6851 = vunpack.c.h.b16 %v6088
    %v6852 = vunpack.c.l.b16 %v6089
    %v6853 = vunpack.c.h.b16 %v6089
    %v6854 = vunpack.c.l.b16 %v6090
    %v6855 = vunpack.c.h.b16 %v6090
    %v6856 = vunpack.c.l.b16 %v6091
    %v6857 = vunpack.c.h.b16 %v6091
    %v6858 = vunpack.c.l.b16 %v6092
    %v6859 = vunpack.c.h.b16 %v6092
    %v6860 = vunpack.c.l.b16 %v6093
    %v6861 = vunpack.c.h.b16 %v6093
    %v6862 = vunpack.c.l.b16 %v6094
    %v6863 = vunpack.c.h.b16 %v6094
    %v6864 = vunpack.c.l.b16 %v6095
    %v6865 = vunpack.c.h.b16 %v6095
    %v6866 = vunpack.c.l.b16 %v6096
    %v6867 = vunpack.c.h.b16 %v6096
    %v6868 = vunpack.c.l.b16 %v6097
    %v6869 = vunpack.c.h.b16 %v6097
    %v6870 = vunpack.c.l.b16 %v6098
    %v6871 = vunpack.c.h.b16 %v6098
    %v6872 = vunpack.c.l.b16 %v6099
    %v6873 = vunpack.c.h.b16 %v6099
    %v6874 = vunpack.c.l.b16 %v6100
    %v6875 = vunpack.c.h.b16 %v6100
    %v6876 = vunpack.c.l.b16 %v6101
    %v6877 = vunpack.c.h.b16 %v6101
    %v6878 = vunpack.c.l.b16 %v6102
    %v6879 = vunpack.c.h.b16 %v6102
    %v6880 = vunpack.c.l.b16 %v6103
    %v6881 = vunpack.c.h.b16 %v6103
    %v6882 = vpack.c.b16 %v6374, %v6370
    %v6883 = vpack.c.b16 %v6375, %v6371
    %v6884 = vpack.c.b16 %v6376, %v6372
    %v6885 = vpack.c.b16 %v6377, %v6373
    %v6886 = vpack.c.b16 %v6382, %v6378
    %v6887 = vpack.c.b16 %v6383, %v6379
    %v6888 = vpack.c.b16 %v6384, %v6380
    %v6889 = vpack.c.b16 %v6385, %v6381
    %v6890 = vpack.c.b16 %v6390, %v6386
    %v6891 = vpack.c.b16 %v6391, %v6387
    %v6892 = vpack.c.b16 %v6392, %v6388
    %v6893 = vpack.c.b16 %v6393, %v6389
    %v6894 = vpack.c.b16 %v6398, %v6394
    %v6895 = vpack.c.b16 %v6399, %v6395
    %v6896 = vpack.c.b16 %v6400, %v6396
    %v6897 = vpack.c.b16 %v6401, %v6397
    %v6898 = vpack.c.b16 %v6406, %v6402
    %v6899 = vpack.c.b16 %v6407, %v6403
    %v6900 = vpack.c.b16 %v6408, %v6404
    %v6901 = vpack.c.b16 %v6409, %v6405
    %v6902 = vpack.c.b16 %v6414, %v6410
    %v6903 = vpack.c.b16 %v6415, %v6411
    %v6904 = vpack.c.b16 %v6416, %v6412
    %v6905 = vpack.c.b16 %v6417, %v6413
    %v6906 = vpack.c.b16 %v6422, %v6418
    %v6907 = vpack.c.b16 %v6423, %v6419
    %v6908 = vpack.c.b16 %v6424, %v6420
    %v6909 = vpack.c.b16 %v6425, %v6421
    %v6910 = vpack.c.b16 %v6430, %v6426
    %v6911 = vpack.c.b16 %v6431, %v6427
    %v6912 = vpack.c.b16 %v6432, %v6428
    %v6913 = vpack.c.b16 %v6433, %v6429
    %v6914 = vpack.c.b16 %v6438, %v6434
    %v6915 = vpack.c.b16 %v6439, %v6435
    %v6916 = vpack.c.b16 %v6440, %v6436
    %v6917 = vpack.c.b16 %v6441, %v6437
    %v6918 = vpack.c.b16 %v6446, %v6442
    %v6919 = vpack.c.b16 %v6447, %v6443
    %v6920 = vpack.c.b16 %v6448, %v6444
    %v6921 = vpack.c.b16 %v6449, %v6445
    %v6922 = vpack.c.b16 %v6454, %v6450
    %v6923 = vpack.c.b16 %v6455, %v6451
    %v6924 = vpack.c.b16 %v6456, %v6452
    %v6925 = vpack.c.b16 %v6457, %v6453
    %v6926 = vpack.c.b16 %v6462, %v6458
    %v6927 = vpack.c.b16 %v6463, %v6459
    %v6928 = vpack.c.b16 %v6464, %v6460
    %v6929 = vpack.c.b16 %v6465, %v6461
    %v6930 = vpack.c.b16 %v6470, %v6466
    %v6931 = vpack.c.b16 %v6471, %v6467
    %v6932 = vpack.c.b16 %v6472, %v6468
    %v6933 = vpack.c.b16 %v6473, %v6469
    %v6934 = vpack.c.b16 %v6478, %v6474
    %v6935 = vpack.c.b16 %v6479, %v6475
    %v6936 = vpack.c.b16 %v6480, %v6476
    %v6937 = vpack.c.b16 %v6481, %v6477
    %v6938 = vpack.c.b16 %v6486, %v6482
    %v6939 = vpack.c.b16 %v6487, %v6483
    %v6940 = vpack.c.b16 %v6488, %v6484
    %v6941 = vpack.c.b16 %v6489, %v6485
    %v6942 = vpack.c.b16 %v6494, %v6490
    %v6943 = vpack.c.b16 %v6495, %v6491
    %v6944 = vpack.c.b16 %v6496, %v6492
    %v6945 = vpack.c.b16 %v6497, %v6493
    %v6946 = vpack.c.b16 %v6502, %v6498
    %v6947 = vpack.c.b16 %v6503, %v6499
    %v6948 = vpack.c.b16 %v6504, %v6500
    %v6949 = vpack.c.b16 %v6505, %v6501
    %v6950 = vpack.c.b16 %v6510, %v6506
    %v6951 = vpack.c.b16 %v6511, %v6507
    %v6952 = vpack.c.b16 %v6512, %v6508
    %v6953 = vpack.c.b16 %v6513, %v6509
    %v6954 = vpack.c.b16 %v6518, %v6514
    %v6955 = vpack.c.b16 %v6519, %v6515
    %v6956 = vpack.c.b16 %v6520, %v6516
    %v6957 = vpack.c.b16 %v6521, %v6517
    %v6958 = vpack.c.b16 %v6526, %v6522
    %v6959 = vpack.c.b16 %v6527, %v6523
    %v6960 = vpack.c.b16 %v6528, %v6524
    %v6961 = vpack.c.b16 %v6529, %v6525
    %v6962 = vpack.c.b16 %v6534, %v6530
    %v6963 = vpack.c.b16 %v6535, %v6531
    %v6964 = vpack.c.b16 %v6536, %v6532
    %v6965 = vpack.c.b16 %v6537, %v6533
    %v6966 = vpack.c.b16 %v6542, %v6538
    %v6967 = vpack.c.b16 %v6543, %v6539
    %v6968 = vpack.c.b16 %v6544, %v6540
    %v6969 = vpack.c.b16 %v6545, %v6541
    %v6970 = vpack.c.b16 %v6550, %v6546
    %v6971 = vpack.c.b16 %v6551, %v6547
    %v6972 = vpack.c.b16 %v6552, %v6548
    %v6973 = vpack.c.b16 %v6553, %v6549
    %v6974 = vpack.c.b16 %v6558, %v6554
    %v6975 = vpack.c.b16 %v6559, %v6555
    %v6976 = vpack.c.b16 %v6560, %v6556
    %v6977 = vpack.c.b16 %v6561, %v6557
    %v6978 = vpack.c.b16 %v6566, %v6562
    %v6979 = vpack.c.b16 %v6567, %v6563
    %v6980 = vpack.c.b16 %v6568, %v6564
    %v6981 = vpack.c.b16 %v6569, %v6565
    %v6982 = vpack.c.b16 %v6574, %v6570
    %v6983 = vpack.c.b16 %v6575, %v6571
    %v6984 = vpack.c.b16 %v6576, %v6572
    %v6985 = vpack.c.b16 %v6577, %v6573
    %v6986 = vpack.c.b16 %v6582, %v6578
    %v6987 = vpack.c.b16 %v6583, %v6579
    %v6988 = vpack.c.b16 %v6584, %v6580
    %v6989 = vpack.c.b16 %v6585, %v6581
    %v6990 = vpack.c.b16 %v6590, %v6586
    %v6991 = vpack.c.b16 %v6591, %v6587
    %v6992 = vpack.c.b16 %v6592, %v6588
    %v6993 = vpack.c.b16 %v6593, %v6589
    %v6994 = vpack.c.b16 %v6598, %v6594
    %v6995 = vpack.c.b16 %v6599, %v6595
    %v6996 = vpack.c.b16 %v6600, %v6596
    %v6997 = vpack.c.b16 %v6601, %v6597
    %v6998 = vpack.c.b16 %v6606, %v6602
    %v6999 = vpack.c.b16 %v6607, %v6603
    %v7000 = vpack.c.b16 %v6608, %v6604
    %v7001 = vpack.c.b16 %v6609, %v6605
    %v7002 = vpack.c.b16 %v6614, %v6610
    %v7003 = vpack.c.b16 %v6615, %v6611
    %v7004 = vpack.c.b16 %v6616, %v6612
    %v7005 = vpack.c.b16 %v6617, %v6613
    %v7006 = vpack.c.b16 %v6622, %v6618
    %v7007 = vpack.c.b16 %v6623, %v6619
    %v7008 = vpack.c.b16 %v6624, %v6620
    %v7009 = vpack.c.b16 %v6625, %v6621
    %v7010 = vpack.c.b16 %v6630, %v6626
    %v7011 = vpack.c.b16 %v6631, %v6627
    %v7012 = vpack.c.b16 %v6632, %v6628
    %v7013 = vpack.c.b16 %v6633, %v6629
    %v7014 = vpack.c.b16 %v6638, %v6634
    %v7015 = vpack.c.b16 %v6639, %v6635
    %v7016 = vpack.c.b16 %v6640, %v6636
    %v7017 = vpack.c.b16 %v6641, %v6637
    %v7018 = vpack.c.b16 %v6646, %v6642
    %v7019 = vpack.c.b16 %v6647, %v6643
    %v7020 = vpack.c.b16 %v6648, %v6644
    %v7021 = vpack.c.b16 %v6649, %v6645
    %v7022 = vpack.c.b16 %v6654, %v6650
    %v7023 = vpack.c.b16 %v6655, %v6651
    %v7024 = vpack.c.b16 %v6656, %v6652
    %v7025 = vpack.c.b16 %v6657, %v6653
    %v7026 = vpack.c.b16 %v6662, %v6658
    %v7027 = vpack.c.b16 %v6663, %v6659
    %v7028 = vpack.c.b16 %v6664, %v6660
    %v7029 = vpack.c.b16 %v6665, %v6661
    %v7030 = vpack.c.b16 %v6670, %v6666
    %v7031 = vpack.c.b16 %v6671, %v6667
    %v7032 = vpack.c.b16 %v6672, %v6668
    %v7033 = vpack.c.b16 %v6673, %v6669
    %v7034 = vpack.c.b16 %v6678, %v6674
    %v7035 = vpack.c.b16 %v6679, %v6675
    %v7036 = vpack.c.b16 %v6680, %v6676
    %v7037 = vpack.c.b16 %v6681, %v6677
    %v7038 = vpack.c.b16 %v6686, %v6682
    %v7039 = vpack.c.b16 %v6687, %v6683
    %v7040 = vpack.c.b16 %v6688, %v6684
    %v7041 = vpack.c.b16 %v6689, %v6685
    %v7042 = vpack.c.b16 %v6694, %v6690
    %v7043 = vpack.c.b16 %v6695, %v6691
    %v7044 = vpack.c.b16 %v6696, %v6692
    %v7045 = vpack.c.b16 %v6697, %v6693
    %v7046 = vpack.c.b16 %v6702, %v6698
    %v7047 = vpack.c.b16 %v6703, %v6699
    %v7048 = vpack.c.b16 %v6704, %v6700
    %v7049 = vpack.c.b16 %v6705, %v6701
    %v7050 = vpack.c.b16 %v6710, %v6706
    %v7051 = vpack.c.b16 %v6711, %v6707
    %v7052 = vpack.c.b16 %v6712, %v6708
    %v7053 = vpack.c.b16 %v6713, %v6709
    %v7054 = vpack.c.b16 %v6718, %v6714
    %v7055 = vpack.c.b16 %v6719, %v6715
    %v7056 = vpack.c.b16 %v6720, %v6716
    %v7057 = vpack.c.b16 %v6721, %v6717
    %v7058 = vpack.c.b16 %v6726, %v6722
    %v7059 = vpack.c.b16 %v6727, %v6723
    %v7060 = vpack.c.b16 %v6728, %v6724
    %v7061 = vpack.c.b16 %v6729, %v6725
    %v7062 = vpack.c.b16 %v6734, %v6730
    %v7063 = vpack.c.b16 %v6735, %v6731
    %v7064 = vpack.c.b16 %v6736, %v6732
    %v7065 = vpack.c.b16 %v6737, %v6733
    %v7066 = vpack.c.b16 %v6742, %v6738
    %v7067 = vpack.c.b16 %v6743, %v6739
    %v7068 = vpack.c.b16 %v6744, %v6740
    %v7069 = vpack.c.b16 %v6745, %v6741
    %v7070 = vpack.c.b16 %v6750, %v6746
    %v7071 = vpack.c.b16 %v6751, %v6747
    %v7072 = vpack.c.b16 %v6752, %v6748
    %v7073 = vpack.c.b16 %v6753, %v6749
    %v7074 = vpack.c.b16 %v6758, %v6754
    %v7075 = vpack.c.b16 %v6759, %v6755
    %v7076 = vpack.c.b16 %v6760, %v6756
    %v7077 = vpack.c.b16 %v6761, %v6757
    %v7078 = vpack.c.b16 %v6766, %v6762
    %v7079 = vpack.c.b16 %v6767, %v6763
    %v7080 = vpack.c.b16 %v6768, %v6764
    %v7081 = vpack.c.b16 %v6769, %v6765
    %v7082 = vpack.c.b16 %v6774, %v6770
    %v7083 = vpack.c.b16 %v6775, %v6771
    %v7084 = vpack.c.b16 %v6776, %v6772
    %v7085 = vpack.c.b16 %v6777, %v6773
    %v7086 = vpack.c.b16 %v6782, %v6778
    %v7087 = vpack.c.b16 %v6783, %v6779
    %v7088 = vpack.c.b16 %v6784, %v6780
    %v7089 = vpack.c.b16 %v6785, %v6781
    %v7090 = vpack.c.b16 %v6790, %v6786
    %v7091 = vpack.c.b16 %v6791, %v6787
    %v7092 = vpack.c.b16 %v6792, %v6788
    %v7093 = vpack.c.b16 %v6793, %v6789
    %v7094 = vpack.c.b16 %v6798, %v6794
    %v7095 = vpack.c.b16 %v6799, %v6795
    %v7096 = vpack.c.b16 %v6800, %v6796
    %v7097 = vpack.c.b16 %v6801, %v6797
    %v7098 = vpack.c.b16 %v6806, %v6802
    %v7099 = vpack.c.b16 %v6807, %v6803
    %v7100 = vpack.c.b16 %v6808, %v6804
    %v7101 = vpack.c.b16 %v6809, %v6805
    %v7102 = vpack.c.b16 %v6814, %v6810
    %v7103 = vpack.c.b16 %v6815, %v6811
    %v7104 = vpack.c.b16 %v6816, %v6812
    %v7105 = vpack.c.b16 %v6817, %v6813
    %v7106 = vpack.c.b16 %v6822, %v6818
    %v7107 = vpack.c.b16 %v6823, %v6819
    %v7108 = vpack.c.b16 %v6824, %v6820
    %v7109 = vpack.c.b16 %v6825, %v6821
    %v7110 = vpack.c.b16 %v6830, %v6826
    %v7111 = vpack.c.b16 %v6831, %v6827
    %v7112 = vpack.c.b16 %v6832, %v6828
    %v7113 = vpack.c.b16 %v6833, %v6829
    %v7114 = vpack.c.b16 %v6838, %v6834
    %v7115 = vpack.c.b16 %v6839, %v6835
    %v7116 = vpack.c.b16 %v6840, %v6836
    %v7117 = vpack.c.b16 %v6841, %v6837
    %v7118 = vpack.c.b16 %v6846, %v6842
    %v7119 = vpack.c.b16 %v6847, %v6843
    %v7120 = vpack.c.b16 %v6848, %v6844
    %v7121 = vpack.c.b16 %v6849, %v6845
    %v7122 = vpack.c.b16 %v6854, %v6850
    %v7123 = vpack.c.b16 %v6855, %v6851
    %v7124 = vpack.c.b16 %v6856, %v6852
    %v7125 = vpack.c.b16 %v6857, %v6853
    %v7126 = vpack.c.b16 %v6862, %v6858
    %v7127 = vpack.c.b16 %v6863, %v6859
    %v7128 = vpack.c.b16 %v6864, %v6860
    %v7129 = vpack.c.b16 %v6865, %v6861
    %v7130 = vpack.c.b16 %v6870, %v6866
    %v7131 = vpack.c.b16 %v6871, %v6867
    %v7132 = vpack.c.b16 %v6872, %v6868
    %v7133 = vpack.c.b16 %v6873, %v6869
    %v7134 = vpack.c.b16 %v6878, %v6874
    %v7135 = vpack.c.b16 %v6879, %v6875
    %v7136 = vpack.c.b16 %v6880, %v6876
    %v7137 = vpack.c.b16 %v6881, %v6877
    %7394 = vmatpush.bf16.msra.mxu0 %v6910
    %7395 = vmatpush.bf16.msra.mxu0 %v6906
    %7396 = vmatpush.bf16.msra.mxu0 %v6902
    %7397 = vmatpush.bf16.msra.mxu0 %v6898
    %7398 = vmatpush.bf16.msra.mxu0 %v6894
    %7399 = vmatpush.bf16.msra.mxu0 %v6890
    %7400 = vmatpush.bf16.msra.mxu0 %v6886
    %7401 = vmatpush.bf16.msra.mxu0 %v6882
    %7402 = vmatmul.bf16.gmra.mxu0 %v5824
    %v7403 = vpop.f32.mrf.mxu0
    %v7404 = vadd.f32 %v6106, %v7403
    %v7405 = vpop.f32.mrf.mxu0
    %v7406 = vadd.f32 %v6106, %v7405
    %7407 = vmatmul.bf16.gmra.mxu0 %v5832
    %v7408 = vpop.f32.mrf.mxu0
    %v7409 = vadd.f32 %v6106, %v7408
    %v7410 = vpop.f32.mrf.mxu0
    %v7411 = vadd.f32 %v6106, %v7410
    %7412 = vmatmul.bf16.gmra.mxu0 %v5840
    %v7413 = vpop.f32.mrf.mxu0
    %v7414 = vadd.f32 %v6106, %v7413
    %v7415 = vpop.f32.mrf.mxu0
    %v7416 = vadd.f32 %v6106, %v7415
    %7417 = vdwg.mxu0
    %7418 = vmatpush.bf16.msra.mxu0 %v6942
    %7419 = vmatpush.bf16.msra.mxu0 %v6938
    %7420 = vmatpush.bf16.msra.mxu0 %v6934
    %7421 = vmatpush.bf16.msra.mxu0 %v6930
    %7422 = vmatpush.bf16.msra.mxu0 %v6926
    %7423 = vmatpush.bf16.msra.mxu0 %v6922
    %7424 = vmatpush.bf16.msra.mxu0 %v6918
    %7425 = vmatpush.bf16.msra.mxu0 %v6914
    %7426 = vmatmul.bf16.gmra.mxu0 %v5825
    %v7427 = vpop.f32.mrf.mxu0
    %v7428 = vadd.f32 %v7404, %v7427
    %v7429 = vpop.f32.mrf.mxu0
    %v7430 = vadd.f32 %v7406, %v7429
    %7431 = vmatmul.bf16.gmra.mxu0 %v5833
    %v7432 = vpop.f32.mrf.mxu0
    %v7433 = vadd.f32 %v7409, %v7432
    %v7434 = vpop.f32.mrf.mxu0
    %v7435 = vadd.f32 %v7411, %v7434
    %7436 = vmatmul.bf16.gmra.mxu0 %v5841
    %v7437 = vpop.f32.mrf.mxu0
    %v7438 = vadd.f32 %v7414, %v7437
    %v7439 = vpop.f32.mrf.mxu0
    %v7440 = vadd.f32 %v7416, %v7439
    %7441 = vdwg.mxu0
    %7442 = vmatpush.bf16.msra.mxu0 %v6974
    %7443 = vmatpush.bf16.msra.mxu0 %v6970
    %7444 = vmatpush.bf16.msra.mxu0 %v6966
    %7445 = vmatpush.bf16.msra.mxu0 %v6962
    %7446 = vmatpush.bf16.msra.mxu0 %v6958
    %7447 = vmatpush.bf16.msra.mxu0 %v6954
    %7448 = vmatpush.bf16.msra.mxu0 %v6950
    %7449 = vmatpush.bf16.msra.mxu0 %v6946
    %7450 = vmatmul.bf16.gmra.mxu0 %v5826
    %v7451 = vpop.f32.mrf.mxu0
    %v7452 = vadd.f32 %v7428, %v7451
    %v7453 = vpop.f32.mrf.mxu0
    %v7454 = vadd.f32 %v7430, %v7453
    %7455 = vmatmul.bf16.gmra.mxu0 %v5834
    %v7456 = vpop.f32.mrf.mxu0
    %v7457 = vadd.f32 %v7433, %v7456
    %v7458 = vpop.f32.mrf.mxu0
    %v7459 = vadd.f32 %v7435, %v7458
    %7460 = vmatmul.bf16.gmra.mxu0 %v5842
    %v7461 = vpop.f32.mrf.mxu0
    %v7462 = vadd.f32 %v7438, %v7461
    %v7463 = vpop.f32.mrf.mxu0
    %v7464 = vadd.f32 %v7440, %v7463
    %7465 = vdwg.mxu0
    %7466 = vmatpush.bf16.msra.mxu0 %v7006
    %7467 = vmatpush.bf16.msra.mxu0 %v7002
    %7468 = vmatpush.bf16.msra.mxu0 %v6998
    %7469 = vmatpush.bf16.msra.mxu0 %v6994
    %7470 = vmatpush.bf16.msra.mxu0 %v6990
    %7471 = vmatpush.bf16.msra.mxu0 %v6986
    %7472 = vmatpush.bf16.msra.mxu0 %v6982
    %7473 = vmatpush.bf16.msra.mxu0 %v6978
    %7474 = vmatmul.bf16.gmra.mxu0 %v5827
    %v7475 = vpop.f32.mrf.mxu0
    %v7476 = vadd.f32 %v7452, %v7475
    %v7477 = vpop.f32.mrf.mxu0
    %v7478 = vadd.f32 %v7454, %v7477
    %7479 = vmatmul.bf16.gmra.mxu0 %v5835
    %v7480 = vpop.f32.mrf.mxu0
    %v7481 = vadd.f32 %v7457, %v7480
    %v7482 = vpop.f32.mrf.mxu0
    %v7483 = vadd.f32 %v7459, %v7482
    %7484 = vmatmul.bf16.gmra.mxu0 %v5843
    %v7485 = vpop.f32.mrf.mxu0
    %v7486 = vadd.f32 %v7462, %v7485
    %v7487 = vpop.f32.mrf.mxu0
    %v7488 = vadd.f32 %v7464, %v7487
    %7489 = vdwg.mxu0
    %7490 = vmatpush.bf16.msra.mxu0 %v7038
    %7491 = vmatpush.bf16.msra.mxu0 %v7034
    %7492 = vmatpush.bf16.msra.mxu0 %v7030
    %7493 = vmatpush.bf16.msra.mxu0 %v7026
    %7494 = vmatpush.bf16.msra.mxu0 %v7022
    %7495 = vmatpush.bf16.msra.mxu0 %v7018
    %7496 = vmatpush.bf16.msra.mxu0 %v7014
    %7497 = vmatpush.bf16.msra.mxu0 %v7010
    %7498 = vmatmul.bf16.gmra.mxu0 %v5828
    %v7499 = vpop.f32.mrf.mxu0
    %v7500 = vadd.f32 %v7476, %v7499
    %v7501 = vpop.f32.mrf.mxu0
    %v7502 = vadd.f32 %v7478, %v7501
    %7503 = vmatmul.bf16.gmra.mxu0 %v5836
    %v7504 = vpop.f32.mrf.mxu0
    %v7505 = vadd.f32 %v7481, %v7504
    %v7506 = vpop.f32.mrf.mxu0
    %v7507 = vadd.f32 %v7483, %v7506
    %7508 = vmatmul.bf16.gmra.mxu0 %v5844
    %v7509 = vpop.f32.mrf.mxu0
    %v7510 = vadd.f32 %v7486, %v7509
    %v7511 = vpop.f32.mrf.mxu0
    %v7512 = vadd.f32 %v7488, %v7511
    %7513 = vdwg.mxu0
    %7514 = vmatpush.bf16.msra.mxu0 %v7070
    %7515 = vmatpush.bf16.msra.mxu0 %v7066
    %7516 = vmatpush.bf16.msra.mxu0 %v7062
    %7517 = vmatpush.bf16.msra.mxu0 %v7058
    %7518 = vmatpush.bf16.msra.mxu0 %v7054
    %7519 = vmatpush.bf16.msra.mxu0 %v7050
    %7520 = vmatpush.bf16.msra.mxu0 %v7046
    %7521 = vmatpush.bf16.msra.mxu0 %v7042
    %7522 = vmatmul.bf16.gmra.mxu0 %v5829
    %v7523 = vpop.f32.mrf.mxu0
    %v7524 = vadd.f32 %v7500, %v7523
    %v7525 = vpop.f32.mrf.mxu0
    %v7526 = vadd.f32 %v7502, %v7525
    %7527 = vmatmul.bf16.gmra.mxu0 %v5837
    %v7528 = vpop.f32.mrf.mxu0
    %v7529 = vadd.f32 %v7505, %v7528
    %v7530 = vpop.f32.mrf.mxu0
    %v7531 = vadd.f32 %v7507, %v7530
    %7532 = vmatmul.bf16.gmra.mxu0 %v5845
    %v7533 = vpop.f32.mrf.mxu0
    %v7534 = vadd.f32 %v7510, %v7533
    %v7535 = vpop.f32.mrf.mxu0
    %v7536 = vadd.f32 %v7512, %v7535
    %7537 = vdwg.mxu0
    %7538 = vmatpush.bf16.msra.mxu0 %v7102
    %7539 = vmatpush.bf16.msra.mxu0 %v7098
    %7540 = vmatpush.bf16.msra.mxu0 %v7094
    %7541 = vmatpush.bf16.msra.mxu0 %v7090
    %7542 = vmatpush.bf16.msra.mxu0 %v7086
    %7543 = vmatpush.bf16.msra.mxu0 %v7082
    %7544 = vmatpush.bf16.msra.mxu0 %v7078
    %7545 = vmatpush.bf16.msra.mxu0 %v7074
    %7546 = vmatmul.bf16.gmra.mxu0 %v5830
    %v7547 = vpop.f32.mrf.mxu0
    %v7548 = vadd.f32 %v7524, %v7547
    %v7549 = vpop.f32.mrf.mxu0
    %v7550 = vadd.f32 %v7526, %v7549
    %7551 = vmatmul.bf16.gmra.mxu0 %v5838
    %v7552 = vpop.f32.mrf.mxu0
    %v7553 = vadd.f32 %v7529, %v7552
    %v7554 = vpop.f32.mrf.mxu0
    %v7555 = vadd.f32 %v7531, %v7554
    %7556 = vmatmul.bf16.gmra.mxu0 %v5846
    %v7557 = vpop.f32.mrf.mxu0
    %v7558 = vadd.f32 %v7534, %v7557
    %v7559 = vpop.f32.mrf.mxu0
    %v7560 = vadd.f32 %v7536, %v7559
    %7561 = vdwg.mxu0
    %7562 = vmatpush.bf16.msra.mxu0 %v7134
    %7563 = vmatpush.bf16.msra.mxu0 %v7130
    %7564 = vmatpush.bf16.msra.mxu0 %v7126
    %7565 = vmatpush.bf16.msra.mxu0 %v7122
    %7566 = vmatpush.bf16.msra.mxu0 %v7118
    %7567 = vmatpush.bf16.msra.mxu0 %v7114
    %7568 = vmatpush.bf16.msra.mxu0 %v7110
    %7569 = vmatpush.bf16.msra.mxu0 %v7106
    %7570 = vmatmul.bf16.gmra.mxu0 %v5831
    %v7571 = vpop.f32.mrf.mxu0
    %v7572 = vadd.f32 %v7548, %v7571
    %v7573 = vpop.f32.mrf.mxu0
    %v7574 = vadd.f32 %v7550, %v7573
    %7575 = vmatmul.bf16.gmra.mxu0 %v5839
    %v7576 = vpop.f32.mrf.mxu0
    %v7577 = vadd.f32 %v7553, %v7576
    %v7578 = vpop.f32.mrf.mxu0
    %v7579 = vadd.f32 %v7555, %v7578
    %7580 = vmatmul.bf16.gmra.mxu0 %v5847
    %v7581 = vpop.f32.mrf.mxu0
    %v7582 = vadd.f32 %v7558, %v7581
    %v7583 = vpop.f32.mrf.mxu0
    %v7584 = vadd.f32 %v7560, %v7583
    %7585 = vdwg.mxu0
    %7586 = vmatpush.bf16.msra.mxu0 %v6911
    %7587 = vmatpush.bf16.msra.mxu0 %v6907
    %7588 = vmatpush.bf16.msra.mxu0 %v6903
    %7589 = vmatpush.bf16.msra.mxu0 %v6899
    %7590 = vmatpush.bf16.msra.mxu0 %v6895
    %7591 = vmatpush.bf16.msra.mxu0 %v6891
    %7592 = vmatpush.bf16.msra.mxu0 %v6887
    %7593 = vmatpush.bf16.msra.mxu0 %v6883
    %7594 = vmatmul.bf16.gmra.mxu0 %v5824
    %v7595 = vpop.f32.mrf.mxu0
    %v7596 = vadd.f32 %v6107, %v7595
    %v7597 = vpop.f32.mrf.mxu0
    %v7598 = vadd.f32 %v6107, %v7597
    %7599 = vmatmul.bf16.gmra.mxu0 %v5832
    %v7600 = vpop.f32.mrf.mxu0
    %v7601 = vadd.f32 %v6107, %v7600
    %v7602 = vpop.f32.mrf.mxu0
    %v7603 = vadd.f32 %v6107, %v7602
    %7604 = vmatmul.bf16.gmra.mxu0 %v5840
    %v7605 = vpop.f32.mrf.mxu0
    %v7606 = vadd.f32 %v6107, %v7605
    %v7607 = vpop.f32.mrf.mxu0
    %v7608 = vadd.f32 %v6107, %v7607
    %7609 = vdwg.mxu0
    %7610 = vmatpush.bf16.msra.mxu0 %v6943
    %7611 = vmatpush.bf16.msra.mxu0 %v6939
    %7612 = vmatpush.bf16.msra.mxu0 %v6935
    %7613 = vmatpush.bf16.msra.mxu0 %v6931
    %7614 = vmatpush.bf16.msra.mxu0 %v6927
    %7615 = vmatpush.bf16.msra.mxu0 %v6923
    %7616 = vmatpush.bf16.msra.mxu0 %v6919
    %7617 = vmatpush.bf16.msra.mxu0 %v6915
    %7618 = vmatmul.bf16.gmra.mxu0 %v5825
    %v7619 = vpop.f32.mrf.mxu0
    %v7620 = vadd.f32 %v7596, %v7619
    %v7621 = vpop.f32.mrf.mxu0
    %v7622 = vadd.f32 %v7598, %v7621
    %7623 = vmatmul.bf16.gmra.mxu0 %v5833
    %v7624 = vpop.f32.mrf.mxu0
    %v7625 = vadd.f32 %v7601, %v7624
    %v7626 = vpop.f32.mrf.mxu0
    %v7627 = vadd.f32 %v7603, %v7626
    %7628 = vmatmul.bf16.gmra.mxu0 %v5841
    %v7629 = vpop.f32.mrf.mxu0
    %v7630 = vadd.f32 %v7606, %v7629
    %v7631 = vpop.f32.mrf.mxu0
    %v7632 = vadd.f32 %v7608, %v7631
    %7633 = vdwg.mxu0
    %7634 = vmatpush.bf16.msra.mxu0 %v6975
    %7635 = vmatpush.bf16.msra.mxu0 %v6971
    %7636 = vmatpush.bf16.msra.mxu0 %v6967
    %7637 = vmatpush.bf16.msra.mxu0 %v6963
    %7638 = vmatpush.bf16.msra.mxu0 %v6959
    %7639 = vmatpush.bf16.msra.mxu0 %v6955
    %7640 = vmatpush.bf16.msra.mxu0 %v6951
    %7641 = vmatpush.bf16.msra.mxu0 %v6947
    %7642 = vmatmul.bf16.gmra.mxu0 %v5826
    %v7643 = vpop.f32.mrf.mxu0
    %v7644 = vadd.f32 %v7620, %v7643
    %v7645 = vpop.f32.mrf.mxu0
    %v7646 = vadd.f32 %v7622, %v7645
    %7647 = vmatmul.bf16.gmra.mxu0 %v5834
    %v7648 = vpop.f32.mrf.mxu0
    %v7649 = vadd.f32 %v7625, %v7648
    %v7650 = vpop.f32.mrf.mxu0
    %v7651 = vadd.f32 %v7627, %v7650
    %7652 = vmatmul.bf16.gmra.mxu0 %v5842
    %v7653 = vpop.f32.mrf.mxu0
    %v7654 = vadd.f32 %v7630, %v7653
    %v7655 = vpop.f32.mrf.mxu0
    %v7656 = vadd.f32 %v7632, %v7655
    %7657 = vdwg.mxu0
    %7658 = vmatpush.bf16.msra.mxu0 %v7007
    %7659 = vmatpush.bf16.msra.mxu0 %v7003
    %7660 = vmatpush.bf16.msra.mxu0 %v6999
    %7661 = vmatpush.bf16.msra.mxu0 %v6995
    %7662 = vmatpush.bf16.msra.mxu0 %v6991
    %7663 = vmatpush.bf16.msra.mxu0 %v6987
    %7664 = vmatpush.bf16.msra.mxu0 %v6983
    %7665 = vmatpush.bf16.msra.mxu0 %v6979
    %7666 = vmatmul.bf16.gmra.mxu0 %v5827
    %v7667 = vpop.f32.mrf.mxu0
    %v7668 = vadd.f32 %v7644, %v7667
    %v7669 = vpop.f32.mrf.mxu0
    %v7670 = vadd.f32 %v7646, %v7669
    %7671 = vmatmul.bf16.gmra.mxu0 %v5835
    %v7672 = vpop.f32.mrf.mxu0
    %v7673 = vadd.f32 %v7649, %v7672
    %v7674 = vpop.f32.mrf.mxu0
    %v7675 = vadd.f32 %v7651, %v7674
    %7676 = vmatmul.bf16.gmra.mxu0 %v5843
    %v7677 = vpop.f32.mrf.mxu0
    %v7678 = vadd.f32 %v7654, %v7677
    %v7679 = vpop.f32.mrf.mxu0
    %v7680 = vadd.f32 %v7656, %v7679
    %7681 = vdwg.mxu0
    %7682 = vmatpush.bf16.msra.mxu0 %v7039
    %7683 = vmatpush.bf16.msra.mxu0 %v7035
    %7684 = vmatpush.bf16.msra.mxu0 %v7031
    %7685 = vmatpush.bf16.msra.mxu0 %v7027
    %7686 = vmatpush.bf16.msra.mxu0 %v7023
    %7687 = vmatpush.bf16.msra.mxu0 %v7019
    %7688 = vmatpush.bf16.msra.mxu0 %v7015
    %7689 = vmatpush.bf16.msra.mxu0 %v7011
    %7690 = vmatmul.bf16.gmra.mxu0 %v5828
    %v7691 = vpop.f32.mrf.mxu0
    %v7692 = vadd.f32 %v7668, %v7691
    %v7693 = vpop.f32.mrf.mxu0
    %v7694 = vadd.f32 %v7670, %v7693
    %7695 = vmatmul.bf16.gmra.mxu0 %v5836
    %v7696 = vpop.f32.mrf.mxu0
    %v7697 = vadd.f32 %v7673, %v7696
    %v7698 = vpop.f32.mrf.mxu0
    %v7699 = vadd.f32 %v7675, %v7698
    %7700 = vmatmul.bf16.gmra.mxu0 %v5844
    %v7701 = vpop.f32.mrf.mxu0
    %v7702 = vadd.f32 %v7678, %v7701
    %v7703 = vpop.f32.mrf.mxu0
    %v7704 = vadd.f32 %v7680, %v7703
    %7705 = vdwg.mxu0
    %7706 = vmatpush.bf16.msra.mxu0 %v7071
    %7707 = vmatpush.bf16.msra.mxu0 %v7067
    %7708 = vmatpush.bf16.msra.mxu0 %v7063
    %7709 = vmatpush.bf16.msra.mxu0 %v7059
    %7710 = vmatpush.bf16.msra.mxu0 %v7055
    %7711 = vmatpush.bf16.msra.mxu0 %v7051
    %7712 = vmatpush.bf16.msra.mxu0 %v7047
    %7713 = vmatpush.bf16.msra.mxu0 %v7043
    %7714 = vmatmul.bf16.gmra.mxu0 %v5829
    %v7715 = vpop.f32.mrf.mxu0
    %v7716 = vadd.f32 %v7692, %v7715
    %v7717 = vpop.f32.mrf.mxu0
    %v7718 = vadd.f32 %v7694, %v7717
    %7719 = vmatmul.bf16.gmra.mxu0 %v5837
    %v7720 = vpop.f32.mrf.mxu0
    %v7721 = vadd.f32 %v7697, %v7720
    %v7722 = vpop.f32.mrf.mxu0
    %v7723 = vadd.f32 %v7699, %v7722
    %7724 = vmatmul.bf16.gmra.mxu0 %v5845
    %v7725 = vpop.f32.mrf.mxu0
    %v7726 = vadd.f32 %v7702, %v7725
    %v7727 = vpop.f32.mrf.mxu0
    %v7728 = vadd.f32 %v7704, %v7727
    %7729 = vdwg.mxu0
    %7730 = vmatpush.bf16.msra.mxu0 %v7103
    %7731 = vmatpush.bf16.msra.mxu0 %v7099
    %7732 = vmatpush.bf16.msra.mxu0 %v7095
    %7733 = vmatpush.bf16.msra.mxu0 %v7091
    %7734 = vmatpush.bf16.msra.mxu0 %v7087
    %7735 = vmatpush.bf16.msra.mxu0 %v7083
    %7736 = vmatpush.bf16.msra.mxu0 %v7079
    %7737 = vmatpush.bf16.msra.mxu0 %v7075
    %7738 = vmatmul.bf16.gmra.mxu0 %v5830
    %v7739 = vpop.f32.mrf.mxu0
    %v7740 = vadd.f32 %v7716, %v7739
    %v7741 = vpop.f32.mrf.mxu0
    %v7742 = vadd.f32 %v7718, %v7741
    %7743 = vmatmul.bf16.gmra.mxu0 %v5838
    %v7744 = vpop.f32.mrf.mxu0
    %v7745 = vadd.f32 %v7721, %v7744
    %v7746 = vpop.f32.mrf.mxu0
    %v7747 = vadd.f32 %v7723, %v7746
    %7748 = vmatmul.bf16.gmra.mxu0 %v5846
    %v7749 = vpop.f32.mrf.mxu0
    %v7750 = vadd.f32 %v7726, %v7749
    %v7751 = vpop.f32.mrf.mxu0
    %v7752 = vadd.f32 %v7728, %v7751
    %7753 = vdwg.mxu0
    %7754 = vmatpush.bf16.msra.mxu0 %v7135
    %7755 = vmatpush.bf16.msra.mxu0 %v7131
    %7756 = vmatpush.bf16.msra.mxu0 %v7127
    %7757 = vmatpush.bf16.msra.mxu0 %v7123
    %7758 = vmatpush.bf16.msra.mxu0 %v7119
    %7759 = vmatpush.bf16.msra.mxu0 %v7115
    %7760 = vmatpush.bf16.msra.mxu0 %v7111
    %7761 = vmatpush.bf16.msra.mxu0 %v7107
    %7762 = vmatmul.bf16.gmra.mxu0 %v5831
    %v7763 = vpop.f32.mrf.mxu0
    %v7764 = vadd.f32 %v7740, %v7763
    %v7765 = vpop.f32.mrf.mxu0
    %v7766 = vadd.f32 %v7742, %v7765
    %7767 = vmatmul.bf16.gmra.mxu0 %v5839
    %v7768 = vpop.f32.mrf.mxu0
    %v7769 = vadd.f32 %v7745, %v7768
    %v7770 = vpop.f32.mrf.mxu0
    %v7771 = vadd.f32 %v7747, %v7770
    %7772 = vmatmul.bf16.gmra.mxu0 %v5847
    %v7773 = vpop.f32.mrf.mxu0
    %v7774 = vadd.f32 %v7750, %v7773
    %v7775 = vpop.f32.mrf.mxu0
    %v7776 = vadd.f32 %v7752, %v7775
    %7777 = vdwg.mxu0
    %7778 = vmatpush.bf16.msra.mxu0 %v6912
    %7779 = vmatpush.bf16.msra.mxu0 %v6908
    %7780 = vmatpush.bf16.msra.mxu0 %v6904
    %7781 = vmatpush.bf16.msra.mxu0 %v6900
    %7782 = vmatpush.bf16.msra.mxu0 %v6896
    %7783 = vmatpush.bf16.msra.mxu0 %v6892
    %7784 = vmatpush.bf16.msra.mxu0 %v6888
    %7785 = vmatpush.bf16.msra.mxu0 %v6884
    %7786 = vmatmul.bf16.gmra.mxu0 %v5824
    %v7787 = vpop.f32.mrf.mxu0
    %v7788 = vadd.f32 %v6108, %v7787
    %v7789 = vpop.f32.mrf.mxu0
    %v7790 = vadd.f32 %v6108, %v7789
    %7791 = vmatmul.bf16.gmra.mxu0 %v5832
    %v7792 = vpop.f32.mrf.mxu0
    %v7793 = vadd.f32 %v6108, %v7792
    %v7794 = vpop.f32.mrf.mxu0
    %v7795 = vadd.f32 %v6108, %v7794
    %7796 = vmatmul.bf16.gmra.mxu0 %v5840
    %v7797 = vpop.f32.mrf.mxu0
    %v7798 = vadd.f32 %v6108, %v7797
    %v7799 = vpop.f32.mrf.mxu0
    %v7800 = vadd.f32 %v6108, %v7799
    %7801 = vdwg.mxu0
    %7802 = vmatpush.bf16.msra.mxu0 %v6944
    %7803 = vmatpush.bf16.msra.mxu0 %v6940
    %7804 = vmatpush.bf16.msra.mxu0 %v6936
    %7805 = vmatpush.bf16.msra.mxu0 %v6932
    %7806 = vmatpush.bf16.msra.mxu0 %v6928
    %7807 = vmatpush.bf16.msra.mxu0 %v6924
    %7808 = vmatpush.bf16.msra.mxu0 %v6920
    %7809 = vmatpush.bf16.msra.mxu0 %v6916
    %7810 = vmatmul.bf16.gmra.mxu0 %v5825
    %v7811 = vpop.f32.mrf.mxu0
    %v7812 = vadd.f32 %v7788, %v7811
    %v7813 = vpop.f32.mrf.mxu0
    %v7814 = vadd.f32 %v7790, %v7813
    %7815 = vmatmul.bf16.gmra.mxu0 %v5833
    %v7816 = vpop.f32.mrf.mxu0
    %v7817 = vadd.f32 %v7793, %v7816
    %v7818 = vpop.f32.mrf.mxu0
    %v7819 = vadd.f32 %v7795, %v7818
    %7820 = vmatmul.bf16.gmra.mxu0 %v5841
    %v7821 = vpop.f32.mrf.mxu0
    %v7822 = vadd.f32 %v7798, %v7821
    %v7823 = vpop.f32.mrf.mxu0
    %v7824 = vadd.f32 %v7800, %v7823
    %7825 = vdwg.mxu0
    %7826 = vmatpush.bf16.msra.mxu0 %v6976
    %7827 = vmatpush.bf16.msra.mxu0 %v6972
    %7828 = vmatpush.bf16.msra.mxu0 %v6968
    %7829 = vmatpush.bf16.msra.mxu0 %v6964
    %7830 = vmatpush.bf16.msra.mxu0 %v6960
    %7831 = vmatpush.bf16.msra.mxu0 %v6956
    %7832 = vmatpush.bf16.msra.mxu0 %v6952
    %7833 = vmatpush.bf16.msra.mxu0 %v6948
    %7834 = vmatmul.bf16.gmra.mxu0 %v5826
    %v7835 = vpop.f32.mrf.mxu0
    %v7836 = vadd.f32 %v7812, %v7835
    %v7837 = vpop.f32.mrf.mxu0
    %v7838 = vadd.f32 %v7814, %v7837
    %7839 = vmatmul.bf16.gmra.mxu0 %v5834
    %v7840 = vpop.f32.mrf.mxu0
    %v7841 = vadd.f32 %v7817, %v7840
    %v7842 = vpop.f32.mrf.mxu0
    %v7843 = vadd.f32 %v7819, %v7842
    %7844 = vmatmul.bf16.gmra.mxu0 %v5842
    %v7845 = vpop.f32.mrf.mxu0
    %v7846 = vadd.f32 %v7822, %v7845
    %v7847 = vpop.f32.mrf.mxu0
    %v7848 = vadd.f32 %v7824, %v7847
    %7849 = vdwg.mxu0
    %7850 = vmatpush.bf16.msra.mxu0 %v7008
    %7851 = vmatpush.bf16.msra.mxu0 %v7004
    %7852 = vmatpush.bf16.msra.mxu0 %v7000
    %7853 = vmatpush.bf16.msra.mxu0 %v6996
    %7854 = vmatpush.bf16.msra.mxu0 %v6992
    %7855 = vmatpush.bf16.msra.mxu0 %v6988
    %7856 = vmatpush.bf16.msra.mxu0 %v6984
    %7857 = vmatpush.bf16.msra.mxu0 %v6980
    %7858 = vmatmul.bf16.gmra.mxu0 %v5827
    %v7859 = vpop.f32.mrf.mxu0
    %v7860 = vadd.f32 %v7836, %v7859
    %v7861 = vpop.f32.mrf.mxu0
    %v7862 = vadd.f32 %v7838, %v7861
    %7863 = vmatmul.bf16.gmra.mxu0 %v5835
    %v7864 = vpop.f32.mrf.mxu0
    %v7865 = vadd.f32 %v7841, %v7864
    %v7866 = vpop.f32.mrf.mxu0
    %v7867 = vadd.f32 %v7843, %v7866
    %7868 = vmatmul.bf16.gmra.mxu0 %v5843
    %v7869 = vpop.f32.mrf.mxu0
    %v7870 = vadd.f32 %v7846, %v7869
    %v7871 = vpop.f32.mrf.mxu0
    %v7872 = vadd.f32 %v7848, %v7871
    %7873 = vdwg.mxu0
    %7874 = vmatpush.bf16.msra.mxu0 %v7040
    %7875 = vmatpush.bf16.msra.mxu0 %v7036
    %7876 = vmatpush.bf16.msra.mxu0 %v7032
    %7877 = vmatpush.bf16.msra.mxu0 %v7028
    %7878 = vmatpush.bf16.msra.mxu0 %v7024
    %7879 = vmatpush.bf16.msra.mxu0 %v7020
    %7880 = vmatpush.bf16.msra.mxu0 %v7016
    %7881 = vmatpush.bf16.msra.mxu0 %v7012
    %7882 = vmatmul.bf16.gmra.mxu0 %v5828
    %v7883 = vpop.f32.mrf.mxu0
    %v7884 = vadd.f32 %v7860, %v7883
    %v7885 = vpop.f32.mrf.mxu0
    %v7886 = vadd.f32 %v7862, %v7885
    %7887 = vmatmul.bf16.gmra.mxu0 %v5836
    %v7888 = vpop.f32.mrf.mxu0
    %v7889 = vadd.f32 %v7865, %v7888
    %v7890 = vpop.f32.mrf.mxu0
    %v7891 = vadd.f32 %v7867, %v7890
    %7892 = vmatmul.bf16.gmra.mxu0 %v5844
    %v7893 = vpop.f32.mrf.mxu0
    %v7894 = vadd.f32 %v7870, %v7893
    %v7895 = vpop.f32.mrf.mxu0
    %v7896 = vadd.f32 %v7872, %v7895
    %7897 = vdwg.mxu0
    %7898 = vmatpush.bf16.msra.mxu0 %v7072
    %7899 = vmatpush.bf16.msra.mxu0 %v7068
    %7900 = vmatpush.bf16.msra.mxu0 %v7064
    %7901 = vmatpush.bf16.msra.mxu0 %v7060
    %7902 = vmatpush.bf16.msra.mxu0 %v7056
    %7903 = vmatpush.bf16.msra.mxu0 %v7052
    %7904 = vmatpush.bf16.msra.mxu0 %v7048
    %7905 = vmatpush.bf16.msra.mxu0 %v7044
    %7906 = vmatmul.bf16.gmra.mxu0 %v5829
    %v7907 = vpop.f32.mrf.mxu0
    %v7908 = vadd.f32 %v7884, %v7907
    %v7909 = vpop.f32.mrf.mxu0
    %v7910 = vadd.f32 %v7886, %v7909
    %7911 = vmatmul.bf16.gmra.mxu0 %v5837
    %v7912 = vpop.f32.mrf.mxu0
    %v7913 = vadd.f32 %v7889, %v7912
    %v7914 = vpop.f32.mrf.mxu0
    %v7915 = vadd.f32 %v7891, %v7914
    %7916 = vmatmul.bf16.gmra.mxu0 %v5845
    %v7917 = vpop.f32.mrf.mxu0
    %v7918 = vadd.f32 %v7894, %v7917
    %v7919 = vpop.f32.mrf.mxu0
    %v7920 = vadd.f32 %v7896, %v7919
    %7921 = vdwg.mxu0
    %7922 = vmatpush.bf16.msra.mxu0 %v7104
    %7923 = vmatpush.bf16.msra.mxu0 %v7100
    %7924 = vmatpush.bf16.msra.mxu0 %v7096
    %7925 = vmatpush.bf16.msra.mxu0 %v7092
    %7926 = vmatpush.bf16.msra.mxu0 %v7088
    %7927 = vmatpush.bf16.msra.mxu0 %v7084
    %7928 = vmatpush.bf16.msra.mxu0 %v7080
    %7929 = vmatpush.bf16.msra.mxu0 %v7076
    %7930 = vmatmul.bf16.gmra.mxu0 %v5830
    %v7931 = vpop.f32.mrf.mxu0
    %v7932 = vadd.f32 %v7908, %v7931
    %v7933 = vpop.f32.mrf.mxu0
    %v7934 = vadd.f32 %v7910, %v7933
    %7935 = vmatmul.bf16.gmra.mxu0 %v5838
    %v7936 = vpop.f32.mrf.mxu0
    %v7937 = vadd.f32 %v7913, %v7936
    %v7938 = vpop.f32.mrf.mxu0
    %v7939 = vadd.f32 %v7915, %v7938
    %7940 = vmatmul.bf16.gmra.mxu0 %v5846
    %v7941 = vpop.f32.mrf.mxu0
    %v7942 = vadd.f32 %v7918, %v7941
    %v7943 = vpop.f32.mrf.mxu0
    %v7944 = vadd.f32 %v7920, %v7943
    %7945 = vdwg.mxu0
    %7946 = vmatpush.bf16.msra.mxu0 %v7136
    %7947 = vmatpush.bf16.msra.mxu0 %v7132
    %7948 = vmatpush.bf16.msra.mxu0 %v7128
    %7949 = vmatpush.bf16.msra.mxu0 %v7124
    %7950 = vmatpush.bf16.msra.mxu0 %v7120
    %7951 = vmatpush.bf16.msra.mxu0 %v7116
    %7952 = vmatpush.bf16.msra.mxu0 %v7112
    %7953 = vmatpush.bf16.msra.mxu0 %v7108
    %7954 = vmatmul.bf16.gmra.mxu0 %v5831
    %v7955 = vpop.f32.mrf.mxu0
    %v7956 = vadd.f32 %v7932, %v7955
    %v7957 = vpop.f32.mrf.mxu0
    %v7958 = vadd.f32 %v7934, %v7957
    %7959 = vmatmul.bf16.gmra.mxu0 %v5839
    %v7960 = vpop.f32.mrf.mxu0
    %v7961 = vadd.f32 %v7937, %v7960
    %v7962 = vpop.f32.mrf.mxu0
    %v7963 = vadd.f32 %v7939, %v7962
    %7964 = vmatmul.bf16.gmra.mxu0 %v5847
    %v7965 = vpop.f32.mrf.mxu0
    %v7966 = vadd.f32 %v7942, %v7965
    %v7967 = vpop.f32.mrf.mxu0
    %v7968 = vadd.f32 %v7944, %v7967
    %7969 = vdwg.mxu0
    %7970 = vmatpush.bf16.msra.mxu0 %v6913
    %7971 = vmatpush.bf16.msra.mxu0 %v6909
    %7972 = vmatpush.bf16.msra.mxu0 %v6905
    %7973 = vmatpush.bf16.msra.mxu0 %v6901
    %7974 = vmatpush.bf16.msra.mxu0 %v6897
    %7975 = vmatpush.bf16.msra.mxu0 %v6893
    %7976 = vmatpush.bf16.msra.mxu0 %v6889
    %7977 = vmatpush.bf16.msra.mxu0 %v6885
    %7978 = vmatmul.bf16.gmra.mxu0 %v5824
    %v7979 = vpop.f32.mrf.mxu0
    %v7980 = vadd.f32 %v6109, %v7979
    %v7981 = vpop.f32.mrf.mxu0
    %v7982 = vadd.f32 %v6109, %v7981
    %7983 = vmatmul.bf16.gmra.mxu0 %v5832
    %v7984 = vpop.f32.mrf.mxu0
    %v7985 = vadd.f32 %v6109, %v7984
    %v7986 = vpop.f32.mrf.mxu0
    %v7987 = vadd.f32 %v6109, %v7986
    %7988 = vmatmul.bf16.gmra.mxu0 %v5840
    %v7989 = vpop.f32.mrf.mxu0
    %v7990 = vadd.f32 %v6109, %v7989
    %v7991 = vpop.f32.mrf.mxu0
    %v7992 = vadd.f32 %v6109, %v7991
    %7993 = vdwg.mxu0
    %7994 = vmatpush.bf16.msra.mxu0 %v6945
    %7995 = vmatpush.bf16.msra.mxu0 %v6941
    %7996 = vmatpush.bf16.msra.mxu0 %v6937
    %7997 = vmatpush.bf16.msra.mxu0 %v6933
    %7998 = vmatpush.bf16.msra.mxu0 %v6929
    %7999 = vmatpush.bf16.msra.mxu0 %v6925
    %8000 = vmatpush.bf16.msra.mxu0 %v6921
    %8001 = vmatpush.bf16.msra.mxu0 %v6917
    %8002 = vmatmul.bf16.gmra.mxu0 %v5825
    %v8003 = vpop.f32.mrf.mxu0
    %v8004 = vadd.f32 %v7980, %v8003
    %v8005 = vpop.f32.mrf.mxu0
    %v8006 = vadd.f32 %v7982, %v8005
    %8007 = vmatmul.bf16.gmra.mxu0 %v5833
    %v8008 = vpop.f32.mrf.mxu0
    %v8009 = vadd.f32 %v7985, %v8008
    %v8010 = vpop.f32.mrf.mxu0
    %v8011 = vadd.f32 %v7987, %v8010
    %8012 = vmatmul.bf16.gmra.mxu0 %v5841
    %v8013 = vpop.f32.mrf.mxu0
    %v8014 = vadd.f32 %v7990, %v8013
    %v8015 = vpop.f32.mrf.mxu0
    %v8016 = vadd.f32 %v7992, %v8015
    %8017 = vdwg.mxu0
    %8018 = vmatpush.bf16.msra.mxu0 %v6977
    %8019 = vmatpush.bf16.msra.mxu0 %v6973
    %8020 = vmatpush.bf16.msra.mxu0 %v6969
    %8021 = vmatpush.bf16.msra.mxu0 %v6965
    %8022 = vmatpush.bf16.msra.mxu0 %v6961
    %8023 = vmatpush.bf16.msra.mxu0 %v6957
    %8024 = vmatpush.bf16.msra.mxu0 %v6953
    %8025 = vmatpush.bf16.msra.mxu0 %v6949
    %8026 = vmatmul.bf16.gmra.mxu0 %v5826
    %v8027 = vpop.f32.mrf.mxu0
    %v8028 = vadd.f32 %v8004, %v8027
    %v8029 = vpop.f32.mrf.mxu0
    %v8030 = vadd.f32 %v8006, %v8029
    %8031 = vmatmul.bf16.gmra.mxu0 %v5834
    %v8032 = vpop.f32.mrf.mxu0
    %v8033 = vadd.f32 %v8009, %v8032
    %v8034 = vpop.f32.mrf.mxu0
    %v8035 = vadd.f32 %v8011, %v8034
    %8036 = vmatmul.bf16.gmra.mxu0 %v5842
    %v8037 = vpop.f32.mrf.mxu0
    %v8038 = vadd.f32 %v8014, %v8037
    %v8039 = vpop.f32.mrf.mxu0
    %v8040 = vadd.f32 %v8016, %v8039
    %8041 = vdwg.mxu0
    %8042 = vmatpush.bf16.msra.mxu0 %v7009
    %8043 = vmatpush.bf16.msra.mxu0 %v7005
    %8044 = vmatpush.bf16.msra.mxu0 %v7001
    %8045 = vmatpush.bf16.msra.mxu0 %v6997
    %8046 = vmatpush.bf16.msra.mxu0 %v6993
    %8047 = vmatpush.bf16.msra.mxu0 %v6989
    %8048 = vmatpush.bf16.msra.mxu0 %v6985
    %8049 = vmatpush.bf16.msra.mxu0 %v6981
    %8050 = vmatmul.bf16.gmra.mxu0 %v5827
    %v8051 = vpop.f32.mrf.mxu0
    %v8052 = vadd.f32 %v8028, %v8051
    %v8053 = vpop.f32.mrf.mxu0
    %v8054 = vadd.f32 %v8030, %v8053
    %8055 = vmatmul.bf16.gmra.mxu0 %v5835
    %v8056 = vpop.f32.mrf.mxu0
    %v8057 = vadd.f32 %v8033, %v8056
    %v8058 = vpop.f32.mrf.mxu0
    %v8059 = vadd.f32 %v8035, %v8058
    %8060 = vmatmul.bf16.gmra.mxu0 %v5843
    %v8061 = vpop.f32.mrf.mxu0
    %v8062 = vadd.f32 %v8038, %v8061
    %v8063 = vpop.f32.mrf.mxu0
    %v8064 = vadd.f32 %v8040, %v8063
    %8065 = vdwg.mxu0
    %8066 = vmatpush.bf16.msra.mxu0 %v7041
    %8067 = vmatpush.bf16.msra.mxu0 %v7037
    %8068 = vmatpush.bf16.msra.mxu0 %v7033
    %8069 = vmatpush.bf16.msra.mxu0 %v7029
    %8070 = vmatpush.bf16.msra.mxu0 %v7025
    %8071 = vmatpush.bf16.msra.mxu0 %v7021
    %8072 = vmatpush.bf16.msra.mxu0 %v7017
    %8073 = vmatpush.bf16.msra.mxu0 %v7013
    %8074 = vmatmul.bf16.gmra.mxu0 %v5828
    %v8075 = vpop.f32.mrf.mxu0
    %v8076 = vadd.f32 %v8052, %v8075
    %v8077 = vpop.f32.mrf.mxu0
    %v8078 = vadd.f32 %v8054, %v8077
    %8079 = vmatmul.bf16.gmra.mxu0 %v5836
    %v8080 = vpop.f32.mrf.mxu0
    %v8081 = vadd.f32 %v8057, %v8080
    %v8082 = vpop.f32.mrf.mxu0
    %v8083 = vadd.f32 %v8059, %v8082
    %8084 = vmatmul.bf16.gmra.mxu0 %v5844
    %v8085 = vpop.f32.mrf.mxu0
    %v8086 = vadd.f32 %v8062, %v8085
    %v8087 = vpop.f32.mrf.mxu0
    %v8088 = vadd.f32 %v8064, %v8087
    %8089 = vdwg.mxu0
    %8090 = vmatpush.bf16.msra.mxu0 %v7073
    %8091 = vmatpush.bf16.msra.mxu0 %v7069
    %8092 = vmatpush.bf16.msra.mxu0 %v7065
    %8093 = vmatpush.bf16.msra.mxu0 %v7061
    %8094 = vmatpush.bf16.msra.mxu0 %v7057
    %8095 = vmatpush.bf16.msra.mxu0 %v7053
    %8096 = vmatpush.bf16.msra.mxu0 %v7049
    %8097 = vmatpush.bf16.msra.mxu0 %v7045
    %8098 = vmatmul.bf16.gmra.mxu0 %v5829
    %v8099 = vpop.f32.mrf.mxu0
    %v8100 = vadd.f32 %v8076, %v8099
    %v8101 = vpop.f32.mrf.mxu0
    %v8102 = vadd.f32 %v8078, %v8101
    %8103 = vmatmul.bf16.gmra.mxu0 %v5837
    %v8104 = vpop.f32.mrf.mxu0
    %v8105 = vadd.f32 %v8081, %v8104
    %v8106 = vpop.f32.mrf.mxu0
    %v8107 = vadd.f32 %v8083, %v8106
    %8108 = vmatmul.bf16.gmra.mxu0 %v5845
    %v8109 = vpop.f32.mrf.mxu0
    %v8110 = vadd.f32 %v8086, %v8109
    %v8111 = vpop.f32.mrf.mxu0
    %v8112 = vadd.f32 %v8088, %v8111
    %8113 = vdwg.mxu0
    %8114 = vmatpush.bf16.msra.mxu0 %v7105
    %8115 = vmatpush.bf16.msra.mxu0 %v7101
    %8116 = vmatpush.bf16.msra.mxu0 %v7097
    %8117 = vmatpush.bf16.msra.mxu0 %v7093
    %8118 = vmatpush.bf16.msra.mxu0 %v7089
    %8119 = vmatpush.bf16.msra.mxu0 %v7085
    %8120 = vmatpush.bf16.msra.mxu0 %v7081
    %8121 = vmatpush.bf16.msra.mxu0 %v7077
    %8122 = vmatmul.bf16.gmra.mxu0 %v5830
    %v8123 = vpop.f32.mrf.mxu0
    %v8124 = vadd.f32 %v8100, %v8123
    %v8125 = vpop.f32.mrf.mxu0
    %v8126 = vadd.f32 %v8102, %v8125
    %8127 = vmatmul.bf16.gmra.mxu0 %v5838
    %v8128 = vpop.f32.mrf.mxu0
    %v8129 = vadd.f32 %v8105, %v8128
    %v8130 = vpop.f32.mrf.mxu0
    %v8131 = vadd.f32 %v8107, %v8130
    %8132 = vmatmul.bf16.gmra.mxu0 %v5846
    %v8133 = vpop.f32.mrf.mxu0
    %v8134 = vadd.f32 %v8110, %v8133
    %v8135 = vpop.f32.mrf.mxu0
    %v8136 = vadd.f32 %v8112, %v8135
    %8137 = vdwg.mxu0
    %8138 = vmatpush.bf16.msra.mxu0 %v7137
    %8139 = vmatpush.bf16.msra.mxu0 %v7133
    %8140 = vmatpush.bf16.msra.mxu0 %v7129
    %8141 = vmatpush.bf16.msra.mxu0 %v7125
    %8142 = vmatpush.bf16.msra.mxu0 %v7121
    %8143 = vmatpush.bf16.msra.mxu0 %v7117
    %8144 = vmatpush.bf16.msra.mxu0 %v7113
    %8145 = vmatpush.bf16.msra.mxu0 %v7109
    %8146 = vmatmul.bf16.gmra.mxu0 %v5831
    %v8147 = vpop.f32.mrf.mxu0
    %v8148 = vadd.f32 %v8124, %v8147
    %v8149 = vpop.f32.mrf.mxu0
    %v8150 = vadd.f32 %v8126, %v8149
    %8151 = vmatmul.bf16.gmra.mxu0 %v5839
    %v8152 = vpop.f32.mrf.mxu0
    %v8153 = vadd.f32 %v8129, %v8152
    %v8154 = vpop.f32.mrf.mxu0
    %v8155 = vadd.f32 %v8131, %v8154
    %8156 = vmatmul.bf16.gmra.mxu0 %v5847
    %v8157 = vpop.f32.mrf.mxu0
    %v8158 = vadd.f32 %v8134, %v8157
    %v8159 = vpop.f32.mrf.mxu0
    %v8160 = vadd.f32 %v8136, %v8159
    %8161 = vdwg.mxu0
    %v8162 = vmax.f32 %v7572, 0.0
    %v8163 = vmax.f32 %v7764, 0.0
    %v8164 = vmax.f32 %v7956, 0.0
    %v8165 = vmax.f32 %v8148, 0.0
    %v8166 = vmax.f32 %v7574, 0.0
    %v8167 = vmax.f32 %v7766, 0.0
    %v8168 = vmax.f32 %v7958, 0.0
    %v8169 = vmax.f32 %v8150, 0.0
    %v8170 = vmax.f32 %v7577, 0.0
    %v8171 = vmax.f32 %v7769, 0.0
    %v8172 = vmax.f32 %v7961, 0.0
    %v8173 = vmax.f32 %v8153, 0.0
    %v8174 = vmax.f32 %v7579, 0.0
    %v8175 = vmax.f32 %v7771, 0.0
    %v8176 = vmax.f32 %v7963, 0.0
    %v8177 = vmax.f32 %v8155, 0.0
    %v8178 = vmax.f32 %v7582, 0.0
    %v8179 = vmax.f32 %v7774, 0.0
    %v8180 = vmax.f32 %v7966, 0.0
    %v8181 = vmax.f32 %v8158, 0.0
    %v8182 = vmax.f32 %v7584, 0.0
    %v8183 = vmax.f32 %v7776, 0.0
    %v8184 = vmax.f32 %v7968, 0.0
    %v8185 = vmax.f32 %v8160, 0.0
    %v8186 = vmul.f32 %v8162, %v8178
    %v8187 = vmul.f32 %v8163, %v8179
    %v8188 = vmul.f32 %v8164, %v8180
    %v8189 = vmul.f32 %v8165, %v8181
    %v8190 = vmul.f32 %v8166, %v8182
    %v8191 = vmul.f32 %v8167, %v8183
    %v8192 = vmul.f32 %v8168, %v8184
    %v8193 = vmul.f32 %v8169, %v8185
    %v8194 = vadd.f32 %v8186, %v8187
    %v8195 = vadd.f32 %v8194, %v8188
    %v8196 = vadd.f32 %v8195, %v8189
    %8197 = vadd.xlane.f32.xlu0 %v8196
    %v8198 = vpop.xlane.xlu0 %8197
    %v8199 = vadd.f32 %v8190, %v8191
    %v8200 = vadd.f32 %v8199, %v8192
    %v8201 = vadd.f32 %v8200, %v8193
    %8202 = vadd.xlane.f32.xlu0 %v8201
    %v8203 = vpop.xlane.xlu0 %8202
    %v8204 = vmul.f32 %v8170, %v8178
    %v8205 = vmul.f32 %v8171, %v8179
    %v8206 = vmul.f32 %v8172, %v8180
    %v8207 = vmul.f32 %v8173, %v8181
    %v8208 = vmul.f32 %v8174, %v8182
    %v8209 = vmul.f32 %v8175, %v8183
    %v8210 = vmul.f32 %v8176, %v8184
    %v8211 = vmul.f32 %v8177, %v8185
    %v8212 = vadd.f32 %v8204, %v8205
    %v8213 = vadd.f32 %v8212, %v8206
    %v8214 = vadd.f32 %v8213, %v8207
    %8215 = vadd.xlane.f32.xlu0 %v8214
    %v8216 = vpop.xlane.xlu0 %8215
    %v8217 = vadd.f32 %v8208, %v8209
    %v8218 = vadd.f32 %v8217, %v8210
    %v8219 = vadd.f32 %v8218, %v8211
    %8220 = vadd.xlane.f32.xlu0 %v8219
    %v8221 = vpop.xlane.xlu0 %8220
    %v8222 = vmul.f32 %v8162, %v8162
    %v8223 = vmul.f32 %v8163, %v8163
    %v8224 = vmul.f32 %v8164, %v8164
    %v8225 = vmul.f32 %v8165, %v8165
    %v8226 = vmul.f32 %v8166, %v8166
    %v8227 = vmul.f32 %v8167, %v8167
    %v8228 = vmul.f32 %v8168, %v8168
    %v8229 = vmul.f32 %v8169, %v8169
    %v8230 = vadd.f32 %v8222, %v8223
    %v8231 = vadd.f32 %v8230, %v8224
    %v8232 = vadd.f32 %v8231, %v8225
    %8233 = vadd.xlane.f32.xlu0 %v8232
    %v8234 = vpop.xlane.xlu0 %8233
    %v8235 = vadd.f32 %v8226, %v8227
    %v8236 = vadd.f32 %v8235, %v8228
    %v8237 = vadd.f32 %v8236, %v8229
    %8238 = vadd.xlane.f32.xlu0 %v8237
    %v8239 = vpop.xlane.xlu0 %8238
    %v8240 = vmul.f32 %v8170, %v8170
    %v8241 = vmul.f32 %v8171, %v8171
    %v8242 = vmul.f32 %v8172, %v8172
    %v8243 = vmul.f32 %v8173, %v8173
    %v8244 = vmul.f32 %v8174, %v8174
    %v8245 = vmul.f32 %v8175, %v8175
    %v8246 = vmul.f32 %v8176, %v8176
    %v8247 = vmul.f32 %v8177, %v8177
    %v8248 = vadd.f32 %v8240, %v8241
    %v8249 = vadd.f32 %v8248, %v8242
    %v8250 = vadd.f32 %v8249, %v8243
    %8251 = vadd.xlane.f32.xlu0 %v8250
    %v8252 = vpop.xlane.xlu0 %8251
    %v8253 = vadd.f32 %v8244, %v8245
    %v8254 = vadd.f32 %v8253, %v8246
    %v8255 = vadd.f32 %v8254, %v8247
    %8256 = vadd.xlane.f32.xlu0 %v8255
    %v8257 = vpop.xlane.xlu0 %8256
    %v8258 = vmul.f32 %v8178, %v8178
    %v8259 = vmul.f32 %v8179, %v8179
    %v8260 = vmul.f32 %v8180, %v8180
    %v8261 = vmul.f32 %v8181, %v8181
    %v8262 = vmul.f32 %v8182, %v8182
    %v8263 = vmul.f32 %v8183, %v8183
    %v8264 = vmul.f32 %v8184, %v8184
    %v8265 = vmul.f32 %v8185, %v8185
    %v8266 = vadd.f32 %v8258, %v8259
    %v8267 = vadd.f32 %v8266, %v8260
    %v8268 = vadd.f32 %v8267, %v8261
    %8269 = vadd.xlane.f32.xlu0 %v8268
    %v8270 = vpop.xlane.xlu0 %8269
    %v8271 = vadd.f32 %v8262, %v8263
    %v8272 = vadd.f32 %v8271, %v8264
    %v8273 = vadd.f32 %v8272, %v8265
    %8274 = vadd.xlane.f32.xlu0 %v8273
    %v8275 = vpop.xlane.xlu0 %8274
    %v8276 = vmul.f32 %v8234, %v8270
    %v8277 = vmul.f32 %v8239, %v8275
    %v8278 = vmax.f32 %v8276, 1e-16
    %v8279 = vmax.f32 %v8277, 1e-16
    %v8280 = vrsqrt.pop %v8278
    %v8281 = vmul.f32 %v8280, %v8278
    %v8282 = vmul.f32 %v8281, %v8280
    %v8283 = vmul.f32 0.5, %v8282
    %v8284 = vsub.f32 1.5, %v8283
    %v8285 = vmul.f32 %v8280, %v8284
    %vm8286 = vweird.f32 %v8278
    %vm8287 = vweird.f32 %v8280
    %vm8288 = vmor %vm8286, %vm8287
    %v8289 = vsel %vm8288, %v8280, %v8285
    %v8290 = vrsqrt.pop %v8279
    %v8291 = vmul.f32 %v8290, %v8279
    %v8292 = vmul.f32 %v8291, %v8290
    %v8293 = vmul.f32 0.5, %v8292
    %v8294 = vsub.f32 1.5, %v8293
    %v8295 = vmul.f32 %v8290, %v8294
    %vm8296 = vweird.f32 %v8279
    %vm8297 = vweird.f32 %v8290
    %vm8298 = vmor %vm8296, %vm8297
    %v8299 = vsel %vm8298, %v8290, %v8295
    %v8300 = vmul.f32 %v8198, %v8289
    %v8301 = vmul.f32 %v8203, %v8299
    %v8302 = vmul.f32 %v8252, %v8270
    %v8303 = vmul.f32 %v8257, %v8275
    %v8304 = vmax.f32 %v8302, 1e-16
    %v8305 = vmax.f32 %v8303, 1e-16
    %v8306 = vrsqrt.pop %v8304
    %v8307 = vmul.f32 %v8306, %v8304
    %v8308 = vmul.f32 %v8307, %v8306
    %v8309 = vmul.f32 0.5, %v8308
    %v8310 = vsub.f32 1.5, %v8309
    %v8311 = vmul.f32 %v8306, %v8310
    %vm8312 = vweird.f32 %v8304
    %vm8313 = vweird.f32 %v8306
    %vm8314 = vmor %vm8312, %vm8313
    %v8315 = vsel %vm8314, %v8306, %v8311
    %v8316 = vrsqrt.pop %v8305
    %v8317 = vmul.f32 %v8316, %v8305
    %v8318 = vmul.f32 %v8317, %v8316
    %v8319 = vmul.f32 0.5, %v8318
    %v8320 = vsub.f32 1.5, %v8319
    %v8321 = vmul.f32 %v8316, %v8320
    %vm8322 = vweird.f32 %v8305
    %vm8323 = vweird.f32 %v8316
    %vm8324 = vmor %vm8322, %vm8323
    %v8325 = vsel %vm8324, %v8316, %v8321
    %v8326 = vmul.f32 %v8216, %v8315
    %v8327 = vmul.f32 %v8221, %v8325
    %8329 = vset.pattern.permute.xlu0 0
    %8330 = vperm.xlu0 %8329, %v8300
    %v8331 = vpop.permute.xlu0 %8330
    %8334 = vset.pattern.permute.xlu0 0
    %8335 = vperm.xlu0 %8334, %v8301
    %v8336 = vpop.permute.xlu0 %8335
    %8339 = vset.pattern.permute.xlu0 0
    %8340 = vperm.xlu0 %8339, %v8326
    %v8341 = vpop.permute.xlu0 %8340
    %8344 = vset.pattern.permute.xlu0 0
    %8345 = vperm.xlu0 %8344, %v8327
    %v8346 = vpop.permute.xlu0 %8345
    %8348 = vst [vmem:[%s9] sm:$0xff] %v8331
    %8349 = vst [vmem:[%s9 + $0x8] sm:$0xff] %v8336
    %8350 = vst [vmem:[%s9 + $0x10] sm:$0xff] %v8341
    %8351 = vst [vmem:[%s9 + $0x18] sm:$0xff] %v8346
    // Predicated region
    $region70: #{model_forward.1} parent=1 // pred_check
      _
    $region71: #{model_forward.1} parent=1 // pred_check_branch
      %8353 = sbr.rel (0) target = $region73
    $region72: #{model_forward.1} parent=1 // pred_region
      _
    $region73: #{model_forward.1} parent=1 // pred_fallthru
      _
    // Predicated region
    $region74: #{model_forward.1} parent=1 // pred_check
      _
    $region75: #{model_forward.1} parent=1 // pred_check_branch
      %8355 = sbr.rel (0) target = $region77
    $region76: #{model_forward.1} parent=1 // pred_region
      _
    $region77: #{model_forward.1} parent=1 // pred_fallthru
      _
    %8356 = vsyncpa [#allocation3], 1
    %8357 = vsyncpa [#allocation5], 1
    %8358 = vsyncpa [#allocation8], 1
    %8359 = vsyncpa [#allocation11], 1
    %8360 = vsyncpa [#allocation14], 1

</llo_original>
